<compile_context>
chip_gen: v7x
topology: tpu7x:2x2x1
jax: 0.10.0
libtpu: 0.0.40
codegen_flags: <defaults>
</compile_context>

<pallas_src>
import functools

import jax
import jax.numpy as jnp
from jax import lax
from jax.experimental import pallas as pl
from jax.experimental.pallas import tpu as pltpu


# ----------------------------- Pallas kernel -------------------------------
def lstm_attention_kernel(
    gx_ref,    # (T, Nb, 4H)  precomputed x-projection for lstm1 (bias folded in)
    img_ref,   # (L, Nb, H)   image features, region-major so img_ref[l] is one tile
    whh1_ref,  # (H, 4H)      lstm1 hidden->gates (transposed)
    w2_ref,    # (3H, 4H)     lstm2 weights [W_ih2(v_att); W_ih2(h1); W_hh2]^T
    b2_ref,    # (Nb, 4H)     lstm2 bias (b_ih2+b_hh2), pre-broadcast over batch
    out_ref,   # (T, Nb, H)   h2 per timestep (time-major)
):
    T, Nb, H = out_ref.shape
    L = img_ref.shape[0]

    def gate_nonlin(gates, c_prev):
        i = jax.nn.sigmoid(gates[:, 0 * H:1 * H])
        f = jax.nn.sigmoid(gates[:, 1 * H:2 * H])
        g = jnp.tanh(gates[:, 2 * H:3 * H])
        o = jax.nn.sigmoid(gates[:, 3 * H:4 * H])
        c_new = f * c_prev + i * g
        h_new = o * jnp.tanh(c_new)
        return h_new, c_new

    def step(t, carry):
        h1, c1, h2, c2 = carry

        # h2_prev's contribution to gates2 only depends on the previous step,
        # so it can issue alongside the LSTM1 matmul below (the former fused
        # concat + K=3H dot serialized gates2 behind the attention).
        g2_prev = jnp.dot(h2, w2_ref[2 * H:3 * H, :],
                          preferred_element_type=jnp.float32)

        # ---- LSTM cell 1 (x-projection hoisted to the wrapper) ----
        gates1 = gx_ref[t] + jnp.dot(h1, whh1_ref[...],
                                     preferred_element_type=jnp.float32)
        h1, c1 = gate_nonlin(gates1, c1)

        # ---- attention against img_features directly (L=8 << H=128):
        #      two small reductions, all in natural (Nb, H) 2-D tile layout ----
        v_att = jnp.zeros((Nb, H), jnp.float32)
        for l in range(L):                                   # static unroll, L=8
            img_l = img_ref[l]                               # (Nb, H) tile load
            alpha_l = jnp.sum(h1 * img_l, axis=1, keepdims=True)   # (Nb, 1)
            v_att = v_att + alpha_l * img_l

        # ---- LSTM cell 2: three accumulating K=H dots (no concatenate) ----
        gates2 = (jnp.dot(v_att, w2_ref[0:H, :], preferred_element_type=jnp.float32)
                  + jnp.dot(h1, w2_ref[H:2 * H, :], preferred_element_type=jnp.float32)
                  + g2_prev + b2_ref[...])
        h2, c2 = gate_nonlin(gates2, c2)

        out_ref[t] = h2
        return h1, c1, h2, c2

    z = jnp.zeros((Nb, H), jnp.float32)
    lax.fori_loop(0, T, step, (z, z, z, z), unroll=True)


def lstm_attention_forward(inputs, img_features, params, *, hidden_dim):
    """inputs: (N, T) int32 token ids; img_features: (N, L, D) f32, D == hidden_dim."""
    N, T = inputs.shape
    _, L, D = img_features.shape
    H = hidden_dim
    assert D == H, "dimension not match for img_features and hidden state"

    # Embedding lookup + PyTorch `.view(max_len, batch_size, -1)` (raw reshape).
    emb = jnp.take(params["embedding"], inputs, axis=0)       # (N, T, E)
    E = emb.shape[-1]
    emb_tm = emb.reshape(T, N, E)

    # Hoisted LSTM1 input projection: one (T*N, E) x (E, 4H) matmul (M = T*N).
    b1 = (params["b_ih1"] + params["b_hh1"]).reshape(1, 4 * H)
    gx = (emb_tm.reshape(T * N, E) @ params["w_ih1"].T + b1).reshape(T, N, 4 * H)

    # Region-major image features so img_ref[l] is a contiguous (N, H) tile.
    img_lm = jnp.transpose(img_features, (1, 0, 2))            # (L, N, H)

    whh1_t = params["w_hh1"].T                                 # (H, 4H)
    # LSTM2 weights stacked as rows [W_a (v_att); W_b (h1); W_c (h2_prev)]:
    w2 = jnp.concatenate([params["w_ih2"].T, params["w_hh2"].T], axis=0)  # (3H, 4H)
    # Pre-broadcast the bias so no broadcast is re-emitted per unrolled step.
    b2 = jnp.broadcast_to((params["b_ih2"] + params["b_hh2"]).reshape(1, 4 * H),
                          (N, 4 * H))

    # Batch-parallel grid axis: exploits v7x's 2 TensorCores (rows of the
    # recurrence are independent).  Blocks need sublane dim Nb % 8 == 0, so at
    # this toy N=8 it stays a single grid step (no per-step overhead on
    # single-TC v5e/v6e either).
    batch_tiles = 2 if N % 16 == 0 else 1
    Nb = N // batch_tiles

    # TODO(synk): on v6e/v7x the resident weights (whh1_t, w2) could be cast to
    # bf16 (f32 accumulation) for ~3x fewer MXU passes, but that likely breaks
    # the 2e-4 tolerance check, so exact f32 is kept here.
    h2_tm = pl.pallas_call(
        lstm_attention_kernel,
        out_shape=jax.ShapeDtypeStruct((T, N, H), jnp.float32),
        grid_spec=pltpu.PrefetchScalarGridSpec(
            num_scalar_prefetch=0,
            grid=(batch_tiles,),
            in_specs=[
                pl.BlockSpec((T, Nb, 4 * H), lambda b: (0, b, 0)),   # gx
                pl.BlockSpec((L, Nb, H), lambda b: (0, b, 0)),       # img (L-major)
                pl.BlockSpec((H, 4 * H), lambda b: (0, 0)),          # W_hh1^T
                pl.BlockSpec((3 * H, 4 * H), lambda b: (0, 0)),      # stacked W2
                pl.BlockSpec((Nb, 4 * H), lambda b: (b, 0)),         # b2 (pre-bcast)
            ],
            out_specs=pl.BlockSpec((T, Nb, H), lambda b: (0, b, 0)),
        ),
        compiler_params=pltpu.CompilerParams(
            dimension_semantics=("parallel",),
        ),
    )(gx, img_lm, whh1_t, w2, b2)

    # PyTorch: torch.cat(hidden_states, 0).view(N, T, -1) == raw-order reshape.
    return h2_tm.reshape(N, T, H)


# ----------------------------- pure-JAX reference ---------------------------
def _lstm_cell_ref(x, h, c, w_ih, w_hh, b_ih, b_hh):
    gates = x @ w_ih.T + b_ih + h @ w_hh.T + b_hh
    i, f, g, o = jnp.split(gates, 4, axis=1)
    c_new = jax.nn.sigmoid(f) * c + jax.nn.sigmoid(i) * jnp.tanh(g)
    h_new = jax.nn.sigmoid(o) * jnp.tanh(c_new)
    return h_new, c_new


def reference_forward(inputs, img_features, params, *, hidden_dim):
    N, T = inputs.shape
    H = hidden_dim
    emb = jnp.take(params["embedding"], inputs, axis=0).reshape(T, N, -1)
    h1 = c1 = h2 = c2 = jnp.zeros((N, H), jnp.float32)
    outs = []
    for t in range(T):
        h1, c1 = _lstm_cell_ref(emb[t], h1, c1, params["w_ih1"], params["w_hh1"],
                                params["b_ih1"], params["b_hh1"])
        alpha = jnp.einsum("nh,nlh->nl", h1, img_features)
        v_att = jnp.einsum("nl,nld->nd", alpha, img_features)
        x2 = jnp.concatenate([v_att, h1], axis=1)
        h2, c2 = _lstm_cell_ref(x2, h2, c2, params["w_ih2"], params["w_hh2"],
                                params["b_ih2"], params["b_hh2"])
        outs.append(h2)
    return jnp.concatenate(outs, axis=0).reshape(N, T, H)


# ---------------------------------- main ------------------------------------
if __name__ == "__main__":
    # Small shapes consistent with the module's forward.
    N = 8          # batch_size
    T = 8          # sequence length
    H = 128        # hidden_dim
    E = 128        # embed_dim
    V = 64         # vocab_size
    L = 8          # number of image regions; D == H

    key = jax.random.PRNGKey(0)
    keys = jax.random.split(key, 12)
    s = 1.0 / jnp.sqrt(H).astype(jnp.float32)

    params = {
        "embedding": jax.random.normal(keys[0], (V, E), jnp.float32) * 0.1,
        "w_ih1": jax.random.uniform(keys[1], (4 * H, E), jnp.float32, -s, s),
        "w_hh1": jax.random.uniform(keys[2], (4 * H, H), jnp.float32, -s, s),
        "b_ih1": jax.random.uniform(keys[3], (4 * H,), jnp.float32, -s, s),
        "b_hh1": jax.random.uniform(keys[4], (4 * H,), jnp.float32, -s, s),
        "w_ih2": jax.random.uniform(keys[5], (4 * H, 2 * H), jnp.float32, -s, s),
        "w_hh2": jax.random.uniform(keys[6], (4 * H, H), jnp.float32, -s, s),
        "b_ih2": jax.random.uniform(keys[7], (4 * H,), jnp.float32, -s, s),
        "b_hh2": jax.random.uniform(keys[8], (4 * H,), jnp.float32, -s, s),
    }

    inputs = jax.random.randint(keys[9], (N, T), 0, V, dtype=jnp.int32)
    img_features = jax.random.normal(keys[10], (N, L, H), jnp.float32) * 0.1

    fwd = jax.jit(functools.partial(lstm_attention_forward, hidden_dim=H))
    out = fwd(inputs, img_features, params)
    out = jax.block_until_ready(out)

    ref = reference_forward(inputs, img_features, params, hidden_dim=H)
    assert out.shape == (N, T, H), out.shape
    assert jnp.allclose(out, ref, atol=2e-4, rtol=2e-4), float(jnp.max(jnp.abs(out - ref)))

    print("KERNEL_OK")
</pallas_src>

<mosaic_0001>
module attributes {stable_mosaic.version = 11 : i64} {
  func.func @lstm_attention_kernel(%arg0: i32, %arg1: memref<8x8x512xf32, #tpu.memory_space<vmem>>, %arg2: memref<8x8x128xf32, #tpu.memory_space<vmem>>, %arg3: memref<128x512xf32, #tpu.memory_space<vmem>>, %arg4: memref<384x512xf32, #tpu.memory_space<vmem>>, %arg5: memref<8x512xf32, #tpu.memory_space<vmem>>, %arg6: memref<8x8x128xf32, #tpu.memory_space<vmem>>) attributes {dimension_semantics = [#tpu.dimension_semantics<parallel>], iteration_bounds = array<i64: 1>, scalar_prefetch = 0 : i64, scratch_operands = 0 : i64, tpu.core_type = #tpu.core_type<tc>, window_params = [{transform_indices = @transform_0, window_bounds = array<i64: 8, 8, 512>}, {transform_indices = @transform_1, window_bounds = array<i64: 8, 8, 128>}, {pipeline_mode = #tpu.pipeline_mode<synchronous>, transform_indices = @transform_2, window_bounds = array<i64: 128, 512>}, {pipeline_mode = #tpu.pipeline_mode<synchronous>, transform_indices = @transform_3, window_bounds = array<i64: 384, 512>}, {transform_indices = @transform_4, window_bounds = array<i64: 8, 512>}, {transform_indices = @transform_5, window_bounds = array<i64: 8, 8, 128>}]} {
    %cst = arith.constant 0.000000e+00 : f32
    %0 = vector.broadcast %cst : f32 to vector<8x128xf32>
    %c0_i32 = arith.constant 0 : i32
    %c256 = arith.constant 256 : index
    %c0 = arith.constant 0 : index
    %1 = vector.load %arg4[%c256, %c0] : memref<384x512xf32, #tpu.memory_space<vmem>>, vector<128x512xf32>
    %cst_0 = arith.constant dense<0.000000e+00> : vector<8x512xf32>
    %2 = tpu.matmul %0, %1, %cst_0 {dimension_numbers = #tpu.dot_dimension_numbers<[1], [0], [0], [1], [0, 0, 1, 1], [], []>} : vector<8x128xf32>, vector<128x512xf32>, vector<8x512xf32> -> vector<8x512xf32>
    %3 = arith.index_cast %c0_i32 : i32 to index
    %c0_1 = arith.constant 0 : index
    %c0_2 = arith.constant 0 : index
    %4 = vector.load %arg1[%3, %c0_1, %c0_2] : memref<8x8x512xf32, #tpu.memory_space<vmem>>, vector<1x8x512xf32>
    %5 = vector.shape_cast %4 : vector<1x8x512xf32> to vector<8x512xf32>
    %c0_3 = arith.constant 0 : index
    %c0_4 = arith.constant 0 : index
    %6 = vector.load %arg3[%c0_3, %c0_4] : memref<128x512xf32, #tpu.memory_space<vmem>>, vector<128x512xf32>
    %cst_5 = arith.constant dense<0.000000e+00> : vector<8x512xf32>
    %7 = tpu.matmul %0, %6, %cst_5 {dimension_numbers = #tpu.dot_dimension_numbers<[1], [0], [0], [1], [0, 0, 1, 1], [], []>} : vector<8x128xf32>, vector<128x512xf32>, vector<8x512xf32> -> vector<8x512xf32>
    %8 = arith.addf %5, %7 : vector<8x512xf32>
    %9 = vector.extract_strided_slice %8 {offsets = [0, 0], sizes = [8, 128], strides = [1, 1]} : vector<8x512xf32> to vector<8x128xf32>
    %10 = arith.negf %9 : vector<8x128xf32>
    %11 = math.exp %10 : vector<8x128xf32>
    %cst_6 = arith.constant 1.000000e+00 : f32
    %12 = vector.broadcast %cst_6 : f32 to vector<8x128xf32>
    %13 = arith.addf %12, %11 : vector<8x128xf32>
    %14 = arith.divf %12, %13 : vector<8x128xf32>
    %15 = vector.extract_strided_slice %8 {offsets = [0, 128], sizes = [8, 128], strides = [1, 1]} : vector<8x512xf32> to vector<8x128xf32>
    %16 = arith.negf %15 : vector<8x128xf32>
    %17 = math.exp %16 : vector<8x128xf32>
    %cst_7 = arith.constant 1.000000e+00 : f32
    %18 = vector.broadcast %cst_7 : f32 to vector<8x128xf32>
    %19 = arith.addf %18, %17 : vector<8x128xf32>
    %20 = arith.divf %18, %19 : vector<8x128xf32>
    %21 = vector.extract_strided_slice %8 {offsets = [0, 256], sizes = [8, 128], strides = [1, 1]} : vector<8x512xf32> to vector<8x128xf32>
    %22 = math.tanh %21 : vector<8x128xf32>
    %23 = vector.extract_strided_slice %8 {offsets = [0, 384], sizes = [8, 128], strides = [1, 1]} : vector<8x512xf32> to vector<8x128xf32>
    %24 = arith.negf %23 : vector<8x128xf32>
    %25 = math.exp %24 : vector<8x128xf32>
    %cst_8 = arith.constant 1.000000e+00 : f32
    %26 = vector.broadcast %cst_8 : f32 to vector<8x128xf32>
    %27 = arith.addf %26, %25 : vector<8x128xf32>
    %28 = arith.divf %26, %27 : vector<8x128xf32>
    %29 = arith.mulf %20, %0 : vector<8x128xf32>
    %30 = arith.mulf %14, %22 : vector<8x128xf32>
    %31 = arith.addf %29, %30 : vector<8x128xf32>
    %32 = math.tanh %31 : vector<8x128xf32>
    %33 = arith.mulf %28, %32 : vector<8x128xf32>
    %cst_9 = arith.constant 0.000000e+00 : f32
    %34 = vector.broadcast %cst_9 : f32 to vector<8x128xf32>
    %c0_10 = arith.constant 0 : index
    %c0_11 = arith.constant 0 : index
    %c0_12 = arith.constant 0 : index
    %35 = vector.load %arg2[%c0_10, %c0_11, %c0_12] : memref<8x8x128xf32, #tpu.memory_space<vmem>>, vector<1x8x128xf32>
    %36 = vector.shape_cast %35 : vector<1x8x128xf32> to vector<8x128xf32>
    %37 = arith.mulf %33, %36 : vector<8x128xf32>
    %cst_13 = arith.constant dense<0.000000e+00> : vector<8xf32>
    %38 = vector.multi_reduction <add>, %37, %cst_13 [1] : vector<8x128xf32> to vector<8xf32>
    %39 = vector.shape_cast %38 : vector<8xf32> to vector<8x1xf32>
    %40 = vector.broadcast %39 : vector<8x1xf32> to vector<8x128xf32>
    %41 = arith.mulf %40, %36 : vector<8x128xf32>
    %42 = arith.addf %34, %41 : vector<8x128xf32>
    %c1 = arith.constant 1 : index
    %c0_14 = arith.constant 0 : index
    %c0_15 = arith.constant 0 : index
    %43 = vector.load %arg2[%c1, %c0_14, %c0_15] : memref<8x8x128xf32, #tpu.memory_space<vmem>>, vector<1x8x128xf32>
    %44 = vector.shape_cast %43 : vector<1x8x128xf32> to vector<8x128xf32>
    %45 = arith.mulf %33, %44 : vector<8x128xf32>
    %cst_16 = arith.constant dense<0.000000e+00> : vector<8xf32>
    %46 = vector.multi_reduction <add>, %45, %cst_16 [1] : vector<8x128xf32> to vector<8xf32>
    %47 = vector.shape_cast %46 : vector<8xf32> to vector<8x1xf32>
    %48 = vector.broadcast %47 : vector<8x1xf32> to vector<8x128xf32>
    %49 = arith.mulf %48, %44 : vector<8x128xf32>
    %50 = arith.addf %42, %49 : vector<8x128xf32>
    %c2 = arith.constant 2 : index
    %c0_17 = arith.constant 0 : index
    %c0_18 = arith.constant 0 : index
    %51 = vector.load %arg2[%c2, %c0_17, %c0_18] : memref<8x8x128xf32, #tpu.memory_space<vmem>>, vector<1x8x128xf32>
    %52 = vector.shape_cast %51 : vector<1x8x128xf32> to vector<8x128xf32>
    %53 = arith.mulf %33, %52 : vector<8x128xf32>
    %cst_19 = arith.constant dense<0.000000e+00> : vector<8xf32>
    %54 = vector.multi_reduction <add>, %53, %cst_19 [1] : vector<8x128xf32> to vector<8xf32>
    %55 = vector.shape_cast %54 : vector<8xf32> to vector<8x1xf32>
    %56 = vector.broadcast %55 : vector<8x1xf32> to vector<8x128xf32>
    %57 = arith.mulf %56, %52 : vector<8x128xf32>
    %58 = arith.addf %50, %57 : vector<8x128xf32>
    %c3 = arith.constant 3 : index
    %c0_20 = arith.constant 0 : index
    %c0_21 = arith.constant 0 : index
    %59 = vector.load %arg2[%c3, %c0_20, %c0_21] : memref<8x8x128xf32, #tpu.memory_space<vmem>>, vector<1x8x128xf32>
    %60 = vector.shape_cast %59 : vector<1x8x128xf32> to vector<8x128xf32>
    %61 = arith.mulf %33, %60 : vector<8x128xf32>
    %cst_22 = arith.constant dense<0.000000e+00> : vector<8xf32>
    %62 = vector.multi_reduction <add>, %61, %cst_22 [1] : vector<8x128xf32> to vector<8xf32>
    %63 = vector.shape_cast %62 : vector<8xf32> to vector<8x1xf32>
    %64 = vector.broadcast %63 : vector<8x1xf32> to vector<8x128xf32>
    %65 = arith.mulf %64, %60 : vector<8x128xf32>
    %66 = arith.addf %58, %65 : vector<8x128xf32>
    %c4 = arith.constant 4 : index
    %c0_23 = arith.constant 0 : index
    %c0_24 = arith.constant 0 : index
    %67 = vector.load %arg2[%c4, %c0_23, %c0_24] : memref<8x8x128xf32, #tpu.memory_space<vmem>>, vector<1x8x128xf32>
    %68 = vector.shape_cast %67 : vector<1x8x128xf32> to vector<8x128xf32>
    %69 = arith.mulf %33, %68 : vector<8x128xf32>
    %cst_25 = arith.constant dense<0.000000e+00> : vector<8xf32>
    %70 = vector.multi_reduction <add>, %69, %cst_25 [1] : vector<8x128xf32> to vector<8xf32>
    %71 = vector.shape_cast %70 : vector<8xf32> to vector<8x1xf32>
    %72 = vector.broadcast %71 : vector<8x1xf32> to vector<8x128xf32>
    %73 = arith.mulf %72, %68 : vector<8x128xf32>
    %74 = arith.addf %66, %73 : vector<8x128xf32>
    %c5 = arith.constant 5 : index
    %c0_26 = arith.constant 0 : index
    %c0_27 = arith.constant 0 : index
    %75 = vector.load %arg2[%c5, %c0_26, %c0_27] : memref<8x8x128xf32, #tpu.memory_space<vmem>>, vector<1x8x128xf32>
    %76 = vector.shape_cast %75 : vector<1x8x128xf32> to vector<8x128xf32>
    %77 = arith.mulf %33, %76 : vector<8x128xf32>
    %cst_28 = arith.constant dense<0.000000e+00> : vector<8xf32>
    %78 = vector.multi_reduction <add>, %77, %cst_28 [1] : vector<8x128xf32> to vector<8xf32>
    %79 = vector.shape_cast %78 : vector<8xf32> to vector<8x1xf32>
    %80 = vector.broadcast %79 : vector<8x1xf32> to vector<8x128xf32>
    %81 = arith.mulf %80, %76 : vector<8x128xf32>
    %82 = arith.addf %74, %81 : vector<8x128xf32>
    %c6 = arith.constant 6 : index
    %c0_29 = arith.constant 0 : index
    %c0_30 = arith.constant 0 : index
    %83 = vector.load %arg2[%c6, %c0_29, %c0_30] : memref<8x8x128xf32, #tpu.memory_space<vmem>>, vector<1x8x128xf32>
    %84 = vector.shape_cast %83 : vector<1x8x128xf32> to vector<8x128xf32>
    %85 = arith.mulf %33, %84 : vector<8x128xf32>
    %cst_31 = arith.constant dense<0.000000e+00> : vector<8xf32>
    %86 = vector.multi_reduction <add>, %85, %cst_31 [1] : vector<8x128xf32> to vector<8xf32>
    %87 = vector.shape_cast %86 : vector<8xf32> to vector<8x1xf32>
    %88 = vector.broadcast %87 : vector<8x1xf32> to vector<8x128xf32>
    %89 = arith.mulf %88, %84 : vector<8x128xf32>
    %90 = arith.addf %82, %89 : vector<8x128xf32>
    %c7 = arith.constant 7 : index
    %c0_32 = arith.constant 0 : index
    %c0_33 = arith.constant 0 : index
    %91 = vector.load %arg2[%c7, %c0_32, %c0_33] : memref<8x8x128xf32, #tpu.memory_space<vmem>>, vector<1x8x128xf32>
    %92 = vector.shape_cast %91 : vector<1x8x128xf32> to vector<8x128xf32>
    %93 = arith.mulf %33, %92 : vector<8x128xf32>
    %cst_34 = arith.constant dense<0.000000e+00> : vector<8xf32>
    %94 = vector.multi_reduction <add>, %93, %cst_34 [1] : vector<8x128xf32> to vector<8xf32>
    %95 = vector.shape_cast %94 : vector<8xf32> to vector<8x1xf32>
    %96 = vector.broadcast %95 : vector<8x1xf32> to vector<8x128xf32>
    %97 = arith.mulf %96, %92 : vector<8x128xf32>
    %98 = arith.addf %90, %97 : vector<8x128xf32>
    %c0_35 = arith.constant 0 : index
    %c0_36 = arith.constant 0 : index
    %99 = vector.load %arg4[%c0_35, %c0_36] : memref<384x512xf32, #tpu.memory_space<vmem>>, vector<128x512xf32>
    %cst_37 = arith.constant dense<0.000000e+00> : vector<8x512xf32>
    %100 = tpu.matmul %98, %99, %cst_37 {dimension_numbers = #tpu.dot_dimension_numbers<[1], [0], [0], [1], [0, 0, 1, 1], [], []>} : vector<8x128xf32>, vector<128x512xf32>, vector<8x512xf32> -> vector<8x512xf32>
    %c128 = arith.constant 128 : index
    %c0_38 = arith.constant 0 : index
    %101 = vector.load %arg4[%c128, %c0_38] : memref<384x512xf32, #tpu.memory_space<vmem>>, vector<128x512xf32>
    %cst_39 = arith.constant dense<0.000000e+00> : vector<8x512xf32>
    %102 = tpu.matmul %33, %101, %cst_39 {dimension_numbers = #tpu.dot_dimension_numbers<[1], [0], [0], [1], [0, 0, 1, 1], [], []>} : vector<8x128xf32>, vector<128x512xf32>, vector<8x512xf32> -> vector<8x512xf32>
    %103 = arith.addf %100, %102 : vector<8x512xf32>
    %104 = arith.addf %103, %2 : vector<8x512xf32>
    %c0_40 = arith.constant 0 : index
    %c0_41 = arith.constant 0 : index
    %105 = vector.load %arg5[%c0_40, %c0_41] : memref<8x512xf32, #tpu.memory_space<vmem>>, vector<8x512xf32>
    %106 = arith.addf %104, %105 : vector<8x512xf32>
    %107 = vector.extract_strided_slice %106 {offsets = [0, 0], sizes = [8, 128], strides = [1, 1]} : vector<8x512xf32> to vector<8x128xf32>
    %108 = arith.negf %107 : vector<8x128xf32>
    %109 = math.exp %108 : vector<8x128xf32>
    %cst_42 = arith.constant 1.000000e+00 : f32
    %110 = vector.broadcast %cst_42 : f32 to vector<8x128xf32>
    %111 = arith.addf %110, %109 : vector<8x128xf32>
    %112 = arith.divf %110, %111 : vector<8x128xf32>
    %113 = vector.extract_strided_slice %106 {offsets = [0, 128], sizes = [8, 128], strides = [1, 1]} : vector<8x512xf32> to vector<8x128xf32>
    %114 = arith.negf %113 : vector<8x128xf32>
    %115 = math.exp %114 : vector<8x128xf32>
    %cst_43 = arith.constant 1.000000e+00 : f32
    %116 = vector.broadcast %cst_43 : f32 to vector<8x128xf32>
    %117 = arith.addf %116, %115 : vector<8x128xf32>
    %118 = arith.divf %116, %117 : vector<8x128xf32>
    %119 = vector.extract_strided_slice %106 {offsets = [0, 256], sizes = [8, 128], strides = [1, 1]} : vector<8x512xf32> to vector<8x128xf32>
    %120 = math.tanh %119 : vector<8x128xf32>
    %121 = vector.extract_strided_slice %106 {offsets = [0, 384], sizes = [8, 128], strides = [1, 1]} : vector<8x512xf32> to vector<8x128xf32>
    %122 = arith.negf %121 : vector<8x128xf32>
    %123 = math.exp %122 : vector<8x128xf32>
    %cst_44 = arith.constant 1.000000e+00 : f32
    %124 = vector.broadcast %cst_44 : f32 to vector<8x128xf32>
    %125 = arith.addf %124, %123 : vector<8x128xf32>
    %126 = arith.divf %124, %125 : vector<8x128xf32>
    %127 = arith.mulf %118, %0 : vector<8x128xf32>
    %128 = arith.mulf %112, %120 : vector<8x128xf32>
    %129 = arith.addf %127, %128 : vector<8x128xf32>
    %130 = math.tanh %129 : vector<8x128xf32>
    %131 = arith.mulf %126, %130 : vector<8x128xf32>
    %132 = arith.index_cast %c0_i32 : i32 to index
    %c0_45 = arith.constant 0 : index
    %c0_46 = arith.constant 0 : index
    %133 = vector.load %arg6[%132, %c0_45, %c0_46] : memref<8x8x128xf32, #tpu.memory_space<vmem>>, vector<1x8x128xf32>
    %134 = vector.shape_cast %133 : vector<1x8x128xf32> to vector<8x128xf32>
    %135 = vector.shape_cast %131 : vector<8x128xf32> to vector<1x8x128xf32>
    tpu.vector_store %arg6[%132, %c0_45, %c0_46], %135 {strides = array<i32>} : memref<8x8x128xf32, #tpu.memory_space<vmem>>, vector<1x8x128xf32>,
    %c1_i32 = arith.constant 1 : i32
    %c256_47 = arith.constant 256 : index
    %c0_48 = arith.constant 0 : index
    %136 = vector.load %arg4[%c256_47, %c0_48] : memref<384x512xf32, #tpu.memory_space<vmem>>, vector<128x512xf32>
    %cst_49 = arith.constant dense<0.000000e+00> : vector<8x512xf32>
    %137 = tpu.matmul %131, %136, %cst_49 {dimension_numbers = #tpu.dot_dimension_numbers<[1], [0], [0], [1], [0, 0, 1, 1], [], []>} : vector<8x128xf32>, vector<128x512xf32>, vector<8x512xf32> -> vector<8x512xf32>
    %138 = arith.index_cast %c1_i32 : i32 to index
    %c0_50 = arith.constant 0 : index
    %c0_51 = arith.constant 0 : index
    %139 = vector.load %arg1[%138, %c0_50, %c0_51] : memref<8x8x512xf32, #tpu.memory_space<vmem>>, vector<1x8x512xf32>
    %140 = vector.shape_cast %139 : vector<1x8x512xf32> to vector<8x512xf32>
    %c0_52 = arith.constant 0 : index
    %c0_53 = arith.constant 0 : index
    %141 = vector.load %arg3[%c0_52, %c0_53] : memref<128x512xf32, #tpu.memory_space<vmem>>, vector<128x512xf32>
    %cst_54 = arith.constant dense<0.000000e+00> : vector<8x512xf32>
    %142 = tpu.matmul %33, %141, %cst_54 {dimension_numbers = #tpu.dot_dimension_numbers<[1], [0], [0], [1], [0, 0, 1, 1], [], []>} : vector<8x128xf32>, vector<128x512xf32>, vector<8x512xf32> -> vector<8x512xf32>
    %143 = arith.addf %140, %142 : vector<8x512xf32>
    %144 = vector.extract_strided_slice %143 {offsets = [0, 0], sizes = [8, 128], strides = [1, 1]} : vector<8x512xf32> to vector<8x128xf32>
    %145 = arith.negf %144 : vector<8x128xf32>
    %146 = math.exp %145 : vector<8x128xf32>
    %cst_55 = arith.constant 1.000000e+00 : f32
    %147 = vector.broadcast %cst_55 : f32 to vector<8x128xf32>
    %148 = arith.addf %147, %146 : vector<8x128xf32>
    %149 = arith.divf %147, %148 : vector<8x128xf32>
    %150 = vector.extract_strided_slice %143 {offsets = [0, 128], sizes = [8, 128], strides = [1, 1]} : vector<8x512xf32> to vector<8x128xf32>
    %151 = arith.negf %150 : vector<8x128xf32>
    %152 = math.exp %151 : vector<8x128xf32>
    %cst_56 = arith.constant 1.000000e+00 : f32
    %153 = vector.broadcast %cst_56 : f32 to vector<8x128xf32>
    %154 = arith.addf %153, %152 : vector<8x128xf32>
    %155 = arith.divf %153, %154 : vector<8x128xf32>
    %156 = vector.extract_strided_slice %143 {offsets = [0, 256], sizes = [8, 128], strides = [1, 1]} : vector<8x512xf32> to vector<8x128xf32>
    %157 = math.tanh %156 : vector<8x128xf32>
    %158 = vector.extract_strided_slice %143 {offsets = [0, 384], sizes = [8, 128], strides = [1, 1]} : vector<8x512xf32> to vector<8x128xf32>
    %159 = arith.negf %158 : vector<8x128xf32>
    %160 = math.exp %159 : vector<8x128xf32>
    %cst_57 = arith.constant 1.000000e+00 : f32
    %161 = vector.broadcast %cst_57 : f32 to vector<8x128xf32>
    %162 = arith.addf %161, %160 : vector<8x128xf32>
    %163 = arith.divf %161, %162 : vector<8x128xf32>
    %164 = arith.mulf %155, %31 : vector<8x128xf32>
    %165 = arith.mulf %149, %157 : vector<8x128xf32>
    %166 = arith.addf %164, %165 : vector<8x128xf32>
    %167 = math.tanh %166 : vector<8x128xf32>
    %168 = arith.mulf %163, %167 : vector<8x128xf32>
    %cst_58 = arith.constant 0.000000e+00 : f32
    %169 = vector.broadcast %cst_58 : f32 to vector<8x128xf32>
    %c0_59 = arith.constant 0 : index
    %c0_60 = arith.constant 0 : index
    %c0_61 = arith.constant 0 : index
    %170 = vector.load %arg2[%c0_59, %c0_60, %c0_61] : memref<8x8x128xf32, #tpu.memory_space<vmem>>, vector<1x8x128xf32>
    %171 = vector.shape_cast %170 : vector<1x8x128xf32> to vector<8x128xf32>
    %172 = arith.mulf %168, %171 : vector<8x128xf32>
    %cst_62 = arith.constant dense<0.000000e+00> : vector<8xf32>
    %173 = vector.multi_reduction <add>, %172, %cst_62 [1] : vector<8x128xf32> to vector<8xf32>
    %174 = vector.shape_cast %173 : vector<8xf32> to vector<8x1xf32>
    %175 = vector.broadcast %174 : vector<8x1xf32> to vector<8x128xf32>
    %176 = arith.mulf %175, %171 : vector<8x128xf32>
    %177 = arith.addf %169, %176 : vector<8x128xf32>
    %c1_63 = arith.constant 1 : index
    %c0_64 = arith.constant 0 : index
    %c0_65 = arith.constant 0 : index
    %178 = vector.load %arg2[%c1_63, %c0_64, %c0_65] : memref<8x8x128xf32, #tpu.memory_space<vmem>>, vector<1x8x128xf32>
    %179 = vector.shape_cast %178 : vector<1x8x128xf32> to vector<8x128xf32>
    %180 = arith.mulf %168, %179 : vector<8x128xf32>
    %cst_66 = arith.constant dense<0.000000e+00> : vector<8xf32>
    %181 = vector.multi_reduction <add>, %180, %cst_66 [1] : vector<8x128xf32> to vector<8xf32>
    %182 = vector.shape_cast %181 : vector<8xf32> to vector<8x1xf32>
    %183 = vector.broadcast %182 : vector<8x1xf32> to vector<8x128xf32>
    %184 = arith.mulf %183, %179 : vector<8x128xf32>
    %185 = arith.addf %177, %184 : vector<8x128xf32>
    %c2_67 = arith.constant 2 : index
    %c0_68 = arith.constant 0 : index
    %c0_69 = arith.constant 0 : index
    %186 = vector.load %arg2[%c2_67, %c0_68, %c0_69] : memref<8x8x128xf32, #tpu.memory_space<vmem>>, vector<1x8x128xf32>
    %187 = vector.shape_cast %186 : vector<1x8x128xf32> to vector<8x128xf32>
    %188 = arith.mulf %168, %187 : vector<8x128xf32>
    %cst_70 = arith.constant dense<0.000000e+00> : vector<8xf32>
    %189 = vector.multi_reduction <add>, %188, %cst_70 [1] : vector<8x128xf32> to vector<8xf32>
    %190 = vector.shape_cast %189 : vector<8xf32> to vector<8x1xf32>
    %191 = vector.broadcast %190 : vector<8x1xf32> to vector<8x128xf32>
    %192 = arith.mulf %191, %187 : vector<8x128xf32>
    %193 = arith.addf %185, %192 : vector<8x128xf32>
    %c3_71 = arith.constant 3 : index
    %c0_72 = arith.constant 0 : index
    %c0_73 = arith.constant 0 : index
    %194 = vector.load %arg2[%c3_71, %c0_72, %c0_73] : memref<8x8x128xf32, #tpu.memory_space<vmem>>, vector<1x8x128xf32>
    %195 = vector.shape_cast %194 : vector<1x8x128xf32> to vector<8x128xf32>
    %196 = arith.mulf %168, %195 : vector<8x128xf32>
    %cst_74 = arith.constant dense<0.000000e+00> : vector<8xf32>
    %197 = vector.multi_reduction <add>, %196, %cst_74 [1] : vector<8x128xf32> to vector<8xf32>
    %198 = vector.shape_cast %197 : vector<8xf32> to vector<8x1xf32>
    %199 = vector.broadcast %198 : vector<8x1xf32> to vector<8x128xf32>
    %200 = arith.mulf %199, %195 : vector<8x128xf32>
    %201 = arith.addf %193, %200 : vector<8x128xf32>
    %c4_75 = arith.constant 4 : index
    %c0_76 = arith.constant 0 : index
    %c0_77 = arith.constant 0 : index
    %202 = vector.load %arg2[%c4_75, %c0_76, %c0_77] : memref<8x8x128xf32, #tpu.memory_space<vmem>>, vector<1x8x128xf32>
    %203 = vector.shape_cast %202 : vector<1x8x128xf32> to vector<8x128xf32>
    %204 = arith.mulf %168, %203 : vector<8x128xf32>
    %cst_78 = arith.constant dense<0.000000e+00> : vector<8xf32>
    %205 = vector.multi_reduction <add>, %204, %cst_78 [1] : vector<8x128xf32> to vector<8xf32>
    %206 = vector.shape_cast %205 : vector<8xf32> to vector<8x1xf32>
    %207 = vector.broadcast %206 : vector<8x1xf32> to vector<8x128xf32>
    %208 = arith.mulf %207, %203 : vector<8x128xf32>
    %209 = arith.addf %201, %208 : vector<8x128xf32>
    %c5_79 = arith.constant 5 : index
    %c0_80 = arith.constant 0 : index
    %c0_81 = arith.constant 0 : index
    %210 = vector.load %arg2[%c5_79, %c0_80, %c0_81] : memref<8x8x128xf32, #tpu.memory_space<vmem>>, vector<1x8x128xf32>
    %211 = vector.shape_cast %210 : vector<1x8x128xf32> to vector<8x128xf32>
    %212 = arith.mulf %168, %211 : vector<8x128xf32>
    %cst_82 = arith.constant dense<0.000000e+00> : vector<8xf32>
    %213 = vector.multi_reduction <add>, %212, %cst_82 [1] : vector<8x128xf32> to vector<8xf32>
    %214 = vector.shape_cast %213 : vector<8xf32> to vector<8x1xf32>
    %215 = vector.broadcast %214 : vector<8x1xf32> to vector<8x128xf32>
    %216 = arith.mulf %215, %211 : vector<8x128xf32>
    %217 = arith.addf %209, %216 : vector<8x128xf32>
    %c6_83 = arith.constant 6 : index
    %c0_84 = arith.constant 0 : index
    %c0_85 = arith.constant 0 : index
    %218 = vector.load %arg2[%c6_83, %c0_84, %c0_85] : memref<8x8x128xf32, #tpu.memory_space<vmem>>, vector<1x8x128xf32>
    %219 = vector.shape_cast %218 : vector<1x8x128xf32> to vector<8x128xf32>
    %220 = arith.mulf %168, %219 : vector<8x128xf32>
    %cst_86 = arith.constant dense<0.000000e+00> : vector<8xf32>
    %221 = vector.multi_reduction <add>, %220, %cst_86 [1] : vector<8x128xf32> to vector<8xf32>
    %222 = vector.shape_cast %221 : vector<8xf32> to vector<8x1xf32>
    %223 = vector.broadcast %222 : vector<8x1xf32> to vector<8x128xf32>
    %224 = arith.mulf %223, %219 : vector<8x128xf32>
    %225 = arith.addf %217, %224 : vector<8x128xf32>
    %c7_87 = arith.constant 7 : index
    %c0_88 = arith.constant 0 : index
    %c0_89 = arith.constant 0 : index
    %226 = vector.load %arg2[%c7_87, %c0_88, %c0_89] : memref<8x8x128xf32, #tpu.memory_space<vmem>>, vector<1x8x128xf32>
    %227 = vector.shape_cast %226 : vector<1x8x128xf32> to vector<8x128xf32>
    %228 = arith.mulf %168, %227 : vector<8x128xf32>
    %cst_90 = arith.constant dense<0.000000e+00> : vector<8xf32>
    %229 = vector.multi_reduction <add>, %228, %cst_90 [1] : vector<8x128xf32> to vector<8xf32>
    %230 = vector.shape_cast %229 : vector<8xf32> to vector<8x1xf32>
    %231 = vector.broadcast %230 : vector<8x1xf32> to vector<8x128xf32>
    %232 = arith.mulf %231, %227 : vector<8x128xf32>
    %233 = arith.addf %225, %232 : vector<8x128xf32>
    %c0_91 = arith.constant 0 : index
    %c0_92 = arith.constant 0 : index
    %234 = vector.load %arg4[%c0_91, %c0_92] : memref<384x512xf32, #tpu.memory_space<vmem>>, vector<128x512xf32>
    %cst_93 = arith.constant dense<0.000000e+00> : vector<8x512xf32>
    %235 = tpu.matmul %233, %234, %cst_93 {dimension_numbers = #tpu.dot_dimension_numbers<[1], [0], [0], [1], [0, 0, 1, 1], [], []>} : vector<8x128xf32>, vector<128x512xf32>, vector<8x512xf32> -> vector<8x512xf32>
    %c128_94 = arith.constant 128 : index
    %c0_95 = arith.constant 0 : index
    %236 = vector.load %arg4[%c128_94, %c0_95] : memref<384x512xf32, #tpu.memory_space<vmem>>, vector<128x512xf32>
    %cst_96 = arith.constant dense<0.000000e+00> : vector<8x512xf32>
    %237 = tpu.matmul %168, %236, %cst_96 {dimension_numbers = #tpu.dot_dimension_numbers<[1], [0], [0], [1], [0, 0, 1, 1], [], []>} : vector<8x128xf32>, vector<128x512xf32>, vector<8x512xf32> -> vector<8x512xf32>
    %238 = arith.addf %235, %237 : vector<8x512xf32>
    %239 = arith.addf %238, %137 : vector<8x512xf32>
    %c0_97 = arith.constant 0 : index
    %c0_98 = arith.constant 0 : index
    %240 = vector.load %arg5[%c0_97, %c0_98] : memref<8x512xf32, #tpu.memory_space<vmem>>, vector<8x512xf32>
    %241 = arith.addf %239, %240 : vector<8x512xf32>
    %242 = vector.extract_strided_slice %241 {offsets = [0, 0], sizes = [8, 128], strides = [1, 1]} : vector<8x512xf32> to vector<8x128xf32>
    %243 = arith.negf %242 : vector<8x128xf32>
    %244 = math.exp %243 : vector<8x128xf32>
    %cst_99 = arith.constant 1.000000e+00 : f32
    %245 = vector.broadcast %cst_99 : f32 to vector<8x128xf32>
    %246 = arith.addf %245, %244 : vector<8x128xf32>
    %247 = arith.divf %245, %246 : vector<8x128xf32>
    %248 = vector.extract_strided_slice %241 {offsets = [0, 128], sizes = [8, 128], strides = [1, 1]} : vector<8x512xf32> to vector<8x128xf32>
    %249 = arith.negf %248 : vector<8x128xf32>
    %250 = math.exp %249 : vector<8x128xf32>
    %cst_100 = arith.constant 1.000000e+00 : f32
    %251 = vector.broadcast %cst_100 : f32 to vector<8x128xf32>
    %252 = arith.addf %251, %250 : vector<8x128xf32>
    %253 = arith.divf %251, %252 : vector<8x128xf32>
    %254 = vector.extract_strided_slice %241 {offsets = [0, 256], sizes = [8, 128], strides = [1, 1]} : vector<8x512xf32> to vector<8x128xf32>
    %255 = math.tanh %254 : vector<8x128xf32>
    %256 = vector.extract_strided_slice %241 {offsets = [0, 384], sizes = [8, 128], strides = [1, 1]} : vector<8x512xf32> to vector<8x128xf32>
    %257 = arith.negf %256 : vector<8x128xf32>
    %258 = math.exp %257 : vector<8x128xf32>
    %cst_101 = arith.constant 1.000000e+00 : f32
    %259 = vector.broadcast %cst_101 : f32 to vector<8x128xf32>
    %260 = arith.addf %259, %258 : vector<8x128xf32>
    %261 = arith.divf %259, %260 : vector<8x128xf32>
    %262 = arith.mulf %253, %129 : vector<8x128xf32>
    %263 = arith.mulf %247, %255 : vector<8x128xf32>
    %264 = arith.addf %262, %263 : vector<8x128xf32>
    %265 = math.tanh %264 : vector<8x128xf32>
    %266 = arith.mulf %261, %265 : vector<8x128xf32>
    %267 = arith.index_cast %c1_i32 : i32 to index
    %c0_102 = arith.constant 0 : index
    %c0_103 = arith.constant 0 : index
    %268 = vector.load %arg6[%267, %c0_102, %c0_103] : memref<8x8x128xf32, #tpu.memory_space<vmem>>, vector<1x8x128xf32>
    %269 = vector.shape_cast %268 : vector<1x8x128xf32> to vector<8x128xf32>
    %270 = vector.shape_cast %266 : vector<8x128xf32> to vector<1x8x128xf32>
    tpu.vector_store %arg6[%267, %c0_102, %c0_103], %270 {strides = array<i32>} : memref<8x8x128xf32, #tpu.memory_space<vmem>>, vector<1x8x128xf32>,
    %c2_i32 = arith.constant 2 : i32
    %c256_104 = arith.constant 256 : index
    %c0_105 = arith.constant 0 : index
    %271 = vector.load %arg4[%c256_104, %c0_105] : memref<384x512xf32, #tpu.memory_space<vmem>>, vector<128x512xf32>
    %cst_106 = arith.constant dense<0.000000e+00> : vector<8x512xf32>
    %272 = tpu.matmul %266, %271, %cst_106 {dimension_numbers = #tpu.dot_dimension_numbers<[1], [0], [0], [1], [0, 0, 1, 1], [], []>} : vector<8x128xf32>, vector<128x512xf32>, vector<8x512xf32> -> vector<8x512xf32>
    %273 = arith.index_cast %c2_i32 : i32 to index
    %c0_107 = arith.constant 0 : index
    %c0_108 = arith.constant 0 : index
    %274 = vector.load %arg1[%273, %c0_107, %c0_108] : memref<8x8x512xf32, #tpu.memory_space<vmem>>, vector<1x8x512xf32>
    %275 = vector.shape_cast %274 : vector<1x8x512xf32> to vector<8x512xf32>
    %c0_109 = arith.constant 0 : index
    %c0_110 = arith.constant 0 : index
    %276 = vector.load %arg3[%c0_109, %c0_110] : memref<128x512xf32, #tpu.memory_space<vmem>>, vector<128x512xf32>
    %cst_111 = arith.constant dense<0.000000e+00> : vector<8x512xf32>
    %277 = tpu.matmul %168, %276, %cst_111 {dimension_numbers = #tpu.dot_dimension_numbers<[1], [0], [0], [1], [0, 0, 1, 1], [], []>} : vector<8x128xf32>, vector<128x512xf32>, vector<8x512xf32> -> vector<8x512xf32>
    %278 = arith.addf %275, %277 : vector<8x512xf32>
    %279 = vector.extract_strided_slice %278 {offsets = [0, 0], sizes = [8, 128], strides = [1, 1]} : vector<8x512xf32> to vector<8x128xf32>
    %280 = arith.negf %279 : vector<8x128xf32>
    %281 = math.exp %280 : vector<8x128xf32>
    %cst_112 = arith.constant 1.000000e+00 : f32
    %282 = vector.broadcast %cst_112 : f32 to vector<8x128xf32>
    %283 = arith.addf %282, %281 : vector<8x128xf32>
    %284 = arith.divf %282, %283 : vector<8x128xf32>
    %285 = vector.extract_strided_slice %278 {offsets = [0, 128], sizes = [8, 128], strides = [1, 1]} : vector<8x512xf32> to vector<8x128xf32>
    %286 = arith.negf %285 : vector<8x128xf32>
    %287 = math.exp %286 : vector<8x128xf32>
    %cst_113 = arith.constant 1.000000e+00 : f32
    %288 = vector.broadcast %cst_113 : f32 to vector<8x128xf32>
    %289 = arith.addf %288, %287 : vector<8x128xf32>
    %290 = arith.divf %288, %289 : vector<8x128xf32>
    %291 = vector.extract_strided_slice %278 {offsets = [0, 256], sizes = [8, 128], strides = [1, 1]} : vector<8x512xf32> to vector<8x128xf32>
    %292 = math.tanh %291 : vector<8x128xf32>
    %293 = vector.extract_strided_slice %278 {offsets = [0, 384], sizes = [8, 128], strides = [1, 1]} : vector<8x512xf32> to vector<8x128xf32>
    %294 = arith.negf %293 : vector<8x128xf32>
    %295 = math.exp %294 : vector<8x128xf32>
    %cst_114 = arith.constant 1.000000e+00 : f32
    %296 = vector.broadcast %cst_114 : f32 to vector<8x128xf32>
    %297 = arith.addf %296, %295 : vector<8x128xf32>
    %298 = arith.divf %296, %297 : vector<8x128xf32>
    %299 = arith.mulf %290, %166 : vector<8x128xf32>
    %300 = arith.mulf %284, %292 : vector<8x128xf32>
    %301 = arith.addf %299, %300 : vector<8x128xf32>
    %302 = math.tanh %301 : vector<8x128xf32>
    %303 = arith.mulf %298, %302 : vector<8x128xf32>
    %cst_115 = arith.constant 0.000000e+00 : f32
    %304 = vector.broadcast %cst_115 : f32 to vector<8x128xf32>
    %c0_116 = arith.constant 0 : index
    %c0_117 = arith.constant 0 : index
    %c0_118 = arith.constant 0 : index
    %305 = vector.load %arg2[%c0_116, %c0_117, %c0_118] : memref<8x8x128xf32, #tpu.memory_space<vmem>>, vector<1x8x128xf32>
    %306 = vector.shape_cast %305 : vector<1x8x128xf32> to vector<8x128xf32>
    %307 = arith.mulf %303, %306 : vector<8x128xf32>
    %cst_119 = arith.constant dense<0.000000e+00> : vector<8xf32>
    %308 = vector.multi_reduction <add>, %307, %cst_119 [1] : vector<8x128xf32> to vector<8xf32>
    %309 = vector.shape_cast %308 : vector<8xf32> to vector<8x1xf32>
    %310 = vector.broadcast %309 : vector<8x1xf32> to vector<8x128xf32>
    %311 = arith.mulf %310, %306 : vector<8x128xf32>
    %312 = arith.addf %304, %311 : vector<8x128xf32>
    %c1_120 = arith.constant 1 : index
    %c0_121 = arith.constant 0 : index
    %c0_122 = arith.constant 0 : index
    %313 = vector.load %arg2[%c1_120, %c0_121, %c0_122] : memref<8x8x128xf32, #tpu.memory_space<vmem>>, vector<1x8x128xf32>
    %314 = vector.shape_cast %313 : vector<1x8x128xf32> to vector<8x128xf32>
    %315 = arith.mulf %303, %314 : vector<8x128xf32>
    %cst_123 = arith.constant dense<0.000000e+00> : vector<8xf32>
    %316 = vector.multi_reduction <add>, %315, %cst_123 [1] : vector<8x128xf32> to vector<8xf32>
    %317 = vector.shape_cast %316 : vector<8xf32> to vector<8x1xf32>
    %318 = vector.broadcast %317 : vector<8x1xf32> to vector<8x128xf32>
    %319 = arith.mulf %318, %314 : vector<8x128xf32>
    %320 = arith.addf %312, %319 : vector<8x128xf32>
    %c2_124 = arith.constant 2 : index
    %c0_125 = arith.constant 0 : index
    %c0_126 = arith.constant 0 : index
    %321 = vector.load %arg2[%c2_124, %c0_125, %c0_126] : memref<8x8x128xf32, #tpu.memory_space<vmem>>, vector<1x8x128xf32>
    %322 = vector.shape_cast %321 : vector<1x8x128xf32> to vector<8x128xf32>
    %323 = arith.mulf %303, %322 : vector<8x128xf32>
    %cst_127 = arith.constant dense<0.000000e+00> : vector<8xf32>
    %324 = vector.multi_reduction <add>, %323, %cst_127 [1] : vector<8x128xf32> to vector<8xf32>
    %325 = vector.shape_cast %324 : vector<8xf32> to vector<8x1xf32>
    %326 = vector.broadcast %325 : vector<8x1xf32> to vector<8x128xf32>
    %327 = arith.mulf %326, %322 : vector<8x128xf32>
    %328 = arith.addf %320, %327 : vector<8x128xf32>
    %c3_128 = arith.constant 3 : index
    %c0_129 = arith.constant 0 : index
    %c0_130 = arith.constant 0 : index
    %329 = vector.load %arg2[%c3_128, %c0_129, %c0_130] : memref<8x8x128xf32, #tpu.memory_space<vmem>>, vector<1x8x128xf32>
    %330 = vector.shape_cast %329 : vector<1x8x128xf32> to vector<8x128xf32>
    %331 = arith.mulf %303, %330 : vector<8x128xf32>
    %cst_131 = arith.constant dense<0.000000e+00> : vector<8xf32>
    %332 = vector.multi_reduction <add>, %331, %cst_131 [1] : vector<8x128xf32> to vector<8xf32>
    %333 = vector.shape_cast %332 : vector<8xf32> to vector<8x1xf32>
    %334 = vector.broadcast %333 : vector<8x1xf32> to vector<8x128xf32>
    %335 = arith.mulf %334, %330 : vector<8x128xf32>
    %336 = arith.addf %328, %335 : vector<8x128xf32>
    %c4_132 = arith.constant 4 : index
    %c0_133 = arith.constant 0 : index
    %c0_134 = arith.constant 0 : index
    %337 = vector.load %arg2[%c4_132, %c0_133, %c0_134] : memref<8x8x128xf32, #tpu.memory_space<vmem>>, vector<1x8x128xf32>
    %338 = vector.shape_cast %337 : vector<1x8x128xf32> to vector<8x128xf32>
    %339 = arith.mulf %303, %338 : vector<8x128xf32>
    %cst_135 = arith.constant dense<0.000000e+00> : vector<8xf32>
    %340 = vector.multi_reduction <add>, %339, %cst_135 [1] : vector<8x128xf32> to vector<8xf32>
    %341 = vector.shape_cast %340 : vector<8xf32> to vector<8x1xf32>
    %342 = vector.broadcast %341 : vector<8x1xf32> to vector<8x128xf32>
    %343 = arith.mulf %342, %338 : vector<8x128xf32>
    %344 = arith.addf %336, %343 : vector<8x128xf32>
    %c5_136 = arith.constant 5 : index
    %c0_137 = arith.constant 0 : index
    %c0_138 = arith.constant 0 : index
    %345 = vector.load %arg2[%c5_136, %c0_137, %c0_138] : memref<8x8x128xf32, #tpu.memory_space<vmem>>, vector<1x8x128xf32>
    %346 = vector.shape_cast %345 : vector<1x8x128xf32> to vector<8x128xf32>
    %347 = arith.mulf %303, %346 : vector<8x128xf32>
    %cst_139 = arith.constant dense<0.000000e+00> : vector<8xf32>
    %348 = vector.multi_reduction <add>, %347, %cst_139 [1] : vector<8x128xf32> to vector<8xf32>
    %349 = vector.shape_cast %348 : vector<8xf32> to vector<8x1xf32>
    %350 = vector.broadcast %349 : vector<8x1xf32> to vector<8x128xf32>
    %351 = arith.mulf %350, %346 : vector<8x128xf32>
    %352 = arith.addf %344, %351 : vector<8x128xf32>
    %c6_140 = arith.constant 6 : index
    %c0_141 = arith.constant 0 : index
    %c0_142 = arith.constant 0 : index
    %353 = vector.load %arg2[%c6_140, %c0_141, %c0_142] : memref<8x8x128xf32, #tpu.memory_space<vmem>>, vector<1x8x128xf32>
    %354 = vector.shape_cast %353 : vector<1x8x128xf32> to vector<8x128xf32>
    %355 = arith.mulf %303, %354 : vector<8x128xf32>
    %cst_143 = arith.constant dense<0.000000e+00> : vector<8xf32>
    %356 = vector.multi_reduction <add>, %355, %cst_143 [1] : vector<8x128xf32> to vector<8xf32>
    %357 = vector.shape_cast %356 : vector<8xf32> to vector<8x1xf32>
    %358 = vector.broadcast %357 : vector<8x1xf32> to vector<8x128xf32>
    %359 = arith.mulf %358, %354 : vector<8x128xf32>
    %360 = arith.addf %352, %359 : vector<8x128xf32>
    %c7_144 = arith.constant 7 : index
    %c0_145 = arith.constant 0 : index
    %c0_146 = arith.constant 0 : index
    %361 = vector.load %arg2[%c7_144, %c0_145, %c0_146] : memref<8x8x128xf32, #tpu.memory_space<vmem>>, vector<1x8x128xf32>
    %362 = vector.shape_cast %361 : vector<1x8x128xf32> to vector<8x128xf32>
    %363 = arith.mulf %303, %362 : vector<8x128xf32>
    %cst_147 = arith.constant dense<0.000000e+00> : vector<8xf32>
    %364 = vector.multi_reduction <add>, %363, %cst_147 [1] : vector<8x128xf32> to vector<8xf32>
    %365 = vector.shape_cast %364 : vector<8xf32> to vector<8x1xf32>
    %366 = vector.broadcast %365 : vector<8x1xf32> to vector<8x128xf32>
    %367 = arith.mulf %366, %362 : vector<8x128xf32>
    %368 = arith.addf %360, %367 : vector<8x128xf32>
    %c0_148 = arith.constant 0 : index
    %c0_149 = arith.constant 0 : index
    %369 = vector.load %arg4[%c0_148, %c0_149] : memref<384x512xf32, #tpu.memory_space<vmem>>, vector<128x512xf32>
    %cst_150 = arith.constant dense<0.000000e+00> : vector<8x512xf32>
    %370 = tpu.matmul %368, %369, %cst_150 {dimension_numbers = #tpu.dot_dimension_numbers<[1], [0], [0], [1], [0, 0, 1, 1], [], []>} : vector<8x128xf32>, vector<128x512xf32>, vector<8x512xf32> -> vector<8x512xf32>
    %c128_151 = arith.constant 128 : index
    %c0_152 = arith.constant 0 : index
    %371 = vector.load %arg4[%c128_151, %c0_152] : memref<384x512xf32, #tpu.memory_space<vmem>>, vector<128x512xf32>
    %cst_153 = arith.constant dense<0.000000e+00> : vector<8x512xf32>
    %372 = tpu.matmul %303, %371, %cst_153 {dimension_numbers = #tpu.dot_dimension_numbers<[1], [0], [0], [1], [0, 0, 1, 1], [], []>} : vector<8x128xf32>, vector<128x512xf32>, vector<8x512xf32> -> vector<8x512xf32>
    %373 = arith.addf %370, %372 : vector<8x512xf32>
    %374 = arith.addf %373, %272 : vector<8x512xf32>
    %c0_154 = arith.constant 0 : index
    %c0_155 = arith.constant 0 : index
    %375 = vector.load %arg5[%c0_154, %c0_155] : memref<8x512xf32, #tpu.memory_space<vmem>>, vector<8x512xf32>
    %376 = arith.addf %374, %375 : vector<8x512xf32>
    %377 = vector.extract_strided_slice %376 {offsets = [0, 0], sizes = [8, 128], strides = [1, 1]} : vector<8x512xf32> to vector<8x128xf32>
    %378 = arith.negf %377 : vector<8x128xf32>
    %379 = math.exp %378 : vector<8x128xf32>
    %cst_156 = arith.constant 1.000000e+00 : f32
    %380 = vector.broadcast %cst_156 : f32 to vector<8x128xf32>
    %381 = arith.addf %380, %379 : vector<8x128xf32>
    %382 = arith.divf %380, %381 : vector<8x128xf32>
    %383 = vector.extract_strided_slice %376 {offsets = [0, 128], sizes = [8, 128], strides = [1, 1]} : vector<8x512xf32> to vector<8x128xf32>
    %384 = arith.negf %383 : vector<8x128xf32>
    %385 = math.exp %384 : vector<8x128xf32>
    %cst_157 = arith.constant 1.000000e+00 : f32
    %386 = vector.broadcast %cst_157 : f32 to vector<8x128xf32>
    %387 = arith.addf %386, %385 : vector<8x128xf32>
    %388 = arith.divf %386, %387 : vector<8x128xf32>
    %389 = vector.extract_strided_slice %376 {offsets = [0, 256], sizes = [8, 128], strides = [1, 1]} : vector<8x512xf32> to vector<8x128xf32>
    %390 = math.tanh %389 : vector<8x128xf32>
    %391 = vector.extract_strided_slice %376 {offsets = [0, 384], sizes = [8, 128], strides = [1, 1]} : vector<8x512xf32> to vector<8x128xf32>
    %392 = arith.negf %391 : vector<8x128xf32>
    %393 = math.exp %392 : vector<8x128xf32>
    %cst_158 = arith.constant 1.000000e+00 : f32
    %394 = vector.broadcast %cst_158 : f32 to vector<8x128xf32>
    %395 = arith.addf %394, %393 : vector<8x128xf32>
    %396 = arith.divf %394, %395 : vector<8x128xf32>
    %397 = arith.mulf %388, %264 : vector<8x128xf32>
    %398 = arith.mulf %382, %390 : vector<8x128xf32>
    %399 = arith.addf %397, %398 : vector<8x128xf32>
    %400 = math.tanh %399 : vector<8x128xf32>
    %401 = arith.mulf %396, %400 : vector<8x128xf32>
    %402 = arith.index_cast %c2_i32 : i32 to index
    %c0_159 = arith.constant 0 : index
    %c0_160 = arith.constant 0 : index
    %403 = vector.load %arg6[%402, %c0_159, %c0_160] : memref<8x8x128xf32, #tpu.memory_space<vmem>>, vector<1x8x128xf32>
    %404 = vector.shape_cast %403 : vector<1x8x128xf32> to vector<8x128xf32>
    %405 = vector.shape_cast %401 : vector<8x128xf32> to vector<1x8x128xf32>
    tpu.vector_store %arg6[%402, %c0_159, %c0_160], %405 {strides = array<i32>} : memref<8x8x128xf32, #tpu.memory_space<vmem>>, vector<1x8x128xf32>,
    %c3_i32 = arith.constant 3 : i32
    %c256_161 = arith.constant 256 : index
    %c0_162 = arith.constant 0 : index
    %406 = vector.load %arg4[%c256_161, %c0_162] : memref<384x512xf32, #tpu.memory_space<vmem>>, vector<128x512xf32>
    %cst_163 = arith.constant dense<0.000000e+00> : vector<8x512xf32>
    %407 = tpu.matmul %401, %406, %cst_163 {dimension_numbers = #tpu.dot_dimension_numbers<[1], [0], [0], [1], [0, 0, 1, 1], [], []>} : vector<8x128xf32>, vector<128x512xf32>, vector<8x512xf32> -> vector<8x512xf32>
    %408 = arith.index_cast %c3_i32 : i32 to index
    %c0_164 = arith.constant 0 : index
    %c0_165 = arith.constant 0 : index
    %409 = vector.load %arg1[%408, %c0_164, %c0_165] : memref<8x8x512xf32, #tpu.memory_space<vmem>>, vector<1x8x512xf32>
    %410 = vector.shape_cast %409 : vector<1x8x512xf32> to vector<8x512xf32>
    %c0_166 = arith.constant 0 : index
    %c0_167 = arith.constant 0 : index
    %411 = vector.load %arg3[%c0_166, %c0_167] : memref<128x512xf32, #tpu.memory_space<vmem>>, vector<128x512xf32>
    %cst_168 = arith.constant dense<0.000000e+00> : vector<8x512xf32>
    %412 = tpu.matmul %303, %411, %cst_168 {dimension_numbers = #tpu.dot_dimension_numbers<[1], [0], [0], [1], [0, 0, 1, 1], [], []>} : vector<8x128xf32>, vector<128x512xf32>, vector<8x512xf32> -> vector<8x512xf32>
    %413 = arith.addf %410, %412 : vector<8x512xf32>
    %414 = vector.extract_strided_slice %413 {offsets = [0, 0], sizes = [8, 128], strides = [1, 1]} : vector<8x512xf32> to vector<8x128xf32>
    %415 = arith.negf %414 : vector<8x128xf32>
    %416 = math.exp %415 : vector<8x128xf32>
    %cst_169 = arith.constant 1.000000e+00 : f32
    %417 = vector.broadcast %cst_169 : f32 to vector<8x128xf32>
    %418 = arith.addf %417, %416 : vector<8x128xf32>
    %419 = arith.divf %417, %418 : vector<8x128xf32>
    %420 = vector.extract_strided_slice %413 {offsets = [0, 128], sizes = [8, 128], strides = [1, 1]} : vector<8x512xf32> to vector<8x128xf32>
    %421 = arith.negf %420 : vector<8x128xf32>
    %422 = math.exp %421 : vector<8x128xf32>
    %cst_170 = arith.constant 1.000000e+00 : f32
    %423 = vector.broadcast %cst_170 : f32 to vector<8x128xf32>
    %424 = arith.addf %423, %422 : vector<8x128xf32>
    %425 = arith.divf %423, %424 : vector<8x128xf32>
    %426 = vector.extract_strided_slice %413 {offsets = [0, 256], sizes = [8, 128], strides = [1, 1]} : vector<8x512xf32> to vector<8x128xf32>
    %427 = math.tanh %426 : vector<8x128xf32>
    %428 = vector.extract_strided_slice %413 {offsets = [0, 384], sizes = [8, 128], strides = [1, 1]} : vector<8x512xf32> to vector<8x128xf32>
    %429 = arith.negf %428 : vector<8x128xf32>
    %430 = math.exp %429 : vector<8x128xf32>
    %cst_171 = arith.constant 1.000000e+00 : f32
    %431 = vector.broadcast %cst_171 : f32 to vector<8x128xf32>
    %432 = arith.addf %431, %430 : vector<8x128xf32>
    %433 = arith.divf %431, %432 : vector<8x128xf32>
    %434 = arith.mulf %425, %301 : vector<8x128xf32>
    %435 = arith.mulf %419, %427 : vector<8x128xf32>
    %436 = arith.addf %434, %435 : vector<8x128xf32>
    %437 = math.tanh %436 : vector<8x128xf32>
    %438 = arith.mulf %433, %437 : vector<8x128xf32>
    %cst_172 = arith.constant 0.000000e+00 : f32
    %439 = vector.broadcast %cst_172 : f32 to vector<8x128xf32>
    %c0_173 = arith.constant 0 : index
    %c0_174 = arith.constant 0 : index
    %c0_175 = arith.constant 0 : index
    %440 = vector.load %arg2[%c0_173, %c0_174, %c0_175] : memref<8x8x128xf32, #tpu.memory_space<vmem>>, vector<1x8x128xf32>
    %441 = vector.shape_cast %440 : vector<1x8x128xf32> to vector<8x128xf32>
    %442 = arith.mulf %438, %441 : vector<8x128xf32>
    %cst_176 = arith.constant dense<0.000000e+00> : vector<8xf32>
    %443 = vector.multi_reduction <add>, %442, %cst_176 [1] : vector<8x128xf32> to vector<8xf32>
    %444 = vector.shape_cast %443 : vector<8xf32> to vector<8x1xf32>
    %445 = vector.broadcast %444 : vector<8x1xf32> to vector<8x128xf32>
    %446 = arith.mulf %445, %441 : vector<8x128xf32>
    %447 = arith.addf %439, %446 : vector<8x128xf32>
    %c1_177 = arith.constant 1 : index
    %c0_178 = arith.constant 0 : index
    %c0_179 = arith.constant 0 : index
    %448 = vector.load %arg2[%c1_177, %c0_178, %c0_179] : memref<8x8x128xf32, #tpu.memory_space<vmem>>, vector<1x8x128xf32>
    %449 = vector.shape_cast %448 : vector<1x8x128xf32> to vector<8x128xf32>
    %450 = arith.mulf %438, %449 : vector<8x128xf32>
    %cst_180 = arith.constant dense<0.000000e+00> : vector<8xf32>
    %451 = vector.multi_reduction <add>, %450, %cst_180 [1] : vector<8x128xf32> to vector<8xf32>
    %452 = vector.shape_cast %451 : vector<8xf32> to vector<8x1xf32>
    %453 = vector.broadcast %452 : vector<8x1xf32> to vector<8x128xf32>
    %454 = arith.mulf %453, %449 : vector<8x128xf32>
    %455 = arith.addf %447, %454 : vector<8x128xf32>
    %c2_181 = arith.constant 2 : index
    %c0_182 = arith.constant 0 : index
    %c0_183 = arith.constant 0 : index
    %456 = vector.load %arg2[%c2_181, %c0_182, %c0_183] : memref<8x8x128xf32, #tpu.memory_space<vmem>>, vector<1x8x128xf32>
    %457 = vector.shape_cast %456 : vector<1x8x128xf32> to vector<8x128xf32>
    %458 = arith.mulf %438, %457 : vector<8x128xf32>
    %cst_184 = arith.constant dense<0.000000e+00> : vector<8xf32>
    %459 = vector.multi_reduction <add>, %458, %cst_184 [1] : vector<8x128xf32> to vector<8xf32>
    %460 = vector.shape_cast %459 : vector<8xf32> to vector<8x1xf32>
    %461 = vector.broadcast %460 : vector<8x1xf32> to vector<8x128xf32>
    %462 = arith.mulf %461, %457 : vector<8x128xf32>
    %463 = arith.addf %455, %462 : vector<8x128xf32>
    %c3_185 = arith.constant 3 : index
    %c0_186 = arith.constant 0 : index
    %c0_187 = arith.constant 0 : index
    %464 = vector.load %arg2[%c3_185, %c0_186, %c0_187] : memref<8x8x128xf32, #tpu.memory_space<vmem>>, vector<1x8x128xf32>
    %465 = vector.shape_cast %464 : vector<1x8x128xf32> to vector<8x128xf32>
    %466 = arith.mulf %438, %465 : vector<8x128xf32>
    %cst_188 = arith.constant dense<0.000000e+00> : vector<8xf32>
    %467 = vector.multi_reduction <add>, %466, %cst_188 [1] : vector<8x128xf32> to vector<8xf32>
    %468 = vector.shape_cast %467 : vector<8xf32> to vector<8x1xf32>
    %469 = vector.broadcast %468 : vector<8x1xf32> to vector<8x128xf32>
    %470 = arith.mulf %469, %465 : vector<8x128xf32>
    %471 = arith.addf %463, %470 : vector<8x128xf32>
    %c4_189 = arith.constant 4 : index
    %c0_190 = arith.constant 0 : index
    %c0_191 = arith.constant 0 : index
    %472 = vector.load %arg2[%c4_189, %c0_190, %c0_191] : memref<8x8x128xf32, #tpu.memory_space<vmem>>, vector<1x8x128xf32>
    %473 = vector.shape_cast %472 : vector<1x8x128xf32> to vector<8x128xf32>
    %474 = arith.mulf %438, %473 : vector<8x128xf32>
    %cst_192 = arith.constant dense<0.000000e+00> : vector<8xf32>
    %475 = vector.multi_reduction <add>, %474, %cst_192 [1] : vector<8x128xf32> to vector<8xf32>
    %476 = vector.shape_cast %475 : vector<8xf32> to vector<8x1xf32>
    %477 = vector.broadcast %476 : vector<8x1xf32> to vector<8x128xf32>
    %478 = arith.mulf %477, %473 : vector<8x128xf32>
    %479 = arith.addf %471, %478 : vector<8x128xf32>
    %c5_193 = arith.constant 5 : index
    %c0_194 = arith.constant 0 : index
    %c0_195 = arith.constant 0 : index
    %480 = vector.load %arg2[%c5_193, %c0_194, %c0_195] : memref<8x8x128xf32, #tpu.memory_space<vmem>>, vector<1x8x128xf32>
    %481 = vector.shape_cast %480 : vector<1x8x128xf32> to vector<8x128xf32>
    %482 = arith.mulf %438, %481 : vector<8x128xf32>
    %cst_196 = arith.constant dense<0.000000e+00> : vector<8xf32>
    %483 = vector.multi_reduction <add>, %482, %cst_196 [1] : vector<8x128xf32> to vector<8xf32>
    %484 = vector.shape_cast %483 : vector<8xf32> to vector<8x1xf32>
    %485 = vector.broadcast %484 : vector<8x1xf32> to vector<8x128xf32>
    %486 = arith.mulf %485, %481 : vector<8x128xf32>
    %487 = arith.addf %479, %486 : vector<8x128xf32>
    %c6_197 = arith.constant 6 : index
    %c0_198 = arith.constant 0 : index
    %c0_199 = arith.constant 0 : index
    %488 = vector.load %arg2[%c6_197, %c0_198, %c0_199] : memref<8x8x128xf32, #tpu.memory_space<vmem>>, vector<1x8x128xf32>
    %489 = vector.shape_cast %488 : vector<1x8x128xf32> to vector<8x128xf32>
    %490 = arith.mulf %438, %489 : vector<8x128xf32>
    %cst_200 = arith.constant dense<0.000000e+00> : vector<8xf32>
    %491 = vector.multi_reduction <add>, %490, %cst_200 [1] : vector<8x128xf32> to vector<8xf32>
    %492 = vector.shape_cast %491 : vector<8xf32> to vector<8x1xf32>
    %493 = vector.broadcast %492 : vector<8x1xf32> to vector<8x128xf32>
    %494 = arith.mulf %493, %489 : vector<8x128xf32>
    %495 = arith.addf %487, %494 : vector<8x128xf32>
    %c7_201 = arith.constant 7 : index
    %c0_202 = arith.constant 0 : index
    %c0_203 = arith.constant 0 : index
    %496 = vector.load %arg2[%c7_201, %c0_202, %c0_203] : memref<8x8x128xf32, #tpu.memory_space<vmem>>, vector<1x8x128xf32>
    %497 = vector.shape_cast %496 : vector<1x8x128xf32> to vector<8x128xf32>
    %498 = arith.mulf %438, %497 : vector<8x128xf32>
    %cst_204 = arith.constant dense<0.000000e+00> : vector<8xf32>
    %499 = vector.multi_reduction <add>, %498, %cst_204 [1] : vector<8x128xf32> to vector<8xf32>
    %500 = vector.shape_cast %499 : vector<8xf32> to vector<8x1xf32>
    %501 = vector.broadcast %500 : vector<8x1xf32> to vector<8x128xf32>
    %502 = arith.mulf %501, %497 : vector<8x128xf32>
    %503 = arith.addf %495, %502 : vector<8x128xf32>
    %c0_205 = arith.constant 0 : index
    %c0_206 = arith.constant 0 : index
    %504 = vector.load %arg4[%c0_205, %c0_206] : memref<384x512xf32, #tpu.memory_space<vmem>>, vector<128x512xf32>
    %cst_207 = arith.constant dense<0.000000e+00> : vector<8x512xf32>
    %505 = tpu.matmul %503, %504, %cst_207 {dimension_numbers = #tpu.dot_dimension_numbers<[1], [0], [0], [1], [0, 0, 1, 1], [], []>} : vector<8x128xf32>, vector<128x512xf32>, vector<8x512xf32> -> vector<8x512xf32>
    %c128_208 = arith.constant 128 : index
    %c0_209 = arith.constant 0 : index
    %506 = vector.load %arg4[%c128_208, %c0_209] : memref<384x512xf32, #tpu.memory_space<vmem>>, vector<128x512xf32>
    %cst_210 = arith.constant dense<0.000000e+00> : vector<8x512xf32>
    %507 = tpu.matmul %438, %506, %cst_210 {dimension_numbers = #tpu.dot_dimension_numbers<[1], [0], [0], [1], [0, 0, 1, 1], [], []>} : vector<8x128xf32>, vector<128x512xf32>, vector<8x512xf32> -> vector<8x512xf32>
    %508 = arith.addf %505, %507 : vector<8x512xf32>
    %509 = arith.addf %508, %407 : vector<8x512xf32>
    %c0_211 = arith.constant 0 : index
    %c0_212 = arith.constant 0 : index
    %510 = vector.load %arg5[%c0_211, %c0_212] : memref<8x512xf32, #tpu.memory_space<vmem>>, vector<8x512xf32>
    %511 = arith.addf %509, %510 : vector<8x512xf32>
    %512 = vector.extract_strided_slice %511 {offsets = [0, 0], sizes = [8, 128], strides = [1, 1]} : vector<8x512xf32> to vector<8x128xf32>
    %513 = arith.negf %512 : vector<8x128xf32>
    %514 = math.exp %513 : vector<8x128xf32>
    %cst_213 = arith.constant 1.000000e+00 : f32
    %515 = vector.broadcast %cst_213 : f32 to vector<8x128xf32>
    %516 = arith.addf %515, %514 : vector<8x128xf32>
    %517 = arith.divf %515, %516 : vector<8x128xf32>
    %518 = vector.extract_strided_slice %511 {offsets = [0, 128], sizes = [8, 128], strides = [1, 1]} : vector<8x512xf32> to vector<8x128xf32>
    %519 = arith.negf %518 : vector<8x128xf32>
    %520 = math.exp %519 : vector<8x128xf32>
    %cst_214 = arith.constant 1.000000e+00 : f32
    %521 = vector.broadcast %cst_214 : f32 to vector<8x128xf32>
    %522 = arith.addf %521, %520 : vector<8x128xf32>
    %523 = arith.divf %521, %522 : vector<8x128xf32>
    %524 = vector.extract_strided_slice %511 {offsets = [0, 256], sizes = [8, 128], strides = [1, 1]} : vector<8x512xf32> to vector<8x128xf32>
    %525 = math.tanh %524 : vector<8x128xf32>
    %526 = vector.extract_strided_slice %511 {offsets = [0, 384], sizes = [8, 128], strides = [1, 1]} : vector<8x512xf32> to vector<8x128xf32>
    %527 = arith.negf %526 : vector<8x128xf32>
    %528 = math.exp %527 : vector<8x128xf32>
    %cst_215 = arith.constant 1.000000e+00 : f32
    %529 = vector.broadcast %cst_215 : f32 to vector<8x128xf32>
    %530 = arith.addf %529, %528 : vector<8x128xf32>
    %531 = arith.divf %529, %530 : vector<8x128xf32>
    %532 = arith.mulf %523, %399 : vector<8x128xf32>
    %533 = arith.mulf %517, %525 : vector<8x128xf32>
    %534 = arith.addf %532, %533 : vector<8x128xf32>
    %535 = math.tanh %534 : vector<8x128xf32>
    %536 = arith.mulf %531, %535 : vector<8x128xf32>
    %537 = arith.index_cast %c3_i32 : i32 to index
    %c0_216 = arith.constant 0 : index
    %c0_217 = arith.constant 0 : index
    %538 = vector.load %arg6[%537, %c0_216, %c0_217] : memref<8x8x128xf32, #tpu.memory_space<vmem>>, vector<1x8x128xf32>
    %539 = vector.shape_cast %538 : vector<1x8x128xf32> to vector<8x128xf32>
    %540 = vector.shape_cast %536 : vector<8x128xf32> to vector<1x8x128xf32>
    tpu.vector_store %arg6[%537, %c0_216, %c0_217], %540 {strides = array<i32>} : memref<8x8x128xf32, #tpu.memory_space<vmem>>, vector<1x8x128xf32>,
    %c4_i32 = arith.constant 4 : i32
    %c256_218 = arith.constant 256 : index
    %c0_219 = arith.constant 0 : index
    %541 = vector.load %arg4[%c256_218, %c0_219] : memref<384x512xf32, #tpu.memory_space<vmem>>, vector<128x512xf32>
    %cst_220 = arith.constant dense<0.000000e+00> : vector<8x512xf32>
    %542 = tpu.matmul %536, %541, %cst_220 {dimension_numbers = #tpu.dot_dimension_numbers<[1], [0], [0], [1], [0, 0, 1, 1], [], []>} : vector<8x128xf32>, vector<128x512xf32>, vector<8x512xf32> -> vector<8x512xf32>
    %543 = arith.index_cast %c4_i32 : i32 to index
    %c0_221 = arith.constant 0 : index
    %c0_222 = arith.constant 0 : index
    %544 = vector.load %arg1[%543, %c0_221, %c0_222] : memref<8x8x512xf32, #tpu.memory_space<vmem>>, vector<1x8x512xf32>
    %545 = vector.shape_cast %544 : vector<1x8x512xf32> to vector<8x512xf32>
    %c0_223 = arith.constant 0 : index
    %c0_224 = arith.constant 0 : index
    %546 = vector.load %arg3[%c0_223, %c0_224] : memref<128x512xf32, #tpu.memory_space<vmem>>, vector<128x512xf32>
    %cst_225 = arith.constant dense<0.000000e+00> : vector<8x512xf32>
    %547 = tpu.matmul %438, %546, %cst_225 {dimension_numbers = #tpu.dot_dimension_numbers<[1], [0], [0], [1], [0, 0, 1, 1], [], []>} : vector<8x128xf32>, vector<128x512xf32>, vector<8x512xf32> -> vector<8x512xf32>
    %548 = arith.addf %545, %547 : vector<8x512xf32>
    %549 = vector.extract_strided_slice %548 {offsets = [0, 0], sizes = [8, 128], strides = [1, 1]} : vector<8x512xf32> to vector<8x128xf32>
    %550 = arith.negf %549 : vector<8x128xf32>
    %551 = math.exp %550 : vector<8x128xf32>
    %cst_226 = arith.constant 1.000000e+00 : f32
    %552 = vector.broadcast %cst_226 : f32 to vector<8x128xf32>
    %553 = arith.addf %552, %551 : vector<8x128xf32>
    %554 = arith.divf %552, %553 : vector<8x128xf32>
    %555 = vector.extract_strided_slice %548 {offsets = [0, 128], sizes = [8, 128], strides = [1, 1]} : vector<8x512xf32> to vector<8x128xf32>
    %556 = arith.negf %555 : vector<8x128xf32>
    %557 = math.exp %556 : vector<8x128xf32>
    %cst_227 = arith.constant 1.000000e+00 : f32
    %558 = vector.broadcast %cst_227 : f32 to vector<8x128xf32>
    %559 = arith.addf %558, %557 : vector<8x128xf32>
    %560 = arith.divf %558, %559 : vector<8x128xf32>
    %561 = vector.extract_strided_slice %548 {offsets = [0, 256], sizes = [8, 128], strides = [1, 1]} : vector<8x512xf32> to vector<8x128xf32>
    %562 = math.tanh %561 : vector<8x128xf32>
    %563 = vector.extract_strided_slice %548 {offsets = [0, 384], sizes = [8, 128], strides = [1, 1]} : vector<8x512xf32> to vector<8x128xf32>
    %564 = arith.negf %563 : vector<8x128xf32>
    %565 = math.exp %564 : vector<8x128xf32>
    %cst_228 = arith.constant 1.000000e+00 : f32
    %566 = vector.broadcast %cst_228 : f32 to vector<8x128xf32>
    %567 = arith.addf %566, %565 : vector<8x128xf32>
    %568 = arith.divf %566, %567 : vector<8x128xf32>
    %569 = arith.mulf %560, %436 : vector<8x128xf32>
    %570 = arith.mulf %554, %562 : vector<8x128xf32>
    %571 = arith.addf %569, %570 : vector<8x128xf32>
    %572 = math.tanh %571 : vector<8x128xf32>
    %573 = arith.mulf %568, %572 : vector<8x128xf32>
    %cst_229 = arith.constant 0.000000e+00 : f32
    %574 = vector.broadcast %cst_229 : f32 to vector<8x128xf32>
    %c0_230 = arith.constant 0 : index
    %c0_231 = arith.constant 0 : index
    %c0_232 = arith.constant 0 : index
    %575 = vector.load %arg2[%c0_230, %c0_231, %c0_232] : memref<8x8x128xf32, #tpu.memory_space<vmem>>, vector<1x8x128xf32>
    %576 = vector.shape_cast %575 : vector<1x8x128xf32> to vector<8x128xf32>
    %577 = arith.mulf %573, %576 : vector<8x128xf32>
    %cst_233 = arith.constant dense<0.000000e+00> : vector<8xf32>
    %578 = vector.multi_reduction <add>, %577, %cst_233 [1] : vector<8x128xf32> to vector<8xf32>
    %579 = vector.shape_cast %578 : vector<8xf32> to vector<8x1xf32>
    %580 = vector.broadcast %579 : vector<8x1xf32> to vector<8x128xf32>
    %581 = arith.mulf %580, %576 : vector<8x128xf32>
    %582 = arith.addf %574, %581 : vector<8x128xf32>
    %c1_234 = arith.constant 1 : index
    %c0_235 = arith.constant 0 : index
    %c0_236 = arith.constant 0 : index
    %583 = vector.load %arg2[%c1_234, %c0_235, %c0_236] : memref<8x8x128xf32, #tpu.memory_space<vmem>>, vector<1x8x128xf32>
    %584 = vector.shape_cast %583 : vector<1x8x128xf32> to vector<8x128xf32>
    %585 = arith.mulf %573, %584 : vector<8x128xf32>
    %cst_237 = arith.constant dense<0.000000e+00> : vector<8xf32>
    %586 = vector.multi_reduction <add>, %585, %cst_237 [1] : vector<8x128xf32> to vector<8xf32>
    %587 = vector.shape_cast %586 : vector<8xf32> to vector<8x1xf32>
    %588 = vector.broadcast %587 : vector<8x1xf32> to vector<8x128xf32>
    %589 = arith.mulf %588, %584 : vector<8x128xf32>
    %590 = arith.addf %582, %589 : vector<8x128xf32>
    %c2_238 = arith.constant 2 : index
    %c0_239 = arith.constant 0 : index
    %c0_240 = arith.constant 0 : index
    %591 = vector.load %arg2[%c2_238, %c0_239, %c0_240] : memref<8x8x128xf32, #tpu.memory_space<vmem>>, vector<1x8x128xf32>
    %592 = vector.shape_cast %591 : vector<1x8x128xf32> to vector<8x128xf32>
    %593 = arith.mulf %573, %592 : vector<8x128xf32>
    %cst_241 = arith.constant dense<0.000000e+00> : vector<8xf32>
    %594 = vector.multi_reduction <add>, %593, %cst_241 [1] : vector<8x128xf32> to vector<8xf32>
    %595 = vector.shape_cast %594 : vector<8xf32> to vector<8x1xf32>
    %596 = vector.broadcast %595 : vector<8x1xf32> to vector<8x128xf32>
    %597 = arith.mulf %596, %592 : vector<8x128xf32>
    %598 = arith.addf %590, %597 : vector<8x128xf32>
    %c3_242 = arith.constant 3 : index
    %c0_243 = arith.constant 0 : index
    %c0_244 = arith.constant 0 : index
    %599 = vector.load %arg2[%c3_242, %c0_243, %c0_244] : memref<8x8x128xf32, #tpu.memory_space<vmem>>, vector<1x8x128xf32>
    %600 = vector.shape_cast %599 : vector<1x8x128xf32> to vector<8x128xf32>
    %601 = arith.mulf %573, %600 : vector<8x128xf32>
    %cst_245 = arith.constant dense<0.000000e+00> : vector<8xf32>
    %602 = vector.multi_reduction <add>, %601, %cst_245 [1] : vector<8x128xf32> to vector<8xf32>
    %603 = vector.shape_cast %602 : vector<8xf32> to vector<8x1xf32>
    %604 = vector.broadcast %603 : vector<8x1xf32> to vector<8x128xf32>
    %605 = arith.mulf %604, %600 : vector<8x128xf32>
    %606 = arith.addf %598, %605 : vector<8x128xf32>
    %c4_246 = arith.constant 4 : index
    %c0_247 = arith.constant 0 : index
    %c0_248 = arith.constant 0 : index
    %607 = vector.load %arg2[%c4_246, %c0_247, %c0_248] : memref<8x8x128xf32, #tpu.memory_space<vmem>>, vector<1x8x128xf32>
    %608 = vector.shape_cast %607 : vector<1x8x128xf32> to vector<8x128xf32>
    %609 = arith.mulf %573, %608 : vector<8x128xf32>
    %cst_249 = arith.constant dense<0.000000e+00> : vector<8xf32>
    %610 = vector.multi_reduction <add>, %609, %cst_249 [1] : vector<8x128xf32> to vector<8xf32>
    %611 = vector.shape_cast %610 : vector<8xf32> to vector<8x1xf32>
    %612 = vector.broadcast %611 : vector<8x1xf32> to vector<8x128xf32>
    %613 = arith.mulf %612, %608 : vector<8x128xf32>
    %614 = arith.addf %606, %613 : vector<8x128xf32>
    %c5_250 = arith.constant 5 : index
    %c0_251 = arith.constant 0 : index
    %c0_252 = arith.constant 0 : index
    %615 = vector.load %arg2[%c5_250, %c0_251, %c0_252] : memref<8x8x128xf32, #tpu.memory_space<vmem>>, vector<1x8x128xf32>
    %616 = vector.shape_cast %615 : vector<1x8x128xf32> to vector<8x128xf32>
    %617 = arith.mulf %573, %616 : vector<8x128xf32>
    %cst_253 = arith.constant dense<0.000000e+00> : vector<8xf32>
    %618 = vector.multi_reduction <add>, %617, %cst_253 [1] : vector<8x128xf32> to vector<8xf32>
    %619 = vector.shape_cast %618 : vector<8xf32> to vector<8x1xf32>
    %620 = vector.broadcast %619 : vector<8x1xf32> to vector<8x128xf32>
    %621 = arith.mulf %620, %616 : vector<8x128xf32>
    %622 = arith.addf %614, %621 : vector<8x128xf32>
    %c6_254 = arith.constant 6 : index
    %c0_255 = arith.constant 0 : index
    %c0_256 = arith.constant 0 : index
    %623 = vector.load %arg2[%c6_254, %c0_255, %c0_256] : memref<8x8x128xf32, #tpu.memory_space<vmem>>, vector<1x8x128xf32>
    %624 = vector.shape_cast %623 : vector<1x8x128xf32> to vector<8x128xf32>
    %625 = arith.mulf %573, %624 : vector<8x128xf32>
    %cst_257 = arith.constant dense<0.000000e+00> : vector<8xf32>
    %626 = vector.multi_reduction <add>, %625, %cst_257 [1] : vector<8x128xf32> to vector<8xf32>
    %627 = vector.shape_cast %626 : vector<8xf32> to vector<8x1xf32>
    %628 = vector.broadcast %627 : vector<8x1xf32> to vector<8x128xf32>
    %629 = arith.mulf %628, %624 : vector<8x128xf32>
    %630 = arith.addf %622, %629 : vector<8x128xf32>
    %c7_258 = arith.constant 7 : index
    %c0_259 = arith.constant 0 : index
    %c0_260 = arith.constant 0 : index
    %631 = vector.load %arg2[%c7_258, %c0_259, %c0_260] : memref<8x8x128xf32, #tpu.memory_space<vmem>>, vector<1x8x128xf32>
    %632 = vector.shape_cast %631 : vector<1x8x128xf32> to vector<8x128xf32>
    %633 = arith.mulf %573, %632 : vector<8x128xf32>
    %cst_261 = arith.constant dense<0.000000e+00> : vector<8xf32>
    %634 = vector.multi_reduction <add>, %633, %cst_261 [1] : vector<8x128xf32> to vector<8xf32>
    %635 = vector.shape_cast %634 : vector<8xf32> to vector<8x1xf32>
    %636 = vector.broadcast %635 : vector<8x1xf32> to vector<8x128xf32>
    %637 = arith.mulf %636, %632 : vector<8x128xf32>
    %638 = arith.addf %630, %637 : vector<8x128xf32>
    %c0_262 = arith.constant 0 : index
    %c0_263 = arith.constant 0 : index
    %639 = vector.load %arg4[%c0_262, %c0_263] : memref<384x512xf32, #tpu.memory_space<vmem>>, vector<128x512xf32>
    %cst_264 = arith.constant dense<0.000000e+00> : vector<8x512xf32>
    %640 = tpu.matmul %638, %639, %cst_264 {dimension_numbers = #tpu.dot_dimension_numbers<[1], [0], [0], [1], [0, 0, 1, 1], [], []>} : vector<8x128xf32>, vector<128x512xf32>, vector<8x512xf32> -> vector<8x512xf32>
    %c128_265 = arith.constant 128 : index
    %c0_266 = arith.constant 0 : index
    %641 = vector.load %arg4[%c128_265, %c0_266] : memref<384x512xf32, #tpu.memory_space<vmem>>, vector<128x512xf32>
    %cst_267 = arith.constant dense<0.000000e+00> : vector<8x512xf32>
    %642 = tpu.matmul %573, %641, %cst_267 {dimension_numbers = #tpu.dot_dimension_numbers<[1], [0], [0], [1], [0, 0, 1, 1], [], []>} : vector<8x128xf32>, vector<128x512xf32>, vector<8x512xf32> -> vector<8x512xf32>
    %643 = arith.addf %640, %642 : vector<8x512xf32>
    %644 = arith.addf %643, %542 : vector<8x512xf32>
    %c0_268 = arith.constant 0 : index
    %c0_269 = arith.constant 0 : index
    %645 = vector.load %arg5[%c0_268, %c0_269] : memref<8x512xf32, #tpu.memory_space<vmem>>, vector<8x512xf32>
    %646 = arith.addf %644, %645 : vector<8x512xf32>
    %647 = vector.extract_strided_slice %646 {offsets = [0, 0], sizes = [8, 128], strides = [1, 1]} : vector<8x512xf32> to vector<8x128xf32>
    %648 = arith.negf %647 : vector<8x128xf32>
    %649 = math.exp %648 : vector<8x128xf32>
    %cst_270 = arith.constant 1.000000e+00 : f32
    %650 = vector.broadcast %cst_270 : f32 to vector<8x128xf32>
    %651 = arith.addf %650, %649 : vector<8x128xf32>
    %652 = arith.divf %650, %651 : vector<8x128xf32>
    %653 = vector.extract_strided_slice %646 {offsets = [0, 128], sizes = [8, 128], strides = [1, 1]} : vector<8x512xf32> to vector<8x128xf32>
    %654 = arith.negf %653 : vector<8x128xf32>
    %655 = math.exp %654 : vector<8x128xf32>
    %cst_271 = arith.constant 1.000000e+00 : f32
    %656 = vector.broadcast %cst_271 : f32 to vector<8x128xf32>
    %657 = arith.addf %656, %655 : vector<8x128xf32>
    %658 = arith.divf %656, %657 : vector<8x128xf32>
    %659 = vector.extract_strided_slice %646 {offsets = [0, 256], sizes = [8, 128], strides = [1, 1]} : vector<8x512xf32> to vector<8x128xf32>
    %660 = math.tanh %659 : vector<8x128xf32>
    %661 = vector.extract_strided_slice %646 {offsets = [0, 384], sizes = [8, 128], strides = [1, 1]} : vector<8x512xf32> to vector<8x128xf32>
    %662 = arith.negf %661 : vector<8x128xf32>
    %663 = math.exp %662 : vector<8x128xf32>
    %cst_272 = arith.constant 1.000000e+00 : f32
    %664 = vector.broadcast %cst_272 : f32 to vector<8x128xf32>
    %665 = arith.addf %664, %663 : vector<8x128xf32>
    %666 = arith.divf %664, %665 : vector<8x128xf32>
    %667 = arith.mulf %658, %534 : vector<8x128xf32>
    %668 = arith.mulf %652, %660 : vector<8x128xf32>
    %669 = arith.addf %667, %668 : vector<8x128xf32>
    %670 = math.tanh %669 : vector<8x128xf32>
    %671 = arith.mulf %666, %670 : vector<8x128xf32>
    %672 = arith.index_cast %c4_i32 : i32 to index
    %c0_273 = arith.constant 0 : index
    %c0_274 = arith.constant 0 : index
    %673 = vector.load %arg6[%672, %c0_273, %c0_274] : memref<8x8x128xf32, #tpu.memory_space<vmem>>, vector<1x8x128xf32>
    %674 = vector.shape_cast %673 : vector<1x8x128xf32> to vector<8x128xf32>
    %675 = vector.shape_cast %671 : vector<8x128xf32> to vector<1x8x128xf32>
    tpu.vector_store %arg6[%672, %c0_273, %c0_274], %675 {strides = array<i32>} : memref<8x8x128xf32, #tpu.memory_space<vmem>>, vector<1x8x128xf32>,
    %c5_i32 = arith.constant 5 : i32
    %c256_275 = arith.constant 256 : index
    %c0_276 = arith.constant 0 : index
    %676 = vector.load %arg4[%c256_275, %c0_276] : memref<384x512xf32, #tpu.memory_space<vmem>>, vector<128x512xf32>
    %cst_277 = arith.constant dense<0.000000e+00> : vector<8x512xf32>
    %677 = tpu.matmul %671, %676, %cst_277 {dimension_numbers = #tpu.dot_dimension_numbers<[1], [0], [0], [1], [0, 0, 1, 1], [], []>} : vector<8x128xf32>, vector<128x512xf32>, vector<8x512xf32> -> vector<8x512xf32>
    %678 = arith.index_cast %c5_i32 : i32 to index
    %c0_278 = arith.constant 0 : index
    %c0_279 = arith.constant 0 : index
    %679 = vector.load %arg1[%678, %c0_278, %c0_279] : memref<8x8x512xf32, #tpu.memory_space<vmem>>, vector<1x8x512xf32>
    %680 = vector.shape_cast %679 : vector<1x8x512xf32> to vector<8x512xf32>
    %c0_280 = arith.constant 0 : index
    %c0_281 = arith.constant 0 : index
    %681 = vector.load %arg3[%c0_280, %c0_281] : memref<128x512xf32, #tpu.memory_space<vmem>>, vector<128x512xf32>
    %cst_282 = arith.constant dense<0.000000e+00> : vector<8x512xf32>
    %682 = tpu.matmul %573, %681, %cst_282 {dimension_numbers = #tpu.dot_dimension_numbers<[1], [0], [0], [1], [0, 0, 1, 1], [], []>} : vector<8x128xf32>, vector<128x512xf32>, vector<8x512xf32> -> vector<8x512xf32>
    %683 = arith.addf %680, %682 : vector<8x512xf32>
    %684 = vector.extract_strided_slice %683 {offsets = [0, 0], sizes = [8, 128], strides = [1, 1]} : vector<8x512xf32> to vector<8x128xf32>
    %685 = arith.negf %684 : vector<8x128xf32>
    %686 = math.exp %685 : vector<8x128xf32>
    %cst_283 = arith.constant 1.000000e+00 : f32
    %687 = vector.broadcast %cst_283 : f32 to vector<8x128xf32>
    %688 = arith.addf %687, %686 : vector<8x128xf32>
    %689 = arith.divf %687, %688 : vector<8x128xf32>
    %690 = vector.extract_strided_slice %683 {offsets = [0, 128], sizes = [8, 128], strides = [1, 1]} : vector<8x512xf32> to vector<8x128xf32>
    %691 = arith.negf %690 : vector<8x128xf32>
    %692 = math.exp %691 : vector<8x128xf32>
    %cst_284 = arith.constant 1.000000e+00 : f32
    %693 = vector.broadcast %cst_284 : f32 to vector<8x128xf32>
    %694 = arith.addf %693, %692 : vector<8x128xf32>
    %695 = arith.divf %693, %694 : vector<8x128xf32>
    %696 = vector.extract_strided_slice %683 {offsets = [0, 256], sizes = [8, 128], strides = [1, 1]} : vector<8x512xf32> to vector<8x128xf32>
    %697 = math.tanh %696 : vector<8x128xf32>
    %698 = vector.extract_strided_slice %683 {offsets = [0, 384], sizes = [8, 128], strides = [1, 1]} : vector<8x512xf32> to vector<8x128xf32>
    %699 = arith.negf %698 : vector<8x128xf32>
    %700 = math.exp %699 : vector<8x128xf32>
    %cst_285 = arith.constant 1.000000e+00 : f32
    %701 = vector.broadcast %cst_285 : f32 to vector<8x128xf32>
    %702 = arith.addf %701, %700 : vector<8x128xf32>
    %703 = arith.divf %701, %702 : vector<8x128xf32>
    %704 = arith.mulf %695, %571 : vector<8x128xf32>
    %705 = arith.mulf %689, %697 : vector<8x128xf32>
    %706 = arith.addf %704, %705 : vector<8x128xf32>
    %707 = math.tanh %706 : vector<8x128xf32>
    %708 = arith.mulf %703, %707 : vector<8x128xf32>
    %cst_286 = arith.constant 0.000000e+00 : f32
    %709 = vector.broadcast %cst_286 : f32 to vector<8x128xf32>
    %c0_287 = arith.constant 0 : index
    %c0_288 = arith.constant 0 : index
    %c0_289 = arith.constant 0 : index
    %710 = vector.load %arg2[%c0_287, %c0_288, %c0_289] : memref<8x8x128xf32, #tpu.memory_space<vmem>>, vector<1x8x128xf32>
    %711 = vector.shape_cast %710 : vector<1x8x128xf32> to vector<8x128xf32>
    %712 = arith.mulf %708, %711 : vector<8x128xf32>
    %cst_290 = arith.constant dense<0.000000e+00> : vector<8xf32>
    %713 = vector.multi_reduction <add>, %712, %cst_290 [1] : vector<8x128xf32> to vector<8xf32>
    %714 = vector.shape_cast %713 : vector<8xf32> to vector<8x1xf32>
    %715 = vector.broadcast %714 : vector<8x1xf32> to vector<8x128xf32>
    %716 = arith.mulf %715, %711 : vector<8x128xf32>
    %717 = arith.addf %709, %716 : vector<8x128xf32>
    %c1_291 = arith.constant 1 : index
    %c0_292 = arith.constant 0 : index
    %c0_293 = arith.constant 0 : index
    %718 = vector.load %arg2[%c1_291, %c0_292, %c0_293] : memref<8x8x128xf32, #tpu.memory_space<vmem>>, vector<1x8x128xf32>
    %719 = vector.shape_cast %718 : vector<1x8x128xf32> to vector<8x128xf32>
    %720 = arith.mulf %708, %719 : vector<8x128xf32>
    %cst_294 = arith.constant dense<0.000000e+00> : vector<8xf32>
    %721 = vector.multi_reduction <add>, %720, %cst_294 [1] : vector<8x128xf32> to vector<8xf32>
    %722 = vector.shape_cast %721 : vector<8xf32> to vector<8x1xf32>
    %723 = vector.broadcast %722 : vector<8x1xf32> to vector<8x128xf32>
    %724 = arith.mulf %723, %719 : vector<8x128xf32>
    %725 = arith.addf %717, %724 : vector<8x128xf32>
    %c2_295 = arith.constant 2 : index
    %c0_296 = arith.constant 0 : index
    %c0_297 = arith.constant 0 : index
    %726 = vector.load %arg2[%c2_295, %c0_296, %c0_297] : memref<8x8x128xf32, #tpu.memory_space<vmem>>, vector<1x8x128xf32>
    %727 = vector.shape_cast %726 : vector<1x8x128xf32> to vector<8x128xf32>
    %728 = arith.mulf %708, %727 : vector<8x128xf32>
    %cst_298 = arith.constant dense<0.000000e+00> : vector<8xf32>
    %729 = vector.multi_reduction <add>, %728, %cst_298 [1] : vector<8x128xf32> to vector<8xf32>
    %730 = vector.shape_cast %729 : vector<8xf32> to vector<8x1xf32>
    %731 = vector.broadcast %730 : vector<8x1xf32> to vector<8x128xf32>
    %732 = arith.mulf %731, %727 : vector<8x128xf32>
    %733 = arith.addf %725, %732 : vector<8x128xf32>
    %c3_299 = arith.constant 3 : index
    %c0_300 = arith.constant 0 : index
    %c0_301 = arith.constant 0 : index
    %734 = vector.load %arg2[%c3_299, %c0_300, %c0_301] : memref<8x8x128xf32, #tpu.memory_space<vmem>>, vector<1x8x128xf32>
    %735 = vector.shape_cast %734 : vector<1x8x128xf32> to vector<8x128xf32>
    %736 = arith.mulf %708, %735 : vector<8x128xf32>
    %cst_302 = arith.constant dense<0.000000e+00> : vector<8xf32>
    %737 = vector.multi_reduction <add>, %736, %cst_302 [1] : vector<8x128xf32> to vector<8xf32>
    %738 = vector.shape_cast %737 : vector<8xf32> to vector<8x1xf32>
    %739 = vector.broadcast %738 : vector<8x1xf32> to vector<8x128xf32>
    %740 = arith.mulf %739, %735 : vector<8x128xf32>
    %741 = arith.addf %733, %740 : vector<8x128xf32>
    %c4_303 = arith.constant 4 : index
    %c0_304 = arith.constant 0 : index
    %c0_305 = arith.constant 0 : index
    %742 = vector.load %arg2[%c4_303, %c0_304, %c0_305] : memref<8x8x128xf32, #tpu.memory_space<vmem>>, vector<1x8x128xf32>
    %743 = vector.shape_cast %742 : vector<1x8x128xf32> to vector<8x128xf32>
    %744 = arith.mulf %708, %743 : vector<8x128xf32>
    %cst_306 = arith.constant dense<0.000000e+00> : vector<8xf32>
    %745 = vector.multi_reduction <add>, %744, %cst_306 [1] : vector<8x128xf32> to vector<8xf32>
    %746 = vector.shape_cast %745 : vector<8xf32> to vector<8x1xf32>
    %747 = vector.broadcast %746 : vector<8x1xf32> to vector<8x128xf32>
    %748 = arith.mulf %747, %743 : vector<8x128xf32>
    %749 = arith.addf %741, %748 : vector<8x128xf32>
    %c5_307 = arith.constant 5 : index
    %c0_308 = arith.constant 0 : index
    %c0_309 = arith.constant 0 : index
    %750 = vector.load %arg2[%c5_307, %c0_308, %c0_309] : memref<8x8x128xf32, #tpu.memory_space<vmem>>, vector<1x8x128xf32>
    %751 = vector.shape_cast %750 : vector<1x8x128xf32> to vector<8x128xf32>
    %752 = arith.mulf %708, %751 : vector<8x128xf32>
    %cst_310 = arith.constant dense<0.000000e+00> : vector<8xf32>
    %753 = vector.multi_reduction <add>, %752, %cst_310 [1] : vector<8x128xf32> to vector<8xf32>
    %754 = vector.shape_cast %753 : vector<8xf32> to vector<8x1xf32>
    %755 = vector.broadcast %754 : vector<8x1xf32> to vector<8x128xf32>
    %756 = arith.mulf %755, %751 : vector<8x128xf32>
    %757 = arith.addf %749, %756 : vector<8x128xf32>
    %c6_311 = arith.constant 6 : index
    %c0_312 = arith.constant 0 : index
    %c0_313 = arith.constant 0 : index
    %758 = vector.load %arg2[%c6_311, %c0_312, %c0_313] : memref<8x8x128xf32, #tpu.memory_space<vmem>>, vector<1x8x128xf32>
    %759 = vector.shape_cast %758 : vector<1x8x128xf32> to vector<8x128xf32>
    %760 = arith.mulf %708, %759 : vector<8x128xf32>
    %cst_314 = arith.constant dense<0.000000e+00> : vector<8xf32>
    %761 = vector.multi_reduction <add>, %760, %cst_314 [1] : vector<8x128xf32> to vector<8xf32>
    %762 = vector.shape_cast %761 : vector<8xf32> to vector<8x1xf32>
    %763 = vector.broadcast %762 : vector<8x1xf32> to vector<8x128xf32>
    %764 = arith.mulf %763, %759 : vector<8x128xf32>
    %765 = arith.addf %757, %764 : vector<8x128xf32>
    %c7_315 = arith.constant 7 : index
    %c0_316 = arith.constant 0 : index
    %c0_317 = arith.constant 0 : index
    %766 = vector.load %arg2[%c7_315, %c0_316, %c0_317] : memref<8x8x128xf32, #tpu.memory_space<vmem>>, vector<1x8x128xf32>
    %767 = vector.shape_cast %766 : vector<1x8x128xf32> to vector<8x128xf32>
    %768 = arith.mulf %708, %767 : vector<8x128xf32>
    %cst_318 = arith.constant dense<0.000000e+00> : vector<8xf32>
    %769 = vector.multi_reduction <add>, %768, %cst_318 [1] : vector<8x128xf32> to vector<8xf32>
    %770 = vector.shape_cast %769 : vector<8xf32> to vector<8x1xf32>
    %771 = vector.broadcast %770 : vector<8x1xf32> to vector<8x128xf32>
    %772 = arith.mulf %771, %767 : vector<8x128xf32>
    %773 = arith.addf %765, %772 : vector<8x128xf32>
    %c0_319 = arith.constant 0 : index
    %c0_320 = arith.constant 0 : index
    %774 = vector.load %arg4[%c0_319, %c0_320] : memref<384x512xf32, #tpu.memory_space<vmem>>, vector<128x512xf32>
    %cst_321 = arith.constant dense<0.000000e+00> : vector<8x512xf32>
    %775 = tpu.matmul %773, %774, %cst_321 {dimension_numbers = #tpu.dot_dimension_numbers<[1], [0], [0], [1], [0, 0, 1, 1], [], []>} : vector<8x128xf32>, vector<128x512xf32>, vector<8x512xf32> -> vector<8x512xf32>
    %c128_322 = arith.constant 128 : index
    %c0_323 = arith.constant 0 : index
    %776 = vector.load %arg4[%c128_322, %c0_323] : memref<384x512xf32, #tpu.memory_space<vmem>>, vector<128x512xf32>
    %cst_324 = arith.constant dense<0.000000e+00> : vector<8x512xf32>
    %777 = tpu.matmul %708, %776, %cst_324 {dimension_numbers = #tpu.dot_dimension_numbers<[1], [0], [0], [1], [0, 0, 1, 1], [], []>} : vector<8x128xf32>, vector<128x512xf32>, vector<8x512xf32> -> vector<8x512xf32>
    %778 = arith.addf %775, %777 : vector<8x512xf32>
    %779 = arith.addf %778, %677 : vector<8x512xf32>
    %c0_325 = arith.constant 0 : index
    %c0_326 = arith.constant 0 : index
    %780 = vector.load %arg5[%c0_325, %c0_326] : memref<8x512xf32, #tpu.memory_space<vmem>>, vector<8x512xf32>
    %781 = arith.addf %779, %780 : vector<8x512xf32>
    %782 = vector.extract_strided_slice %781 {offsets = [0, 0], sizes = [8, 128], strides = [1, 1]} : vector<8x512xf32> to vector<8x128xf32>
    %783 = arith.negf %782 : vector<8x128xf32>
    %784 = math.exp %783 : vector<8x128xf32>
    %cst_327 = arith.constant 1.000000e+00 : f32
    %785 = vector.broadcast %cst_327 : f32 to vector<8x128xf32>
    %786 = arith.addf %785, %784 : vector<8x128xf32>
    %787 = arith.divf %785, %786 : vector<8x128xf32>
    %788 = vector.extract_strided_slice %781 {offsets = [0, 128], sizes = [8, 128], strides = [1, 1]} : vector<8x512xf32> to vector<8x128xf32>
    %789 = arith.negf %788 : vector<8x128xf32>
    %790 = math.exp %789 : vector<8x128xf32>
    %cst_328 = arith.constant 1.000000e+00 : f32
    %791 = vector.broadcast %cst_328 : f32 to vector<8x128xf32>
    %792 = arith.addf %791, %790 : vector<8x128xf32>
    %793 = arith.divf %791, %792 : vector<8x128xf32>
    %794 = vector.extract_strided_slice %781 {offsets = [0, 256], sizes = [8, 128], strides = [1, 1]} : vector<8x512xf32> to vector<8x128xf32>
    %795 = math.tanh %794 : vector<8x128xf32>
    %796 = vector.extract_strided_slice %781 {offsets = [0, 384], sizes = [8, 128], strides = [1, 1]} : vector<8x512xf32> to vector<8x128xf32>
    %797 = arith.negf %796 : vector<8x128xf32>
    %798 = math.exp %797 : vector<8x128xf32>
    %cst_329 = arith.constant 1.000000e+00 : f32
    %799 = vector.broadcast %cst_329 : f32 to vector<8x128xf32>
    %800 = arith.addf %799, %798 : vector<8x128xf32>
    %801 = arith.divf %799, %800 : vector<8x128xf32>
    %802 = arith.mulf %793, %669 : vector<8x128xf32>
    %803 = arith.mulf %787, %795 : vector<8x128xf32>
    %804 = arith.addf %802, %803 : vector<8x128xf32>
    %805 = math.tanh %804 : vector<8x128xf32>
    %806 = arith.mulf %801, %805 : vector<8x128xf32>
    %807 = arith.index_cast %c5_i32 : i32 to index
    %c0_330 = arith.constant 0 : index
    %c0_331 = arith.constant 0 : index
    %808 = vector.load %arg6[%807, %c0_330, %c0_331] : memref<8x8x128xf32, #tpu.memory_space<vmem>>, vector<1x8x128xf32>
    %809 = vector.shape_cast %808 : vector<1x8x128xf32> to vector<8x128xf32>
    %810 = vector.shape_cast %806 : vector<8x128xf32> to vector<1x8x128xf32>
    tpu.vector_store %arg6[%807, %c0_330, %c0_331], %810 {strides = array<i32>} : memref<8x8x128xf32, #tpu.memory_space<vmem>>, vector<1x8x128xf32>,
    %c6_i32 = arith.constant 6 : i32
    %c256_332 = arith.constant 256 : index
    %c0_333 = arith.constant 0 : index
    %811 = vector.load %arg4[%c256_332, %c0_333] : memref<384x512xf32, #tpu.memory_space<vmem>>, vector<128x512xf32>
    %cst_334 = arith.constant dense<0.000000e+00> : vector<8x512xf32>
    %812 = tpu.matmul %806, %811, %cst_334 {dimension_numbers = #tpu.dot_dimension_numbers<[1], [0], [0], [1], [0, 0, 1, 1], [], []>} : vector<8x128xf32>, vector<128x512xf32>, vector<8x512xf32> -> vector<8x512xf32>
    %813 = arith.index_cast %c6_i32 : i32 to index
    %c0_335 = arith.constant 0 : index
    %c0_336 = arith.constant 0 : index
    %814 = vector.load %arg1[%813, %c0_335, %c0_336] : memref<8x8x512xf32, #tpu.memory_space<vmem>>, vector<1x8x512xf32>
    %815 = vector.shape_cast %814 : vector<1x8x512xf32> to vector<8x512xf32>
    %c0_337 = arith.constant 0 : index
    %c0_338 = arith.constant 0 : index
    %816 = vector.load %arg3[%c0_337, %c0_338] : memref<128x512xf32, #tpu.memory_space<vmem>>, vector<128x512xf32>
    %cst_339 = arith.constant dense<0.000000e+00> : vector<8x512xf32>
    %817 = tpu.matmul %708, %816, %cst_339 {dimension_numbers = #tpu.dot_dimension_numbers<[1], [0], [0], [1], [0, 0, 1, 1], [], []>} : vector<8x128xf32>, vector<128x512xf32>, vector<8x512xf32> -> vector<8x512xf32>
    %818 = arith.addf %815, %817 : vector<8x512xf32>
    %819 = vector.extract_strided_slice %818 {offsets = [0, 0], sizes = [8, 128], strides = [1, 1]} : vector<8x512xf32> to vector<8x128xf32>
    %820 = arith.negf %819 : vector<8x128xf32>
    %821 = math.exp %820 : vector<8x128xf32>
    %cst_340 = arith.constant 1.000000e+00 : f32
    %822 = vector.broadcast %cst_340 : f32 to vector<8x128xf32>
    %823 = arith.addf %822, %821 : vector<8x128xf32>
    %824 = arith.divf %822, %823 : vector<8x128xf32>
    %825 = vector.extract_strided_slice %818 {offsets = [0, 128], sizes = [8, 128], strides = [1, 1]} : vector<8x512xf32> to vector<8x128xf32>
    %826 = arith.negf %825 : vector<8x128xf32>
    %827 = math.exp %826 : vector<8x128xf32>
    %cst_341 = arith.constant 1.000000e+00 : f32
    %828 = vector.broadcast %cst_341 : f32 to vector<8x128xf32>
    %829 = arith.addf %828, %827 : vector<8x128xf32>
    %830 = arith.divf %828, %829 : vector<8x128xf32>
    %831 = vector.extract_strided_slice %818 {offsets = [0, 256], sizes = [8, 128], strides = [1, 1]} : vector<8x512xf32> to vector<8x128xf32>
    %832 = math.tanh %831 : vector<8x128xf32>
    %833 = vector.extract_strided_slice %818 {offsets = [0, 384], sizes = [8, 128], strides = [1, 1]} : vector<8x512xf32> to vector<8x128xf32>
    %834 = arith.negf %833 : vector<8x128xf32>
    %835 = math.exp %834 : vector<8x128xf32>
    %cst_342 = arith.constant 1.000000e+00 : f32
    %836 = vector.broadcast %cst_342 : f32 to vector<8x128xf32>
    %837 = arith.addf %836, %835 : vector<8x128xf32>
    %838 = arith.divf %836, %837 : vector<8x128xf32>
    %839 = arith.mulf %830, %706 : vector<8x128xf32>
    %840 = arith.mulf %824, %832 : vector<8x128xf32>
    %841 = arith.addf %839, %840 : vector<8x128xf32>
    %842 = math.tanh %841 : vector<8x128xf32>
    %843 = arith.mulf %838, %842 : vector<8x128xf32>
    %cst_343 = arith.constant 0.000000e+00 : f32
    %844 = vector.broadcast %cst_343 : f32 to vector<8x128xf32>
    %c0_344 = arith.constant 0 : index
    %c0_345 = arith.constant 0 : index
    %c0_346 = arith.constant 0 : index
    %845 = vector.load %arg2[%c0_344, %c0_345, %c0_346] : memref<8x8x128xf32, #tpu.memory_space<vmem>>, vector<1x8x128xf32>
    %846 = vector.shape_cast %845 : vector<1x8x128xf32> to vector<8x128xf32>
    %847 = arith.mulf %843, %846 : vector<8x128xf32>
    %cst_347 = arith.constant dense<0.000000e+00> : vector<8xf32>
    %848 = vector.multi_reduction <add>, %847, %cst_347 [1] : vector<8x128xf32> to vector<8xf32>
    %849 = vector.shape_cast %848 : vector<8xf32> to vector<8x1xf32>
    %850 = vector.broadcast %849 : vector<8x1xf32> to vector<8x128xf32>
    %851 = arith.mulf %850, %846 : vector<8x128xf32>
    %852 = arith.addf %844, %851 : vector<8x128xf32>
    %c1_348 = arith.constant 1 : index
    %c0_349 = arith.constant 0 : index
    %c0_350 = arith.constant 0 : index
    %853 = vector.load %arg2[%c1_348, %c0_349, %c0_350] : memref<8x8x128xf32, #tpu.memory_space<vmem>>, vector<1x8x128xf32>
    %854 = vector.shape_cast %853 : vector<1x8x128xf32> to vector<8x128xf32>
    %855 = arith.mulf %843, %854 : vector<8x128xf32>
    %cst_351 = arith.constant dense<0.000000e+00> : vector<8xf32>
    %856 = vector.multi_reduction <add>, %855, %cst_351 [1] : vector<8x128xf32> to vector<8xf32>
    %857 = vector.shape_cast %856 : vector<8xf32> to vector<8x1xf32>
    %858 = vector.broadcast %857 : vector<8x1xf32> to vector<8x128xf32>
    %859 = arith.mulf %858, %854 : vector<8x128xf32>
    %860 = arith.addf %852, %859 : vector<8x128xf32>
    %c2_352 = arith.constant 2 : index
    %c0_353 = arith.constant 0 : index
    %c0_354 = arith.constant 0 : index
    %861 = vector.load %arg2[%c2_352, %c0_353, %c0_354] : memref<8x8x128xf32, #tpu.memory_space<vmem>>, vector<1x8x128xf32>
    %862 = vector.shape_cast %861 : vector<1x8x128xf32> to vector<8x128xf32>
    %863 = arith.mulf %843, %862 : vector<8x128xf32>
    %cst_355 = arith.constant dense<0.000000e+00> : vector<8xf32>
    %864 = vector.multi_reduction <add>, %863, %cst_355 [1] : vector<8x128xf32> to vector<8xf32>
    %865 = vector.shape_cast %864 : vector<8xf32> to vector<8x1xf32>
    %866 = vector.broadcast %865 : vector<8x1xf32> to vector<8x128xf32>
    %867 = arith.mulf %866, %862 : vector<8x128xf32>
    %868 = arith.addf %860, %867 : vector<8x128xf32>
    %c3_356 = arith.constant 3 : index
    %c0_357 = arith.constant 0 : index
    %c0_358 = arith.constant 0 : index
    %869 = vector.load %arg2[%c3_356, %c0_357, %c0_358] : memref<8x8x128xf32, #tpu.memory_space<vmem>>, vector<1x8x128xf32>
    %870 = vector.shape_cast %869 : vector<1x8x128xf32> to vector<8x128xf32>
    %871 = arith.mulf %843, %870 : vector<8x128xf32>
    %cst_359 = arith.constant dense<0.000000e+00> : vector<8xf32>
    %872 = vector.multi_reduction <add>, %871, %cst_359 [1] : vector<8x128xf32> to vector<8xf32>
    %873 = vector.shape_cast %872 : vector<8xf32> to vector<8x1xf32>
    %874 = vector.broadcast %873 : vector<8x1xf32> to vector<8x128xf32>
    %875 = arith.mulf %874, %870 : vector<8x128xf32>
    %876 = arith.addf %868, %875 : vector<8x128xf32>
    %c4_360 = arith.constant 4 : index
    %c0_361 = arith.constant 0 : index
    %c0_362 = arith.constant 0 : index
    %877 = vector.load %arg2[%c4_360, %c0_361, %c0_362] : memref<8x8x128xf32, #tpu.memory_space<vmem>>, vector<1x8x128xf32>
    %878 = vector.shape_cast %877 : vector<1x8x128xf32> to vector<8x128xf32>
    %879 = arith.mulf %843, %878 : vector<8x128xf32>
    %cst_363 = arith.constant dense<0.000000e+00> : vector<8xf32>
    %880 = vector.multi_reduction <add>, %879, %cst_363 [1] : vector<8x128xf32> to vector<8xf32>
    %881 = vector.shape_cast %880 : vector<8xf32> to vector<8x1xf32>
    %882 = vector.broadcast %881 : vector<8x1xf32> to vector<8x128xf32>
    %883 = arith.mulf %882, %878 : vector<8x128xf32>
    %884 = arith.addf %876, %883 : vector<8x128xf32>
    %c5_364 = arith.constant 5 : index
    %c0_365 = arith.constant 0 : index
    %c0_366 = arith.constant 0 : index
    %885 = vector.load %arg2[%c5_364, %c0_365, %c0_366] : memref<8x8x128xf32, #tpu.memory_space<vmem>>, vector<1x8x128xf32>
    %886 = vector.shape_cast %885 : vector<1x8x128xf32> to vector<8x128xf32>
    %887 = arith.mulf %843, %886 : vector<8x128xf32>
    %cst_367 = arith.constant dense<0.000000e+00> : vector<8xf32>
    %888 = vector.multi_reduction <add>, %887, %cst_367 [1] : vector<8x128xf32> to vector<8xf32>
    %889 = vector.shape_cast %888 : vector<8xf32> to vector<8x1xf32>
    %890 = vector.broadcast %889 : vector<8x1xf32> to vector<8x128xf32>
    %891 = arith.mulf %890, %886 : vector<8x128xf32>
    %892 = arith.addf %884, %891 : vector<8x128xf32>
    %c6_368 = arith.constant 6 : index
    %c0_369 = arith.constant 0 : index
    %c0_370 = arith.constant 0 : index
    %893 = vector.load %arg2[%c6_368, %c0_369, %c0_370] : memref<8x8x128xf32, #tpu.memory_space<vmem>>, vector<1x8x128xf32>
    %894 = vector.shape_cast %893 : vector<1x8x128xf32> to vector<8x128xf32>
    %895 = arith.mulf %843, %894 : vector<8x128xf32>
    %cst_371 = arith.constant dense<0.000000e+00> : vector<8xf32>
    %896 = vector.multi_reduction <add>, %895, %cst_371 [1] : vector<8x128xf32> to vector<8xf32>
    %897 = vector.shape_cast %896 : vector<8xf32> to vector<8x1xf32>
    %898 = vector.broadcast %897 : vector<8x1xf32> to vector<8x128xf32>
    %899 = arith.mulf %898, %894 : vector<8x128xf32>
    %900 = arith.addf %892, %899 : vector<8x128xf32>
    %c7_372 = arith.constant 7 : index
    %c0_373 = arith.constant 0 : index
    %c0_374 = arith.constant 0 : index
    %901 = vector.load %arg2[%c7_372, %c0_373, %c0_374] : memref<8x8x128xf32, #tpu.memory_space<vmem>>, vector<1x8x128xf32>
    %902 = vector.shape_cast %901 : vector<1x8x128xf32> to vector<8x128xf32>
    %903 = arith.mulf %843, %902 : vector<8x128xf32>
    %cst_375 = arith.constant dense<0.000000e+00> : vector<8xf32>
    %904 = vector.multi_reduction <add>, %903, %cst_375 [1] : vector<8x128xf32> to vector<8xf32>
    %905 = vector.shape_cast %904 : vector<8xf32> to vector<8x1xf32>
    %906 = vector.broadcast %905 : vector<8x1xf32> to vector<8x128xf32>
    %907 = arith.mulf %906, %902 : vector<8x128xf32>
    %908 = arith.addf %900, %907 : vector<8x128xf32>
    %c0_376 = arith.constant 0 : index
    %c0_377 = arith.constant 0 : index
    %909 = vector.load %arg4[%c0_376, %c0_377] : memref<384x512xf32, #tpu.memory_space<vmem>>, vector<128x512xf32>
    %cst_378 = arith.constant dense<0.000000e+00> : vector<8x512xf32>
    %910 = tpu.matmul %908, %909, %cst_378 {dimension_numbers = #tpu.dot_dimension_numbers<[1], [0], [0], [1], [0, 0, 1, 1], [], []>} : vector<8x128xf32>, vector<128x512xf32>, vector<8x512xf32> -> vector<8x512xf32>
    %c128_379 = arith.constant 128 : index
    %c0_380 = arith.constant 0 : index
    %911 = vector.load %arg4[%c128_379, %c0_380] : memref<384x512xf32, #tpu.memory_space<vmem>>, vector<128x512xf32>
    %cst_381 = arith.constant dense<0.000000e+00> : vector<8x512xf32>
    %912 = tpu.matmul %843, %911, %cst_381 {dimension_numbers = #tpu.dot_dimension_numbers<[1], [0], [0], [1], [0, 0, 1, 1], [], []>} : vector<8x128xf32>, vector<128x512xf32>, vector<8x512xf32> -> vector<8x512xf32>
    %913 = arith.addf %910, %912 : vector<8x512xf32>
    %914 = arith.addf %913, %812 : vector<8x512xf32>
    %c0_382 = arith.constant 0 : index
    %c0_383 = arith.constant 0 : index
    %915 = vector.load %arg5[%c0_382, %c0_383] : memref<8x512xf32, #tpu.memory_space<vmem>>, vector<8x512xf32>
    %916 = arith.addf %914, %915 : vector<8x512xf32>
    %917 = vector.extract_strided_slice %916 {offsets = [0, 0], sizes = [8, 128], strides = [1, 1]} : vector<8x512xf32> to vector<8x128xf32>
    %918 = arith.negf %917 : vector<8x128xf32>
    %919 = math.exp %918 : vector<8x128xf32>
    %cst_384 = arith.constant 1.000000e+00 : f32
    %920 = vector.broadcast %cst_384 : f32 to vector<8x128xf32>
    %921 = arith.addf %920, %919 : vector<8x128xf32>
    %922 = arith.divf %920, %921 : vector<8x128xf32>
    %923 = vector.extract_strided_slice %916 {offsets = [0, 128], sizes = [8, 128], strides = [1, 1]} : vector<8x512xf32> to vector<8x128xf32>
    %924 = arith.negf %923 : vector<8x128xf32>
    %925 = math.exp %924 : vector<8x128xf32>
    %cst_385 = arith.constant 1.000000e+00 : f32
    %926 = vector.broadcast %cst_385 : f32 to vector<8x128xf32>
    %927 = arith.addf %926, %925 : vector<8x128xf32>
    %928 = arith.divf %926, %927 : vector<8x128xf32>
    %929 = vector.extract_strided_slice %916 {offsets = [0, 256], sizes = [8, 128], strides = [1, 1]} : vector<8x512xf32> to vector<8x128xf32>
    %930 = math.tanh %929 : vector<8x128xf32>
    %931 = vector.extract_strided_slice %916 {offsets = [0, 384], sizes = [8, 128], strides = [1, 1]} : vector<8x512xf32> to vector<8x128xf32>
    %932 = arith.negf %931 : vector<8x128xf32>
    %933 = math.exp %932 : vector<8x128xf32>
    %cst_386 = arith.constant 1.000000e+00 : f32
    %934 = vector.broadcast %cst_386 : f32 to vector<8x128xf32>
    %935 = arith.addf %934, %933 : vector<8x128xf32>
    %936 = arith.divf %934, %935 : vector<8x128xf32>
    %937 = arith.mulf %928, %804 : vector<8x128xf32>
    %938 = arith.mulf %922, %930 : vector<8x128xf32>
    %939 = arith.addf %937, %938 : vector<8x128xf32>
    %940 = math.tanh %939 : vector<8x128xf32>
    %941 = arith.mulf %936, %940 : vector<8x128xf32>
    %942 = arith.index_cast %c6_i32 : i32 to index
    %c0_387 = arith.constant 0 : index
    %c0_388 = arith.constant 0 : index
    %943 = vector.load %arg6[%942, %c0_387, %c0_388] : memref<8x8x128xf32, #tpu.memory_space<vmem>>, vector<1x8x128xf32>
    %944 = vector.shape_cast %943 : vector<1x8x128xf32> to vector<8x128xf32>
    %945 = vector.shape_cast %941 : vector<8x128xf32> to vector<1x8x128xf32>
    tpu.vector_store %arg6[%942, %c0_387, %c0_388], %945 {strides = array<i32>} : memref<8x8x128xf32, #tpu.memory_space<vmem>>, vector<1x8x128xf32>,
    %c7_i32 = arith.constant 7 : i32
    %c256_389 = arith.constant 256 : index
    %c0_390 = arith.constant 0 : index
    %946 = vector.load %arg4[%c256_389, %c0_390] : memref<384x512xf32, #tpu.memory_space<vmem>>, vector<128x512xf32>
    %cst_391 = arith.constant dense<0.000000e+00> : vector<8x512xf32>
    %947 = tpu.matmul %941, %946, %cst_391 {dimension_numbers = #tpu.dot_dimension_numbers<[1], [0], [0], [1], [0, 0, 1, 1], [], []>} : vector<8x128xf32>, vector<128x512xf32>, vector<8x512xf32> -> vector<8x512xf32>
    %948 = arith.index_cast %c7_i32 : i32 to index
    %c0_392 = arith.constant 0 : index
    %c0_393 = arith.constant 0 : index
    %949 = vector.load %arg1[%948, %c0_392, %c0_393] : memref<8x8x512xf32, #tpu.memory_space<vmem>>, vector<1x8x512xf32>
    %950 = vector.shape_cast %949 : vector<1x8x512xf32> to vector<8x512xf32>
    %c0_394 = arith.constant 0 : index
    %c0_395 = arith.constant 0 : index
    %951 = vector.load %arg3[%c0_394, %c0_395] : memref<128x512xf32, #tpu.memory_space<vmem>>, vector<128x512xf32>
    %cst_396 = arith.constant dense<0.000000e+00> : vector<8x512xf32>
    %952 = tpu.matmul %843, %951, %cst_396 {dimension_numbers = #tpu.dot_dimension_numbers<[1], [0], [0], [1], [0, 0, 1, 1], [], []>} : vector<8x128xf32>, vector<128x512xf32>, vector<8x512xf32> -> vector<8x512xf32>
    %953 = arith.addf %950, %952 : vector<8x512xf32>
    %954 = vector.extract_strided_slice %953 {offsets = [0, 0], sizes = [8, 128], strides = [1, 1]} : vector<8x512xf32> to vector<8x128xf32>
    %955 = arith.negf %954 : vector<8x128xf32>
    %956 = math.exp %955 : vector<8x128xf32>
    %cst_397 = arith.constant 1.000000e+00 : f32
    %957 = vector.broadcast %cst_397 : f32 to vector<8x128xf32>
    %958 = arith.addf %957, %956 : vector<8x128xf32>
    %959 = arith.divf %957, %958 : vector<8x128xf32>
    %960 = vector.extract_strided_slice %953 {offsets = [0, 128], sizes = [8, 128], strides = [1, 1]} : vector<8x512xf32> to vector<8x128xf32>
    %961 = arith.negf %960 : vector<8x128xf32>
    %962 = math.exp %961 : vector<8x128xf32>
    %cst_398 = arith.constant 1.000000e+00 : f32
    %963 = vector.broadcast %cst_398 : f32 to vector<8x128xf32>
    %964 = arith.addf %963, %962 : vector<8x128xf32>
    %965 = arith.divf %963, %964 : vector<8x128xf32>
    %966 = vector.extract_strided_slice %953 {offsets = [0, 256], sizes = [8, 128], strides = [1, 1]} : vector<8x512xf32> to vector<8x128xf32>
    %967 = math.tanh %966 : vector<8x128xf32>
    %968 = vector.extract_strided_slice %953 {offsets = [0, 384], sizes = [8, 128], strides = [1, 1]} : vector<8x512xf32> to vector<8x128xf32>
    %969 = arith.negf %968 : vector<8x128xf32>
    %970 = math.exp %969 : vector<8x128xf32>
    %cst_399 = arith.constant 1.000000e+00 : f32
    %971 = vector.broadcast %cst_399 : f32 to vector<8x128xf32>
    %972 = arith.addf %971, %970 : vector<8x128xf32>
    %973 = arith.divf %971, %972 : vector<8x128xf32>
    %974 = arith.mulf %965, %841 : vector<8x128xf32>
    %975 = arith.mulf %959, %967 : vector<8x128xf32>
    %976 = arith.addf %974, %975 : vector<8x128xf32>
    %977 = math.tanh %976 : vector<8x128xf32>
    %978 = arith.mulf %973, %977 : vector<8x128xf32>
    %cst_400 = arith.constant 0.000000e+00 : f32
    %979 = vector.broadcast %cst_400 : f32 to vector<8x128xf32>
    %c0_401 = arith.constant 0 : index
    %c0_402 = arith.constant 0 : index
    %c0_403 = arith.constant 0 : index
    %980 = vector.load %arg2[%c0_401, %c0_402, %c0_403] : memref<8x8x128xf32, #tpu.memory_space<vmem>>, vector<1x8x128xf32>
    %981 = vector.shape_cast %980 : vector<1x8x128xf32> to vector<8x128xf32>
    %982 = arith.mulf %978, %981 : vector<8x128xf32>
    %cst_404 = arith.constant dense<0.000000e+00> : vector<8xf32>
    %983 = vector.multi_reduction <add>, %982, %cst_404 [1] : vector<8x128xf32> to vector<8xf32>
    %984 = vector.shape_cast %983 : vector<8xf32> to vector<8x1xf32>
    %985 = vector.broadcast %984 : vector<8x1xf32> to vector<8x128xf32>
    %986 = arith.mulf %985, %981 : vector<8x128xf32>
    %987 = arith.addf %979, %986 : vector<8x128xf32>
    %c1_405 = arith.constant 1 : index
    %c0_406 = arith.constant 0 : index
    %c0_407 = arith.constant 0 : index
    %988 = vector.load %arg2[%c1_405, %c0_406, %c0_407] : memref<8x8x128xf32, #tpu.memory_space<vmem>>, vector<1x8x128xf32>
    %989 = vector.shape_cast %988 : vector<1x8x128xf32> to vector<8x128xf32>
    %990 = arith.mulf %978, %989 : vector<8x128xf32>
    %cst_408 = arith.constant dense<0.000000e+00> : vector<8xf32>
    %991 = vector.multi_reduction <add>, %990, %cst_408 [1] : vector<8x128xf32> to vector<8xf32>
    %992 = vector.shape_cast %991 : vector<8xf32> to vector<8x1xf32>
    %993 = vector.broadcast %992 : vector<8x1xf32> to vector<8x128xf32>
    %994 = arith.mulf %993, %989 : vector<8x128xf32>
    %995 = arith.addf %987, %994 : vector<8x128xf32>
    %c2_409 = arith.constant 2 : index
    %c0_410 = arith.constant 0 : index
    %c0_411 = arith.constant 0 : index
    %996 = vector.load %arg2[%c2_409, %c0_410, %c0_411] : memref<8x8x128xf32, #tpu.memory_space<vmem>>, vector<1x8x128xf32>
    %997 = vector.shape_cast %996 : vector<1x8x128xf32> to vector<8x128xf32>
    %998 = arith.mulf %978, %997 : vector<8x128xf32>
    %cst_412 = arith.constant dense<0.000000e+00> : vector<8xf32>
    %999 = vector.multi_reduction <add>, %998, %cst_412 [1] : vector<8x128xf32> to vector<8xf32>
    %1000 = vector.shape_cast %999 : vector<8xf32> to vector<8x1xf32>
    %1001 = vector.broadcast %1000 : vector<8x1xf32> to vector<8x128xf32>
    %1002 = arith.mulf %1001, %997 : vector<8x128xf32>
    %1003 = arith.addf %995, %1002 : vector<8x128xf32>
    %c3_413 = arith.constant 3 : index
    %c0_414 = arith.constant 0 : index
    %c0_415 = arith.constant 0 : index
    %1004 = vector.load %arg2[%c3_413, %c0_414, %c0_415] : memref<8x8x128xf32, #tpu.memory_space<vmem>>, vector<1x8x128xf32>
    %1005 = vector.shape_cast %1004 : vector<1x8x128xf32> to vector<8x128xf32>
    %1006 = arith.mulf %978, %1005 : vector<8x128xf32>
    %cst_416 = arith.constant dense<0.000000e+00> : vector<8xf32>
    %1007 = vector.multi_reduction <add>, %1006, %cst_416 [1] : vector<8x128xf32> to vector<8xf32>
    %1008 = vector.shape_cast %1007 : vector<8xf32> to vector<8x1xf32>
    %1009 = vector.broadcast %1008 : vector<8x1xf32> to vector<8x128xf32>
    %1010 = arith.mulf %1009, %1005 : vector<8x128xf32>
    %1011 = arith.addf %1003, %1010 : vector<8x128xf32>
    %c4_417 = arith.constant 4 : index
    %c0_418 = arith.constant 0 : index
    %c0_419 = arith.constant 0 : index
    %1012 = vector.load %arg2[%c4_417, %c0_418, %c0_419] : memref<8x8x128xf32, #tpu.memory_space<vmem>>, vector<1x8x128xf32>
    %1013 = vector.shape_cast %1012 : vector<1x8x128xf32> to vector<8x128xf32>
    %1014 = arith.mulf %978, %1013 : vector<8x128xf32>
    %cst_420 = arith.constant dense<0.000000e+00> : vector<8xf32>
    %1015 = vector.multi_reduction <add>, %1014, %cst_420 [1] : vector<8x128xf32> to vector<8xf32>
    %1016 = vector.shape_cast %1015 : vector<8xf32> to vector<8x1xf32>
    %1017 = vector.broadcast %1016 : vector<8x1xf32> to vector<8x128xf32>
    %1018 = arith.mulf %1017, %1013 : vector<8x128xf32>
    %1019 = arith.addf %1011, %1018 : vector<8x128xf32>
    %c5_421 = arith.constant 5 : index
    %c0_422 = arith.constant 0 : index
    %c0_423 = arith.constant 0 : index
    %1020 = vector.load %arg2[%c5_421, %c0_422, %c0_423] : memref<8x8x128xf32, #tpu.memory_space<vmem>>, vector<1x8x128xf32>
    %1021 = vector.shape_cast %1020 : vector<1x8x128xf32> to vector<8x128xf32>
    %1022 = arith.mulf %978, %1021 : vector<8x128xf32>
    %cst_424 = arith.constant dense<0.000000e+00> : vector<8xf32>
    %1023 = vector.multi_reduction <add>, %1022, %cst_424 [1] : vector<8x128xf32> to vector<8xf32>
    %1024 = vector.shape_cast %1023 : vector<8xf32> to vector<8x1xf32>
    %1025 = vector.broadcast %1024 : vector<8x1xf32> to vector<8x128xf32>
    %1026 = arith.mulf %1025, %1021 : vector<8x128xf32>
    %1027 = arith.addf %1019, %1026 : vector<8x128xf32>
    %c6_425 = arith.constant 6 : index
    %c0_426 = arith.constant 0 : index
    %c0_427 = arith.constant 0 : index
    %1028 = vector.load %arg2[%c6_425, %c0_426, %c0_427] : memref<8x8x128xf32, #tpu.memory_space<vmem>>, vector<1x8x128xf32>
    %1029 = vector.shape_cast %1028 : vector<1x8x128xf32> to vector<8x128xf32>
    %1030 = arith.mulf %978, %1029 : vector<8x128xf32>
    %cst_428 = arith.constant dense<0.000000e+00> : vector<8xf32>
    %1031 = vector.multi_reduction <add>, %1030, %cst_428 [1] : vector<8x128xf32> to vector<8xf32>
    %1032 = vector.shape_cast %1031 : vector<8xf32> to vector<8x1xf32>
    %1033 = vector.broadcast %1032 : vector<8x1xf32> to vector<8x128xf32>
    %1034 = arith.mulf %1033, %1029 : vector<8x128xf32>
    %1035 = arith.addf %1027, %1034 : vector<8x128xf32>
    %c7_429 = arith.constant 7 : index
    %c0_430 = arith.constant 0 : index
    %c0_431 = arith.constant 0 : index
    %1036 = vector.load %arg2[%c7_429, %c0_430, %c0_431] : memref<8x8x128xf32, #tpu.memory_space<vmem>>, vector<1x8x128xf32>
    %1037 = vector.shape_cast %1036 : vector<1x8x128xf32> to vector<8x128xf32>
    %1038 = arith.mulf %978, %1037 : vector<8x128xf32>
    %cst_432 = arith.constant dense<0.000000e+00> : vector<8xf32>
    %1039 = vector.multi_reduction <add>, %1038, %cst_432 [1] : vector<8x128xf32> to vector<8xf32>
    %1040 = vector.shape_cast %1039 : vector<8xf32> to vector<8x1xf32>
    %1041 = vector.broadcast %1040 : vector<8x1xf32> to vector<8x128xf32>
    %1042 = arith.mulf %1041, %1037 : vector<8x128xf32>
    %1043 = arith.addf %1035, %1042 : vector<8x128xf32>
    %c0_433 = arith.constant 0 : index
    %c0_434 = arith.constant 0 : index
    %1044 = vector.load %arg4[%c0_433, %c0_434] : memref<384x512xf32, #tpu.memory_space<vmem>>, vector<128x512xf32>
    %cst_435 = arith.constant dense<0.000000e+00> : vector<8x512xf32>
    %1045 = tpu.matmul %1043, %1044, %cst_435 {dimension_numbers = #tpu.dot_dimension_numbers<[1], [0], [0], [1], [0, 0, 1, 1], [], []>} : vector<8x128xf32>, vector<128x512xf32>, vector<8x512xf32> -> vector<8x512xf32>
    %c128_436 = arith.constant 128 : index
    %c0_437 = arith.constant 0 : index
    %1046 = vector.load %arg4[%c128_436, %c0_437] : memref<384x512xf32, #tpu.memory_space<vmem>>, vector<128x512xf32>
    %cst_438 = arith.constant dense<0.000000e+00> : vector<8x512xf32>
    %1047 = tpu.matmul %978, %1046, %cst_438 {dimension_numbers = #tpu.dot_dimension_numbers<[1], [0], [0], [1], [0, 0, 1, 1], [], []>} : vector<8x128xf32>, vector<128x512xf32>, vector<8x512xf32> -> vector<8x512xf32>
    %1048 = arith.addf %1045, %1047 : vector<8x512xf32>
    %1049 = arith.addf %1048, %947 : vector<8x512xf32>
    %c0_439 = arith.constant 0 : index
    %c0_440 = arith.constant 0 : index
    %1050 = vector.load %arg5[%c0_439, %c0_440] : memref<8x512xf32, #tpu.memory_space<vmem>>, vector<8x512xf32>
    %1051 = arith.addf %1049, %1050 : vector<8x512xf32>
    %1052 = vector.extract_strided_slice %1051 {offsets = [0, 0], sizes = [8, 128], strides = [1, 1]} : vector<8x512xf32> to vector<8x128xf32>
    %1053 = arith.negf %1052 : vector<8x128xf32>
    %1054 = math.exp %1053 : vector<8x128xf32>
    %cst_441 = arith.constant 1.000000e+00 : f32
    %1055 = vector.broadcast %cst_441 : f32 to vector<8x128xf32>
    %1056 = arith.addf %1055, %1054 : vector<8x128xf32>
    %1057 = arith.divf %1055, %1056 : vector<8x128xf32>
    %1058 = vector.extract_strided_slice %1051 {offsets = [0, 128], sizes = [8, 128], strides = [1, 1]} : vector<8x512xf32> to vector<8x128xf32>
    %1059 = arith.negf %1058 : vector<8x128xf32>
    %1060 = math.exp %1059 : vector<8x128xf32>
    %cst_442 = arith.constant 1.000000e+00 : f32
    %1061 = vector.broadcast %cst_442 : f32 to vector<8x128xf32>
    %1062 = arith.addf %1061, %1060 : vector<8x128xf32>
    %1063 = arith.divf %1061, %1062 : vector<8x128xf32>
    %1064 = vector.extract_strided_slice %1051 {offsets = [0, 256], sizes = [8, 128], strides = [1, 1]} : vector<8x512xf32> to vector<8x128xf32>
    %1065 = math.tanh %1064 : vector<8x128xf32>
    %1066 = vector.extract_strided_slice %1051 {offsets = [0, 384], sizes = [8, 128], strides = [1, 1]} : vector<8x512xf32> to vector<8x128xf32>
    %1067 = arith.negf %1066 : vector<8x128xf32>
    %1068 = math.exp %1067 : vector<8x128xf32>
    %cst_443 = arith.constant 1.000000e+00 : f32
    %1069 = vector.broadcast %cst_443 : f32 to vector<8x128xf32>
    %1070 = arith.addf %1069, %1068 : vector<8x128xf32>
    %1071 = arith.divf %1069, %1070 : vector<8x128xf32>
    %1072 = arith.mulf %1063, %939 : vector<8x128xf32>
    %1073 = arith.mulf %1057, %1065 : vector<8x128xf32>
    %1074 = arith.addf %1072, %1073 : vector<8x128xf32>
    %1075 = math.tanh %1074 : vector<8x128xf32>
    %1076 = arith.mulf %1071, %1075 : vector<8x128xf32>
    %1077 = arith.index_cast %c7_i32 : i32 to index
    %c0_444 = arith.constant 0 : index
    %c0_445 = arith.constant 0 : index
    %1078 = vector.load %arg6[%1077, %c0_444, %c0_445] : memref<8x8x128xf32, #tpu.memory_space<vmem>>, vector<1x8x128xf32>
    %1079 = vector.shape_cast %1078 : vector<1x8x128xf32> to vector<8x128xf32>
    %1080 = vector.shape_cast %1076 : vector<8x128xf32> to vector<1x8x128xf32>
    tpu.vector_store %arg6[%1077, %c0_444, %c0_445], %1080 {strides = array<i32>} : memref<8x8x128xf32, #tpu.memory_space<vmem>>, vector<1x8x128xf32>,
    %c8_i32 = arith.constant 8 : i32
    return
  }
  func.func @transform_0(%arg0: i32) -> (i32, i32, i32) {
    %c0_i32 = arith.constant 0 : i32
    %c0_i32_0 = arith.constant 0 : i32
    %c0_i32_1 = arith.constant 0 : i32
    return %c0_i32, %arg0, %c0_i32_0 : i32, i32, i32
  }
  func.func @transform_1(%arg0: i32) -> (i32, i32, i32) {
    %c0_i32 = arith.constant 0 : i32
    %c0_i32_0 = arith.constant 0 : i32
    %c0_i32_1 = arith.constant 0 : i32
    return %c0_i32, %arg0, %c0_i32_0 : i32, i32, i32
  }
  func.func @transform_2(%arg0: i32) -> (i32, i32) {
    %c0_i32 = arith.constant 0 : i32
    %c0_i32_0 = arith.constant 0 : i32
    %c0_i32_1 = arith.constant 0 : i32
    return %c0_i32, %c0_i32_0 : i32, i32
  }
  func.func @transform_3(%arg0: i32) -> (i32, i32) {
    %c0_i32 = arith.constant 0 : i32
    %c0_i32_0 = arith.constant 0 : i32
    %c0_i32_1 = arith.constant 0 : i32
    return %c0_i32, %c0_i32_0 : i32, i32
  }
  func.func @transform_4(%arg0: i32) -> (i32, i32) {
    %c0_i32 = arith.constant 0 : i32
    %c0_i32_0 = arith.constant 0 : i32
    return %arg0, %c0_i32 : i32, i32
  }
  func.func @transform_5(%arg0: i32) -> (i32, i32, i32) {
    %c0_i32 = arith.constant 0 : i32
    %c0_i32_0 = arith.constant 0 : i32
    %c0_i32_1 = arith.constant 0 : i32
    return %c0_i32, %arg0, %c0_i32_0 : i32, i32, i32
  }
}

</mosaic_0001>

<llo_original>
// kernel: lstm_attention_forward.1
$region0: #{lstm_attention_forward.1}
  #allocation0 [shape = 'u32[]', space=smem, size = 0x4, offset = 0x4, fixed_abs, tag = 'smem constant byte address 0x4 - core index']
  #allocation1 [shape = 'u32[144,128]{1,0:T(1,128)}', space=vmem, size = 0x12000, scoped, tag = 'internal scratch']
  %s0 = inlined_call_operand.vmem [shape: f32[8,8,512], index: 0, kind: input, shape index: {}]
  %s1 = inlined_call_operand.vmem [shape: f32[8,8,128], index: 1, kind: input, shape index: {}]
  %s2 = inlined_call_operand.vmem [shape: f32[128,512], index: 2, kind: input, shape index: {}]
  %s3 = inlined_call_operand.vmem [shape: f32[384,512], index: 3, kind: input, shape index: {}]
  %s4 = inlined_call_operand.vmem [shape: f32[8,512], index: 4, kind: input, shape index: {}]
  %s5 = inlined_call_operand.hbm [shape: f32[8,8,128], index: 5, kind: output, shape index: {}]
  %s6 = sld [smem:[#allocation0]]
  $region30: #{lstm_attention_forward.1} parent=0
    _
  %s8 = ssub.s32 1, %s6
  %s9 = scalar_select 0, %s8, %s6
  $region1: #{lstm_attention_forward.1} parent=0
    #allocation2 [shape = 'u8[32768]{0}', space=vmem, size = 0x8000, scoped, tag = 'output window, operand 0, single buffered']
    #allocation3 [shape = 's32[1]{0}', space=sflag, size = 0x4, scoped, tag = 'scoped memory for lstm_attention_forward.1']
    %10 = vsyncpa [#allocation3], 0
    // Predicated region
    $region2: #{lstm_attention_forward.1} parent=1 // pred_check
      _
    $region3: #{lstm_attention_forward.1} parent=1 // pred_check_branch
      %12 = sbr.rel (0) target = $region5
    $region4: #{lstm_attention_forward.1} parent=1 // pred_region
      _
    $region5: #{lstm_attention_forward.1} parent=1 // pred_fallthru
      _
    // Predicated region
    $region6: #{lstm_attention_forward.1} parent=1 // pred_check
      _
    $region7: #{lstm_attention_forward.1} parent=1 // pred_check_branch
      %14 = sbr.rel (0) target = $region9
    $region8: #{lstm_attention_forward.1} parent=1 // pred_region
      _
    $region9: #{lstm_attention_forward.1} parent=1 // pred_fallthru
      _
    // Predicated region
    $region10: #{lstm_attention_forward.1} parent=1 // pred_check
      _
    $region11: #{lstm_attention_forward.1} parent=1 // pred_check_branch
      %16 = sbr.rel (0) target = $region13
    $region12: #{lstm_attention_forward.1} parent=1 // pred_region
      _
    $region13: #{lstm_attention_forward.1} parent=1 // pred_fallthru
      _
    // Predicated region
    $region14: #{lstm_attention_forward.1} parent=1 // pred_check
      _
    $region15: #{lstm_attention_forward.1} parent=1 // pred_check_branch
      %18 = sbr.rel (0) target = $region17
    $region16: #{lstm_attention_forward.1} parent=1 // pred_region
      _
    $region17: #{lstm_attention_forward.1} parent=1 // pred_fallthru
      _
    // Predicated region
    $region18: #{lstm_attention_forward.1} parent=1 // pred_check
      _
    $region19: #{lstm_attention_forward.1} parent=1 // pred_check_branch
      %20 = sbr.rel (0) target = $region21
    $region20: #{lstm_attention_forward.1} parent=1 // pred_region
      _
    $region21: #{lstm_attention_forward.1} parent=1 // pred_fallthru
      _
    %v21 = vld [vmem:[%s3 + $0x400] sm:$0xff]
    %v22 = vld [vmem:[%s3 + $0x408] sm:$0xff]
    %v23 = vld [vmem:[%s3 + $0x410] sm:$0xff]
    %v24 = vld [vmem:[%s3 + $0x418] sm:$0xff]
    %v25 = vld [vmem:[%s3 + $0x420] sm:$0xff]
    %v26 = vld [vmem:[%s3 + $0x428] sm:$0xff]
    %v27 = vld [vmem:[%s3 + $0x430] sm:$0xff]
    %v28 = vld [vmem:[%s3 + $0x438] sm:$0xff]
    %v29 = vld [vmem:[%s3 + $0x440] sm:$0xff]
    %v30 = vld [vmem:[%s3 + $0x448] sm:$0xff]
    %v31 = vld [vmem:[%s3 + $0x450] sm:$0xff]
    %v32 = vld [vmem:[%s3 + $0x458] sm:$0xff]
    %v33 = vld [vmem:[%s3 + $0x460] sm:$0xff]
    %v34 = vld [vmem:[%s3 + $0x468] sm:$0xff]
    %v35 = vld [vmem:[%s3 + $0x470] sm:$0xff]
    %v36 = vld [vmem:[%s3 + $0x478] sm:$0xff]
    %v37 = vld [vmem:[%s3 + $0x480] sm:$0xff]
    %v38 = vld [vmem:[%s3 + $0x488] sm:$0xff]
    %v39 = vld [vmem:[%s3 + $0x490] sm:$0xff]
    %v40 = vld [vmem:[%s3 + $0x498] sm:$0xff]
    %v41 = vld [vmem:[%s3 + $0x4a0] sm:$0xff]
    %v42 = vld [vmem:[%s3 + $0x4a8] sm:$0xff]
    %v43 = vld [vmem:[%s3 + $0x4b0] sm:$0xff]
    %v44 = vld [vmem:[%s3 + $0x4b8] sm:$0xff]
    %v45 = vld [vmem:[%s3 + $0x4c0] sm:$0xff]
    %v46 = vld [vmem:[%s3 + $0x4c8] sm:$0xff]
    %v47 = vld [vmem:[%s3 + $0x4d0] sm:$0xff]
    %v48 = vld [vmem:[%s3 + $0x4d8] sm:$0xff]
    %v49 = vld [vmem:[%s3 + $0x4e0] sm:$0xff]
    %v50 = vld [vmem:[%s3 + $0x4e8] sm:$0xff]
    %v51 = vld [vmem:[%s3 + $0x4f0] sm:$0xff]
    %v52 = vld [vmem:[%s3 + $0x4f8] sm:$0xff]
    %v53 = vld [vmem:[%s3 + $0x500] sm:$0xff]
    %v54 = vld [vmem:[%s3 + $0x508] sm:$0xff]
    %v55 = vld [vmem:[%s3 + $0x510] sm:$0xff]
    %v56 = vld [vmem:[%s3 + $0x518] sm:$0xff]
    %v57 = vld [vmem:[%s3 + $0x520] sm:$0xff]
    %v58 = vld [vmem:[%s3 + $0x528] sm:$0xff]
    %v59 = vld [vmem:[%s3 + $0x530] sm:$0xff]
    %v60 = vld [vmem:[%s3 + $0x538] sm:$0xff]
    %v61 = vld [vmem:[%s3 + $0x540] sm:$0xff]
    %v62 = vld [vmem:[%s3 + $0x548] sm:$0xff]
    %v63 = vld [vmem:[%s3 + $0x550] sm:$0xff]
    %v64 = vld [vmem:[%s3 + $0x558] sm:$0xff]
    %v65 = vld [vmem:[%s3 + $0x560] sm:$0xff]
    %v66 = vld [vmem:[%s3 + $0x568] sm:$0xff]
    %v67 = vld [vmem:[%s3 + $0x570] sm:$0xff]
    %v68 = vld [vmem:[%s3 + $0x578] sm:$0xff]
    %v69 = vld [vmem:[%s3 + $0x580] sm:$0xff]
    %v70 = vld [vmem:[%s3 + $0x588] sm:$0xff]
    %v71 = vld [vmem:[%s3 + $0x590] sm:$0xff]
    %v72 = vld [vmem:[%s3 + $0x598] sm:$0xff]
    %v73 = vld [vmem:[%s3 + $0x5a0] sm:$0xff]
    %v74 = vld [vmem:[%s3 + $0x5a8] sm:$0xff]
    %v75 = vld [vmem:[%s3 + $0x5b0] sm:$0xff]
    %v76 = vld [vmem:[%s3 + $0x5b8] sm:$0xff]
    %v77 = vld [vmem:[%s3 + $0x5c0] sm:$0xff]
    %v78 = vld [vmem:[%s3 + $0x5c8] sm:$0xff]
    %v79 = vld [vmem:[%s3 + $0x5d0] sm:$0xff]
    %v80 = vld [vmem:[%s3 + $0x5d8] sm:$0xff]
    %v81 = vld [vmem:[%s3 + $0x5e0] sm:$0xff]
    %v82 = vld [vmem:[%s3 + $0x5e8] sm:$0xff]
    %v83 = vld [vmem:[%s3 + $0x5f0] sm:$0xff]
    %v84 = vld [vmem:[%s3 + $0x5f8] sm:$0xff]
    %85 = vmatprep.subr.mxu0 %v22
    %86 = vmatpush1.msra.mxu0 %v21
    %87 = vmatprep.subr.mxu0 %v26
    %88 = vmatpush1.msra.mxu0 %v25
    %89 = vmatprep.subr.mxu0 %v30
    %90 = vmatpush1.msra.mxu0 %v29
    %91 = vmatprep.subr.mxu0 %v34
    %92 = vmatpush1.msra.mxu0 %v33
    %93 = vmatprep.subr.mxu0 %v38
    %94 = vmatpush1.msra.mxu0 %v37
    %95 = vmatprep.subr.mxu0 %v42
    %96 = vmatpush1.msra.mxu0 %v41
    %97 = vmatprep.subr.mxu0 %v46
    %98 = vmatpush1.msra.mxu0 %v45
    %99 = vmatprep.subr.mxu0 %v50
    %100 = vmatpush1.msra.mxu0 %v49
    %101 = vmatprep.subr.mxu0 %v54
    %102 = vmatpush1.msra.mxu0 %v53
    %103 = vmatprep.subr.mxu0 %v58
    %104 = vmatpush1.msra.mxu0 %v57
    %105 = vmatprep.subr.mxu0 %v62
    %106 = vmatpush1.msra.mxu0 %v61
    %107 = vmatprep.subr.mxu0 %v66
    %108 = vmatpush1.msra.mxu0 %v65
    %109 = vmatprep.subr.mxu0 %v70
    %110 = vmatpush1.msra.mxu0 %v69
    %111 = vmatprep.subr.mxu0 %v74
    %112 = vmatpush1.msra.mxu0 %v73
    %113 = vmatprep.subr.mxu0 %v78
    %114 = vmatpush1.msra.mxu0 %v77
    %115 = vmatprep.subr.mxu0 %v82
    %116 = vmatpush1.msra.mxu0 %v81
    %117 = vmatprep.subr.mxu0 0.0
    %118 = vmatpush1.msra.mxu0 0.0
    %119 = vmatprep.subr.mxu0 0.0
    %120 = vmatpush1.msra.mxu0 0.0
    %121 = vmatprep.subr.mxu0 0.0
    %122 = vmatpush1.msra.mxu0 0.0
    %123 = vmatprep.subr.mxu0 0.0
    %124 = vmatpush1.msra.mxu0 0.0
    %125 = vmatprep.subr.mxu0 0.0
    %126 = vmatpush1.msra.mxu0 0.0
    %127 = vmatprep.subr.mxu0 0.0
    %128 = vmatpush1.msra.mxu0 0.0
    %129 = vmatprep.subr.mxu0 0.0
    %130 = vmatpush1.msra.mxu0 0.0
    %131 = vmatprep.subr.mxu0 0.0
    %132 = vmatpush1.msra.mxu0 0.0
    %133 = vmatprep.subr.mxu0 0.0
    %134 = vmatpush1.msra.mxu0 0.0
    %135 = vmatprep.subr.mxu0 0.0
    %136 = vmatpush1.msra.mxu0 0.0
    %137 = vmatprep.subr.mxu0 0.0
    %138 = vmatpush1.msra.mxu0 0.0
    %139 = vmatprep.subr.mxu0 0.0
    %140 = vmatpush1.msra.mxu0 0.0
    %141 = vmatprep.subr.mxu0 0.0
    %142 = vmatpush1.msra.mxu0 0.0
    %143 = vmatprep.subr.mxu0 0.0
    %144 = vmatpush1.msra.mxu0 0.0
    %145 = vmatprep.subr.mxu0 0.0
    %146 = vmatpush1.msra.mxu0 0.0
    %147 = vmatprep.subr.mxu0 0.0
    %148 = vmatpush1.msra.mxu0 0.0
    %149 = vmatprep.mubr.f32.mxu0 0.0
    %150 = vmatmul.mubr.f32.gmra.mrb[0].mxu0 0.0
    %v151 = vpop.f32.mrb[0].mxu0
    %v152 = vadd.f32 0.0, %v151
    %v153 = vpop.f32.mrb[0].mxu0
    %v154 = vadd.f32 0.0, %v153
    %155 = vdwg.mxu0
    %156 = vmatprep.subr.mxu0 %v24
    %157 = vmatpush1.msra.mxu0 %v23
    %158 = vmatprep.subr.mxu0 %v28
    %159 = vmatpush1.msra.mxu0 %v27
    %160 = vmatprep.subr.mxu0 %v32
    %161 = vmatpush1.msra.mxu0 %v31
    %162 = vmatprep.subr.mxu0 %v36
    %163 = vmatpush1.msra.mxu0 %v35
    %164 = vmatprep.subr.mxu0 %v40
    %165 = vmatpush1.msra.mxu0 %v39
    %166 = vmatprep.subr.mxu0 %v44
    %167 = vmatpush1.msra.mxu0 %v43
    %168 = vmatprep.subr.mxu0 %v48
    %169 = vmatpush1.msra.mxu0 %v47
    %170 = vmatprep.subr.mxu0 %v52
    %171 = vmatpush1.msra.mxu0 %v51
    %172 = vmatprep.subr.mxu0 %v56
    %173 = vmatpush1.msra.mxu0 %v55
    %174 = vmatprep.subr.mxu0 %v60
    %175 = vmatpush1.msra.mxu0 %v59
    %176 = vmatprep.subr.mxu0 %v64
    %177 = vmatpush1.msra.mxu0 %v63
    %178 = vmatprep.subr.mxu0 %v68
    %179 = vmatpush1.msra.mxu0 %v67
    %180 = vmatprep.subr.mxu0 %v72
    %181 = vmatpush1.msra.mxu0 %v71
    %182 = vmatprep.subr.mxu0 %v76
    %183 = vmatpush1.msra.mxu0 %v75
    %184 = vmatprep.subr.mxu0 %v80
    %185 = vmatpush1.msra.mxu0 %v79
    %186 = vmatprep.subr.mxu0 %v84
    %187 = vmatpush1.msra.mxu0 %v83
    %188 = vmatprep.subr.mxu0 0.0
    %189 = vmatpush1.msra.mxu0 0.0
    %190 = vmatprep.subr.mxu0 0.0
    %191 = vmatpush1.msra.mxu0 0.0
    %192 = vmatprep.subr.mxu0 0.0
    %193 = vmatpush1.msra.mxu0 0.0
    %194 = vmatprep.subr.mxu0 0.0
    %195 = vmatpush1.msra.mxu0 0.0
    %196 = vmatprep.subr.mxu0 0.0
    %197 = vmatpush1.msra.mxu0 0.0
    %198 = vmatprep.subr.mxu0 0.0
    %199 = vmatpush1.msra.mxu0 0.0
    %200 = vmatprep.subr.mxu0 0.0
    %201 = vmatpush1.msra.mxu0 0.0
    %202 = vmatprep.subr.mxu0 0.0
    %203 = vmatpush1.msra.mxu0 0.0
    %204 = vmatprep.subr.mxu0 0.0
    %205 = vmatpush1.msra.mxu0 0.0
    %206 = vmatprep.subr.mxu0 0.0
    %207 = vmatpush1.msra.mxu0 0.0
    %208 = vmatprep.subr.mxu0 0.0
    %209 = vmatpush1.msra.mxu0 0.0
    %210 = vmatprep.subr.mxu0 0.0
    %211 = vmatpush1.msra.mxu0 0.0
    %212 = vmatprep.subr.mxu0 0.0
    %213 = vmatpush1.msra.mxu0 0.0
    %214 = vmatprep.subr.mxu0 0.0
    %215 = vmatpush1.msra.mxu0 0.0
    %216 = vmatprep.subr.mxu0 0.0
    %217 = vmatpush1.msra.mxu0 0.0
    %218 = vmatprep.subr.mxu0 0.0
    %219 = vmatpush1.msra.mxu0 0.0
    %220 = vmatprep.mubr.f32.mxu0 0.0
    %221 = vmatmul.mubr.f32.gmra.mrb[0].mxu0 0.0
    %v222 = vpop.f32.mrb[0].mxu0
    %v223 = vadd.f32 0.0, %v222
    %v224 = vpop.f32.mrb[0].mxu0
    %v225 = vadd.f32 0.0, %v224
    %226 = vdwg.mxu0
    %v227 = vld [vmem:[%s0] sm:$0xff]
    %v228 = vld [vmem:[%s0 + $0x8] sm:$0xff]
    %v229 = vld [vmem:[%s0 + $0x10] sm:$0xff]
    %v230 = vld [vmem:[%s0 + $0x18] sm:$0xff]
    %v231 = vld [vmem:[%s2] sm:$0xff]
    %v232 = vld [vmem:[%s2 + $0x8] sm:$0xff]
    %v233 = vld [vmem:[%s2 + $0x10] sm:$0xff]
    %v234 = vld [vmem:[%s2 + $0x18] sm:$0xff]
    %v235 = vld [vmem:[%s2 + $0x20] sm:$0xff]
    %v236 = vld [vmem:[%s2 + $0x28] sm:$0xff]
    %v237 = vld [vmem:[%s2 + $0x30] sm:$0xff]
    %v238 = vld [vmem:[%s2 + $0x38] sm:$0xff]
    %v239 = vld [vmem:[%s2 + $0x40] sm:$0xff]
    %v240 = vld [vmem:[%s2 + $0x48] sm:$0xff]
    %v241 = vld [vmem:[%s2 + $0x50] sm:$0xff]
    %v242 = vld [vmem:[%s2 + $0x58] sm:$0xff]
    %v243 = vld [vmem:[%s2 + $0x60] sm:$0xff]
    %v244 = vld [vmem:[%s2 + $0x68] sm:$0xff]
    %v245 = vld [vmem:[%s2 + $0x70] sm:$0xff]
    %v246 = vld [vmem:[%s2 + $0x78] sm:$0xff]
    %v247 = vld [vmem:[%s2 + $0x80] sm:$0xff]
    %v248 = vld [vmem:[%s2 + $0x88] sm:$0xff]
    %v249 = vld [vmem:[%s2 + $0x90] sm:$0xff]
    %v250 = vld [vmem:[%s2 + $0x98] sm:$0xff]
    %v251 = vld [vmem:[%s2 + $0xa0] sm:$0xff]
    %v252 = vld [vmem:[%s2 + $0xa8] sm:$0xff]
    %v253 = vld [vmem:[%s2 + $0xb0] sm:$0xff]
    %v254 = vld [vmem:[%s2 + $0xb8] sm:$0xff]
    %v255 = vld [vmem:[%s2 + $0xc0] sm:$0xff]
    %v256 = vld [vmem:[%s2 + $0xc8] sm:$0xff]
    %v257 = vld [vmem:[%s2 + $0xd0] sm:$0xff]
    %v258 = vld [vmem:[%s2 + $0xd8] sm:$0xff]
    %v259 = vld [vmem:[%s2 + $0xe0] sm:$0xff]
    %v260 = vld [vmem:[%s2 + $0xe8] sm:$0xff]
    %v261 = vld [vmem:[%s2 + $0xf0] sm:$0xff]
    %v262 = vld [vmem:[%s2 + $0xf8] sm:$0xff]
    %v263 = vld [vmem:[%s2 + $0x100] sm:$0xff]
    %v264 = vld [vmem:[%s2 + $0x108] sm:$0xff]
    %v265 = vld [vmem:[%s2 + $0x110] sm:$0xff]
    %v266 = vld [vmem:[%s2 + $0x118] sm:$0xff]
    %v267 = vld [vmem:[%s2 + $0x120] sm:$0xff]
    %v268 = vld [vmem:[%s2 + $0x128] sm:$0xff]
    %v269 = vld [vmem:[%s2 + $0x130] sm:$0xff]
    %v270 = vld [vmem:[%s2 + $0x138] sm:$0xff]
    %v271 = vld [vmem:[%s2 + $0x140] sm:$0xff]
    %v272 = vld [vmem:[%s2 + $0x148] sm:$0xff]
    %v273 = vld [vmem:[%s2 + $0x150] sm:$0xff]
    %v274 = vld [vmem:[%s2 + $0x158] sm:$0xff]
    %v275 = vld [vmem:[%s2 + $0x160] sm:$0xff]
    %v276 = vld [vmem:[%s2 + $0x168] sm:$0xff]
    %v277 = vld [vmem:[%s2 + $0x170] sm:$0xff]
    %v278 = vld [vmem:[%s2 + $0x178] sm:$0xff]
    %v279 = vld [vmem:[%s2 + $0x180] sm:$0xff]
    %v280 = vld [vmem:[%s2 + $0x188] sm:$0xff]
    %v281 = vld [vmem:[%s2 + $0x190] sm:$0xff]
    %v282 = vld [vmem:[%s2 + $0x198] sm:$0xff]
    %v283 = vld [vmem:[%s2 + $0x1a0] sm:$0xff]
    %v284 = vld [vmem:[%s2 + $0x1a8] sm:$0xff]
    %v285 = vld [vmem:[%s2 + $0x1b0] sm:$0xff]
    %v286 = vld [vmem:[%s2 + $0x1b8] sm:$0xff]
    %v287 = vld [vmem:[%s2 + $0x1c0] sm:$0xff]
    %v288 = vld [vmem:[%s2 + $0x1c8] sm:$0xff]
    %v289 = vld [vmem:[%s2 + $0x1d0] sm:$0xff]
    %v290 = vld [vmem:[%s2 + $0x1d8] sm:$0xff]
    %v291 = vld [vmem:[%s2 + $0x1e0] sm:$0xff]
    %v292 = vld [vmem:[%s2 + $0x1e8] sm:$0xff]
    %v293 = vld [vmem:[%s2 + $0x1f0] sm:$0xff]
    %v294 = vld [vmem:[%s2 + $0x1f8] sm:$0xff]
    %295 = vmatprep.subr.mxu0 %v232
    %296 = vmatpush1.msra.mxu0 %v231
    %297 = vmatprep.subr.mxu0 %v236
    %298 = vmatpush1.msra.mxu0 %v235
    %299 = vmatprep.subr.mxu0 %v240
    %300 = vmatpush1.msra.mxu0 %v239
    %301 = vmatprep.subr.mxu0 %v244
    %302 = vmatpush1.msra.mxu0 %v243
    %303 = vmatprep.subr.mxu0 %v248
    %304 = vmatpush1.msra.mxu0 %v247
    %305 = vmatprep.subr.mxu0 %v252
    %306 = vmatpush1.msra.mxu0 %v251
    %307 = vmatprep.subr.mxu0 %v256
    %308 = vmatpush1.msra.mxu0 %v255
    %309 = vmatprep.subr.mxu0 %v260
    %310 = vmatpush1.msra.mxu0 %v259
    %311 = vmatprep.subr.mxu0 %v264
    %312 = vmatpush1.msra.mxu0 %v263
    %313 = vmatprep.subr.mxu0 %v268
    %314 = vmatpush1.msra.mxu0 %v267
    %315 = vmatprep.subr.mxu0 %v272
    %316 = vmatpush1.msra.mxu0 %v271
    %317 = vmatprep.subr.mxu0 %v276
    %318 = vmatpush1.msra.mxu0 %v275
    %319 = vmatprep.subr.mxu0 %v280
    %320 = vmatpush1.msra.mxu0 %v279
    %321 = vmatprep.subr.mxu0 %v284
    %322 = vmatpush1.msra.mxu0 %v283
    %323 = vmatprep.subr.mxu0 %v288
    %324 = vmatpush1.msra.mxu0 %v287
    %325 = vmatprep.subr.mxu0 %v292
    %326 = vmatpush1.msra.mxu0 %v291
    %327 = vmatprep.subr.mxu0 0.0
    %328 = vmatpush1.msra.mxu0 0.0
    %329 = vmatprep.subr.mxu0 0.0
    %330 = vmatpush1.msra.mxu0 0.0
    %331 = vmatprep.subr.mxu0 0.0
    %332 = vmatpush1.msra.mxu0 0.0
    %333 = vmatprep.subr.mxu0 0.0
    %334 = vmatpush1.msra.mxu0 0.0
    %335 = vmatprep.subr.mxu0 0.0
    %336 = vmatpush1.msra.mxu0 0.0
    %337 = vmatprep.subr.mxu0 0.0
    %338 = vmatpush1.msra.mxu0 0.0
    %339 = vmatprep.subr.mxu0 0.0
    %340 = vmatpush1.msra.mxu0 0.0
    %341 = vmatprep.subr.mxu0 0.0
    %342 = vmatpush1.msra.mxu0 0.0
    %343 = vmatprep.subr.mxu0 0.0
    %344 = vmatpush1.msra.mxu0 0.0
    %345 = vmatprep.subr.mxu0 0.0
    %346 = vmatpush1.msra.mxu0 0.0
    %347 = vmatprep.subr.mxu0 0.0
    %348 = vmatpush1.msra.mxu0 0.0
    %349 = vmatprep.subr.mxu0 0.0
    %350 = vmatpush1.msra.mxu0 0.0
    %351 = vmatprep.subr.mxu0 0.0
    %352 = vmatpush1.msra.mxu0 0.0
    %353 = vmatprep.subr.mxu0 0.0
    %354 = vmatpush1.msra.mxu0 0.0
    %355 = vmatprep.subr.mxu0 0.0
    %356 = vmatpush1.msra.mxu0 0.0
    %357 = vmatprep.subr.mxu0 0.0
    %358 = vmatpush1.msra.mxu0 0.0
    %359 = vmatprep.mubr.f32.mxu0 0.0
    %360 = vmatmul.mubr.f32.gmra.mrb[0].mxu0 0.0
    %v361 = vpop.f32.mrb[0].mxu0
    %v362 = vadd.f32 0.0, %v361
    %v363 = vpop.f32.mrb[0].mxu0
    %v364 = vadd.f32 0.0, %v363
    %365 = vdwg.mxu0
    %366 = vmatprep.subr.mxu0 %v234
    %367 = vmatpush1.msra.mxu0 %v233
    %368 = vmatprep.subr.mxu0 %v238
    %369 = vmatpush1.msra.mxu0 %v237
    %370 = vmatprep.subr.mxu0 %v242
    %371 = vmatpush1.msra.mxu0 %v241
    %372 = vmatprep.subr.mxu0 %v246
    %373 = vmatpush1.msra.mxu0 %v245
    %374 = vmatprep.subr.mxu0 %v250
    %375 = vmatpush1.msra.mxu0 %v249
    %376 = vmatprep.subr.mxu0 %v254
    %377 = vmatpush1.msra.mxu0 %v253
    %378 = vmatprep.subr.mxu0 %v258
    %379 = vmatpush1.msra.mxu0 %v257
    %380 = vmatprep.subr.mxu0 %v262
    %381 = vmatpush1.msra.mxu0 %v261
    %382 = vmatprep.subr.mxu0 %v266
    %383 = vmatpush1.msra.mxu0 %v265
    %384 = vmatprep.subr.mxu0 %v270
    %385 = vmatpush1.msra.mxu0 %v269
    %386 = vmatprep.subr.mxu0 %v274
    %387 = vmatpush1.msra.mxu0 %v273
    %388 = vmatprep.subr.mxu0 %v278
    %389 = vmatpush1.msra.mxu0 %v277
    %390 = vmatprep.subr.mxu0 %v282
    %391 = vmatpush1.msra.mxu0 %v281
    %392 = vmatprep.subr.mxu0 %v286
    %393 = vmatpush1.msra.mxu0 %v285
    %394 = vmatprep.subr.mxu0 %v290
    %395 = vmatpush1.msra.mxu0 %v289
    %396 = vmatprep.subr.mxu0 %v294
    %397 = vmatpush1.msra.mxu0 %v293
    %398 = vmatprep.subr.mxu0 0.0
    %399 = vmatpush1.msra.mxu0 0.0
    %400 = vmatprep.subr.mxu0 0.0
    %401 = vmatpush1.msra.mxu0 0.0
    %402 = vmatprep.subr.mxu0 0.0
    %403 = vmatpush1.msra.mxu0 0.0
    %404 = vmatprep.subr.mxu0 0.0
    %405 = vmatpush1.msra.mxu0 0.0
    %406 = vmatprep.subr.mxu0 0.0
    %407 = vmatpush1.msra.mxu0 0.0
    %408 = vmatprep.subr.mxu0 0.0
    %409 = vmatpush1.msra.mxu0 0.0
    %410 = vmatprep.subr.mxu0 0.0
    %411 = vmatpush1.msra.mxu0 0.0
    %412 = vmatprep.subr.mxu0 0.0
    %413 = vmatpush1.msra.mxu0 0.0
    %414 = vmatprep.subr.mxu0 0.0
    %415 = vmatpush1.msra.mxu0 0.0
    %416 = vmatprep.subr.mxu0 0.0
    %417 = vmatpush1.msra.mxu0 0.0
    %418 = vmatprep.subr.mxu0 0.0
    %419 = vmatpush1.msra.mxu0 0.0
    %420 = vmatprep.subr.mxu0 0.0
    %421 = vmatpush1.msra.mxu0 0.0
    %422 = vmatprep.subr.mxu0 0.0
    %423 = vmatpush1.msra.mxu0 0.0
    %424 = vmatprep.subr.mxu0 0.0
    %425 = vmatpush1.msra.mxu0 0.0
    %426 = vmatprep.subr.mxu0 0.0
    %427 = vmatpush1.msra.mxu0 0.0
    %428 = vmatprep.subr.mxu0 0.0
    %429 = vmatpush1.msra.mxu0 0.0
    %430 = vmatprep.mubr.f32.mxu0 0.0
    %431 = vmatmul.mubr.f32.gmra.mrb[0].mxu0 0.0
    %v432 = vpop.f32.mrb[0].mxu0
    %v433 = vadd.f32 0.0, %v432
    %v434 = vpop.f32.mrb[0].mxu0
    %v435 = vadd.f32 0.0, %v434
    %436 = vdwg.mxu0
    %v437 = vadd.f32 %v227, %v362
    %v438 = vadd.f32 %v228, %v364
    %v439 = vadd.f32 %v229, %v433
    %v440 = vadd.f32 %v230, %v435
    %v441 = vxor.u32 %v437, 2147483648
    %v442 = vmul.f32 %v441, 1.442695
    %v443 = vpow.pop %v442
    %v444 = vadd.f32 %v443, 1.0
    %v445 = vrcp.pop %v444
    %v446 = vmul.f32 1.0, %v445
    %v447 = vxor.u32 %v438, 2147483648
    %v448 = vmul.f32 %v447, 1.442695
    %v449 = vpow.pop %v448
    %v450 = vadd.f32 %v449, 1.0
    %v451 = vrcp.pop %v450
    %v452 = vmul.f32 1.0, %v451
    %v453 = vtanh.pop %v439
    %v454 = vxor.u32 %v440, 2147483648
    %v455 = vmul.f32 %v454, 1.442695
    %v456 = vpow.pop %v455
    %v457 = vadd.f32 %v456, 1.0
    %v458 = vrcp.pop %v457
    %v459 = vmul.f32 1.0, %v458
    %v460 = vmul.f32 %v452, 0.0
    %v461 = vmul.f32 %v446, %v453
    %v462 = vadd.f32 %v460, %v461
    %v463 = vtanh.pop %v462
    %v464 = vmul.f32 %v459, %v463
    %v465 = vld [vmem:[%s1] sm:$0xff]
    %v466 = vmul.f32 %v464, %v465
    %467 = vadd.xlane.f32.xlu0 %v466
    %v468 = vpop.xlane.xlu0 %467
    %v469 = vmul.f32 %v468, %v465
    %v470 = vadd.f32 %v469, 0.0
    %s471 = scalar_lea.vmem %s1, 8
    %v472 = vld [vmem:[%s471] sm:$0xff]
    %v473 = vmul.f32 %v464, %v472
    %474 = vadd.xlane.f32.xlu0 %v473
    %v475 = vpop.xlane.xlu0 %474
    %v476 = vmul.f32 %v475, %v472
    %v477 = vadd.f32 %v470, %v476
    %s478 = scalar_lea.vmem %s1, 16
    %v479 = vld [vmem:[%s478] sm:$0xff]
    %v480 = vmul.f32 %v464, %v479
    %481 = vadd.xlane.f32.xlu0 %v480
    %v482 = vpop.xlane.xlu0 %481
    %v483 = vmul.f32 %v482, %v479
    %v484 = vadd.f32 %v477, %v483
    %s485 = scalar_lea.vmem %s1, 24
    %v486 = vld [vmem:[%s485] sm:$0xff]
    %v487 = vmul.f32 %v464, %v486
    %488 = vadd.xlane.f32.xlu0 %v487
    %v489 = vpop.xlane.xlu0 %488
    %v490 = vmul.f32 %v489, %v486
    %v491 = vadd.f32 %v484, %v490
    %s492 = scalar_lea.vmem %s1, 32
    %v493 = vld [vmem:[%s492] sm:$0xff]
    %v494 = vmul.f32 %v464, %v493
    %495 = vadd.xlane.f32.xlu0 %v494
    %v496 = vpop.xlane.xlu0 %495
    %v497 = vmul.f32 %v496, %v493
    %v498 = vadd.f32 %v491, %v497
    %s499 = scalar_lea.vmem %s1, 40
    %v500 = vld [vmem:[%s499] sm:$0xff]
    %v501 = vmul.f32 %v464, %v500
    %502 = vadd.xlane.f32.xlu0 %v501
    %v503 = vpop.xlane.xlu0 %502
    %v504 = vmul.f32 %v503, %v500
    %v505 = vadd.f32 %v498, %v504
    %s506 = scalar_lea.vmem %s1, 48
    %v507 = vld [vmem:[%s506] sm:$0xff]
    %v508 = vmul.f32 %v464, %v507
    %509 = vadd.xlane.f32.xlu0 %v508
    %v510 = vpop.xlane.xlu0 %509
    %v511 = vmul.f32 %v510, %v507
    %v512 = vadd.f32 %v505, %v511
    %s513 = scalar_lea.vmem %s1, 56
    %v514 = vld [vmem:[%s513] sm:$0xff]
    %v515 = vmul.f32 %v464, %v514
    %516 = vadd.xlane.f32.xlu0 %v515
    %v517 = vpop.xlane.xlu0 %516
    %v518 = vmul.f32 %v517, %v514
    %v519 = vadd.f32 %v512, %v518
    %v520 = vld [vmem:[%s3] sm:$0xff]
    %v521 = vld [vmem:[%s3 + $0x8] sm:$0xff]
    %v522 = vld [vmem:[%s3 + $0x10] sm:$0xff]
    %v523 = vld [vmem:[%s3 + $0x18] sm:$0xff]
    %v524 = vld [vmem:[%s3 + $0x20] sm:$0xff]
    %v525 = vld [vmem:[%s3 + $0x28] sm:$0xff]
    %v526 = vld [vmem:[%s3 + $0x30] sm:$0xff]
    %v527 = vld [vmem:[%s3 + $0x38] sm:$0xff]
    %v528 = vld [vmem:[%s3 + $0x40] sm:$0xff]
    %v529 = vld [vmem:[%s3 + $0x48] sm:$0xff]
    %v530 = vld [vmem:[%s3 + $0x50] sm:$0xff]
    %v531 = vld [vmem:[%s3 + $0x58] sm:$0xff]
    %v532 = vld [vmem:[%s3 + $0x60] sm:$0xff]
    %v533 = vld [vmem:[%s3 + $0x68] sm:$0xff]
    %v534 = vld [vmem:[%s3 + $0x70] sm:$0xff]
    %v535 = vld [vmem:[%s3 + $0x78] sm:$0xff]
    %v536 = vld [vmem:[%s3 + $0x80] sm:$0xff]
    %v537 = vld [vmem:[%s3 + $0x88] sm:$0xff]
    %v538 = vld [vmem:[%s3 + $0x90] sm:$0xff]
    %v539 = vld [vmem:[%s3 + $0x98] sm:$0xff]
    %v540 = vld [vmem:[%s3 + $0xa0] sm:$0xff]
    %v541 = vld [vmem:[%s3 + $0xa8] sm:$0xff]
    %v542 = vld [vmem:[%s3 + $0xb0] sm:$0xff]
    %v543 = vld [vmem:[%s3 + $0xb8] sm:$0xff]
    %v544 = vld [vmem:[%s3 + $0xc0] sm:$0xff]
    %v545 = vld [vmem:[%s3 + $0xc8] sm:$0xff]
    %v546 = vld [vmem:[%s3 + $0xd0] sm:$0xff]
    %v547 = vld [vmem:[%s3 + $0xd8] sm:$0xff]
    %v548 = vld [vmem:[%s3 + $0xe0] sm:$0xff]
    %v549 = vld [vmem:[%s3 + $0xe8] sm:$0xff]
    %v550 = vld [vmem:[%s3 + $0xf0] sm:$0xff]
    %v551 = vld [vmem:[%s3 + $0xf8] sm:$0xff]
    %v552 = vld [vmem:[%s3 + $0x100] sm:$0xff]
    %v553 = vld [vmem:[%s3 + $0x108] sm:$0xff]
    %v554 = vld [vmem:[%s3 + $0x110] sm:$0xff]
    %v555 = vld [vmem:[%s3 + $0x118] sm:$0xff]
    %v556 = vld [vmem:[%s3 + $0x120] sm:$0xff]
    %v557 = vld [vmem:[%s3 + $0x128] sm:$0xff]
    %v558 = vld [vmem:[%s3 + $0x130] sm:$0xff]
    %v559 = vld [vmem:[%s3 + $0x138] sm:$0xff]
    %v560 = vld [vmem:[%s3 + $0x140] sm:$0xff]
    %v561 = vld [vmem:[%s3 + $0x148] sm:$0xff]
    %v562 = vld [vmem:[%s3 + $0x150] sm:$0xff]
    %v563 = vld [vmem:[%s3 + $0x158] sm:$0xff]
    %v564 = vld [vmem:[%s3 + $0x160] sm:$0xff]
    %v565 = vld [vmem:[%s3 + $0x168] sm:$0xff]
    %v566 = vld [vmem:[%s3 + $0x170] sm:$0xff]
    %v567 = vld [vmem:[%s3 + $0x178] sm:$0xff]
    %v568 = vld [vmem:[%s3 + $0x180] sm:$0xff]
    %v569 = vld [vmem:[%s3 + $0x188] sm:$0xff]
    %v570 = vld [vmem:[%s3 + $0x190] sm:$0xff]
    %v571 = vld [vmem:[%s3 + $0x198] sm:$0xff]
    %v572 = vld [vmem:[%s3 + $0x1a0] sm:$0xff]
    %v573 = vld [vmem:[%s3 + $0x1a8] sm:$0xff]
    %v574 = vld [vmem:[%s3 + $0x1b0] sm:$0xff]
    %v575 = vld [vmem:[%s3 + $0x1b8] sm:$0xff]
    %v576 = vld [vmem:[%s3 + $0x1c0] sm:$0xff]
    %v577 = vld [vmem:[%s3 + $0x1c8] sm:$0xff]
    %v578 = vld [vmem:[%s3 + $0x1d0] sm:$0xff]
    %v579 = vld [vmem:[%s3 + $0x1d8] sm:$0xff]
    %v580 = vld [vmem:[%s3 + $0x1e0] sm:$0xff]
    %v581 = vld [vmem:[%s3 + $0x1e8] sm:$0xff]
    %v582 = vld [vmem:[%s3 + $0x1f0] sm:$0xff]
    %v583 = vld [vmem:[%s3 + $0x1f8] sm:$0xff]
    %v584 = vld [vmem:[%s3 + $0x200] sm:$0xff]
    %v585 = vld [vmem:[%s3 + $0x208] sm:$0xff]
    %v586 = vld [vmem:[%s3 + $0x210] sm:$0xff]
    %v587 = vld [vmem:[%s3 + $0x218] sm:$0xff]
    %v588 = vld [vmem:[%s3 + $0x220] sm:$0xff]
    %v589 = vld [vmem:[%s3 + $0x228] sm:$0xff]
    %v590 = vld [vmem:[%s3 + $0x230] sm:$0xff]
    %v591 = vld [vmem:[%s3 + $0x238] sm:$0xff]
    %v592 = vld [vmem:[%s3 + $0x240] sm:$0xff]
    %v593 = vld [vmem:[%s3 + $0x248] sm:$0xff]
    %v594 = vld [vmem:[%s3 + $0x250] sm:$0xff]
    %v595 = vld [vmem:[%s3 + $0x258] sm:$0xff]
    %v596 = vld [vmem:[%s3 + $0x260] sm:$0xff]
    %v597 = vld [vmem:[%s3 + $0x268] sm:$0xff]
    %v598 = vld [vmem:[%s3 + $0x270] sm:$0xff]
    %v599 = vld [vmem:[%s3 + $0x278] sm:$0xff]
    %v600 = vld [vmem:[%s3 + $0x280] sm:$0xff]
    %v601 = vld [vmem:[%s3 + $0x288] sm:$0xff]
    %v602 = vld [vmem:[%s3 + $0x290] sm:$0xff]
    %v603 = vld [vmem:[%s3 + $0x298] sm:$0xff]
    %v604 = vld [vmem:[%s3 + $0x2a0] sm:$0xff]
    %v605 = vld [vmem:[%s3 + $0x2a8] sm:$0xff]
    %v606 = vld [vmem:[%s3 + $0x2b0] sm:$0xff]
    %v607 = vld [vmem:[%s3 + $0x2b8] sm:$0xff]
    %v608 = vld [vmem:[%s3 + $0x2c0] sm:$0xff]
    %v609 = vld [vmem:[%s3 + $0x2c8] sm:$0xff]
    %v610 = vld [vmem:[%s3 + $0x2d0] sm:$0xff]
    %v611 = vld [vmem:[%s3 + $0x2d8] sm:$0xff]
    %v612 = vld [vmem:[%s3 + $0x2e0] sm:$0xff]
    %v613 = vld [vmem:[%s3 + $0x2e8] sm:$0xff]
    %v614 = vld [vmem:[%s3 + $0x2f0] sm:$0xff]
    %v615 = vld [vmem:[%s3 + $0x2f8] sm:$0xff]
    %v616 = vld [vmem:[%s3 + $0x300] sm:$0xff]
    %v617 = vld [vmem:[%s3 + $0x308] sm:$0xff]
    %v618 = vld [vmem:[%s3 + $0x310] sm:$0xff]
    %v619 = vld [vmem:[%s3 + $0x318] sm:$0xff]
    %v620 = vld [vmem:[%s3 + $0x320] sm:$0xff]
    %v621 = vld [vmem:[%s3 + $0x328] sm:$0xff]
    %v622 = vld [vmem:[%s3 + $0x330] sm:$0xff]
    %v623 = vld [vmem:[%s3 + $0x338] sm:$0xff]
    %v624 = vld [vmem:[%s3 + $0x340] sm:$0xff]
    %v625 = vld [vmem:[%s3 + $0x348] sm:$0xff]
    %v626 = vld [vmem:[%s3 + $0x350] sm:$0xff]
    %v627 = vld [vmem:[%s3 + $0x358] sm:$0xff]
    %v628 = vld [vmem:[%s3 + $0x360] sm:$0xff]
    %v629 = vld [vmem:[%s3 + $0x368] sm:$0xff]
    %v630 = vld [vmem:[%s3 + $0x370] sm:$0xff]
    %v631 = vld [vmem:[%s3 + $0x378] sm:$0xff]
    %v632 = vld [vmem:[%s3 + $0x380] sm:$0xff]
    %v633 = vld [vmem:[%s3 + $0x388] sm:$0xff]
    %v634 = vld [vmem:[%s3 + $0x390] sm:$0xff]
    %v635 = vld [vmem:[%s3 + $0x398] sm:$0xff]
    %v636 = vld [vmem:[%s3 + $0x3a0] sm:$0xff]
    %v637 = vld [vmem:[%s3 + $0x3a8] sm:$0xff]
    %v638 = vld [vmem:[%s3 + $0x3b0] sm:$0xff]
    %v639 = vld [vmem:[%s3 + $0x3b8] sm:$0xff]
    %v640 = vld [vmem:[%s3 + $0x3c0] sm:$0xff]
    %v641 = vld [vmem:[%s3 + $0x3c8] sm:$0xff]
    %v642 = vld [vmem:[%s3 + $0x3d0] sm:$0xff]
    %v643 = vld [vmem:[%s3 + $0x3d8] sm:$0xff]
    %v644 = vld [vmem:[%s3 + $0x3e0] sm:$0xff]
    %v645 = vld [vmem:[%s3 + $0x3e8] sm:$0xff]
    %v646 = vld [vmem:[%s3 + $0x3f0] sm:$0xff]
    %v647 = vld [vmem:[%s3 + $0x3f8] sm:$0xff]
    %648 = vmatprep.subr.mxu0 %v585
    %649 = vmatpush1.msra.mxu0 %v584
    %650 = vmatprep.subr.mxu0 %v589
    %651 = vmatpush1.msra.mxu0 %v588
    %652 = vmatprep.subr.mxu0 %v593
    %653 = vmatpush1.msra.mxu0 %v592
    %654 = vmatprep.subr.mxu0 %v597
    %655 = vmatpush1.msra.mxu0 %v596
    %656 = vmatprep.subr.mxu0 %v601
    %657 = vmatpush1.msra.mxu0 %v600
    %658 = vmatprep.subr.mxu0 %v605
    %659 = vmatpush1.msra.mxu0 %v604
    %660 = vmatprep.subr.mxu0 %v609
    %661 = vmatpush1.msra.mxu0 %v608
    %662 = vmatprep.subr.mxu0 %v613
    %663 = vmatpush1.msra.mxu0 %v612
    %664 = vmatprep.subr.mxu0 %v617
    %665 = vmatpush1.msra.mxu0 %v616
    %666 = vmatprep.subr.mxu0 %v621
    %667 = vmatpush1.msra.mxu0 %v620
    %668 = vmatprep.subr.mxu0 %v625
    %669 = vmatpush1.msra.mxu0 %v624
    %670 = vmatprep.subr.mxu0 %v629
    %671 = vmatpush1.msra.mxu0 %v628
    %672 = vmatprep.subr.mxu0 %v633
    %673 = vmatpush1.msra.mxu0 %v632
    %674 = vmatprep.subr.mxu0 %v637
    %675 = vmatpush1.msra.mxu0 %v636
    %676 = vmatprep.subr.mxu0 %v641
    %677 = vmatpush1.msra.mxu0 %v640
    %678 = vmatprep.subr.mxu0 %v645
    %679 = vmatpush1.msra.mxu0 %v644
    %680 = vmatprep.subr.mxu0 0.0
    %681 = vmatpush1.msra.mxu0 0.0
    %682 = vmatprep.subr.mxu0 0.0
    %683 = vmatpush1.msra.mxu0 0.0
    %684 = vmatprep.subr.mxu0 0.0
    %685 = vmatpush1.msra.mxu0 0.0
    %686 = vmatprep.subr.mxu0 0.0
    %687 = vmatpush1.msra.mxu0 0.0
    %688 = vmatprep.subr.mxu0 0.0
    %689 = vmatpush1.msra.mxu0 0.0
    %690 = vmatprep.subr.mxu0 0.0
    %691 = vmatpush1.msra.mxu0 0.0
    %692 = vmatprep.subr.mxu0 0.0
    %693 = vmatpush1.msra.mxu0 0.0
    %694 = vmatprep.subr.mxu0 0.0
    %695 = vmatpush1.msra.mxu0 0.0
    %696 = vmatprep.subr.mxu0 0.0
    %697 = vmatpush1.msra.mxu0 0.0
    %698 = vmatprep.subr.mxu0 0.0
    %699 = vmatpush1.msra.mxu0 0.0
    %700 = vmatprep.subr.mxu0 0.0
    %701 = vmatpush1.msra.mxu0 0.0
    %702 = vmatprep.subr.mxu0 0.0
    %703 = vmatpush1.msra.mxu0 0.0
    %704 = vmatprep.subr.mxu0 0.0
    %705 = vmatpush1.msra.mxu0 0.0
    %706 = vmatprep.subr.mxu0 0.0
    %707 = vmatpush1.msra.mxu0 0.0
    %708 = vmatprep.subr.mxu0 0.0
    %709 = vmatpush1.msra.mxu0 0.0
    %710 = vmatprep.subr.mxu0 0.0
    %711 = vmatpush1.msra.mxu0 0.0
    %712 = vmatprep.mubr.f32.mxu0 0.0
    %713 = vmatmul.mubr.f32.gmra.mrb[0].mxu0 %v464
    %v714 = vpop.f32.mrb[0].mxu0
    %v715 = vadd.f32 0.0, %v714
    %v716 = vpop.f32.mrb[0].mxu0
    %v717 = vadd.f32 0.0, %v716
    %718 = vdwg.mxu0
    %719 = vmatprep.subr.mxu0 %v587
    %720 = vmatpush1.msra.mxu0 %v586
    %721 = vmatprep.subr.mxu0 %v591
    %722 = vmatpush1.msra.mxu0 %v590
    %723 = vmatprep.subr.mxu0 %v595
    %724 = vmatpush1.msra.mxu0 %v594
    %725 = vmatprep.subr.mxu0 %v599
    %726 = vmatpush1.msra.mxu0 %v598
    %727 = vmatprep.subr.mxu0 %v603
    %728 = vmatpush1.msra.mxu0 %v602
    %729 = vmatprep.subr.mxu0 %v607
    %730 = vmatpush1.msra.mxu0 %v606
    %731 = vmatprep.subr.mxu0 %v611
    %732 = vmatpush1.msra.mxu0 %v610
    %733 = vmatprep.subr.mxu0 %v615
    %734 = vmatpush1.msra.mxu0 %v614
    %735 = vmatprep.subr.mxu0 %v619
    %736 = vmatpush1.msra.mxu0 %v618
    %737 = vmatprep.subr.mxu0 %v623
    %738 = vmatpush1.msra.mxu0 %v622
    %739 = vmatprep.subr.mxu0 %v627
    %740 = vmatpush1.msra.mxu0 %v626
    %741 = vmatprep.subr.mxu0 %v631
    %742 = vmatpush1.msra.mxu0 %v630
    %743 = vmatprep.subr.mxu0 %v635
    %744 = vmatpush1.msra.mxu0 %v634
    %745 = vmatprep.subr.mxu0 %v639
    %746 = vmatpush1.msra.mxu0 %v638
    %747 = vmatprep.subr.mxu0 %v643
    %748 = vmatpush1.msra.mxu0 %v642
    %749 = vmatprep.subr.mxu0 %v647
    %750 = vmatpush1.msra.mxu0 %v646
    %751 = vmatprep.subr.mxu0 0.0
    %752 = vmatpush1.msra.mxu0 0.0
    %753 = vmatprep.subr.mxu0 0.0
    %754 = vmatpush1.msra.mxu0 0.0
    %755 = vmatprep.subr.mxu0 0.0
    %756 = vmatpush1.msra.mxu0 0.0
    %757 = vmatprep.subr.mxu0 0.0
    %758 = vmatpush1.msra.mxu0 0.0
    %759 = vmatprep.subr.mxu0 0.0
    %760 = vmatpush1.msra.mxu0 0.0
    %761 = vmatprep.subr.mxu0 0.0
    %762 = vmatpush1.msra.mxu0 0.0
    %763 = vmatprep.subr.mxu0 0.0
    %764 = vmatpush1.msra.mxu0 0.0
    %765 = vmatprep.subr.mxu0 0.0
    %766 = vmatpush1.msra.mxu0 0.0
    %767 = vmatprep.subr.mxu0 0.0
    %768 = vmatpush1.msra.mxu0 0.0
    %769 = vmatprep.subr.mxu0 0.0
    %770 = vmatpush1.msra.mxu0 0.0
    %771 = vmatprep.subr.mxu0 0.0
    %772 = vmatpush1.msra.mxu0 0.0
    %773 = vmatprep.subr.mxu0 0.0
    %774 = vmatpush1.msra.mxu0 0.0
    %775 = vmatprep.subr.mxu0 0.0
    %776 = vmatpush1.msra.mxu0 0.0
    %777 = vmatprep.subr.mxu0 0.0
    %778 = vmatpush1.msra.mxu0 0.0
    %779 = vmatprep.subr.mxu0 0.0
    %780 = vmatpush1.msra.mxu0 0.0
    %781 = vmatprep.subr.mxu0 0.0
    %782 = vmatpush1.msra.mxu0 0.0
    %783 = vmatprep.mubr.f32.mxu0 0.0
    %784 = vmatmul.mubr.f32.gmra.mrb[0].mxu0 %v464
    %v785 = vpop.f32.mrb[0].mxu0
    %v786 = vadd.f32 0.0, %v785
    %v787 = vpop.f32.mrb[0].mxu0
    %v788 = vadd.f32 0.0, %v787
    %789 = vdwg.mxu0
    %790 = vmatprep.subr.mxu0 %v521
    %791 = vmatpush1.msra.mxu0 %v520
    %792 = vmatprep.subr.mxu0 %v525
    %793 = vmatpush1.msra.mxu0 %v524
    %794 = vmatprep.subr.mxu0 %v529
    %795 = vmatpush1.msra.mxu0 %v528
    %796 = vmatprep.subr.mxu0 %v533
    %797 = vmatpush1.msra.mxu0 %v532
    %798 = vmatprep.subr.mxu0 %v537
    %799 = vmatpush1.msra.mxu0 %v536
    %800 = vmatprep.subr.mxu0 %v541
    %801 = vmatpush1.msra.mxu0 %v540
    %802 = vmatprep.subr.mxu0 %v545
    %803 = vmatpush1.msra.mxu0 %v544
    %804 = vmatprep.subr.mxu0 %v549
    %805 = vmatpush1.msra.mxu0 %v548
    %806 = vmatprep.subr.mxu0 %v553
    %807 = vmatpush1.msra.mxu0 %v552
    %808 = vmatprep.subr.mxu0 %v557
    %809 = vmatpush1.msra.mxu0 %v556
    %810 = vmatprep.subr.mxu0 %v561
    %811 = vmatpush1.msra.mxu0 %v560
    %812 = vmatprep.subr.mxu0 %v565
    %813 = vmatpush1.msra.mxu0 %v564
    %814 = vmatprep.subr.mxu0 %v569
    %815 = vmatpush1.msra.mxu0 %v568
    %816 = vmatprep.subr.mxu0 %v573
    %817 = vmatpush1.msra.mxu0 %v572
    %818 = vmatprep.subr.mxu0 %v577
    %819 = vmatpush1.msra.mxu0 %v576
    %820 = vmatprep.subr.mxu0 %v581
    %821 = vmatpush1.msra.mxu0 %v580
    %822 = vmatprep.subr.mxu0 0.0
    %823 = vmatpush1.msra.mxu0 0.0
    %824 = vmatprep.subr.mxu0 0.0
    %825 = vmatpush1.msra.mxu0 0.0
    %826 = vmatprep.subr.mxu0 0.0
    %827 = vmatpush1.msra.mxu0 0.0
    %828 = vmatprep.subr.mxu0 0.0
    %829 = vmatpush1.msra.mxu0 0.0
    %830 = vmatprep.subr.mxu0 0.0
    %831 = vmatpush1.msra.mxu0 0.0
    %832 = vmatprep.subr.mxu0 0.0
    %833 = vmatpush1.msra.mxu0 0.0
    %834 = vmatprep.subr.mxu0 0.0
    %835 = vmatpush1.msra.mxu0 0.0
    %836 = vmatprep.subr.mxu0 0.0
    %837 = vmatpush1.msra.mxu0 0.0
    %838 = vmatprep.subr.mxu0 0.0
    %839 = vmatpush1.msra.mxu0 0.0
    %840 = vmatprep.subr.mxu0 0.0
    %841 = vmatpush1.msra.mxu0 0.0
    %842 = vmatprep.subr.mxu0 0.0
    %843 = vmatpush1.msra.mxu0 0.0
    %844 = vmatprep.subr.mxu0 0.0
    %845 = vmatpush1.msra.mxu0 0.0
    %846 = vmatprep.subr.mxu0 0.0
    %847 = vmatpush1.msra.mxu0 0.0
    %848 = vmatprep.subr.mxu0 0.0
    %849 = vmatpush1.msra.mxu0 0.0
    %850 = vmatprep.subr.mxu0 0.0
    %851 = vmatpush1.msra.mxu0 0.0
    %852 = vmatprep.subr.mxu0 0.0
    %853 = vmatpush1.msra.mxu0 0.0
    %854 = vmatprep.mubr.f32.mxu0 0.0
    %855 = vmatmul.mubr.f32.gmra.mrb[0].mxu0 %v519
    %v856 = vpop.f32.mrb[0].mxu0
    %v857 = vadd.f32 %v715, %v856
    %v858 = vpop.f32.mrb[0].mxu0
    %v859 = vadd.f32 %v717, %v858
    %860 = vdwg.mxu0
    %861 = vmatprep.subr.mxu0 %v523
    %862 = vmatpush1.msra.mxu0 %v522
    %863 = vmatprep.subr.mxu0 %v527
    %864 = vmatpush1.msra.mxu0 %v526
    %865 = vmatprep.subr.mxu0 %v531
    %866 = vmatpush1.msra.mxu0 %v530
    %867 = vmatprep.subr.mxu0 %v535
    %868 = vmatpush1.msra.mxu0 %v534
    %869 = vmatprep.subr.mxu0 %v539
    %870 = vmatpush1.msra.mxu0 %v538
    %871 = vmatprep.subr.mxu0 %v543
    %872 = vmatpush1.msra.mxu0 %v542
    %873 = vmatprep.subr.mxu0 %v547
    %874 = vmatpush1.msra.mxu0 %v546
    %875 = vmatprep.subr.mxu0 %v551
    %876 = vmatpush1.msra.mxu0 %v550
    %877 = vmatprep.subr.mxu0 %v555
    %878 = vmatpush1.msra.mxu0 %v554
    %879 = vmatprep.subr.mxu0 %v559
    %880 = vmatpush1.msra.mxu0 %v558
    %881 = vmatprep.subr.mxu0 %v563
    %882 = vmatpush1.msra.mxu0 %v562
    %883 = vmatprep.subr.mxu0 %v567
    %884 = vmatpush1.msra.mxu0 %v566
    %885 = vmatprep.subr.mxu0 %v571
    %886 = vmatpush1.msra.mxu0 %v570
    %887 = vmatprep.subr.mxu0 %v575
    %888 = vmatpush1.msra.mxu0 %v574
    %889 = vmatprep.subr.mxu0 %v579
    %890 = vmatpush1.msra.mxu0 %v578
    %891 = vmatprep.subr.mxu0 %v583
    %892 = vmatpush1.msra.mxu0 %v582
    %893 = vmatprep.subr.mxu0 0.0
    %894 = vmatpush1.msra.mxu0 0.0
    %895 = vmatprep.subr.mxu0 0.0
    %896 = vmatpush1.msra.mxu0 0.0
    %897 = vmatprep.subr.mxu0 0.0
    %898 = vmatpush1.msra.mxu0 0.0
    %899 = vmatprep.subr.mxu0 0.0
    %900 = vmatpush1.msra.mxu0 0.0
    %901 = vmatprep.subr.mxu0 0.0
    %902 = vmatpush1.msra.mxu0 0.0
    %903 = vmatprep.subr.mxu0 0.0
    %904 = vmatpush1.msra.mxu0 0.0
    %905 = vmatprep.subr.mxu0 0.0
    %906 = vmatpush1.msra.mxu0 0.0
    %907 = vmatprep.subr.mxu0 0.0
    %908 = vmatpush1.msra.mxu0 0.0
    %909 = vmatprep.subr.mxu0 0.0
    %910 = vmatpush1.msra.mxu0 0.0
    %911 = vmatprep.subr.mxu0 0.0
    %912 = vmatpush1.msra.mxu0 0.0
    %913 = vmatprep.subr.mxu0 0.0
    %914 = vmatpush1.msra.mxu0 0.0
    %915 = vmatprep.subr.mxu0 0.0
    %916 = vmatpush1.msra.mxu0 0.0
    %917 = vmatprep.subr.mxu0 0.0
    %918 = vmatpush1.msra.mxu0 0.0
    %919 = vmatprep.subr.mxu0 0.0
    %920 = vmatpush1.msra.mxu0 0.0
    %921 = vmatprep.subr.mxu0 0.0
    %922 = vmatpush1.msra.mxu0 0.0
    %923 = vmatprep.subr.mxu0 0.0
    %924 = vmatpush1.msra.mxu0 0.0
    %925 = vmatprep.mubr.f32.mxu0 0.0
    %926 = vmatmul.mubr.f32.gmra.mrb[0].mxu0 %v519
    %v927 = vpop.f32.mrb[0].mxu0
    %v928 = vadd.f32 %v786, %v927
    %v929 = vpop.f32.mrb[0].mxu0
    %v930 = vadd.f32 %v788, %v929
    %931 = vdwg.mxu0
    %v932 = vadd.f32 %v857, %v152
    %v933 = vadd.f32 %v859, %v154
    %v934 = vadd.f32 %v928, %v223
    %v935 = vadd.f32 %v930, %v225
    %v936 = vld [vmem:[%s4] sm:$0xff]
    %v937 = vld [vmem:[%s4 + $0x8] sm:$0xff]
    %v938 = vld [vmem:[%s4 + $0x10] sm:$0xff]
    %v939 = vld [vmem:[%s4 + $0x18] sm:$0xff]
    %v940 = vadd.f32 %v932, %v936
    %v941 = vadd.f32 %v933, %v937
    %v942 = vadd.f32 %v934, %v938
    %v943 = vadd.f32 %v935, %v939
    %v944 = vxor.u32 %v940, 2147483648
    %v945 = vmul.f32 %v944, 1.442695
    %v946 = vpow.pop %v945
    %v947 = vadd.f32 %v946, 1.0
    %v948 = vrcp.pop %v947
    %v949 = vmul.f32 1.0, %v948
    %v950 = vxor.u32 %v941, 2147483648
    %v951 = vmul.f32 %v950, 1.442695
    %v952 = vpow.pop %v951
    %v953 = vadd.f32 %v952, 1.0
    %v954 = vrcp.pop %v953
    %v955 = vmul.f32 1.0, %v954
    %v956 = vtanh.pop %v942
    %v957 = vxor.u32 %v943, 2147483648
    %v958 = vmul.f32 %v957, 1.442695
    %v959 = vpow.pop %v958
    %v960 = vadd.f32 %v959, 1.0
    %v961 = vrcp.pop %v960
    %v962 = vmul.f32 1.0, %v961
    %v963 = vmul.f32 %v955, 0.0
    %v964 = vmul.f32 %v949, %v956
    %v965 = vadd.f32 %v963, %v964
    %v966 = vtanh.pop %v965
    %v967 = vmul.f32 %v962, %v966
    %968 = vst [vmem:[#allocation2] sm:$0xff] %v967
    %v969 = vld [vmem:[%s3 + $0x400] sm:$0xff]
    %v970 = vld [vmem:[%s3 + $0x408] sm:$0xff]
    %v971 = vld [vmem:[%s3 + $0x410] sm:$0xff]
    %v972 = vld [vmem:[%s3 + $0x418] sm:$0xff]
    %v973 = vld [vmem:[%s3 + $0x420] sm:$0xff]
    %v974 = vld [vmem:[%s3 + $0x428] sm:$0xff]
    %v975 = vld [vmem:[%s3 + $0x430] sm:$0xff]
    %v976 = vld [vmem:[%s3 + $0x438] sm:$0xff]
    %v977 = vld [vmem:[%s3 + $0x440] sm:$0xff]
    %v978 = vld [vmem:[%s3 + $0x448] sm:$0xff]
    %v979 = vld [vmem:[%s3 + $0x450] sm:$0xff]
    %v980 = vld [vmem:[%s3 + $0x458] sm:$0xff]
    %v981 = vld [vmem:[%s3 + $0x460] sm:$0xff]
    %v982 = vld [vmem:[%s3 + $0x468] sm:$0xff]
    %v983 = vld [vmem:[%s3 + $0x470] sm:$0xff]
    %v984 = vld [vmem:[%s3 + $0x478] sm:$0xff]
    %v985 = vld [vmem:[%s3 + $0x480] sm:$0xff]
    %v986 = vld [vmem:[%s3 + $0x488] sm:$0xff]
    %v987 = vld [vmem:[%s3 + $0x490] sm:$0xff]
    %v988 = vld [vmem:[%s3 + $0x498] sm:$0xff]
    %v989 = vld [vmem:[%s3 + $0x4a0] sm:$0xff]
    %v990 = vld [vmem:[%s3 + $0x4a8] sm:$0xff]
    %v991 = vld [vmem:[%s3 + $0x4b0] sm:$0xff]
    %v992 = vld [vmem:[%s3 + $0x4b8] sm:$0xff]
    %v993 = vld [vmem:[%s3 + $0x4c0] sm:$0xff]
    %v994 = vld [vmem:[%s3 + $0x4c8] sm:$0xff]
    %v995 = vld [vmem:[%s3 + $0x4d0] sm:$0xff]
    %v996 = vld [vmem:[%s3 + $0x4d8] sm:$0xff]
    %v997 = vld [vmem:[%s3 + $0x4e0] sm:$0xff]
    %v998 = vld [vmem:[%s3 + $0x4e8] sm:$0xff]
    %v999 = vld [vmem:[%s3 + $0x4f0] sm:$0xff]
    %v1000 = vld [vmem:[%s3 + $0x4f8] sm:$0xff]
    %v1001 = vld [vmem:[%s3 + $0x500] sm:$0xff]
    %v1002 = vld [vmem:[%s3 + $0x508] sm:$0xff]
    %v1003 = vld [vmem:[%s3 + $0x510] sm:$0xff]
    %v1004 = vld [vmem:[%s3 + $0x518] sm:$0xff]
    %v1005 = vld [vmem:[%s3 + $0x520] sm:$0xff]
    %v1006 = vld [vmem:[%s3 + $0x528] sm:$0xff]
    %v1007 = vld [vmem:[%s3 + $0x530] sm:$0xff]
    %v1008 = vld [vmem:[%s3 + $0x538] sm:$0xff]
    %v1009 = vld [vmem:[%s3 + $0x540] sm:$0xff]
    %v1010 = vld [vmem:[%s3 + $0x548] sm:$0xff]
    %v1011 = vld [vmem:[%s3 + $0x550] sm:$0xff]
    %v1012 = vld [vmem:[%s3 + $0x558] sm:$0xff]
    %v1013 = vld [vmem:[%s3 + $0x560] sm:$0xff]
    %v1014 = vld [vmem:[%s3 + $0x568] sm:$0xff]
    %v1015 = vld [vmem:[%s3 + $0x570] sm:$0xff]
    %v1016 = vld [vmem:[%s3 + $0x578] sm:$0xff]
    %v1017 = vld [vmem:[%s3 + $0x580] sm:$0xff]
    %v1018 = vld [vmem:[%s3 + $0x588] sm:$0xff]
    %v1019 = vld [vmem:[%s3 + $0x590] sm:$0xff]
    %v1020 = vld [vmem:[%s3 + $0x598] sm:$0xff]
    %v1021 = vld [vmem:[%s3 + $0x5a0] sm:$0xff]
    %v1022 = vld [vmem:[%s3 + $0x5a8] sm:$0xff]
    %v1023 = vld [vmem:[%s3 + $0x5b0] sm:$0xff]
    %v1024 = vld [vmem:[%s3 + $0x5b8] sm:$0xff]
    %v1025 = vld [vmem:[%s3 + $0x5c0] sm:$0xff]
    %v1026 = vld [vmem:[%s3 + $0x5c8] sm:$0xff]
    %v1027 = vld [vmem:[%s3 + $0x5d0] sm:$0xff]
    %v1028 = vld [vmem:[%s3 + $0x5d8] sm:$0xff]
    %v1029 = vld [vmem:[%s3 + $0x5e0] sm:$0xff]
    %v1030 = vld [vmem:[%s3 + $0x5e8] sm:$0xff]
    %v1031 = vld [vmem:[%s3 + $0x5f0] sm:$0xff]
    %v1032 = vld [vmem:[%s3 + $0x5f8] sm:$0xff]
    %1033 = vmatprep.subr.mxu0 %v970
    %1034 = vmatpush1.msra.mxu0 %v969
    %1035 = vmatprep.subr.mxu0 %v974
    %1036 = vmatpush1.msra.mxu0 %v973
    %1037 = vmatprep.subr.mxu0 %v978
    %1038 = vmatpush1.msra.mxu0 %v977
    %1039 = vmatprep.subr.mxu0 %v982
    %1040 = vmatpush1.msra.mxu0 %v981
    %1041 = vmatprep.subr.mxu0 %v986
    %1042 = vmatpush1.msra.mxu0 %v985
    %1043 = vmatprep.subr.mxu0 %v990
    %1044 = vmatpush1.msra.mxu0 %v989
    %1045 = vmatprep.subr.mxu0 %v994
    %1046 = vmatpush1.msra.mxu0 %v993
    %1047 = vmatprep.subr.mxu0 %v998
    %1048 = vmatpush1.msra.mxu0 %v997
    %1049 = vmatprep.subr.mxu0 %v1002
    %1050 = vmatpush1.msra.mxu0 %v1001
    %1051 = vmatprep.subr.mxu0 %v1006
    %1052 = vmatpush1.msra.mxu0 %v1005
    %1053 = vmatprep.subr.mxu0 %v1010
    %1054 = vmatpush1.msra.mxu0 %v1009
    %1055 = vmatprep.subr.mxu0 %v1014
    %1056 = vmatpush1.msra.mxu0 %v1013
    %1057 = vmatprep.subr.mxu0 %v1018
    %1058 = vmatpush1.msra.mxu0 %v1017
    %1059 = vmatprep.subr.mxu0 %v1022
    %1060 = vmatpush1.msra.mxu0 %v1021
    %1061 = vmatprep.subr.mxu0 %v1026
    %1062 = vmatpush1.msra.mxu0 %v1025
    %1063 = vmatprep.subr.mxu0 %v1030
    %1064 = vmatpush1.msra.mxu0 %v1029
    %1065 = vmatprep.subr.mxu0 0.0
    %1066 = vmatpush1.msra.mxu0 0.0
    %1067 = vmatprep.subr.mxu0 0.0
    %1068 = vmatpush1.msra.mxu0 0.0
    %1069 = vmatprep.subr.mxu0 0.0
    %1070 = vmatpush1.msra.mxu0 0.0
    %1071 = vmatprep.subr.mxu0 0.0
    %1072 = vmatpush1.msra.mxu0 0.0
    %1073 = vmatprep.subr.mxu0 0.0
    %1074 = vmatpush1.msra.mxu0 0.0
    %1075 = vmatprep.subr.mxu0 0.0
    %1076 = vmatpush1.msra.mxu0 0.0
    %1077 = vmatprep.subr.mxu0 0.0
    %1078 = vmatpush1.msra.mxu0 0.0
    %1079 = vmatprep.subr.mxu0 0.0
    %1080 = vmatpush1.msra.mxu0 0.0
    %1081 = vmatprep.subr.mxu0 0.0
    %1082 = vmatpush1.msra.mxu0 0.0
    %1083 = vmatprep.subr.mxu0 0.0
    %1084 = vmatpush1.msra.mxu0 0.0
    %1085 = vmatprep.subr.mxu0 0.0
    %1086 = vmatpush1.msra.mxu0 0.0
    %1087 = vmatprep.subr.mxu0 0.0
    %1088 = vmatpush1.msra.mxu0 0.0
    %1089 = vmatprep.subr.mxu0 0.0
    %1090 = vmatpush1.msra.mxu0 0.0
    %1091 = vmatprep.subr.mxu0 0.0
    %1092 = vmatpush1.msra.mxu0 0.0
    %1093 = vmatprep.subr.mxu0 0.0
    %1094 = vmatpush1.msra.mxu0 0.0
    %1095 = vmatprep.subr.mxu0 0.0
    %1096 = vmatpush1.msra.mxu0 0.0
    %1097 = vmatprep.mubr.f32.mxu0 0.0
    %1098 = vmatmul.mubr.f32.gmra.mrb[0].mxu0 %v967
    %v1099 = vpop.f32.mrb[0].mxu0
    %v1100 = vadd.f32 0.0, %v1099
    %v1101 = vpop.f32.mrb[0].mxu0
    %v1102 = vadd.f32 0.0, %v1101
    %1103 = vdwg.mxu0
    %1104 = vmatprep.subr.mxu0 %v972
    %1105 = vmatpush1.msra.mxu0 %v971
    %1106 = vmatprep.subr.mxu0 %v976
    %1107 = vmatpush1.msra.mxu0 %v975
    %1108 = vmatprep.subr.mxu0 %v980
    %1109 = vmatpush1.msra.mxu0 %v979
    %1110 = vmatprep.subr.mxu0 %v984
    %1111 = vmatpush1.msra.mxu0 %v983
    %1112 = vmatprep.subr.mxu0 %v988
    %1113 = vmatpush1.msra.mxu0 %v987
    %1114 = vmatprep.subr.mxu0 %v992
    %1115 = vmatpush1.msra.mxu0 %v991
    %1116 = vmatprep.subr.mxu0 %v996
    %1117 = vmatpush1.msra.mxu0 %v995
    %1118 = vmatprep.subr.mxu0 %v1000
    %1119 = vmatpush1.msra.mxu0 %v999
    %1120 = vmatprep.subr.mxu0 %v1004
    %1121 = vmatpush1.msra.mxu0 %v1003
    %1122 = vmatprep.subr.mxu0 %v1008
    %1123 = vmatpush1.msra.mxu0 %v1007
    %1124 = vmatprep.subr.mxu0 %v1012
    %1125 = vmatpush1.msra.mxu0 %v1011
    %1126 = vmatprep.subr.mxu0 %v1016
    %1127 = vmatpush1.msra.mxu0 %v1015
    %1128 = vmatprep.subr.mxu0 %v1020
    %1129 = vmatpush1.msra.mxu0 %v1019
    %1130 = vmatprep.subr.mxu0 %v1024
    %1131 = vmatpush1.msra.mxu0 %v1023
    %1132 = vmatprep.subr.mxu0 %v1028
    %1133 = vmatpush1.msra.mxu0 %v1027
    %1134 = vmatprep.subr.mxu0 %v1032
    %1135 = vmatpush1.msra.mxu0 %v1031
    %1136 = vmatprep.subr.mxu0 0.0
    %1137 = vmatpush1.msra.mxu0 0.0
    %1138 = vmatprep.subr.mxu0 0.0
    %1139 = vmatpush1.msra.mxu0 0.0
    %1140 = vmatprep.subr.mxu0 0.0
    %1141 = vmatpush1.msra.mxu0 0.0
    %1142 = vmatprep.subr.mxu0 0.0
    %1143 = vmatpush1.msra.mxu0 0.0
    %1144 = vmatprep.subr.mxu0 0.0
    %1145 = vmatpush1.msra.mxu0 0.0
    %1146 = vmatprep.subr.mxu0 0.0
    %1147 = vmatpush1.msra.mxu0 0.0
    %1148 = vmatprep.subr.mxu0 0.0
    %1149 = vmatpush1.msra.mxu0 0.0
    %1150 = vmatprep.subr.mxu0 0.0
    %1151 = vmatpush1.msra.mxu0 0.0
    %1152 = vmatprep.subr.mxu0 0.0
    %1153 = vmatpush1.msra.mxu0 0.0
    %1154 = vmatprep.subr.mxu0 0.0
    %1155 = vmatpush1.msra.mxu0 0.0
    %1156 = vmatprep.subr.mxu0 0.0
    %1157 = vmatpush1.msra.mxu0 0.0
    %1158 = vmatprep.subr.mxu0 0.0
    %1159 = vmatpush1.msra.mxu0 0.0
    %1160 = vmatprep.subr.mxu0 0.0
    %1161 = vmatpush1.msra.mxu0 0.0
    %1162 = vmatprep.subr.mxu0 0.0
    %1163 = vmatpush1.msra.mxu0 0.0
    %1164 = vmatprep.subr.mxu0 0.0
    %1165 = vmatpush1.msra.mxu0 0.0
    %1166 = vmatprep.subr.mxu0 0.0
    %1167 = vmatpush1.msra.mxu0 0.0
    %1168 = vmatprep.mubr.f32.mxu0 0.0
    %1169 = vmatmul.mubr.f32.gmra.mrb[0].mxu0 %v967
    %v1170 = vpop.f32.mrb[0].mxu0
    %v1171 = vadd.f32 0.0, %v1170
    %v1172 = vpop.f32.mrb[0].mxu0
    %v1173 = vadd.f32 0.0, %v1172
    %1174 = vdwg.mxu0
    %s1175 = scalar_lea.vmem %s0, 32
    %v1176 = vld [vmem:[%s1175] sm:$0xff]
    %v1177 = vld [vmem:[%s1175 + $0x8] sm:$0xff]
    %v1178 = vld [vmem:[%s1175 + $0x10] sm:$0xff]
    %v1179 = vld [vmem:[%s1175 + $0x18] sm:$0xff]
    %v1180 = vld [vmem:[%s2] sm:$0xff]
    %v1181 = vld [vmem:[%s2 + $0x8] sm:$0xff]
    %v1182 = vld [vmem:[%s2 + $0x10] sm:$0xff]
    %v1183 = vld [vmem:[%s2 + $0x18] sm:$0xff]
    %v1184 = vld [vmem:[%s2 + $0x20] sm:$0xff]
    %v1185 = vld [vmem:[%s2 + $0x28] sm:$0xff]
    %v1186 = vld [vmem:[%s2 + $0x30] sm:$0xff]
    %v1187 = vld [vmem:[%s2 + $0x38] sm:$0xff]
    %v1188 = vld [vmem:[%s2 + $0x40] sm:$0xff]
    %v1189 = vld [vmem:[%s2 + $0x48] sm:$0xff]
    %v1190 = vld [vmem:[%s2 + $0x50] sm:$0xff]
    %v1191 = vld [vmem:[%s2 + $0x58] sm:$0xff]
    %v1192 = vld [vmem:[%s2 + $0x60] sm:$0xff]
    %v1193 = vld [vmem:[%s2 + $0x68] sm:$0xff]
    %v1194 = vld [vmem:[%s2 + $0x70] sm:$0xff]
    %v1195 = vld [vmem:[%s2 + $0x78] sm:$0xff]
    %v1196 = vld [vmem:[%s2 + $0x80] sm:$0xff]
    %v1197 = vld [vmem:[%s2 + $0x88] sm:$0xff]
    %v1198 = vld [vmem:[%s2 + $0x90] sm:$0xff]
    %v1199 = vld [vmem:[%s2 + $0x98] sm:$0xff]
    %v1200 = vld [vmem:[%s2 + $0xa0] sm:$0xff]
    %v1201 = vld [vmem:[%s2 + $0xa8] sm:$0xff]
    %v1202 = vld [vmem:[%s2 + $0xb0] sm:$0xff]
    %v1203 = vld [vmem:[%s2 + $0xb8] sm:$0xff]
    %v1204 = vld [vmem:[%s2 + $0xc0] sm:$0xff]
    %v1205 = vld [vmem:[%s2 + $0xc8] sm:$0xff]
    %v1206 = vld [vmem:[%s2 + $0xd0] sm:$0xff]
    %v1207 = vld [vmem:[%s2 + $0xd8] sm:$0xff]
    %v1208 = vld [vmem:[%s2 + $0xe0] sm:$0xff]
    %v1209 = vld [vmem:[%s2 + $0xe8] sm:$0xff]
    %v1210 = vld [vmem:[%s2 + $0xf0] sm:$0xff]
    %v1211 = vld [vmem:[%s2 + $0xf8] sm:$0xff]
    %v1212 = vld [vmem:[%s2 + $0x100] sm:$0xff]
    %v1213 = vld [vmem:[%s2 + $0x108] sm:$0xff]
    %v1214 = vld [vmem:[%s2 + $0x110] sm:$0xff]
    %v1215 = vld [vmem:[%s2 + $0x118] sm:$0xff]
    %v1216 = vld [vmem:[%s2 + $0x120] sm:$0xff]
    %v1217 = vld [vmem:[%s2 + $0x128] sm:$0xff]
    %v1218 = vld [vmem:[%s2 + $0x130] sm:$0xff]
    %v1219 = vld [vmem:[%s2 + $0x138] sm:$0xff]
    %v1220 = vld [vmem:[%s2 + $0x140] sm:$0xff]
    %v1221 = vld [vmem:[%s2 + $0x148] sm:$0xff]
    %v1222 = vld [vmem:[%s2 + $0x150] sm:$0xff]
    %v1223 = vld [vmem:[%s2 + $0x158] sm:$0xff]
    %v1224 = vld [vmem:[%s2 + $0x160] sm:$0xff]
    %v1225 = vld [vmem:[%s2 + $0x168] sm:$0xff]
    %v1226 = vld [vmem:[%s2 + $0x170] sm:$0xff]
    %v1227 = vld [vmem:[%s2 + $0x178] sm:$0xff]
    %v1228 = vld [vmem:[%s2 + $0x180] sm:$0xff]
    %v1229 = vld [vmem:[%s2 + $0x188] sm:$0xff]
    %v1230 = vld [vmem:[%s2 + $0x190] sm:$0xff]
    %v1231 = vld [vmem:[%s2 + $0x198] sm:$0xff]
    %v1232 = vld [vmem:[%s2 + $0x1a0] sm:$0xff]
    %v1233 = vld [vmem:[%s2 + $0x1a8] sm:$0xff]
    %v1234 = vld [vmem:[%s2 + $0x1b0] sm:$0xff]
    %v1235 = vld [vmem:[%s2 + $0x1b8] sm:$0xff]
    %v1236 = vld [vmem:[%s2 + $0x1c0] sm:$0xff]
    %v1237 = vld [vmem:[%s2 + $0x1c8] sm:$0xff]
    %v1238 = vld [vmem:[%s2 + $0x1d0] sm:$0xff]
    %v1239 = vld [vmem:[%s2 + $0x1d8] sm:$0xff]
    %v1240 = vld [vmem:[%s2 + $0x1e0] sm:$0xff]
    %v1241 = vld [vmem:[%s2 + $0x1e8] sm:$0xff]
    %v1242 = vld [vmem:[%s2 + $0x1f0] sm:$0xff]
    %v1243 = vld [vmem:[%s2 + $0x1f8] sm:$0xff]
    %1244 = vmatprep.subr.mxu0 %v1181
    %1245 = vmatpush1.msra.mxu0 %v1180
    %1246 = vmatprep.subr.mxu0 %v1185
    %1247 = vmatpush1.msra.mxu0 %v1184
    %1248 = vmatprep.subr.mxu0 %v1189
    %1249 = vmatpush1.msra.mxu0 %v1188
    %1250 = vmatprep.subr.mxu0 %v1193
    %1251 = vmatpush1.msra.mxu0 %v1192
    %1252 = vmatprep.subr.mxu0 %v1197
    %1253 = vmatpush1.msra.mxu0 %v1196
    %1254 = vmatprep.subr.mxu0 %v1201
    %1255 = vmatpush1.msra.mxu0 %v1200
    %1256 = vmatprep.subr.mxu0 %v1205
    %1257 = vmatpush1.msra.mxu0 %v1204
    %1258 = vmatprep.subr.mxu0 %v1209
    %1259 = vmatpush1.msra.mxu0 %v1208
    %1260 = vmatprep.subr.mxu0 %v1213
    %1261 = vmatpush1.msra.mxu0 %v1212
    %1262 = vmatprep.subr.mxu0 %v1217
    %1263 = vmatpush1.msra.mxu0 %v1216
    %1264 = vmatprep.subr.mxu0 %v1221
    %1265 = vmatpush1.msra.mxu0 %v1220
    %1266 = vmatprep.subr.mxu0 %v1225
    %1267 = vmatpush1.msra.mxu0 %v1224
    %1268 = vmatprep.subr.mxu0 %v1229
    %1269 = vmatpush1.msra.mxu0 %v1228
    %1270 = vmatprep.subr.mxu0 %v1233
    %1271 = vmatpush1.msra.mxu0 %v1232
    %1272 = vmatprep.subr.mxu0 %v1237
    %1273 = vmatpush1.msra.mxu0 %v1236
    %1274 = vmatprep.subr.mxu0 %v1241
    %1275 = vmatpush1.msra.mxu0 %v1240
    %1276 = vmatprep.subr.mxu0 0.0
    %1277 = vmatpush1.msra.mxu0 0.0
    %1278 = vmatprep.subr.mxu0 0.0
    %1279 = vmatpush1.msra.mxu0 0.0
    %1280 = vmatprep.subr.mxu0 0.0
    %1281 = vmatpush1.msra.mxu0 0.0
    %1282 = vmatprep.subr.mxu0 0.0
    %1283 = vmatpush1.msra.mxu0 0.0
    %1284 = vmatprep.subr.mxu0 0.0
    %1285 = vmatpush1.msra.mxu0 0.0
    %1286 = vmatprep.subr.mxu0 0.0
    %1287 = vmatpush1.msra.mxu0 0.0
    %1288 = vmatprep.subr.mxu0 0.0
    %1289 = vmatpush1.msra.mxu0 0.0
    %1290 = vmatprep.subr.mxu0 0.0
    %1291 = vmatpush1.msra.mxu0 0.0
    %1292 = vmatprep.subr.mxu0 0.0
    %1293 = vmatpush1.msra.mxu0 0.0
    %1294 = vmatprep.subr.mxu0 0.0
    %1295 = vmatpush1.msra.mxu0 0.0
    %1296 = vmatprep.subr.mxu0 0.0
    %1297 = vmatpush1.msra.mxu0 0.0
    %1298 = vmatprep.subr.mxu0 0.0
    %1299 = vmatpush1.msra.mxu0 0.0
    %1300 = vmatprep.subr.mxu0 0.0
    %1301 = vmatpush1.msra.mxu0 0.0
    %1302 = vmatprep.subr.mxu0 0.0
    %1303 = vmatpush1.msra.mxu0 0.0
    %1304 = vmatprep.subr.mxu0 0.0
    %1305 = vmatpush1.msra.mxu0 0.0
    %1306 = vmatprep.subr.mxu0 0.0
    %1307 = vmatpush1.msra.mxu0 0.0
    %1308 = vmatprep.mubr.f32.mxu0 0.0
    %1309 = vmatmul.mubr.f32.gmra.mrb[0].mxu0 %v464
    %v1310 = vpop.f32.mrb[0].mxu0
    %v1311 = vadd.f32 0.0, %v1310
    %v1312 = vpop.f32.mrb[0].mxu0
    %v1313 = vadd.f32 0.0, %v1312
    %1314 = vdwg.mxu0
    %1315 = vmatprep.subr.mxu0 %v1183
    %1316 = vmatpush1.msra.mxu0 %v1182
    %1317 = vmatprep.subr.mxu0 %v1187
    %1318 = vmatpush1.msra.mxu0 %v1186
    %1319 = vmatprep.subr.mxu0 %v1191
    %1320 = vmatpush1.msra.mxu0 %v1190
    %1321 = vmatprep.subr.mxu0 %v1195
    %1322 = vmatpush1.msra.mxu0 %v1194
    %1323 = vmatprep.subr.mxu0 %v1199
    %1324 = vmatpush1.msra.mxu0 %v1198
    %1325 = vmatprep.subr.mxu0 %v1203
    %1326 = vmatpush1.msra.mxu0 %v1202
    %1327 = vmatprep.subr.mxu0 %v1207
    %1328 = vmatpush1.msra.mxu0 %v1206
    %1329 = vmatprep.subr.mxu0 %v1211
    %1330 = vmatpush1.msra.mxu0 %v1210
    %1331 = vmatprep.subr.mxu0 %v1215
    %1332 = vmatpush1.msra.mxu0 %v1214
    %1333 = vmatprep.subr.mxu0 %v1219
    %1334 = vmatpush1.msra.mxu0 %v1218
    %1335 = vmatprep.subr.mxu0 %v1223
    %1336 = vmatpush1.msra.mxu0 %v1222
    %1337 = vmatprep.subr.mxu0 %v1227
    %1338 = vmatpush1.msra.mxu0 %v1226
    %1339 = vmatprep.subr.mxu0 %v1231
    %1340 = vmatpush1.msra.mxu0 %v1230
    %1341 = vmatprep.subr.mxu0 %v1235
    %1342 = vmatpush1.msra.mxu0 %v1234
    %1343 = vmatprep.subr.mxu0 %v1239
    %1344 = vmatpush1.msra.mxu0 %v1238
    %1345 = vmatprep.subr.mxu0 %v1243
    %1346 = vmatpush1.msra.mxu0 %v1242
    %1347 = vmatprep.subr.mxu0 0.0
    %1348 = vmatpush1.msra.mxu0 0.0
    %1349 = vmatprep.subr.mxu0 0.0
    %1350 = vmatpush1.msra.mxu0 0.0
    %1351 = vmatprep.subr.mxu0 0.0
    %1352 = vmatpush1.msra.mxu0 0.0
    %1353 = vmatprep.subr.mxu0 0.0
    %1354 = vmatpush1.msra.mxu0 0.0
    %1355 = vmatprep.subr.mxu0 0.0
    %1356 = vmatpush1.msra.mxu0 0.0
    %1357 = vmatprep.subr.mxu0 0.0
    %1358 = vmatpush1.msra.mxu0 0.0
    %1359 = vmatprep.subr.mxu0 0.0
    %1360 = vmatpush1.msra.mxu0 0.0
    %1361 = vmatprep.subr.mxu0 0.0
    %1362 = vmatpush1.msra.mxu0 0.0
    %1363 = vmatprep.subr.mxu0 0.0
    %1364 = vmatpush1.msra.mxu0 0.0
    %1365 = vmatprep.subr.mxu0 0.0
    %1366 = vmatpush1.msra.mxu0 0.0
    %1367 = vmatprep.subr.mxu0 0.0
    %1368 = vmatpush1.msra.mxu0 0.0
    %1369 = vmatprep.subr.mxu0 0.0
    %1370 = vmatpush1.msra.mxu0 0.0
    %1371 = vmatprep.subr.mxu0 0.0
    %1372 = vmatpush1.msra.mxu0 0.0
    %1373 = vmatprep.subr.mxu0 0.0
    %1374 = vmatpush1.msra.mxu0 0.0
    %1375 = vmatprep.subr.mxu0 0.0
    %1376 = vmatpush1.msra.mxu0 0.0
    %1377 = vmatprep.subr.mxu0 0.0
    %1378 = vmatpush1.msra.mxu0 0.0
    %1379 = vmatprep.mubr.f32.mxu0 0.0
    %1380 = vmatmul.mubr.f32.gmra.mrb[0].mxu0 %v464
    %v1381 = vpop.f32.mrb[0].mxu0
    %v1382 = vadd.f32 0.0, %v1381
    %v1383 = vpop.f32.mrb[0].mxu0
    %v1384 = vadd.f32 0.0, %v1383
    %1385 = vdwg.mxu0
    %v1386 = vadd.f32 %v1176, %v1311
    %v1387 = vadd.f32 %v1177, %v1313
    %v1388 = vadd.f32 %v1178, %v1382
    %v1389 = vadd.f32 %v1179, %v1384
    %v1390 = vxor.u32 %v1386, 2147483648
    %v1391 = vmul.f32 %v1390, 1.442695
    %v1392 = vpow.pop %v1391
    %v1393 = vadd.f32 %v1392, 1.0
    %v1394 = vrcp.pop %v1393
    %v1395 = vmul.f32 1.0, %v1394
    %v1396 = vxor.u32 %v1387, 2147483648
    %v1397 = vmul.f32 %v1396, 1.442695
    %v1398 = vpow.pop %v1397
    %v1399 = vadd.f32 %v1398, 1.0
    %v1400 = vrcp.pop %v1399
    %v1401 = vmul.f32 1.0, %v1400
    %v1402 = vtanh.pop %v1388
    %v1403 = vxor.u32 %v1389, 2147483648
    %v1404 = vmul.f32 %v1403, 1.442695
    %v1405 = vpow.pop %v1404
    %v1406 = vadd.f32 %v1405, 1.0
    %v1407 = vrcp.pop %v1406
    %v1408 = vmul.f32 1.0, %v1407
    %v1409 = vmul.f32 %v1401, %v462
    %v1410 = vmul.f32 %v1395, %v1402
    %v1411 = vadd.f32 %v1409, %v1410
    %v1412 = vtanh.pop %v1411
    %v1413 = vmul.f32 %v1408, %v1412
    %v1414 = vld [vmem:[%s1] sm:$0xff]
    %v1415 = vmul.f32 %v1413, %v1414
    %1416 = vadd.xlane.f32.xlu0 %v1415
    %v1417 = vpop.xlane.xlu0 %1416
    %v1418 = vmul.f32 %v1417, %v1414
    %v1419 = vadd.f32 %v1418, 0.0
    %v1420 = vld [vmem:[%s471] sm:$0xff]
    %v1421 = vmul.f32 %v1413, %v1420
    %1422 = vadd.xlane.f32.xlu0 %v1421
    %v1423 = vpop.xlane.xlu0 %1422
    %v1424 = vmul.f32 %v1423, %v1420
    %v1425 = vadd.f32 %v1419, %v1424
    %v1426 = vld [vmem:[%s478] sm:$0xff]
    %v1427 = vmul.f32 %v1413, %v1426
    %1428 = vadd.xlane.f32.xlu0 %v1427
    %v1429 = vpop.xlane.xlu0 %1428
    %v1430 = vmul.f32 %v1429, %v1426
    %v1431 = vadd.f32 %v1425, %v1430
    %v1432 = vld [vmem:[%s485] sm:$0xff]
    %v1433 = vmul.f32 %v1413, %v1432
    %1434 = vadd.xlane.f32.xlu0 %v1433
    %v1435 = vpop.xlane.xlu0 %1434
    %v1436 = vmul.f32 %v1435, %v1432
    %v1437 = vadd.f32 %v1431, %v1436
    %v1438 = vld [vmem:[%s492] sm:$0xff]
    %v1439 = vmul.f32 %v1413, %v1438
    %1440 = vadd.xlane.f32.xlu0 %v1439
    %v1441 = vpop.xlane.xlu0 %1440
    %v1442 = vmul.f32 %v1441, %v1438
    %v1443 = vadd.f32 %v1437, %v1442
    %v1444 = vld [vmem:[%s499] sm:$0xff]
    %v1445 = vmul.f32 %v1413, %v1444
    %1446 = vadd.xlane.f32.xlu0 %v1445
    %v1447 = vpop.xlane.xlu0 %1446
    %v1448 = vmul.f32 %v1447, %v1444
    %v1449 = vadd.f32 %v1443, %v1448
    %v1450 = vld [vmem:[%s506] sm:$0xff]
    %v1451 = vmul.f32 %v1413, %v1450
    %1452 = vadd.xlane.f32.xlu0 %v1451
    %v1453 = vpop.xlane.xlu0 %1452
    %v1454 = vmul.f32 %v1453, %v1450
    %v1455 = vadd.f32 %v1449, %v1454
    %v1456 = vld [vmem:[%s513] sm:$0xff]
    %v1457 = vmul.f32 %v1413, %v1456
    %1458 = vadd.xlane.f32.xlu0 %v1457
    %v1459 = vpop.xlane.xlu0 %1458
    %v1460 = vmul.f32 %v1459, %v1456
    %v1461 = vadd.f32 %v1455, %v1460
    %v1462 = vld [vmem:[%s3] sm:$0xff]
    %v1463 = vld [vmem:[%s3 + $0x8] sm:$0xff]
    %v1464 = vld [vmem:[%s3 + $0x10] sm:$0xff]
    %v1465 = vld [vmem:[%s3 + $0x18] sm:$0xff]
    %v1466 = vld [vmem:[%s3 + $0x20] sm:$0xff]
    %v1467 = vld [vmem:[%s3 + $0x28] sm:$0xff]
    %v1468 = vld [vmem:[%s3 + $0x30] sm:$0xff]
    %v1469 = vld [vmem:[%s3 + $0x38] sm:$0xff]
    %v1470 = vld [vmem:[%s3 + $0x40] sm:$0xff]
    %v1471 = vld [vmem:[%s3 + $0x48] sm:$0xff]
    %v1472 = vld [vmem:[%s3 + $0x50] sm:$0xff]
    %v1473 = vld [vmem:[%s3 + $0x58] sm:$0xff]
    %v1474 = vld [vmem:[%s3 + $0x60] sm:$0xff]
    %v1475 = vld [vmem:[%s3 + $0x68] sm:$0xff]
    %v1476 = vld [vmem:[%s3 + $0x70] sm:$0xff]
    %v1477 = vld [vmem:[%s3 + $0x78] sm:$0xff]
    %v1478 = vld [vmem:[%s3 + $0x80] sm:$0xff]
    %v1479 = vld [vmem:[%s3 + $0x88] sm:$0xff]
    %v1480 = vld [vmem:[%s3 + $0x90] sm:$0xff]
    %v1481 = vld [vmem:[%s3 + $0x98] sm:$0xff]
    %v1482 = vld [vmem:[%s3 + $0xa0] sm:$0xff]
    %v1483 = vld [vmem:[%s3 + $0xa8] sm:$0xff]
    %v1484 = vld [vmem:[%s3 + $0xb0] sm:$0xff]
    %v1485 = vld [vmem:[%s3 + $0xb8] sm:$0xff]
    %v1486 = vld [vmem:[%s3 + $0xc0] sm:$0xff]
    %v1487 = vld [vmem:[%s3 + $0xc8] sm:$0xff]
    %v1488 = vld [vmem:[%s3 + $0xd0] sm:$0xff]
    %v1489 = vld [vmem:[%s3 + $0xd8] sm:$0xff]
    %v1490 = vld [vmem:[%s3 + $0xe0] sm:$0xff]
    %v1491 = vld [vmem:[%s3 + $0xe8] sm:$0xff]
    %v1492 = vld [vmem:[%s3 + $0xf0] sm:$0xff]
    %v1493 = vld [vmem:[%s3 + $0xf8] sm:$0xff]
    %v1494 = vld [vmem:[%s3 + $0x100] sm:$0xff]
    %v1495 = vld [vmem:[%s3 + $0x108] sm:$0xff]
    %v1496 = vld [vmem:[%s3 + $0x110] sm:$0xff]
    %v1497 = vld [vmem:[%s3 + $0x118] sm:$0xff]
    %v1498 = vld [vmem:[%s3 + $0x120] sm:$0xff]
    %v1499 = vld [vmem:[%s3 + $0x128] sm:$0xff]
    %v1500 = vld [vmem:[%s3 + $0x130] sm:$0xff]
    %v1501 = vld [vmem:[%s3 + $0x138] sm:$0xff]
    %v1502 = vld [vmem:[%s3 + $0x140] sm:$0xff]
    %v1503 = vld [vmem:[%s3 + $0x148] sm:$0xff]
    %v1504 = vld [vmem:[%s3 + $0x150] sm:$0xff]
    %v1505 = vld [vmem:[%s3 + $0x158] sm:$0xff]
    %v1506 = vld [vmem:[%s3 + $0x160] sm:$0xff]
    %v1507 = vld [vmem:[%s3 + $0x168] sm:$0xff]
    %v1508 = vld [vmem:[%s3 + $0x170] sm:$0xff]
    %v1509 = vld [vmem:[%s3 + $0x178] sm:$0xff]
    %v1510 = vld [vmem:[%s3 + $0x180] sm:$0xff]
    %v1511 = vld [vmem:[%s3 + $0x188] sm:$0xff]
    %v1512 = vld [vmem:[%s3 + $0x190] sm:$0xff]
    %v1513 = vld [vmem:[%s3 + $0x198] sm:$0xff]
    %v1514 = vld [vmem:[%s3 + $0x1a0] sm:$0xff]
    %v1515 = vld [vmem:[%s3 + $0x1a8] sm:$0xff]
    %v1516 = vld [vmem:[%s3 + $0x1b0] sm:$0xff]
    %v1517 = vld [vmem:[%s3 + $0x1b8] sm:$0xff]
    %v1518 = vld [vmem:[%s3 + $0x1c0] sm:$0xff]
    %v1519 = vld [vmem:[%s3 + $0x1c8] sm:$0xff]
    %v1520 = vld [vmem:[%s3 + $0x1d0] sm:$0xff]
    %v1521 = vld [vmem:[%s3 + $0x1d8] sm:$0xff]
    %v1522 = vld [vmem:[%s3 + $0x1e0] sm:$0xff]
    %v1523 = vld [vmem:[%s3 + $0x1e8] sm:$0xff]
    %v1524 = vld [vmem:[%s3 + $0x1f0] sm:$0xff]
    %v1525 = vld [vmem:[%s3 + $0x1f8] sm:$0xff]
    %v1526 = vld [vmem:[%s3 + $0x200] sm:$0xff]
    %v1527 = vld [vmem:[%s3 + $0x208] sm:$0xff]
    %v1528 = vld [vmem:[%s3 + $0x210] sm:$0xff]
    %v1529 = vld [vmem:[%s3 + $0x218] sm:$0xff]
    %v1530 = vld [vmem:[%s3 + $0x220] sm:$0xff]
    %v1531 = vld [vmem:[%s3 + $0x228] sm:$0xff]
    %v1532 = vld [vmem:[%s3 + $0x230] sm:$0xff]
    %v1533 = vld [vmem:[%s3 + $0x238] sm:$0xff]
    %v1534 = vld [vmem:[%s3 + $0x240] sm:$0xff]
    %v1535 = vld [vmem:[%s3 + $0x248] sm:$0xff]
    %v1536 = vld [vmem:[%s3 + $0x250] sm:$0xff]
    %v1537 = vld [vmem:[%s3 + $0x258] sm:$0xff]
    %v1538 = vld [vmem:[%s3 + $0x260] sm:$0xff]
    %v1539 = vld [vmem:[%s3 + $0x268] sm:$0xff]
    %v1540 = vld [vmem:[%s3 + $0x270] sm:$0xff]
    %v1541 = vld [vmem:[%s3 + $0x278] sm:$0xff]
    %v1542 = vld [vmem:[%s3 + $0x280] sm:$0xff]
    %v1543 = vld [vmem:[%s3 + $0x288] sm:$0xff]
    %v1544 = vld [vmem:[%s3 + $0x290] sm:$0xff]
    %v1545 = vld [vmem:[%s3 + $0x298] sm:$0xff]
    %v1546 = vld [vmem:[%s3 + $0x2a0] sm:$0xff]
    %v1547 = vld [vmem:[%s3 + $0x2a8] sm:$0xff]
    %v1548 = vld [vmem:[%s3 + $0x2b0] sm:$0xff]
    %v1549 = vld [vmem:[%s3 + $0x2b8] sm:$0xff]
    %v1550 = vld [vmem:[%s3 + $0x2c0] sm:$0xff]
    %v1551 = vld [vmem:[%s3 + $0x2c8] sm:$0xff]
    %v1552 = vld [vmem:[%s3 + $0x2d0] sm:$0xff]
    %v1553 = vld [vmem:[%s3 + $0x2d8] sm:$0xff]
    %v1554 = vld [vmem:[%s3 + $0x2e0] sm:$0xff]
    %v1555 = vld [vmem:[%s3 + $0x2e8] sm:$0xff]
    %v1556 = vld [vmem:[%s3 + $0x2f0] sm:$0xff]
    %v1557 = vld [vmem:[%s3 + $0x2f8] sm:$0xff]
    %v1558 = vld [vmem:[%s3 + $0x300] sm:$0xff]
    %v1559 = vld [vmem:[%s3 + $0x308] sm:$0xff]
    %v1560 = vld [vmem:[%s3 + $0x310] sm:$0xff]
    %v1561 = vld [vmem:[%s3 + $0x318] sm:$0xff]
    %v1562 = vld [vmem:[%s3 + $0x320] sm:$0xff]
    %v1563 = vld [vmem:[%s3 + $0x328] sm:$0xff]
    %v1564 = vld [vmem:[%s3 + $0x330] sm:$0xff]
    %v1565 = vld [vmem:[%s3 + $0x338] sm:$0xff]
    %v1566 = vld [vmem:[%s3 + $0x340] sm:$0xff]
    %v1567 = vld [vmem:[%s3 + $0x348] sm:$0xff]
    %v1568 = vld [vmem:[%s3 + $0x350] sm:$0xff]
    %v1569 = vld [vmem:[%s3 + $0x358] sm:$0xff]
    %v1570 = vld [vmem:[%s3 + $0x360] sm:$0xff]
    %v1571 = vld [vmem:[%s3 + $0x368] sm:$0xff]
    %v1572 = vld [vmem:[%s3 + $0x370] sm:$0xff]
    %v1573 = vld [vmem:[%s3 + $0x378] sm:$0xff]
    %v1574 = vld [vmem:[%s3 + $0x380] sm:$0xff]
    %v1575 = vld [vmem:[%s3 + $0x388] sm:$0xff]
    %v1576 = vld [vmem:[%s3 + $0x390] sm:$0xff]
    %v1577 = vld [vmem:[%s3 + $0x398] sm:$0xff]
    %v1578 = vld [vmem:[%s3 + $0x3a0] sm:$0xff]
    %v1579 = vld [vmem:[%s3 + $0x3a8] sm:$0xff]
    %v1580 = vld [vmem:[%s3 + $0x3b0] sm:$0xff]
    %v1581 = vld [vmem:[%s3 + $0x3b8] sm:$0xff]
    %v1582 = vld [vmem:[%s3 + $0x3c0] sm:$0xff]
    %v1583 = vld [vmem:[%s3 + $0x3c8] sm:$0xff]
    %v1584 = vld [vmem:[%s3 + $0x3d0] sm:$0xff]
    %v1585 = vld [vmem:[%s3 + $0x3d8] sm:$0xff]
    %v1586 = vld [vmem:[%s3 + $0x3e0] sm:$0xff]
    %v1587 = vld [vmem:[%s3 + $0x3e8] sm:$0xff]
    %v1588 = vld [vmem:[%s3 + $0x3f0] sm:$0xff]
    %v1589 = vld [vmem:[%s3 + $0x3f8] sm:$0xff]
    %1590 = vmatprep.subr.mxu0 %v1527
    %1591 = vmatpush1.msra.mxu0 %v1526
    %1592 = vmatprep.subr.mxu0 %v1531
    %1593 = vmatpush1.msra.mxu0 %v1530
    %1594 = vmatprep.subr.mxu0 %v1535
    %1595 = vmatpush1.msra.mxu0 %v1534
    %1596 = vmatprep.subr.mxu0 %v1539
    %1597 = vmatpush1.msra.mxu0 %v1538
    %1598 = vmatprep.subr.mxu0 %v1543
    %1599 = vmatpush1.msra.mxu0 %v1542
    %1600 = vmatprep.subr.mxu0 %v1547
    %1601 = vmatpush1.msra.mxu0 %v1546
    %1602 = vmatprep.subr.mxu0 %v1551
    %1603 = vmatpush1.msra.mxu0 %v1550
    %1604 = vmatprep.subr.mxu0 %v1555
    %1605 = vmatpush1.msra.mxu0 %v1554
    %1606 = vmatprep.subr.mxu0 %v1559
    %1607 = vmatpush1.msra.mxu0 %v1558
    %1608 = vmatprep.subr.mxu0 %v1563
    %1609 = vmatpush1.msra.mxu0 %v1562
    %1610 = vmatprep.subr.mxu0 %v1567
    %1611 = vmatpush1.msra.mxu0 %v1566
    %1612 = vmatprep.subr.mxu0 %v1571
    %1613 = vmatpush1.msra.mxu0 %v1570
    %1614 = vmatprep.subr.mxu0 %v1575
    %1615 = vmatpush1.msra.mxu0 %v1574
    %1616 = vmatprep.subr.mxu0 %v1579
    %1617 = vmatpush1.msra.mxu0 %v1578
    %1618 = vmatprep.subr.mxu0 %v1583
    %1619 = vmatpush1.msra.mxu0 %v1582
    %1620 = vmatprep.subr.mxu0 %v1587
    %1621 = vmatpush1.msra.mxu0 %v1586
    %1622 = vmatprep.subr.mxu0 0.0
    %1623 = vmatpush1.msra.mxu0 0.0
    %1624 = vmatprep.subr.mxu0 0.0
    %1625 = vmatpush1.msra.mxu0 0.0
    %1626 = vmatprep.subr.mxu0 0.0
    %1627 = vmatpush1.msra.mxu0 0.0
    %1628 = vmatprep.subr.mxu0 0.0
    %1629 = vmatpush1.msra.mxu0 0.0
    %1630 = vmatprep.subr.mxu0 0.0
    %1631 = vmatpush1.msra.mxu0 0.0
    %1632 = vmatprep.subr.mxu0 0.0
    %1633 = vmatpush1.msra.mxu0 0.0
    %1634 = vmatprep.subr.mxu0 0.0
    %1635 = vmatpush1.msra.mxu0 0.0
    %1636 = vmatprep.subr.mxu0 0.0
    %1637 = vmatpush1.msra.mxu0 0.0
    %1638 = vmatprep.subr.mxu0 0.0
    %1639 = vmatpush1.msra.mxu0 0.0
    %1640 = vmatprep.subr.mxu0 0.0
    %1641 = vmatpush1.msra.mxu0 0.0
    %1642 = vmatprep.subr.mxu0 0.0
    %1643 = vmatpush1.msra.mxu0 0.0
    %1644 = vmatprep.subr.mxu0 0.0
    %1645 = vmatpush1.msra.mxu0 0.0
    %1646 = vmatprep.subr.mxu0 0.0
    %1647 = vmatpush1.msra.mxu0 0.0
    %1648 = vmatprep.subr.mxu0 0.0
    %1649 = vmatpush1.msra.mxu0 0.0
    %1650 = vmatprep.subr.mxu0 0.0
    %1651 = vmatpush1.msra.mxu0 0.0
    %1652 = vmatprep.subr.mxu0 0.0
    %1653 = vmatpush1.msra.mxu0 0.0
    %1654 = vmatprep.mubr.f32.mxu0 0.0
    %1655 = vmatmul.mubr.f32.gmra.mrb[0].mxu0 %v1413
    %v1656 = vpop.f32.mrb[0].mxu0
    %v1657 = vadd.f32 0.0, %v1656
    %v1658 = vpop.f32.mrb[0].mxu0
    %v1659 = vadd.f32 0.0, %v1658
    %1660 = vdwg.mxu0
    %1661 = vmatprep.subr.mxu0 %v1529
    %1662 = vmatpush1.msra.mxu0 %v1528
    %1663 = vmatprep.subr.mxu0 %v1533
    %1664 = vmatpush1.msra.mxu0 %v1532
    %1665 = vmatprep.subr.mxu0 %v1537
    %1666 = vmatpush1.msra.mxu0 %v1536
    %1667 = vmatprep.subr.mxu0 %v1541
    %1668 = vmatpush1.msra.mxu0 %v1540
    %1669 = vmatprep.subr.mxu0 %v1545
    %1670 = vmatpush1.msra.mxu0 %v1544
    %1671 = vmatprep.subr.mxu0 %v1549
    %1672 = vmatpush1.msra.mxu0 %v1548
    %1673 = vmatprep.subr.mxu0 %v1553
    %1674 = vmatpush1.msra.mxu0 %v1552
    %1675 = vmatprep.subr.mxu0 %v1557
    %1676 = vmatpush1.msra.mxu0 %v1556
    %1677 = vmatprep.subr.mxu0 %v1561
    %1678 = vmatpush1.msra.mxu0 %v1560
    %1679 = vmatprep.subr.mxu0 %v1565
    %1680 = vmatpush1.msra.mxu0 %v1564
    %1681 = vmatprep.subr.mxu0 %v1569
    %1682 = vmatpush1.msra.mxu0 %v1568
    %1683 = vmatprep.subr.mxu0 %v1573
    %1684 = vmatpush1.msra.mxu0 %v1572
    %1685 = vmatprep.subr.mxu0 %v1577
    %1686 = vmatpush1.msra.mxu0 %v1576
    %1687 = vmatprep.subr.mxu0 %v1581
    %1688 = vmatpush1.msra.mxu0 %v1580
    %1689 = vmatprep.subr.mxu0 %v1585
    %1690 = vmatpush1.msra.mxu0 %v1584
    %1691 = vmatprep.subr.mxu0 %v1589
    %1692 = vmatpush1.msra.mxu0 %v1588
    %1693 = vmatprep.subr.mxu0 0.0
    %1694 = vmatpush1.msra.mxu0 0.0
    %1695 = vmatprep.subr.mxu0 0.0
    %1696 = vmatpush1.msra.mxu0 0.0
    %1697 = vmatprep.subr.mxu0 0.0
    %1698 = vmatpush1.msra.mxu0 0.0
    %1699 = vmatprep.subr.mxu0 0.0
    %1700 = vmatpush1.msra.mxu0 0.0
    %1701 = vmatprep.subr.mxu0 0.0
    %1702 = vmatpush1.msra.mxu0 0.0
    %1703 = vmatprep.subr.mxu0 0.0
    %1704 = vmatpush1.msra.mxu0 0.0
    %1705 = vmatprep.subr.mxu0 0.0
    %1706 = vmatpush1.msra.mxu0 0.0
    %1707 = vmatprep.subr.mxu0 0.0
    %1708 = vmatpush1.msra.mxu0 0.0
    %1709 = vmatprep.subr.mxu0 0.0
    %1710 = vmatpush1.msra.mxu0 0.0
    %1711 = vmatprep.subr.mxu0 0.0
    %1712 = vmatpush1.msra.mxu0 0.0
    %1713 = vmatprep.subr.mxu0 0.0
    %1714 = vmatpush1.msra.mxu0 0.0
    %1715 = vmatprep.subr.mxu0 0.0
    %1716 = vmatpush1.msra.mxu0 0.0
    %1717 = vmatprep.subr.mxu0 0.0
    %1718 = vmatpush1.msra.mxu0 0.0
    %1719 = vmatprep.subr.mxu0 0.0
    %1720 = vmatpush1.msra.mxu0 0.0
    %1721 = vmatprep.subr.mxu0 0.0
    %1722 = vmatpush1.msra.mxu0 0.0
    %1723 = vmatprep.subr.mxu0 0.0
    %1724 = vmatpush1.msra.mxu0 0.0
    %1725 = vmatprep.mubr.f32.mxu0 0.0
    %1726 = vmatmul.mubr.f32.gmra.mrb[0].mxu0 %v1413
    %v1727 = vpop.f32.mrb[0].mxu0
    %v1728 = vadd.f32 0.0, %v1727
    %v1729 = vpop.f32.mrb[0].mxu0
    %v1730 = vadd.f32 0.0, %v1729
    %1731 = vdwg.mxu0
    %1732 = vmatprep.subr.mxu0 %v1463
    %1733 = vmatpush1.msra.mxu0 %v1462
    %1734 = vmatprep.subr.mxu0 %v1467
    %1735 = vmatpush1.msra.mxu0 %v1466
    %1736 = vmatprep.subr.mxu0 %v1471
    %1737 = vmatpush1.msra.mxu0 %v1470
    %1738 = vmatprep.subr.mxu0 %v1475
    %1739 = vmatpush1.msra.mxu0 %v1474
    %1740 = vmatprep.subr.mxu0 %v1479
    %1741 = vmatpush1.msra.mxu0 %v1478
    %1742 = vmatprep.subr.mxu0 %v1483
    %1743 = vmatpush1.msra.mxu0 %v1482
    %1744 = vmatprep.subr.mxu0 %v1487
    %1745 = vmatpush1.msra.mxu0 %v1486
    %1746 = vmatprep.subr.mxu0 %v1491
    %1747 = vmatpush1.msra.mxu0 %v1490
    %1748 = vmatprep.subr.mxu0 %v1495
    %1749 = vmatpush1.msra.mxu0 %v1494
    %1750 = vmatprep.subr.mxu0 %v1499
    %1751 = vmatpush1.msra.mxu0 %v1498
    %1752 = vmatprep.subr.mxu0 %v1503
    %1753 = vmatpush1.msra.mxu0 %v1502
    %1754 = vmatprep.subr.mxu0 %v1507
    %1755 = vmatpush1.msra.mxu0 %v1506
    %1756 = vmatprep.subr.mxu0 %v1511
    %1757 = vmatpush1.msra.mxu0 %v1510
    %1758 = vmatprep.subr.mxu0 %v1515
    %1759 = vmatpush1.msra.mxu0 %v1514
    %1760 = vmatprep.subr.mxu0 %v1519
    %1761 = vmatpush1.msra.mxu0 %v1518
    %1762 = vmatprep.subr.mxu0 %v1523
    %1763 = vmatpush1.msra.mxu0 %v1522
    %1764 = vmatprep.subr.mxu0 0.0
    %1765 = vmatpush1.msra.mxu0 0.0
    %1766 = vmatprep.subr.mxu0 0.0
    %1767 = vmatpush1.msra.mxu0 0.0
    %1768 = vmatprep.subr.mxu0 0.0
    %1769 = vmatpush1.msra.mxu0 0.0
    %1770 = vmatprep.subr.mxu0 0.0
    %1771 = vmatpush1.msra.mxu0 0.0
    %1772 = vmatprep.subr.mxu0 0.0
    %1773 = vmatpush1.msra.mxu0 0.0
    %1774 = vmatprep.subr.mxu0 0.0
    %1775 = vmatpush1.msra.mxu0 0.0
    %1776 = vmatprep.subr.mxu0 0.0
    %1777 = vmatpush1.msra.mxu0 0.0
    %1778 = vmatprep.subr.mxu0 0.0
    %1779 = vmatpush1.msra.mxu0 0.0
    %1780 = vmatprep.subr.mxu0 0.0
    %1781 = vmatpush1.msra.mxu0 0.0
    %1782 = vmatprep.subr.mxu0 0.0
    %1783 = vmatpush1.msra.mxu0 0.0
    %1784 = vmatprep.subr.mxu0 0.0
    %1785 = vmatpush1.msra.mxu0 0.0
    %1786 = vmatprep.subr.mxu0 0.0
    %1787 = vmatpush1.msra.mxu0 0.0
    %1788 = vmatprep.subr.mxu0 0.0
    %1789 = vmatpush1.msra.mxu0 0.0
    %1790 = vmatprep.subr.mxu0 0.0
    %1791 = vmatpush1.msra.mxu0 0.0
    %1792 = vmatprep.subr.mxu0 0.0
    %1793 = vmatpush1.msra.mxu0 0.0
    %1794 = vmatprep.subr.mxu0 0.0
    %1795 = vmatpush1.msra.mxu0 0.0
    %1796 = vmatprep.mubr.f32.mxu0 0.0
    %1797 = vmatmul.mubr.f32.gmra.mrb[0].mxu0 %v1461
    %v1798 = vpop.f32.mrb[0].mxu0
    %v1799 = vadd.f32 %v1657, %v1798
    %v1800 = vpop.f32.mrb[0].mxu0
    %v1801 = vadd.f32 %v1659, %v1800
    %1802 = vdwg.mxu0
    %1803 = vmatprep.subr.mxu0 %v1465
    %1804 = vmatpush1.msra.mxu0 %v1464
    %1805 = vmatprep.subr.mxu0 %v1469
    %1806 = vmatpush1.msra.mxu0 %v1468
    %1807 = vmatprep.subr.mxu0 %v1473
    %1808 = vmatpush1.msra.mxu0 %v1472
    %1809 = vmatprep.subr.mxu0 %v1477
    %1810 = vmatpush1.msra.mxu0 %v1476
    %1811 = vmatprep.subr.mxu0 %v1481
    %1812 = vmatpush1.msra.mxu0 %v1480
    %1813 = vmatprep.subr.mxu0 %v1485
    %1814 = vmatpush1.msra.mxu0 %v1484
    %1815 = vmatprep.subr.mxu0 %v1489
    %1816 = vmatpush1.msra.mxu0 %v1488
    %1817 = vmatprep.subr.mxu0 %v1493
    %1818 = vmatpush1.msra.mxu0 %v1492
    %1819 = vmatprep.subr.mxu0 %v1497
    %1820 = vmatpush1.msra.mxu0 %v1496
    %1821 = vmatprep.subr.mxu0 %v1501
    %1822 = vmatpush1.msra.mxu0 %v1500
    %1823 = vmatprep.subr.mxu0 %v1505
    %1824 = vmatpush1.msra.mxu0 %v1504
    %1825 = vmatprep.subr.mxu0 %v1509
    %1826 = vmatpush1.msra.mxu0 %v1508
    %1827 = vmatprep.subr.mxu0 %v1513
    %1828 = vmatpush1.msra.mxu0 %v1512
    %1829 = vmatprep.subr.mxu0 %v1517
    %1830 = vmatpush1.msra.mxu0 %v1516
    %1831 = vmatprep.subr.mxu0 %v1521
    %1832 = vmatpush1.msra.mxu0 %v1520
    %1833 = vmatprep.subr.mxu0 %v1525
    %1834 = vmatpush1.msra.mxu0 %v1524
    %1835 = vmatprep.subr.mxu0 0.0
    %1836 = vmatpush1.msra.mxu0 0.0
    %1837 = vmatprep.subr.mxu0 0.0
    %1838 = vmatpush1.msra.mxu0 0.0
    %1839 = vmatprep.subr.mxu0 0.0
    %1840 = vmatpush1.msra.mxu0 0.0
    %1841 = vmatprep.subr.mxu0 0.0
    %1842 = vmatpush1.msra.mxu0 0.0
    %1843 = vmatprep.subr.mxu0 0.0
    %1844 = vmatpush1.msra.mxu0 0.0
    %1845 = vmatprep.subr.mxu0 0.0
    %1846 = vmatpush1.msra.mxu0 0.0
    %1847 = vmatprep.subr.mxu0 0.0
    %1848 = vmatpush1.msra.mxu0 0.0
    %1849 = vmatprep.subr.mxu0 0.0
    %1850 = vmatpush1.msra.mxu0 0.0
    %1851 = vmatprep.subr.mxu0 0.0
    %1852 = vmatpush1.msra.mxu0 0.0
    %1853 = vmatprep.subr.mxu0 0.0
    %1854 = vmatpush1.msra.mxu0 0.0
    %1855 = vmatprep.subr.mxu0 0.0
    %1856 = vmatpush1.msra.mxu0 0.0
    %1857 = vmatprep.subr.mxu0 0.0
    %1858 = vmatpush1.msra.mxu0 0.0
    %1859 = vmatprep.subr.mxu0 0.0
    %1860 = vmatpush1.msra.mxu0 0.0
    %1861 = vmatprep.subr.mxu0 0.0
    %1862 = vmatpush1.msra.mxu0 0.0
    %1863 = vmatprep.subr.mxu0 0.0
    %1864 = vmatpush1.msra.mxu0 0.0
    %1865 = vmatprep.subr.mxu0 0.0
    %1866 = vmatpush1.msra.mxu0 0.0
    %1867 = vmatprep.mubr.f32.mxu0 0.0
    %1868 = vmatmul.mubr.f32.gmra.mrb[0].mxu0 %v1461
    %v1869 = vpop.f32.mrb[0].mxu0
    %v1870 = vadd.f32 %v1728, %v1869
    %v1871 = vpop.f32.mrb[0].mxu0
    %v1872 = vadd.f32 %v1730, %v1871
    %1873 = vdwg.mxu0
    %v1874 = vadd.f32 %v1799, %v1100
    %v1875 = vadd.f32 %v1801, %v1102
    %v1876 = vadd.f32 %v1870, %v1171
    %v1877 = vadd.f32 %v1872, %v1173
    %v1878 = vld [vmem:[%s4] sm:$0xff]
    %v1879 = vld [vmem:[%s4 + $0x8] sm:$0xff]
    %v1880 = vld [vmem:[%s4 + $0x10] sm:$0xff]
    %v1881 = vld [vmem:[%s4 + $0x18] sm:$0xff]
    %v1882 = vadd.f32 %v1874, %v1878
    %v1883 = vadd.f32 %v1875, %v1879
    %v1884 = vadd.f32 %v1876, %v1880
    %v1885 = vadd.f32 %v1877, %v1881
    %v1886 = vxor.u32 %v1882, 2147483648
    %v1887 = vmul.f32 %v1886, 1.442695
    %v1888 = vpow.pop %v1887
    %v1889 = vadd.f32 %v1888, 1.0
    %v1890 = vrcp.pop %v1889
    %v1891 = vmul.f32 1.0, %v1890
    %v1892 = vxor.u32 %v1883, 2147483648
    %v1893 = vmul.f32 %v1892, 1.442695
    %v1894 = vpow.pop %v1893
    %v1895 = vadd.f32 %v1894, 1.0
    %v1896 = vrcp.pop %v1895
    %v1897 = vmul.f32 1.0, %v1896
    %v1898 = vtanh.pop %v1884
    %v1899 = vxor.u32 %v1885, 2147483648
    %v1900 = vmul.f32 %v1899, 1.442695
    %v1901 = vpow.pop %v1900
    %v1902 = vadd.f32 %v1901, 1.0
    %v1903 = vrcp.pop %v1902
    %v1904 = vmul.f32 1.0, %v1903
    %v1905 = vmul.f32 %v1897, %v965
    %v1906 = vmul.f32 %v1891, %v1898
    %v1907 = vadd.f32 %v1905, %v1906
    %v1908 = vtanh.pop %v1907
    %v1909 = vmul.f32 %v1904, %v1908
    %s1910 = scalar_lea.vmem [#allocation2], 8
    %1911 = vst [vmem:[%s1910] sm:$0xff] %v1909
    %v1912 = vld [vmem:[%s3 + $0x400] sm:$0xff]
    %v1913 = vld [vmem:[%s3 + $0x408] sm:$0xff]
    %v1914 = vld [vmem:[%s3 + $0x410] sm:$0xff]
    %v1915 = vld [vmem:[%s3 + $0x418] sm:$0xff]
    %v1916 = vld [vmem:[%s3 + $0x420] sm:$0xff]
    %v1917 = vld [vmem:[%s3 + $0x428] sm:$0xff]
    %v1918 = vld [vmem:[%s3 + $0x430] sm:$0xff]
    %v1919 = vld [vmem:[%s3 + $0x438] sm:$0xff]
    %v1920 = vld [vmem:[%s3 + $0x440] sm:$0xff]
    %v1921 = vld [vmem:[%s3 + $0x448] sm:$0xff]
    %v1922 = vld [vmem:[%s3 + $0x450] sm:$0xff]
    %v1923 = vld [vmem:[%s3 + $0x458] sm:$0xff]
    %v1924 = vld [vmem:[%s3 + $0x460] sm:$0xff]
    %v1925 = vld [vmem:[%s3 + $0x468] sm:$0xff]
    %v1926 = vld [vmem:[%s3 + $0x470] sm:$0xff]
    %v1927 = vld [vmem:[%s3 + $0x478] sm:$0xff]
    %v1928 = vld [vmem:[%s3 + $0x480] sm:$0xff]
    %v1929 = vld [vmem:[%s3 + $0x488] sm:$0xff]
    %v1930 = vld [vmem:[%s3 + $0x490] sm:$0xff]
    %v1931 = vld [vmem:[%s3 + $0x498] sm:$0xff]
    %v1932 = vld [vmem:[%s3 + $0x4a0] sm:$0xff]
    %v1933 = vld [vmem:[%s3 + $0x4a8] sm:$0xff]
    %v1934 = vld [vmem:[%s3 + $0x4b0] sm:$0xff]
    %v1935 = vld [vmem:[%s3 + $0x4b8] sm:$0xff]
    %v1936 = vld [vmem:[%s3 + $0x4c0] sm:$0xff]
    %v1937 = vld [vmem:[%s3 + $0x4c8] sm:$0xff]
    %v1938 = vld [vmem:[%s3 + $0x4d0] sm:$0xff]
    %v1939 = vld [vmem:[%s3 + $0x4d8] sm:$0xff]
    %v1940 = vld [vmem:[%s3 + $0x4e0] sm:$0xff]
    %v1941 = vld [vmem:[%s3 + $0x4e8] sm:$0xff]
    %v1942 = vld [vmem:[%s3 + $0x4f0] sm:$0xff]
    %v1943 = vld [vmem:[%s3 + $0x4f8] sm:$0xff]
    %v1944 = vld [vmem:[%s3 + $0x500] sm:$0xff]
    %v1945 = vld [vmem:[%s3 + $0x508] sm:$0xff]
    %v1946 = vld [vmem:[%s3 + $0x510] sm:$0xff]
    %v1947 = vld [vmem:[%s3 + $0x518] sm:$0xff]
    %v1948 = vld [vmem:[%s3 + $0x520] sm:$0xff]
    %v1949 = vld [vmem:[%s3 + $0x528] sm:$0xff]
    %v1950 = vld [vmem:[%s3 + $0x530] sm:$0xff]
    %v1951 = vld [vmem:[%s3 + $0x538] sm:$0xff]
    %v1952 = vld [vmem:[%s3 + $0x540] sm:$0xff]
    %v1953 = vld [vmem:[%s3 + $0x548] sm:$0xff]
    %v1954 = vld [vmem:[%s3 + $0x550] sm:$0xff]
    %v1955 = vld [vmem:[%s3 + $0x558] sm:$0xff]
    %v1956 = vld [vmem:[%s3 + $0x560] sm:$0xff]
    %v1957 = vld [vmem:[%s3 + $0x568] sm:$0xff]
    %v1958 = vld [vmem:[%s3 + $0x570] sm:$0xff]
    %v1959 = vld [vmem:[%s3 + $0x578] sm:$0xff]
    %v1960 = vld [vmem:[%s3 + $0x580] sm:$0xff]
    %v1961 = vld [vmem:[%s3 + $0x588] sm:$0xff]
    %v1962 = vld [vmem:[%s3 + $0x590] sm:$0xff]
    %v1963 = vld [vmem:[%s3 + $0x598] sm:$0xff]
    %v1964 = vld [vmem:[%s3 + $0x5a0] sm:$0xff]
    %v1965 = vld [vmem:[%s3 + $0x5a8] sm:$0xff]
    %v1966 = vld [vmem:[%s3 + $0x5b0] sm:$0xff]
    %v1967 = vld [vmem:[%s3 + $0x5b8] sm:$0xff]
    %v1968 = vld [vmem:[%s3 + $0x5c0] sm:$0xff]
    %v1969 = vld [vmem:[%s3 + $0x5c8] sm:$0xff]
    %v1970 = vld [vmem:[%s3 + $0x5d0] sm:$0xff]
    %v1971 = vld [vmem:[%s3 + $0x5d8] sm:$0xff]
    %v1972 = vld [vmem:[%s3 + $0x5e0] sm:$0xff]
    %v1973 = vld [vmem:[%s3 + $0x5e8] sm:$0xff]
    %v1974 = vld [vmem:[%s3 + $0x5f0] sm:$0xff]
    %v1975 = vld [vmem:[%s3 + $0x5f8] sm:$0xff]
    %1976 = vmatprep.subr.mxu0 %v1913
    %1977 = vmatpush1.msra.mxu0 %v1912
    %1978 = vmatprep.subr.mxu0 %v1917
    %1979 = vmatpush1.msra.mxu0 %v1916
    %1980 = vmatprep.subr.mxu0 %v1921
    %1981 = vmatpush1.msra.mxu0 %v1920
    %1982 = vmatprep.subr.mxu0 %v1925
    %1983 = vmatpush1.msra.mxu0 %v1924
    %1984 = vmatprep.subr.mxu0 %v1929
    %1985 = vmatpush1.msra.mxu0 %v1928
    %1986 = vmatprep.subr.mxu0 %v1933
    %1987 = vmatpush1.msra.mxu0 %v1932
    %1988 = vmatprep.subr.mxu0 %v1937
    %1989 = vmatpush1.msra.mxu0 %v1936
    %1990 = vmatprep.subr.mxu0 %v1941
    %1991 = vmatpush1.msra.mxu0 %v1940
    %1992 = vmatprep.subr.mxu0 %v1945
    %1993 = vmatpush1.msra.mxu0 %v1944
    %1994 = vmatprep.subr.mxu0 %v1949
    %1995 = vmatpush1.msra.mxu0 %v1948
    %1996 = vmatprep.subr.mxu0 %v1953
    %1997 = vmatpush1.msra.mxu0 %v1952
    %1998 = vmatprep.subr.mxu0 %v1957
    %1999 = vmatpush1.msra.mxu0 %v1956
    %2000 = vmatprep.subr.mxu0 %v1961
    %2001 = vmatpush1.msra.mxu0 %v1960
    %2002 = vmatprep.subr.mxu0 %v1965
    %2003 = vmatpush1.msra.mxu0 %v1964
    %2004 = vmatprep.subr.mxu0 %v1969
    %2005 = vmatpush1.msra.mxu0 %v1968
    %2006 = vmatprep.subr.mxu0 %v1973
    %2007 = vmatpush1.msra.mxu0 %v1972
    %2008 = vmatprep.subr.mxu0 0.0
    %2009 = vmatpush1.msra.mxu0 0.0
    %2010 = vmatprep.subr.mxu0 0.0
    %2011 = vmatpush1.msra.mxu0 0.0
    %2012 = vmatprep.subr.mxu0 0.0
    %2013 = vmatpush1.msra.mxu0 0.0
    %2014 = vmatprep.subr.mxu0 0.0
    %2015 = vmatpush1.msra.mxu0 0.0
    %2016 = vmatprep.subr.mxu0 0.0
    %2017 = vmatpush1.msra.mxu0 0.0
    %2018 = vmatprep.subr.mxu0 0.0
    %2019 = vmatpush1.msra.mxu0 0.0
    %2020 = vmatprep.subr.mxu0 0.0
    %2021 = vmatpush1.msra.mxu0 0.0
    %2022 = vmatprep.subr.mxu0 0.0
    %2023 = vmatpush1.msra.mxu0 0.0
    %2024 = vmatprep.subr.mxu0 0.0
    %2025 = vmatpush1.msra.mxu0 0.0
    %2026 = vmatprep.subr.mxu0 0.0
    %2027 = vmatpush1.msra.mxu0 0.0
    %2028 = vmatprep.subr.mxu0 0.0
    %2029 = vmatpush1.msra.mxu0 0.0
    %2030 = vmatprep.subr.mxu0 0.0
    %2031 = vmatpush1.msra.mxu0 0.0
    %2032 = vmatprep.subr.mxu0 0.0
    %2033 = vmatpush1.msra.mxu0 0.0
    %2034 = vmatprep.subr.mxu0 0.0
    %2035 = vmatpush1.msra.mxu0 0.0
    %2036 = vmatprep.subr.mxu0 0.0
    %2037 = vmatpush1.msra.mxu0 0.0
    %2038 = vmatprep.subr.mxu0 0.0
    %2039 = vmatpush1.msra.mxu0 0.0
    %2040 = vmatprep.mubr.f32.mxu0 0.0
    %2041 = vmatmul.mubr.f32.gmra.mrb[0].mxu0 %v1909
    %v2042 = vpop.f32.mrb[0].mxu0
    %v2043 = vadd.f32 0.0, %v2042
    %v2044 = vpop.f32.mrb[0].mxu0
    %v2045 = vadd.f32 0.0, %v2044
    %2046 = vdwg.mxu0
    %2047 = vmatprep.subr.mxu0 %v1915
    %2048 = vmatpush1.msra.mxu0 %v1914
    %2049 = vmatprep.subr.mxu0 %v1919
    %2050 = vmatpush1.msra.mxu0 %v1918
    %2051 = vmatprep.subr.mxu0 %v1923
    %2052 = vmatpush1.msra.mxu0 %v1922
    %2053 = vmatprep.subr.mxu0 %v1927
    %2054 = vmatpush1.msra.mxu0 %v1926
    %2055 = vmatprep.subr.mxu0 %v1931
    %2056 = vmatpush1.msra.mxu0 %v1930
    %2057 = vmatprep.subr.mxu0 %v1935
    %2058 = vmatpush1.msra.mxu0 %v1934
    %2059 = vmatprep.subr.mxu0 %v1939
    %2060 = vmatpush1.msra.mxu0 %v1938
    %2061 = vmatprep.subr.mxu0 %v1943
    %2062 = vmatpush1.msra.mxu0 %v1942
    %2063 = vmatprep.subr.mxu0 %v1947
    %2064 = vmatpush1.msra.mxu0 %v1946
    %2065 = vmatprep.subr.mxu0 %v1951
    %2066 = vmatpush1.msra.mxu0 %v1950
    %2067 = vmatprep.subr.mxu0 %v1955
    %2068 = vmatpush1.msra.mxu0 %v1954
    %2069 = vmatprep.subr.mxu0 %v1959
    %2070 = vmatpush1.msra.mxu0 %v1958
    %2071 = vmatprep.subr.mxu0 %v1963
    %2072 = vmatpush1.msra.mxu0 %v1962
    %2073 = vmatprep.subr.mxu0 %v1967
    %2074 = vmatpush1.msra.mxu0 %v1966
    %2075 = vmatprep.subr.mxu0 %v1971
    %2076 = vmatpush1.msra.mxu0 %v1970
    %2077 = vmatprep.subr.mxu0 %v1975
    %2078 = vmatpush1.msra.mxu0 %v1974
    %2079 = vmatprep.subr.mxu0 0.0
    %2080 = vmatpush1.msra.mxu0 0.0
    %2081 = vmatprep.subr.mxu0 0.0
    %2082 = vmatpush1.msra.mxu0 0.0
    %2083 = vmatprep.subr.mxu0 0.0
    %2084 = vmatpush1.msra.mxu0 0.0
    %2085 = vmatprep.subr.mxu0 0.0
    %2086 = vmatpush1.msra.mxu0 0.0
    %2087 = vmatprep.subr.mxu0 0.0
    %2088 = vmatpush1.msra.mxu0 0.0
    %2089 = vmatprep.subr.mxu0 0.0
    %2090 = vmatpush1.msra.mxu0 0.0
    %2091 = vmatprep.subr.mxu0 0.0
    %2092 = vmatpush1.msra.mxu0 0.0
    %2093 = vmatprep.subr.mxu0 0.0
    %2094 = vmatpush1.msra.mxu0 0.0
    %2095 = vmatprep.subr.mxu0 0.0
    %2096 = vmatpush1.msra.mxu0 0.0
    %2097 = vmatprep.subr.mxu0 0.0
    %2098 = vmatpush1.msra.mxu0 0.0
    %2099 = vmatprep.subr.mxu0 0.0
    %2100 = vmatpush1.msra.mxu0 0.0
    %2101 = vmatprep.subr.mxu0 0.0
    %2102 = vmatpush1.msra.mxu0 0.0
    %2103 = vmatprep.subr.mxu0 0.0
    %2104 = vmatpush1.msra.mxu0 0.0
    %2105 = vmatprep.subr.mxu0 0.0
    %2106 = vmatpush1.msra.mxu0 0.0
    %2107 = vmatprep.subr.mxu0 0.0
    %2108 = vmatpush1.msra.mxu0 0.0
    %2109 = vmatprep.subr.mxu0 0.0
    %2110 = vmatpush1.msra.mxu0 0.0
    %2111 = vmatprep.mubr.f32.mxu0 0.0
    %2112 = vmatmul.mubr.f32.gmra.mrb[0].mxu0 %v1909
    %v2113 = vpop.f32.mrb[0].mxu0
    %v2114 = vadd.f32 0.0, %v2113
    %v2115 = vpop.f32.mrb[0].mxu0
    %v2116 = vadd.f32 0.0, %v2115
    %2117 = vdwg.mxu0
    %s2118 = scalar_lea.vmem %s0, 64
    %v2119 = vld [vmem:[%s2118] sm:$0xff]
    %v2120 = vld [vmem:[%s2118 + $0x8] sm:$0xff]
    %v2121 = vld [vmem:[%s2118 + $0x10] sm:$0xff]
    %v2122 = vld [vmem:[%s2118 + $0x18] sm:$0xff]
    %v2123 = vld [vmem:[%s2] sm:$0xff]
    %v2124 = vld [vmem:[%s2 + $0x8] sm:$0xff]
    %v2125 = vld [vmem:[%s2 + $0x10] sm:$0xff]
    %v2126 = vld [vmem:[%s2 + $0x18] sm:$0xff]
    %v2127 = vld [vmem:[%s2 + $0x20] sm:$0xff]
    %v2128 = vld [vmem:[%s2 + $0x28] sm:$0xff]
    %v2129 = vld [vmem:[%s2 + $0x30] sm:$0xff]
    %v2130 = vld [vmem:[%s2 + $0x38] sm:$0xff]
    %v2131 = vld [vmem:[%s2 + $0x40] sm:$0xff]
    %v2132 = vld [vmem:[%s2 + $0x48] sm:$0xff]
    %v2133 = vld [vmem:[%s2 + $0x50] sm:$0xff]
    %v2134 = vld [vmem:[%s2 + $0x58] sm:$0xff]
    %v2135 = vld [vmem:[%s2 + $0x60] sm:$0xff]
    %v2136 = vld [vmem:[%s2 + $0x68] sm:$0xff]
    %v2137 = vld [vmem:[%s2 + $0x70] sm:$0xff]
    %v2138 = vld [vmem:[%s2 + $0x78] sm:$0xff]
    %v2139 = vld [vmem:[%s2 + $0x80] sm:$0xff]
    %v2140 = vld [vmem:[%s2 + $0x88] sm:$0xff]
    %v2141 = vld [vmem:[%s2 + $0x90] sm:$0xff]
    %v2142 = vld [vmem:[%s2 + $0x98] sm:$0xff]
    %v2143 = vld [vmem:[%s2 + $0xa0] sm:$0xff]
    %v2144 = vld [vmem:[%s2 + $0xa8] sm:$0xff]
    %v2145 = vld [vmem:[%s2 + $0xb0] sm:$0xff]
    %v2146 = vld [vmem:[%s2 + $0xb8] sm:$0xff]
    %v2147 = vld [vmem:[%s2 + $0xc0] sm:$0xff]
    %v2148 = vld [vmem:[%s2 + $0xc8] sm:$0xff]
    %v2149 = vld [vmem:[%s2 + $0xd0] sm:$0xff]
    %v2150 = vld [vmem:[%s2 + $0xd8] sm:$0xff]
    %v2151 = vld [vmem:[%s2 + $0xe0] sm:$0xff]
    %v2152 = vld [vmem:[%s2 + $0xe8] sm:$0xff]
    %v2153 = vld [vmem:[%s2 + $0xf0] sm:$0xff]
    %v2154 = vld [vmem:[%s2 + $0xf8] sm:$0xff]
    %v2155 = vld [vmem:[%s2 + $0x100] sm:$0xff]
    %v2156 = vld [vmem:[%s2 + $0x108] sm:$0xff]
    %v2157 = vld [vmem:[%s2 + $0x110] sm:$0xff]
    %v2158 = vld [vmem:[%s2 + $0x118] sm:$0xff]
    %v2159 = vld [vmem:[%s2 + $0x120] sm:$0xff]
    %v2160 = vld [vmem:[%s2 + $0x128] sm:$0xff]
    %v2161 = vld [vmem:[%s2 + $0x130] sm:$0xff]
    %v2162 = vld [vmem:[%s2 + $0x138] sm:$0xff]
    %v2163 = vld [vmem:[%s2 + $0x140] sm:$0xff]
    %v2164 = vld [vmem:[%s2 + $0x148] sm:$0xff]
    %v2165 = vld [vmem:[%s2 + $0x150] sm:$0xff]
    %v2166 = vld [vmem:[%s2 + $0x158] sm:$0xff]
    %v2167 = vld [vmem:[%s2 + $0x160] sm:$0xff]
    %v2168 = vld [vmem:[%s2 + $0x168] sm:$0xff]
    %v2169 = vld [vmem:[%s2 + $0x170] sm:$0xff]
    %v2170 = vld [vmem:[%s2 + $0x178] sm:$0xff]
    %v2171 = vld [vmem:[%s2 + $0x180] sm:$0xff]
    %v2172 = vld [vmem:[%s2 + $0x188] sm:$0xff]
    %v2173 = vld [vmem:[%s2 + $0x190] sm:$0xff]
    %v2174 = vld [vmem:[%s2 + $0x198] sm:$0xff]
    %v2175 = vld [vmem:[%s2 + $0x1a0] sm:$0xff]
    %v2176 = vld [vmem:[%s2 + $0x1a8] sm:$0xff]
    %v2177 = vld [vmem:[%s2 + $0x1b0] sm:$0xff]
    %v2178 = vld [vmem:[%s2 + $0x1b8] sm:$0xff]
    %v2179 = vld [vmem:[%s2 + $0x1c0] sm:$0xff]
    %v2180 = vld [vmem:[%s2 + $0x1c8] sm:$0xff]
    %v2181 = vld [vmem:[%s2 + $0x1d0] sm:$0xff]
    %v2182 = vld [vmem:[%s2 + $0x1d8] sm:$0xff]
    %v2183 = vld [vmem:[%s2 + $0x1e0] sm:$0xff]
    %v2184 = vld [vmem:[%s2 + $0x1e8] sm:$0xff]
    %v2185 = vld [vmem:[%s2 + $0x1f0] sm:$0xff]
    %v2186 = vld [vmem:[%s2 + $0x1f8] sm:$0xff]
    %2187 = vmatprep.subr.mxu0 %v2124
    %2188 = vmatpush1.msra.mxu0 %v2123
    %2189 = vmatprep.subr.mxu0 %v2128
    %2190 = vmatpush1.msra.mxu0 %v2127
    %2191 = vmatprep.subr.mxu0 %v2132
    %2192 = vmatpush1.msra.mxu0 %v2131
    %2193 = vmatprep.subr.mxu0 %v2136
    %2194 = vmatpush1.msra.mxu0 %v2135
    %2195 = vmatprep.subr.mxu0 %v2140
    %2196 = vmatpush1.msra.mxu0 %v2139
    %2197 = vmatprep.subr.mxu0 %v2144
    %2198 = vmatpush1.msra.mxu0 %v2143
    %2199 = vmatprep.subr.mxu0 %v2148
    %2200 = vmatpush1.msra.mxu0 %v2147
    %2201 = vmatprep.subr.mxu0 %v2152
    %2202 = vmatpush1.msra.mxu0 %v2151
    %2203 = vmatprep.subr.mxu0 %v2156
    %2204 = vmatpush1.msra.mxu0 %v2155
    %2205 = vmatprep.subr.mxu0 %v2160
    %2206 = vmatpush1.msra.mxu0 %v2159
    %2207 = vmatprep.subr.mxu0 %v2164
    %2208 = vmatpush1.msra.mxu0 %v2163
    %2209 = vmatprep.subr.mxu0 %v2168
    %2210 = vmatpush1.msra.mxu0 %v2167
    %2211 = vmatprep.subr.mxu0 %v2172
    %2212 = vmatpush1.msra.mxu0 %v2171
    %2213 = vmatprep.subr.mxu0 %v2176
    %2214 = vmatpush1.msra.mxu0 %v2175
    %2215 = vmatprep.subr.mxu0 %v2180
    %2216 = vmatpush1.msra.mxu0 %v2179
    %2217 = vmatprep.subr.mxu0 %v2184
    %2218 = vmatpush1.msra.mxu0 %v2183
    %2219 = vmatprep.subr.mxu0 0.0
    %2220 = vmatpush1.msra.mxu0 0.0
    %2221 = vmatprep.subr.mxu0 0.0
    %2222 = vmatpush1.msra.mxu0 0.0
    %2223 = vmatprep.subr.mxu0 0.0
    %2224 = vmatpush1.msra.mxu0 0.0
    %2225 = vmatprep.subr.mxu0 0.0
    %2226 = vmatpush1.msra.mxu0 0.0
    %2227 = vmatprep.subr.mxu0 0.0
    %2228 = vmatpush1.msra.mxu0 0.0
    %2229 = vmatprep.subr.mxu0 0.0
    %2230 = vmatpush1.msra.mxu0 0.0
    %2231 = vmatprep.subr.mxu0 0.0
    %2232 = vmatpush1.msra.mxu0 0.0
    %2233 = vmatprep.subr.mxu0 0.0
    %2234 = vmatpush1.msra.mxu0 0.0
    %2235 = vmatprep.subr.mxu0 0.0
    %2236 = vmatpush1.msra.mxu0 0.0
    %2237 = vmatprep.subr.mxu0 0.0
    %2238 = vmatpush1.msra.mxu0 0.0
    %2239 = vmatprep.subr.mxu0 0.0
    %2240 = vmatpush1.msra.mxu0 0.0
    %2241 = vmatprep.subr.mxu0 0.0
    %2242 = vmatpush1.msra.mxu0 0.0
    %2243 = vmatprep.subr.mxu0 0.0
    %2244 = vmatpush1.msra.mxu0 0.0
    %2245 = vmatprep.subr.mxu0 0.0
    %2246 = vmatpush1.msra.mxu0 0.0
    %2247 = vmatprep.subr.mxu0 0.0
    %2248 = vmatpush1.msra.mxu0 0.0
    %2249 = vmatprep.subr.mxu0 0.0
    %2250 = vmatpush1.msra.mxu0 0.0
    %2251 = vmatprep.mubr.f32.mxu0 0.0
    %2252 = vmatmul.mubr.f32.gmra.mrb[0].mxu0 %v1413
    %v2253 = vpop.f32.mrb[0].mxu0
    %v2254 = vadd.f32 0.0, %v2253
    %v2255 = vpop.f32.mrb[0].mxu0
    %v2256 = vadd.f32 0.0, %v2255
    %2257 = vdwg.mxu0
    %2258 = vmatprep.subr.mxu0 %v2126
    %2259 = vmatpush1.msra.mxu0 %v2125
    %2260 = vmatprep.subr.mxu0 %v2130
    %2261 = vmatpush1.msra.mxu0 %v2129
    %2262 = vmatprep.subr.mxu0 %v2134
    %2263 = vmatpush1.msra.mxu0 %v2133
    %2264 = vmatprep.subr.mxu0 %v2138
    %2265 = vmatpush1.msra.mxu0 %v2137
    %2266 = vmatprep.subr.mxu0 %v2142
    %2267 = vmatpush1.msra.mxu0 %v2141
    %2268 = vmatprep.subr.mxu0 %v2146
    %2269 = vmatpush1.msra.mxu0 %v2145
    %2270 = vmatprep.subr.mxu0 %v2150
    %2271 = vmatpush1.msra.mxu0 %v2149
    %2272 = vmatprep.subr.mxu0 %v2154
    %2273 = vmatpush1.msra.mxu0 %v2153
    %2274 = vmatprep.subr.mxu0 %v2158
    %2275 = vmatpush1.msra.mxu0 %v2157
    %2276 = vmatprep.subr.mxu0 %v2162
    %2277 = vmatpush1.msra.mxu0 %v2161
    %2278 = vmatprep.subr.mxu0 %v2166
    %2279 = vmatpush1.msra.mxu0 %v2165
    %2280 = vmatprep.subr.mxu0 %v2170
    %2281 = vmatpush1.msra.mxu0 %v2169
    %2282 = vmatprep.subr.mxu0 %v2174
    %2283 = vmatpush1.msra.mxu0 %v2173
    %2284 = vmatprep.subr.mxu0 %v2178
    %2285 = vmatpush1.msra.mxu0 %v2177
    %2286 = vmatprep.subr.mxu0 %v2182
    %2287 = vmatpush1.msra.mxu0 %v2181
    %2288 = vmatprep.subr.mxu0 %v2186
    %2289 = vmatpush1.msra.mxu0 %v2185
    %2290 = vmatprep.subr.mxu0 0.0
    %2291 = vmatpush1.msra.mxu0 0.0
    %2292 = vmatprep.subr.mxu0 0.0
    %2293 = vmatpush1.msra.mxu0 0.0
    %2294 = vmatprep.subr.mxu0 0.0
    %2295 = vmatpush1.msra.mxu0 0.0
    %2296 = vmatprep.subr.mxu0 0.0
    %2297 = vmatpush1.msra.mxu0 0.0
    %2298 = vmatprep.subr.mxu0 0.0
    %2299 = vmatpush1.msra.mxu0 0.0
    %2300 = vmatprep.subr.mxu0 0.0
    %2301 = vmatpush1.msra.mxu0 0.0
    %2302 = vmatprep.subr.mxu0 0.0
    %2303 = vmatpush1.msra.mxu0 0.0
    %2304 = vmatprep.subr.mxu0 0.0
    %2305 = vmatpush1.msra.mxu0 0.0
    %2306 = vmatprep.subr.mxu0 0.0
    %2307 = vmatpush1.msra.mxu0 0.0
    %2308 = vmatprep.subr.mxu0 0.0
    %2309 = vmatpush1.msra.mxu0 0.0
    %2310 = vmatprep.subr.mxu0 0.0
    %2311 = vmatpush1.msra.mxu0 0.0
    %2312 = vmatprep.subr.mxu0 0.0
    %2313 = vmatpush1.msra.mxu0 0.0
    %2314 = vmatprep.subr.mxu0 0.0
    %2315 = vmatpush1.msra.mxu0 0.0
    %2316 = vmatprep.subr.mxu0 0.0
    %2317 = vmatpush1.msra.mxu0 0.0
    %2318 = vmatprep.subr.mxu0 0.0
    %2319 = vmatpush1.msra.mxu0 0.0
    %2320 = vmatprep.subr.mxu0 0.0
    %2321 = vmatpush1.msra.mxu0 0.0
    %2322 = vmatprep.mubr.f32.mxu0 0.0
    %2323 = vmatmul.mubr.f32.gmra.mrb[0].mxu0 %v1413
    %v2324 = vpop.f32.mrb[0].mxu0
    %v2325 = vadd.f32 0.0, %v2324
    %v2326 = vpop.f32.mrb[0].mxu0
    %v2327 = vadd.f32 0.0, %v2326
    %2328 = vdwg.mxu0
    %v2329 = vadd.f32 %v2119, %v2254
    %v2330 = vadd.f32 %v2120, %v2256
    %v2331 = vadd.f32 %v2121, %v2325
    %v2332 = vadd.f32 %v2122, %v2327
    %v2333 = vxor.u32 %v2329, 2147483648
    %v2334 = vmul.f32 %v2333, 1.442695
    %v2335 = vpow.pop %v2334
    %v2336 = vadd.f32 %v2335, 1.0
    %v2337 = vrcp.pop %v2336
    %v2338 = vmul.f32 1.0, %v2337
    %v2339 = vxor.u32 %v2330, 2147483648
    %v2340 = vmul.f32 %v2339, 1.442695
    %v2341 = vpow.pop %v2340
    %v2342 = vadd.f32 %v2341, 1.0
    %v2343 = vrcp.pop %v2342
    %v2344 = vmul.f32 1.0, %v2343
    %v2345 = vtanh.pop %v2331
    %v2346 = vxor.u32 %v2332, 2147483648
    %v2347 = vmul.f32 %v2346, 1.442695
    %v2348 = vpow.pop %v2347
    %v2349 = vadd.f32 %v2348, 1.0
    %v2350 = vrcp.pop %v2349
    %v2351 = vmul.f32 1.0, %v2350
    %v2352 = vmul.f32 %v2344, %v1411
    %v2353 = vmul.f32 %v2338, %v2345
    %v2354 = vadd.f32 %v2352, %v2353
    %v2355 = vtanh.pop %v2354
    %v2356 = vmul.f32 %v2351, %v2355
    %v2357 = vld [vmem:[%s1] sm:$0xff]
    %v2358 = vmul.f32 %v2356, %v2357
    %2359 = vadd.xlane.f32.xlu0 %v2358
    %v2360 = vpop.xlane.xlu0 %2359
    %v2361 = vmul.f32 %v2360, %v2357
    %v2362 = vadd.f32 %v2361, 0.0
    %v2363 = vld [vmem:[%s471] sm:$0xff]
    %v2364 = vmul.f32 %v2356, %v2363
    %2365 = vadd.xlane.f32.xlu0 %v2364
    %v2366 = vpop.xlane.xlu0 %2365
    %v2367 = vmul.f32 %v2366, %v2363
    %v2368 = vadd.f32 %v2362, %v2367
    %v2369 = vld [vmem:[%s478] sm:$0xff]
    %v2370 = vmul.f32 %v2356, %v2369
    %2371 = vadd.xlane.f32.xlu0 %v2370
    %v2372 = vpop.xlane.xlu0 %2371
    %v2373 = vmul.f32 %v2372, %v2369
    %v2374 = vadd.f32 %v2368, %v2373
    %v2375 = vld [vmem:[%s485] sm:$0xff]
    %v2376 = vmul.f32 %v2356, %v2375
    %2377 = vadd.xlane.f32.xlu0 %v2376
    %v2378 = vpop.xlane.xlu0 %2377
    %v2379 = vmul.f32 %v2378, %v2375
    %v2380 = vadd.f32 %v2374, %v2379
    %v2381 = vld [vmem:[%s492] sm:$0xff]
    %v2382 = vmul.f32 %v2356, %v2381
    %2383 = vadd.xlane.f32.xlu0 %v2382
    %v2384 = vpop.xlane.xlu0 %2383
    %v2385 = vmul.f32 %v2384, %v2381
    %v2386 = vadd.f32 %v2380, %v2385
    %v2387 = vld [vmem:[%s499] sm:$0xff]
    %v2388 = vmul.f32 %v2356, %v2387
    %2389 = vadd.xlane.f32.xlu0 %v2388
    %v2390 = vpop.xlane.xlu0 %2389
    %v2391 = vmul.f32 %v2390, %v2387
    %v2392 = vadd.f32 %v2386, %v2391
    %v2393 = vld [vmem:[%s506] sm:$0xff]
    %v2394 = vmul.f32 %v2356, %v2393
    %2395 = vadd.xlane.f32.xlu0 %v2394
    %v2396 = vpop.xlane.xlu0 %2395
    %v2397 = vmul.f32 %v2396, %v2393
    %v2398 = vadd.f32 %v2392, %v2397
    %v2399 = vld [vmem:[%s513] sm:$0xff]
    %v2400 = vmul.f32 %v2356, %v2399
    %2401 = vadd.xlane.f32.xlu0 %v2400
    %v2402 = vpop.xlane.xlu0 %2401
    %v2403 = vmul.f32 %v2402, %v2399
    %v2404 = vadd.f32 %v2398, %v2403
    %v2405 = vld [vmem:[%s3] sm:$0xff]
    %v2406 = vld [vmem:[%s3 + $0x8] sm:$0xff]
    %v2407 = vld [vmem:[%s3 + $0x10] sm:$0xff]
    %v2408 = vld [vmem:[%s3 + $0x18] sm:$0xff]
    %v2409 = vld [vmem:[%s3 + $0x20] sm:$0xff]
    %v2410 = vld [vmem:[%s3 + $0x28] sm:$0xff]
    %v2411 = vld [vmem:[%s3 + $0x30] sm:$0xff]
    %v2412 = vld [vmem:[%s3 + $0x38] sm:$0xff]
    %v2413 = vld [vmem:[%s3 + $0x40] sm:$0xff]
    %v2414 = vld [vmem:[%s3 + $0x48] sm:$0xff]
    %v2415 = vld [vmem:[%s3 + $0x50] sm:$0xff]
    %v2416 = vld [vmem:[%s3 + $0x58] sm:$0xff]
    %v2417 = vld [vmem:[%s3 + $0x60] sm:$0xff]
    %v2418 = vld [vmem:[%s3 + $0x68] sm:$0xff]
    %v2419 = vld [vmem:[%s3 + $0x70] sm:$0xff]
    %v2420 = vld [vmem:[%s3 + $0x78] sm:$0xff]
    %v2421 = vld [vmem:[%s3 + $0x80] sm:$0xff]
    %v2422 = vld [vmem:[%s3 + $0x88] sm:$0xff]
    %v2423 = vld [vmem:[%s3 + $0x90] sm:$0xff]
    %v2424 = vld [vmem:[%s3 + $0x98] sm:$0xff]
    %v2425 = vld [vmem:[%s3 + $0xa0] sm:$0xff]
    %v2426 = vld [vmem:[%s3 + $0xa8] sm:$0xff]
    %v2427 = vld [vmem:[%s3 + $0xb0] sm:$0xff]
    %v2428 = vld [vmem:[%s3 + $0xb8] sm:$0xff]
    %v2429 = vld [vmem:[%s3 + $0xc0] sm:$0xff]
    %v2430 = vld [vmem:[%s3 + $0xc8] sm:$0xff]
    %v2431 = vld [vmem:[%s3 + $0xd0] sm:$0xff]
    %v2432 = vld [vmem:[%s3 + $0xd8] sm:$0xff]
    %v2433 = vld [vmem:[%s3 + $0xe0] sm:$0xff]
    %v2434 = vld [vmem:[%s3 + $0xe8] sm:$0xff]
    %v2435 = vld [vmem:[%s3 + $0xf0] sm:$0xff]
    %v2436 = vld [vmem:[%s3 + $0xf8] sm:$0xff]
    %v2437 = vld [vmem:[%s3 + $0x100] sm:$0xff]
    %v2438 = vld [vmem:[%s3 + $0x108] sm:$0xff]
    %v2439 = vld [vmem:[%s3 + $0x110] sm:$0xff]
    %v2440 = vld [vmem:[%s3 + $0x118] sm:$0xff]
    %v2441 = vld [vmem:[%s3 + $0x120] sm:$0xff]
    %v2442 = vld [vmem:[%s3 + $0x128] sm:$0xff]
    %v2443 = vld [vmem:[%s3 + $0x130] sm:$0xff]
    %v2444 = vld [vmem:[%s3 + $0x138] sm:$0xff]
    %v2445 = vld [vmem:[%s3 + $0x140] sm:$0xff]
    %v2446 = vld [vmem:[%s3 + $0x148] sm:$0xff]
    %v2447 = vld [vmem:[%s3 + $0x150] sm:$0xff]
    %v2448 = vld [vmem:[%s3 + $0x158] sm:$0xff]
    %v2449 = vld [vmem:[%s3 + $0x160] sm:$0xff]
    %v2450 = vld [vmem:[%s3 + $0x168] sm:$0xff]
    %v2451 = vld [vmem:[%s3 + $0x170] sm:$0xff]
    %v2452 = vld [vmem:[%s3 + $0x178] sm:$0xff]
    %v2453 = vld [vmem:[%s3 + $0x180] sm:$0xff]
    %v2454 = vld [vmem:[%s3 + $0x188] sm:$0xff]
    %v2455 = vld [vmem:[%s3 + $0x190] sm:$0xff]
    %v2456 = vld [vmem:[%s3 + $0x198] sm:$0xff]
    %v2457 = vld [vmem:[%s3 + $0x1a0] sm:$0xff]
    %v2458 = vld [vmem:[%s3 + $0x1a8] sm:$0xff]
    %v2459 = vld [vmem:[%s3 + $0x1b0] sm:$0xff]
    %v2460 = vld [vmem:[%s3 + $0x1b8] sm:$0xff]
    %v2461 = vld [vmem:[%s3 + $0x1c0] sm:$0xff]
    %v2462 = vld [vmem:[%s3 + $0x1c8] sm:$0xff]
    %v2463 = vld [vmem:[%s3 + $0x1d0] sm:$0xff]
    %v2464 = vld [vmem:[%s3 + $0x1d8] sm:$0xff]
    %v2465 = vld [vmem:[%s3 + $0x1e0] sm:$0xff]
    %v2466 = vld [vmem:[%s3 + $0x1e8] sm:$0xff]
    %v2467 = vld [vmem:[%s3 + $0x1f0] sm:$0xff]
    %v2468 = vld [vmem:[%s3 + $0x1f8] sm:$0xff]
    %v2469 = vld [vmem:[%s3 + $0x200] sm:$0xff]
    %v2470 = vld [vmem:[%s3 + $0x208] sm:$0xff]
    %v2471 = vld [vmem:[%s3 + $0x210] sm:$0xff]
    %v2472 = vld [vmem:[%s3 + $0x218] sm:$0xff]
    %v2473 = vld [vmem:[%s3 + $0x220] sm:$0xff]
    %v2474 = vld [vmem:[%s3 + $0x228] sm:$0xff]
    %v2475 = vld [vmem:[%s3 + $0x230] sm:$0xff]
    %v2476 = vld [vmem:[%s3 + $0x238] sm:$0xff]
    %v2477 = vld [vmem:[%s3 + $0x240] sm:$0xff]
    %v2478 = vld [vmem:[%s3 + $0x248] sm:$0xff]
    %v2479 = vld [vmem:[%s3 + $0x250] sm:$0xff]
    %v2480 = vld [vmem:[%s3 + $0x258] sm:$0xff]
    %v2481 = vld [vmem:[%s3 + $0x260] sm:$0xff]
    %v2482 = vld [vmem:[%s3 + $0x268] sm:$0xff]
    %v2483 = vld [vmem:[%s3 + $0x270] sm:$0xff]
    %v2484 = vld [vmem:[%s3 + $0x278] sm:$0xff]
    %v2485 = vld [vmem:[%s3 + $0x280] sm:$0xff]
    %v2486 = vld [vmem:[%s3 + $0x288] sm:$0xff]
    %v2487 = vld [vmem:[%s3 + $0x290] sm:$0xff]
    %v2488 = vld [vmem:[%s3 + $0x298] sm:$0xff]
    %v2489 = vld [vmem:[%s3 + $0x2a0] sm:$0xff]
    %v2490 = vld [vmem:[%s3 + $0x2a8] sm:$0xff]
    %v2491 = vld [vmem:[%s3 + $0x2b0] sm:$0xff]
    %v2492 = vld [vmem:[%s3 + $0x2b8] sm:$0xff]
    %v2493 = vld [vmem:[%s3 + $0x2c0] sm:$0xff]
    %v2494 = vld [vmem:[%s3 + $0x2c8] sm:$0xff]
    %v2495 = vld [vmem:[%s3 + $0x2d0] sm:$0xff]
    %v2496 = vld [vmem:[%s3 + $0x2d8] sm:$0xff]
    %v2497 = vld [vmem:[%s3 + $0x2e0] sm:$0xff]
    %v2498 = vld [vmem:[%s3 + $0x2e8] sm:$0xff]
    %v2499 = vld [vmem:[%s3 + $0x2f0] sm:$0xff]
    %v2500 = vld [vmem:[%s3 + $0x2f8] sm:$0xff]
    %v2501 = vld [vmem:[%s3 + $0x300] sm:$0xff]
    %v2502 = vld [vmem:[%s3 + $0x308] sm:$0xff]
    %v2503 = vld [vmem:[%s3 + $0x310] sm:$0xff]
    %v2504 = vld [vmem:[%s3 + $0x318] sm:$0xff]
    %v2505 = vld [vmem:[%s3 + $0x320] sm:$0xff]
    %v2506 = vld [vmem:[%s3 + $0x328] sm:$0xff]
    %v2507 = vld [vmem:[%s3 + $0x330] sm:$0xff]
    %v2508 = vld [vmem:[%s3 + $0x338] sm:$0xff]
    %v2509 = vld [vmem:[%s3 + $0x340] sm:$0xff]
    %v2510 = vld [vmem:[%s3 + $0x348] sm:$0xff]
    %v2511 = vld [vmem:[%s3 + $0x350] sm:$0xff]
    %v2512 = vld [vmem:[%s3 + $0x358] sm:$0xff]
    %v2513 = vld [vmem:[%s3 + $0x360] sm:$0xff]
    %v2514 = vld [vmem:[%s3 + $0x368] sm:$0xff]
    %v2515 = vld [vmem:[%s3 + $0x370] sm:$0xff]
    %v2516 = vld [vmem:[%s3 + $0x378] sm:$0xff]
    %v2517 = vld [vmem:[%s3 + $0x380] sm:$0xff]
    %v2518 = vld [vmem:[%s3 + $0x388] sm:$0xff]
    %v2519 = vld [vmem:[%s3 + $0x390] sm:$0xff]
    %v2520 = vld [vmem:[%s3 + $0x398] sm:$0xff]
    %v2521 = vld [vmem:[%s3 + $0x3a0] sm:$0xff]
    %v2522 = vld [vmem:[%s3 + $0x3a8] sm:$0xff]
    %v2523 = vld [vmem:[%s3 + $0x3b0] sm:$0xff]
    %v2524 = vld [vmem:[%s3 + $0x3b8] sm:$0xff]
    %v2525 = vld [vmem:[%s3 + $0x3c0] sm:$0xff]
    %v2526 = vld [vmem:[%s3 + $0x3c8] sm:$0xff]
    %v2527 = vld [vmem:[%s3 + $0x3d0] sm:$0xff]
    %v2528 = vld [vmem:[%s3 + $0x3d8] sm:$0xff]
    %v2529 = vld [vmem:[%s3 + $0x3e0] sm:$0xff]
    %v2530 = vld [vmem:[%s3 + $0x3e8] sm:$0xff]
    %v2531 = vld [vmem:[%s3 + $0x3f0] sm:$0xff]
    %v2532 = vld [vmem:[%s3 + $0x3f8] sm:$0xff]
    %2533 = vmatprep.subr.mxu0 %v2470
    %2534 = vmatpush1.msra.mxu0 %v2469
    %2535 = vmatprep.subr.mxu0 %v2474
    %2536 = vmatpush1.msra.mxu0 %v2473
    %2537 = vmatprep.subr.mxu0 %v2478
    %2538 = vmatpush1.msra.mxu0 %v2477
    %2539 = vmatprep.subr.mxu0 %v2482
    %2540 = vmatpush1.msra.mxu0 %v2481
    %2541 = vmatprep.subr.mxu0 %v2486
    %2542 = vmatpush1.msra.mxu0 %v2485
    %2543 = vmatprep.subr.mxu0 %v2490
    %2544 = vmatpush1.msra.mxu0 %v2489
    %2545 = vmatprep.subr.mxu0 %v2494
    %2546 = vmatpush1.msra.mxu0 %v2493
    %2547 = vmatprep.subr.mxu0 %v2498
    %2548 = vmatpush1.msra.mxu0 %v2497
    %2549 = vmatprep.subr.mxu0 %v2502
    %2550 = vmatpush1.msra.mxu0 %v2501
    %2551 = vmatprep.subr.mxu0 %v2506
    %2552 = vmatpush1.msra.mxu0 %v2505
    %2553 = vmatprep.subr.mxu0 %v2510
    %2554 = vmatpush1.msra.mxu0 %v2509
    %2555 = vmatprep.subr.mxu0 %v2514
    %2556 = vmatpush1.msra.mxu0 %v2513
    %2557 = vmatprep.subr.mxu0 %v2518
    %2558 = vmatpush1.msra.mxu0 %v2517
    %2559 = vmatprep.subr.mxu0 %v2522
    %2560 = vmatpush1.msra.mxu0 %v2521
    %2561 = vmatprep.subr.mxu0 %v2526
    %2562 = vmatpush1.msra.mxu0 %v2525
    %2563 = vmatprep.subr.mxu0 %v2530
    %2564 = vmatpush1.msra.mxu0 %v2529
    %2565 = vmatprep.subr.mxu0 0.0
    %2566 = vmatpush1.msra.mxu0 0.0
    %2567 = vmatprep.subr.mxu0 0.0
    %2568 = vmatpush1.msra.mxu0 0.0
    %2569 = vmatprep.subr.mxu0 0.0
    %2570 = vmatpush1.msra.mxu0 0.0
    %2571 = vmatprep.subr.mxu0 0.0
    %2572 = vmatpush1.msra.mxu0 0.0
    %2573 = vmatprep.subr.mxu0 0.0
    %2574 = vmatpush1.msra.mxu0 0.0
    %2575 = vmatprep.subr.mxu0 0.0
    %2576 = vmatpush1.msra.mxu0 0.0
    %2577 = vmatprep.subr.mxu0 0.0
    %2578 = vmatpush1.msra.mxu0 0.0
    %2579 = vmatprep.subr.mxu0 0.0
    %2580 = vmatpush1.msra.mxu0 0.0
    %2581 = vmatprep.subr.mxu0 0.0
    %2582 = vmatpush1.msra.mxu0 0.0
    %2583 = vmatprep.subr.mxu0 0.0
    %2584 = vmatpush1.msra.mxu0 0.0
    %2585 = vmatprep.subr.mxu0 0.0
    %2586 = vmatpush1.msra.mxu0 0.0
    %2587 = vmatprep.subr.mxu0 0.0
    %2588 = vmatpush1.msra.mxu0 0.0
    %2589 = vmatprep.subr.mxu0 0.0
    %2590 = vmatpush1.msra.mxu0 0.0
    %2591 = vmatprep.subr.mxu0 0.0
    %2592 = vmatpush1.msra.mxu0 0.0
    %2593 = vmatprep.subr.mxu0 0.0
    %2594 = vmatpush1.msra.mxu0 0.0
    %2595 = vmatprep.subr.mxu0 0.0
    %2596 = vmatpush1.msra.mxu0 0.0
    %2597 = vmatprep.mubr.f32.mxu0 0.0
    %2598 = vmatmul.mubr.f32.gmra.mrb[0].mxu0 %v2356
    %v2599 = vpop.f32.mrb[0].mxu0
    %v2600 = vadd.f32 0.0, %v2599
    %v2601 = vpop.f32.mrb[0].mxu0
    %v2602 = vadd.f32 0.0, %v2601
    %2603 = vdwg.mxu0
    %2604 = vmatprep.subr.mxu0 %v2472
    %2605 = vmatpush1.msra.mxu0 %v2471
    %2606 = vmatprep.subr.mxu0 %v2476
    %2607 = vmatpush1.msra.mxu0 %v2475
    %2608 = vmatprep.subr.mxu0 %v2480
    %2609 = vmatpush1.msra.mxu0 %v2479
    %2610 = vmatprep.subr.mxu0 %v2484
    %2611 = vmatpush1.msra.mxu0 %v2483
    %2612 = vmatprep.subr.mxu0 %v2488
    %2613 = vmatpush1.msra.mxu0 %v2487
    %2614 = vmatprep.subr.mxu0 %v2492
    %2615 = vmatpush1.msra.mxu0 %v2491
    %2616 = vmatprep.subr.mxu0 %v2496
    %2617 = vmatpush1.msra.mxu0 %v2495
    %2618 = vmatprep.subr.mxu0 %v2500
    %2619 = vmatpush1.msra.mxu0 %v2499
    %2620 = vmatprep.subr.mxu0 %v2504
    %2621 = vmatpush1.msra.mxu0 %v2503
    %2622 = vmatprep.subr.mxu0 %v2508
    %2623 = vmatpush1.msra.mxu0 %v2507
    %2624 = vmatprep.subr.mxu0 %v2512
    %2625 = vmatpush1.msra.mxu0 %v2511
    %2626 = vmatprep.subr.mxu0 %v2516
    %2627 = vmatpush1.msra.mxu0 %v2515
    %2628 = vmatprep.subr.mxu0 %v2520
    %2629 = vmatpush1.msra.mxu0 %v2519
    %2630 = vmatprep.subr.mxu0 %v2524
    %2631 = vmatpush1.msra.mxu0 %v2523
    %2632 = vmatprep.subr.mxu0 %v2528
    %2633 = vmatpush1.msra.mxu0 %v2527
    %2634 = vmatprep.subr.mxu0 %v2532
    %2635 = vmatpush1.msra.mxu0 %v2531
    %2636 = vmatprep.subr.mxu0 0.0
    %2637 = vmatpush1.msra.mxu0 0.0
    %2638 = vmatprep.subr.mxu0 0.0
    %2639 = vmatpush1.msra.mxu0 0.0
    %2640 = vmatprep.subr.mxu0 0.0
    %2641 = vmatpush1.msra.mxu0 0.0
    %2642 = vmatprep.subr.mxu0 0.0
    %2643 = vmatpush1.msra.mxu0 0.0
    %2644 = vmatprep.subr.mxu0 0.0
    %2645 = vmatpush1.msra.mxu0 0.0
    %2646 = vmatprep.subr.mxu0 0.0
    %2647 = vmatpush1.msra.mxu0 0.0
    %2648 = vmatprep.subr.mxu0 0.0
    %2649 = vmatpush1.msra.mxu0 0.0
    %2650 = vmatprep.subr.mxu0 0.0
    %2651 = vmatpush1.msra.mxu0 0.0
    %2652 = vmatprep.subr.mxu0 0.0
    %2653 = vmatpush1.msra.mxu0 0.0
    %2654 = vmatprep.subr.mxu0 0.0
    %2655 = vmatpush1.msra.mxu0 0.0
    %2656 = vmatprep.subr.mxu0 0.0
    %2657 = vmatpush1.msra.mxu0 0.0
    %2658 = vmatprep.subr.mxu0 0.0
    %2659 = vmatpush1.msra.mxu0 0.0
    %2660 = vmatprep.subr.mxu0 0.0
    %2661 = vmatpush1.msra.mxu0 0.0
    %2662 = vmatprep.subr.mxu0 0.0
    %2663 = vmatpush1.msra.mxu0 0.0
    %2664 = vmatprep.subr.mxu0 0.0
    %2665 = vmatpush1.msra.mxu0 0.0
    %2666 = vmatprep.subr.mxu0 0.0
    %2667 = vmatpush1.msra.mxu0 0.0
    %2668 = vmatprep.mubr.f32.mxu0 0.0
    %2669 = vmatmul.mubr.f32.gmra.mrb[0].mxu0 %v2356
    %v2670 = vpop.f32.mrb[0].mxu0
    %v2671 = vadd.f32 0.0, %v2670
    %v2672 = vpop.f32.mrb[0].mxu0
    %v2673 = vadd.f32 0.0, %v2672
    %2674 = vdwg.mxu0
    %2675 = vmatprep.subr.mxu0 %v2406
    %2676 = vmatpush1.msra.mxu0 %v2405
    %2677 = vmatprep.subr.mxu0 %v2410
    %2678 = vmatpush1.msra.mxu0 %v2409
    %2679 = vmatprep.subr.mxu0 %v2414
    %2680 = vmatpush1.msra.mxu0 %v2413
    %2681 = vmatprep.subr.mxu0 %v2418
    %2682 = vmatpush1.msra.mxu0 %v2417
    %2683 = vmatprep.subr.mxu0 %v2422
    %2684 = vmatpush1.msra.mxu0 %v2421
    %2685 = vmatprep.subr.mxu0 %v2426
    %2686 = vmatpush1.msra.mxu0 %v2425
    %2687 = vmatprep.subr.mxu0 %v2430
    %2688 = vmatpush1.msra.mxu0 %v2429
    %2689 = vmatprep.subr.mxu0 %v2434
    %2690 = vmatpush1.msra.mxu0 %v2433
    %2691 = vmatprep.subr.mxu0 %v2438
    %2692 = vmatpush1.msra.mxu0 %v2437
    %2693 = vmatprep.subr.mxu0 %v2442
    %2694 = vmatpush1.msra.mxu0 %v2441
    %2695 = vmatprep.subr.mxu0 %v2446
    %2696 = vmatpush1.msra.mxu0 %v2445
    %2697 = vmatprep.subr.mxu0 %v2450
    %2698 = vmatpush1.msra.mxu0 %v2449
    %2699 = vmatprep.subr.mxu0 %v2454
    %2700 = vmatpush1.msra.mxu0 %v2453
    %2701 = vmatprep.subr.mxu0 %v2458
    %2702 = vmatpush1.msra.mxu0 %v2457
    %2703 = vmatprep.subr.mxu0 %v2462
    %2704 = vmatpush1.msra.mxu0 %v2461
    %2705 = vmatprep.subr.mxu0 %v2466
    %2706 = vmatpush1.msra.mxu0 %v2465
    %2707 = vmatprep.subr.mxu0 0.0
    %2708 = vmatpush1.msra.mxu0 0.0
    %2709 = vmatprep.subr.mxu0 0.0
    %2710 = vmatpush1.msra.mxu0 0.0
    %2711 = vmatprep.subr.mxu0 0.0
    %2712 = vmatpush1.msra.mxu0 0.0
    %2713 = vmatprep.subr.mxu0 0.0
    %2714 = vmatpush1.msra.mxu0 0.0
    %2715 = vmatprep.subr.mxu0 0.0
    %2716 = vmatpush1.msra.mxu0 0.0
    %2717 = vmatprep.subr.mxu0 0.0
    %2718 = vmatpush1.msra.mxu0 0.0
    %2719 = vmatprep.subr.mxu0 0.0
    %2720 = vmatpush1.msra.mxu0 0.0
    %2721 = vmatprep.subr.mxu0 0.0
    %2722 = vmatpush1.msra.mxu0 0.0
    %2723 = vmatprep.subr.mxu0 0.0
    %2724 = vmatpush1.msra.mxu0 0.0
    %2725 = vmatprep.subr.mxu0 0.0
    %2726 = vmatpush1.msra.mxu0 0.0
    %2727 = vmatprep.subr.mxu0 0.0
    %2728 = vmatpush1.msra.mxu0 0.0
    %2729 = vmatprep.subr.mxu0 0.0
    %2730 = vmatpush1.msra.mxu0 0.0
    %2731 = vmatprep.subr.mxu0 0.0
    %2732 = vmatpush1.msra.mxu0 0.0
    %2733 = vmatprep.subr.mxu0 0.0
    %2734 = vmatpush1.msra.mxu0 0.0
    %2735 = vmatprep.subr.mxu0 0.0
    %2736 = vmatpush1.msra.mxu0 0.0
    %2737 = vmatprep.subr.mxu0 0.0
    %2738 = vmatpush1.msra.mxu0 0.0
    %2739 = vmatprep.mubr.f32.mxu0 0.0
    %2740 = vmatmul.mubr.f32.gmra.mrb[0].mxu0 %v2404
    %v2741 = vpop.f32.mrb[0].mxu0
    %v2742 = vadd.f32 %v2600, %v2741
    %v2743 = vpop.f32.mrb[0].mxu0
    %v2744 = vadd.f32 %v2602, %v2743
    %2745 = vdwg.mxu0
    %2746 = vmatprep.subr.mxu0 %v2408
    %2747 = vmatpush1.msra.mxu0 %v2407
    %2748 = vmatprep.subr.mxu0 %v2412
    %2749 = vmatpush1.msra.mxu0 %v2411
    %2750 = vmatprep.subr.mxu0 %v2416
    %2751 = vmatpush1.msra.mxu0 %v2415
    %2752 = vmatprep.subr.mxu0 %v2420
    %2753 = vmatpush1.msra.mxu0 %v2419
    %2754 = vmatprep.subr.mxu0 %v2424
    %2755 = vmatpush1.msra.mxu0 %v2423
    %2756 = vmatprep.subr.mxu0 %v2428
    %2757 = vmatpush1.msra.mxu0 %v2427
    %2758 = vmatprep.subr.mxu0 %v2432
    %2759 = vmatpush1.msra.mxu0 %v2431
    %2760 = vmatprep.subr.mxu0 %v2436
    %2761 = vmatpush1.msra.mxu0 %v2435
    %2762 = vmatprep.subr.mxu0 %v2440
    %2763 = vmatpush1.msra.mxu0 %v2439
    %2764 = vmatprep.subr.mxu0 %v2444
    %2765 = vmatpush1.msra.mxu0 %v2443
    %2766 = vmatprep.subr.mxu0 %v2448
    %2767 = vmatpush1.msra.mxu0 %v2447
    %2768 = vmatprep.subr.mxu0 %v2452
    %2769 = vmatpush1.msra.mxu0 %v2451
    %2770 = vmatprep.subr.mxu0 %v2456
    %2771 = vmatpush1.msra.mxu0 %v2455
    %2772 = vmatprep.subr.mxu0 %v2460
    %2773 = vmatpush1.msra.mxu0 %v2459
    %2774 = vmatprep.subr.mxu0 %v2464
    %2775 = vmatpush1.msra.mxu0 %v2463
    %2776 = vmatprep.subr.mxu0 %v2468
    %2777 = vmatpush1.msra.mxu0 %v2467
    %2778 = vmatprep.subr.mxu0 0.0
    %2779 = vmatpush1.msra.mxu0 0.0
    %2780 = vmatprep.subr.mxu0 0.0
    %2781 = vmatpush1.msra.mxu0 0.0
    %2782 = vmatprep.subr.mxu0 0.0
    %2783 = vmatpush1.msra.mxu0 0.0
    %2784 = vmatprep.subr.mxu0 0.0
    %2785 = vmatpush1.msra.mxu0 0.0
    %2786 = vmatprep.subr.mxu0 0.0
    %2787 = vmatpush1.msra.mxu0 0.0
    %2788 = vmatprep.subr.mxu0 0.0
    %2789 = vmatpush1.msra.mxu0 0.0
    %2790 = vmatprep.subr.mxu0 0.0
    %2791 = vmatpush1.msra.mxu0 0.0
    %2792 = vmatprep.subr.mxu0 0.0
    %2793 = vmatpush1.msra.mxu0 0.0
    %2794 = vmatprep.subr.mxu0 0.0
    %2795 = vmatpush1.msra.mxu0 0.0
    %2796 = vmatprep.subr.mxu0 0.0
    %2797 = vmatpush1.msra.mxu0 0.0
    %2798 = vmatprep.subr.mxu0 0.0
    %2799 = vmatpush1.msra.mxu0 0.0
    %2800 = vmatprep.subr.mxu0 0.0
    %2801 = vmatpush1.msra.mxu0 0.0
    %2802 = vmatprep.subr.mxu0 0.0
    %2803 = vmatpush1.msra.mxu0 0.0
    %2804 = vmatprep.subr.mxu0 0.0
    %2805 = vmatpush1.msra.mxu0 0.0
    %2806 = vmatprep.subr.mxu0 0.0
    %2807 = vmatpush1.msra.mxu0 0.0
    %2808 = vmatprep.subr.mxu0 0.0
    %2809 = vmatpush1.msra.mxu0 0.0
    %2810 = vmatprep.mubr.f32.mxu0 0.0
    %2811 = vmatmul.mubr.f32.gmra.mrb[0].mxu0 %v2404
    %v2812 = vpop.f32.mrb[0].mxu0
    %v2813 = vadd.f32 %v2671, %v2812
    %v2814 = vpop.f32.mrb[0].mxu0
    %v2815 = vadd.f32 %v2673, %v2814
    %2816 = vdwg.mxu0
    %v2817 = vadd.f32 %v2742, %v2043
    %v2818 = vadd.f32 %v2744, %v2045
    %v2819 = vadd.f32 %v2813, %v2114
    %v2820 = vadd.f32 %v2815, %v2116
    %v2821 = vld [vmem:[%s4] sm:$0xff]
    %v2822 = vld [vmem:[%s4 + $0x8] sm:$0xff]
    %v2823 = vld [vmem:[%s4 + $0x10] sm:$0xff]
    %v2824 = vld [vmem:[%s4 + $0x18] sm:$0xff]
    %v2825 = vadd.f32 %v2817, %v2821
    %v2826 = vadd.f32 %v2818, %v2822
    %v2827 = vadd.f32 %v2819, %v2823
    %v2828 = vadd.f32 %v2820, %v2824
    %v2829 = vxor.u32 %v2825, 2147483648
    %v2830 = vmul.f32 %v2829, 1.442695
    %v2831 = vpow.pop %v2830
    %v2832 = vadd.f32 %v2831, 1.0
    %v2833 = vrcp.pop %v2832
    %v2834 = vmul.f32 1.0, %v2833
    %v2835 = vxor.u32 %v2826, 2147483648
    %v2836 = vmul.f32 %v2835, 1.442695
    %v2837 = vpow.pop %v2836
    %v2838 = vadd.f32 %v2837, 1.0
    %v2839 = vrcp.pop %v2838
    %v2840 = vmul.f32 1.0, %v2839
    %v2841 = vtanh.pop %v2827
    %v2842 = vxor.u32 %v2828, 2147483648
    %v2843 = vmul.f32 %v2842, 1.442695
    %v2844 = vpow.pop %v2843
    %v2845 = vadd.f32 %v2844, 1.0
    %v2846 = vrcp.pop %v2845
    %v2847 = vmul.f32 1.0, %v2846
    %v2848 = vmul.f32 %v2840, %v1907
    %v2849 = vmul.f32 %v2834, %v2841
    %v2850 = vadd.f32 %v2848, %v2849
    %v2851 = vtanh.pop %v2850
    %v2852 = vmul.f32 %v2847, %v2851
    %s2853 = scalar_lea.vmem [#allocation2], 16
    %2854 = vst [vmem:[%s2853] sm:$0xff] %v2852
    %v2855 = vld [vmem:[%s3 + $0x400] sm:$0xff]
    %v2856 = vld [vmem:[%s3 + $0x408] sm:$0xff]
    %v2857 = vld [vmem:[%s3 + $0x410] sm:$0xff]
    %v2858 = vld [vmem:[%s3 + $0x418] sm:$0xff]
    %v2859 = vld [vmem:[%s3 + $0x420] sm:$0xff]
    %v2860 = vld [vmem:[%s3 + $0x428] sm:$0xff]
    %v2861 = vld [vmem:[%s3 + $0x430] sm:$0xff]
    %v2862 = vld [vmem:[%s3 + $0x438] sm:$0xff]
    %v2863 = vld [vmem:[%s3 + $0x440] sm:$0xff]
    %v2864 = vld [vmem:[%s3 + $0x448] sm:$0xff]
    %v2865 = vld [vmem:[%s3 + $0x450] sm:$0xff]
    %v2866 = vld [vmem:[%s3 + $0x458] sm:$0xff]
    %v2867 = vld [vmem:[%s3 + $0x460] sm:$0xff]
    %v2868 = vld [vmem:[%s3 + $0x468] sm:$0xff]
    %v2869 = vld [vmem:[%s3 + $0x470] sm:$0xff]
    %v2870 = vld [vmem:[%s3 + $0x478] sm:$0xff]
    %v2871 = vld [vmem:[%s3 + $0x480] sm:$0xff]
    %v2872 = vld [vmem:[%s3 + $0x488] sm:$0xff]
    %v2873 = vld [vmem:[%s3 + $0x490] sm:$0xff]
    %v2874 = vld [vmem:[%s3 + $0x498] sm:$0xff]
    %v2875 = vld [vmem:[%s3 + $0x4a0] sm:$0xff]
    %v2876 = vld [vmem:[%s3 + $0x4a8] sm:$0xff]
    %v2877 = vld [vmem:[%s3 + $0x4b0] sm:$0xff]
    %v2878 = vld [vmem:[%s3 + $0x4b8] sm:$0xff]
    %v2879 = vld [vmem:[%s3 + $0x4c0] sm:$0xff]
    %v2880 = vld [vmem:[%s3 + $0x4c8] sm:$0xff]
    %v2881 = vld [vmem:[%s3 + $0x4d0] sm:$0xff]
    %v2882 = vld [vmem:[%s3 + $0x4d8] sm:$0xff]
    %v2883 = vld [vmem:[%s3 + $0x4e0] sm:$0xff]
    %v2884 = vld [vmem:[%s3 + $0x4e8] sm:$0xff]
    %v2885 = vld [vmem:[%s3 + $0x4f0] sm:$0xff]
    %v2886 = vld [vmem:[%s3 + $0x4f8] sm:$0xff]
    %v2887 = vld [vmem:[%s3 + $0x500] sm:$0xff]
    %v2888 = vld [vmem:[%s3 + $0x508] sm:$0xff]
    %v2889 = vld [vmem:[%s3 + $0x510] sm:$0xff]
    %v2890 = vld [vmem:[%s3 + $0x518] sm:$0xff]
    %v2891 = vld [vmem:[%s3 + $0x520] sm:$0xff]
    %v2892 = vld [vmem:[%s3 + $0x528] sm:$0xff]
    %v2893 = vld [vmem:[%s3 + $0x530] sm:$0xff]
    %v2894 = vld [vmem:[%s3 + $0x538] sm:$0xff]
    %v2895 = vld [vmem:[%s3 + $0x540] sm:$0xff]
    %v2896 = vld [vmem:[%s3 + $0x548] sm:$0xff]
    %v2897 = vld [vmem:[%s3 + $0x550] sm:$0xff]
    %v2898 = vld [vmem:[%s3 + $0x558] sm:$0xff]
    %v2899 = vld [vmem:[%s3 + $0x560] sm:$0xff]
    %v2900 = vld [vmem:[%s3 + $0x568] sm:$0xff]
    %v2901 = vld [vmem:[%s3 + $0x570] sm:$0xff]
    %v2902 = vld [vmem:[%s3 + $0x578] sm:$0xff]
    %v2903 = vld [vmem:[%s3 + $0x580] sm:$0xff]
    %v2904 = vld [vmem:[%s3 + $0x588] sm:$0xff]
    %v2905 = vld [vmem:[%s3 + $0x590] sm:$0xff]
    %v2906 = vld [vmem:[%s3 + $0x598] sm:$0xff]
    %v2907 = vld [vmem:[%s3 + $0x5a0] sm:$0xff]
    %v2908 = vld [vmem:[%s3 + $0x5a8] sm:$0xff]
    %v2909 = vld [vmem:[%s3 + $0x5b0] sm:$0xff]
    %v2910 = vld [vmem:[%s3 + $0x5b8] sm:$0xff]
    %v2911 = vld [vmem:[%s3 + $0x5c0] sm:$0xff]
    %v2912 = vld [vmem:[%s3 + $0x5c8] sm:$0xff]
    %v2913 = vld [vmem:[%s3 + $0x5d0] sm:$0xff]
    %v2914 = vld [vmem:[%s3 + $0x5d8] sm:$0xff]
    %v2915 = vld [vmem:[%s3 + $0x5e0] sm:$0xff]
    %v2916 = vld [vmem:[%s3 + $0x5e8] sm:$0xff]
    %v2917 = vld [vmem:[%s3 + $0x5f0] sm:$0xff]
    %v2918 = vld [vmem:[%s3 + $0x5f8] sm:$0xff]
    %2919 = vmatprep.subr.mxu0 %v2856
    %2920 = vmatpush1.msra.mxu0 %v2855
    %2921 = vmatprep.subr.mxu0 %v2860
    %2922 = vmatpush1.msra.mxu0 %v2859
    %2923 = vmatprep.subr.mxu0 %v2864
    %2924 = vmatpush1.msra.mxu0 %v2863
    %2925 = vmatprep.subr.mxu0 %v2868
    %2926 = vmatpush1.msra.mxu0 %v2867
    %2927 = vmatprep.subr.mxu0 %v2872
    %2928 = vmatpush1.msra.mxu0 %v2871
    %2929 = vmatprep.subr.mxu0 %v2876
    %2930 = vmatpush1.msra.mxu0 %v2875
    %2931 = vmatprep.subr.mxu0 %v2880
    %2932 = vmatpush1.msra.mxu0 %v2879
    %2933 = vmatprep.subr.mxu0 %v2884
    %2934 = vmatpush1.msra.mxu0 %v2883
    %2935 = vmatprep.subr.mxu0 %v2888
    %2936 = vmatpush1.msra.mxu0 %v2887
    %2937 = vmatprep.subr.mxu0 %v2892
    %2938 = vmatpush1.msra.mxu0 %v2891
    %2939 = vmatprep.subr.mxu0 %v2896
    %2940 = vmatpush1.msra.mxu0 %v2895
    %2941 = vmatprep.subr.mxu0 %v2900
    %2942 = vmatpush1.msra.mxu0 %v2899
    %2943 = vmatprep.subr.mxu0 %v2904
    %2944 = vmatpush1.msra.mxu0 %v2903
    %2945 = vmatprep.subr.mxu0 %v2908
    %2946 = vmatpush1.msra.mxu0 %v2907
    %2947 = vmatprep.subr.mxu0 %v2912
    %2948 = vmatpush1.msra.mxu0 %v2911
    %2949 = vmatprep.subr.mxu0 %v2916
    %2950 = vmatpush1.msra.mxu0 %v2915
    %2951 = vmatprep.subr.mxu0 0.0
    %2952 = vmatpush1.msra.mxu0 0.0
    %2953 = vmatprep.subr.mxu0 0.0
    %2954 = vmatpush1.msra.mxu0 0.0
    %2955 = vmatprep.subr.mxu0 0.0
    %2956 = vmatpush1.msra.mxu0 0.0
    %2957 = vmatprep.subr.mxu0 0.0
    %2958 = vmatpush1.msra.mxu0 0.0
    %2959 = vmatprep.subr.mxu0 0.0
    %2960 = vmatpush1.msra.mxu0 0.0
    %2961 = vmatprep.subr.mxu0 0.0
    %2962 = vmatpush1.msra.mxu0 0.0
    %2963 = vmatprep.subr.mxu0 0.0
    %2964 = vmatpush1.msra.mxu0 0.0
    %2965 = vmatprep.subr.mxu0 0.0
    %2966 = vmatpush1.msra.mxu0 0.0
    %2967 = vmatprep.subr.mxu0 0.0
    %2968 = vmatpush1.msra.mxu0 0.0
    %2969 = vmatprep.subr.mxu0 0.0
    %2970 = vmatpush1.msra.mxu0 0.0
    %2971 = vmatprep.subr.mxu0 0.0
    %2972 = vmatpush1.msra.mxu0 0.0
    %2973 = vmatprep.subr.mxu0 0.0
    %2974 = vmatpush1.msra.mxu0 0.0
    %2975 = vmatprep.subr.mxu0 0.0
    %2976 = vmatpush1.msra.mxu0 0.0
    %2977 = vmatprep.subr.mxu0 0.0
    %2978 = vmatpush1.msra.mxu0 0.0
    %2979 = vmatprep.subr.mxu0 0.0
    %2980 = vmatpush1.msra.mxu0 0.0
    %2981 = vmatprep.subr.mxu0 0.0
    %2982 = vmatpush1.msra.mxu0 0.0
    %2983 = vmatprep.mubr.f32.mxu0 0.0
    %2984 = vmatmul.mubr.f32.gmra.mrb[0].mxu0 %v2852
    %v2985 = vpop.f32.mrb[0].mxu0
    %v2986 = vadd.f32 0.0, %v2985
    %v2987 = vpop.f32.mrb[0].mxu0
    %v2988 = vadd.f32 0.0, %v2987
    %2989 = vdwg.mxu0
    %2990 = vmatprep.subr.mxu0 %v2858
    %2991 = vmatpush1.msra.mxu0 %v2857
    %2992 = vmatprep.subr.mxu0 %v2862
    %2993 = vmatpush1.msra.mxu0 %v2861
    %2994 = vmatprep.subr.mxu0 %v2866
    %2995 = vmatpush1.msra.mxu0 %v2865
    %2996 = vmatprep.subr.mxu0 %v2870
    %2997 = vmatpush1.msra.mxu0 %v2869
    %2998 = vmatprep.subr.mxu0 %v2874
    %2999 = vmatpush1.msra.mxu0 %v2873
    %3000 = vmatprep.subr.mxu0 %v2878
    %3001 = vmatpush1.msra.mxu0 %v2877
    %3002 = vmatprep.subr.mxu0 %v2882
    %3003 = vmatpush1.msra.mxu0 %v2881
    %3004 = vmatprep.subr.mxu0 %v2886
    %3005 = vmatpush1.msra.mxu0 %v2885
    %3006 = vmatprep.subr.mxu0 %v2890
    %3007 = vmatpush1.msra.mxu0 %v2889
    %3008 = vmatprep.subr.mxu0 %v2894
    %3009 = vmatpush1.msra.mxu0 %v2893
    %3010 = vmatprep.subr.mxu0 %v2898
    %3011 = vmatpush1.msra.mxu0 %v2897
    %3012 = vmatprep.subr.mxu0 %v2902
    %3013 = vmatpush1.msra.mxu0 %v2901
    %3014 = vmatprep.subr.mxu0 %v2906
    %3015 = vmatpush1.msra.mxu0 %v2905
    %3016 = vmatprep.subr.mxu0 %v2910
    %3017 = vmatpush1.msra.mxu0 %v2909
    %3018 = vmatprep.subr.mxu0 %v2914
    %3019 = vmatpush1.msra.mxu0 %v2913
    %3020 = vmatprep.subr.mxu0 %v2918
    %3021 = vmatpush1.msra.mxu0 %v2917
    %3022 = vmatprep.subr.mxu0 0.0
    %3023 = vmatpush1.msra.mxu0 0.0
    %3024 = vmatprep.subr.mxu0 0.0
    %3025 = vmatpush1.msra.mxu0 0.0
    %3026 = vmatprep.subr.mxu0 0.0
    %3027 = vmatpush1.msra.mxu0 0.0
    %3028 = vmatprep.subr.mxu0 0.0
    %3029 = vmatpush1.msra.mxu0 0.0
    %3030 = vmatprep.subr.mxu0 0.0
    %3031 = vmatpush1.msra.mxu0 0.0
    %3032 = vmatprep.subr.mxu0 0.0
    %3033 = vmatpush1.msra.mxu0 0.0
    %3034 = vmatprep.subr.mxu0 0.0
    %3035 = vmatpush1.msra.mxu0 0.0
    %3036 = vmatprep.subr.mxu0 0.0
    %3037 = vmatpush1.msra.mxu0 0.0
    %3038 = vmatprep.subr.mxu0 0.0
    %3039 = vmatpush1.msra.mxu0 0.0
    %3040 = vmatprep.subr.mxu0 0.0
    %3041 = vmatpush1.msra.mxu0 0.0
    %3042 = vmatprep.subr.mxu0 0.0
    %3043 = vmatpush1.msra.mxu0 0.0
    %3044 = vmatprep.subr.mxu0 0.0
    %3045 = vmatpush1.msra.mxu0 0.0
    %3046 = vmatprep.subr.mxu0 0.0
    %3047 = vmatpush1.msra.mxu0 0.0
    %3048 = vmatprep.subr.mxu0 0.0
    %3049 = vmatpush1.msra.mxu0 0.0
    %3050 = vmatprep.subr.mxu0 0.0
    %3051 = vmatpush1.msra.mxu0 0.0
    %3052 = vmatprep.subr.mxu0 0.0
    %3053 = vmatpush1.msra.mxu0 0.0
    %3054 = vmatprep.mubr.f32.mxu0 0.0
    %3055 = vmatmul.mubr.f32.gmra.mrb[0].mxu0 %v2852
    %v3056 = vpop.f32.mrb[0].mxu0
    %v3057 = vadd.f32 0.0, %v3056
    %v3058 = vpop.f32.mrb[0].mxu0
    %v3059 = vadd.f32 0.0, %v3058
    %3060 = vdwg.mxu0
    %s3061 = scalar_lea.vmem %s0, 96
    %v3062 = vld [vmem:[%s3061] sm:$0xff]
    %v3063 = vld [vmem:[%s3061 + $0x8] sm:$0xff]
    %v3064 = vld [vmem:[%s3061 + $0x10] sm:$0xff]
    %v3065 = vld [vmem:[%s3061 + $0x18] sm:$0xff]
    %v3066 = vld [vmem:[%s2] sm:$0xff]
    %v3067 = vld [vmem:[%s2 + $0x8] sm:$0xff]
    %v3068 = vld [vmem:[%s2 + $0x10] sm:$0xff]
    %v3069 = vld [vmem:[%s2 + $0x18] sm:$0xff]
    %v3070 = vld [vmem:[%s2 + $0x20] sm:$0xff]
    %v3071 = vld [vmem:[%s2 + $0x28] sm:$0xff]
    %v3072 = vld [vmem:[%s2 + $0x30] sm:$0xff]
    %v3073 = vld [vmem:[%s2 + $0x38] sm:$0xff]
    %v3074 = vld [vmem:[%s2 + $0x40] sm:$0xff]
    %v3075 = vld [vmem:[%s2 + $0x48] sm:$0xff]
    %v3076 = vld [vmem:[%s2 + $0x50] sm:$0xff]
    %v3077 = vld [vmem:[%s2 + $0x58] sm:$0xff]
    %v3078 = vld [vmem:[%s2 + $0x60] sm:$0xff]
    %v3079 = vld [vmem:[%s2 + $0x68] sm:$0xff]
    %v3080 = vld [vmem:[%s2 + $0x70] sm:$0xff]
    %v3081 = vld [vmem:[%s2 + $0x78] sm:$0xff]
    %v3082 = vld [vmem:[%s2 + $0x80] sm:$0xff]
    %v3083 = vld [vmem:[%s2 + $0x88] sm:$0xff]
    %v3084 = vld [vmem:[%s2 + $0x90] sm:$0xff]
    %v3085 = vld [vmem:[%s2 + $0x98] sm:$0xff]
    %v3086 = vld [vmem:[%s2 + $0xa0] sm:$0xff]
    %v3087 = vld [vmem:[%s2 + $0xa8] sm:$0xff]
    %v3088 = vld [vmem:[%s2 + $0xb0] sm:$0xff]
    %v3089 = vld [vmem:[%s2 + $0xb8] sm:$0xff]
    %v3090 = vld [vmem:[%s2 + $0xc0] sm:$0xff]
    %v3091 = vld [vmem:[%s2 + $0xc8] sm:$0xff]
    %v3092 = vld [vmem:[%s2 + $0xd0] sm:$0xff]
    %v3093 = vld [vmem:[%s2 + $0xd8] sm:$0xff]
    %v3094 = vld [vmem:[%s2 + $0xe0] sm:$0xff]
    %v3095 = vld [vmem:[%s2 + $0xe8] sm:$0xff]
    %v3096 = vld [vmem:[%s2 + $0xf0] sm:$0xff]
    %v3097 = vld [vmem:[%s2 + $0xf8] sm:$0xff]
    %v3098 = vld [vmem:[%s2 + $0x100] sm:$0xff]
    %v3099 = vld [vmem:[%s2 + $0x108] sm:$0xff]
    %v3100 = vld [vmem:[%s2 + $0x110] sm:$0xff]
    %v3101 = vld [vmem:[%s2 + $0x118] sm:$0xff]
    %v3102 = vld [vmem:[%s2 + $0x120] sm:$0xff]
    %v3103 = vld [vmem:[%s2 + $0x128] sm:$0xff]
    %v3104 = vld [vmem:[%s2 + $0x130] sm:$0xff]
    %v3105 = vld [vmem:[%s2 + $0x138] sm:$0xff]
    %v3106 = vld [vmem:[%s2 + $0x140] sm:$0xff]
    %v3107 = vld [vmem:[%s2 + $0x148] sm:$0xff]
    %v3108 = vld [vmem:[%s2 + $0x150] sm:$0xff]
    %v3109 = vld [vmem:[%s2 + $0x158] sm:$0xff]
    %v3110 = vld [vmem:[%s2 + $0x160] sm:$0xff]
    %v3111 = vld [vmem:[%s2 + $0x168] sm:$0xff]
    %v3112 = vld [vmem:[%s2 + $0x170] sm:$0xff]
    %v3113 = vld [vmem:[%s2 + $0x178] sm:$0xff]
    %v3114 = vld [vmem:[%s2 + $0x180] sm:$0xff]
    %v3115 = vld [vmem:[%s2 + $0x188] sm:$0xff]
    %v3116 = vld [vmem:[%s2 + $0x190] sm:$0xff]
    %v3117 = vld [vmem:[%s2 + $0x198] sm:$0xff]
    %v3118 = vld [vmem:[%s2 + $0x1a0] sm:$0xff]
    %v3119 = vld [vmem:[%s2 + $0x1a8] sm:$0xff]
    %v3120 = vld [vmem:[%s2 + $0x1b0] sm:$0xff]
    %v3121 = vld [vmem:[%s2 + $0x1b8] sm:$0xff]
    %v3122 = vld [vmem:[%s2 + $0x1c0] sm:$0xff]
    %v3123 = vld [vmem:[%s2 + $0x1c8] sm:$0xff]
    %v3124 = vld [vmem:[%s2 + $0x1d0] sm:$0xff]
    %v3125 = vld [vmem:[%s2 + $0x1d8] sm:$0xff]
    %v3126 = vld [vmem:[%s2 + $0x1e0] sm:$0xff]
    %v3127 = vld [vmem:[%s2 + $0x1e8] sm:$0xff]
    %v3128 = vld [vmem:[%s2 + $0x1f0] sm:$0xff]
    %v3129 = vld [vmem:[%s2 + $0x1f8] sm:$0xff]
    %3130 = vmatprep.subr.mxu0 %v3067
    %3131 = vmatpush1.msra.mxu0 %v3066
    %3132 = vmatprep.subr.mxu0 %v3071
    %3133 = vmatpush1.msra.mxu0 %v3070
    %3134 = vmatprep.subr.mxu0 %v3075
    %3135 = vmatpush1.msra.mxu0 %v3074
    %3136 = vmatprep.subr.mxu0 %v3079
    %3137 = vmatpush1.msra.mxu0 %v3078
    %3138 = vmatprep.subr.mxu0 %v3083
    %3139 = vmatpush1.msra.mxu0 %v3082
    %3140 = vmatprep.subr.mxu0 %v3087
    %3141 = vmatpush1.msra.mxu0 %v3086
    %3142 = vmatprep.subr.mxu0 %v3091
    %3143 = vmatpush1.msra.mxu0 %v3090
    %3144 = vmatprep.subr.mxu0 %v3095
    %3145 = vmatpush1.msra.mxu0 %v3094
    %3146 = vmatprep.subr.mxu0 %v3099
    %3147 = vmatpush1.msra.mxu0 %v3098
    %3148 = vmatprep.subr.mxu0 %v3103
    %3149 = vmatpush1.msra.mxu0 %v3102
    %3150 = vmatprep.subr.mxu0 %v3107
    %3151 = vmatpush1.msra.mxu0 %v3106
    %3152 = vmatprep.subr.mxu0 %v3111
    %3153 = vmatpush1.msra.mxu0 %v3110
    %3154 = vmatprep.subr.mxu0 %v3115
    %3155 = vmatpush1.msra.mxu0 %v3114
    %3156 = vmatprep.subr.mxu0 %v3119
    %3157 = vmatpush1.msra.mxu0 %v3118
    %3158 = vmatprep.subr.mxu0 %v3123
    %3159 = vmatpush1.msra.mxu0 %v3122
    %3160 = vmatprep.subr.mxu0 %v3127
    %3161 = vmatpush1.msra.mxu0 %v3126
    %3162 = vmatprep.subr.mxu0 0.0
    %3163 = vmatpush1.msra.mxu0 0.0
    %3164 = vmatprep.subr.mxu0 0.0
    %3165 = vmatpush1.msra.mxu0 0.0
    %3166 = vmatprep.subr.mxu0 0.0
    %3167 = vmatpush1.msra.mxu0 0.0
    %3168 = vmatprep.subr.mxu0 0.0
    %3169 = vmatpush1.msra.mxu0 0.0
    %3170 = vmatprep.subr.mxu0 0.0
    %3171 = vmatpush1.msra.mxu0 0.0
    %3172 = vmatprep.subr.mxu0 0.0
    %3173 = vmatpush1.msra.mxu0 0.0
    %3174 = vmatprep.subr.mxu0 0.0
    %3175 = vmatpush1.msra.mxu0 0.0
    %3176 = vmatprep.subr.mxu0 0.0
    %3177 = vmatpush1.msra.mxu0 0.0
    %3178 = vmatprep.subr.mxu0 0.0
    %3179 = vmatpush1.msra.mxu0 0.0
    %3180 = vmatprep.subr.mxu0 0.0
    %3181 = vmatpush1.msra.mxu0 0.0
    %3182 = vmatprep.subr.mxu0 0.0
    %3183 = vmatpush1.msra.mxu0 0.0
    %3184 = vmatprep.subr.mxu0 0.0
    %3185 = vmatpush1.msra.mxu0 0.0
    %3186 = vmatprep.subr.mxu0 0.0
    %3187 = vmatpush1.msra.mxu0 0.0
    %3188 = vmatprep.subr.mxu0 0.0
    %3189 = vmatpush1.msra.mxu0 0.0
    %3190 = vmatprep.subr.mxu0 0.0
    %3191 = vmatpush1.msra.mxu0 0.0
    %3192 = vmatprep.subr.mxu0 0.0
    %3193 = vmatpush1.msra.mxu0 0.0
    %3194 = vmatprep.mubr.f32.mxu0 0.0
    %3195 = vmatmul.mubr.f32.gmra.mrb[0].mxu0 %v2356
    %v3196 = vpop.f32.mrb[0].mxu0
    %v3197 = vadd.f32 0.0, %v3196
    %v3198 = vpop.f32.mrb[0].mxu0
    %v3199 = vadd.f32 0.0, %v3198
    %3200 = vdwg.mxu0
    %3201 = vmatprep.subr.mxu0 %v3069
    %3202 = vmatpush1.msra.mxu0 %v3068
    %3203 = vmatprep.subr.mxu0 %v3073
    %3204 = vmatpush1.msra.mxu0 %v3072
    %3205 = vmatprep.subr.mxu0 %v3077
    %3206 = vmatpush1.msra.mxu0 %v3076
    %3207 = vmatprep.subr.mxu0 %v3081
    %3208 = vmatpush1.msra.mxu0 %v3080
    %3209 = vmatprep.subr.mxu0 %v3085
    %3210 = vmatpush1.msra.mxu0 %v3084
    %3211 = vmatprep.subr.mxu0 %v3089
    %3212 = vmatpush1.msra.mxu0 %v3088
    %3213 = vmatprep.subr.mxu0 %v3093
    %3214 = vmatpush1.msra.mxu0 %v3092
    %3215 = vmatprep.subr.mxu0 %v3097
    %3216 = vmatpush1.msra.mxu0 %v3096
    %3217 = vmatprep.subr.mxu0 %v3101
    %3218 = vmatpush1.msra.mxu0 %v3100
    %3219 = vmatprep.subr.mxu0 %v3105
    %3220 = vmatpush1.msra.mxu0 %v3104
    %3221 = vmatprep.subr.mxu0 %v3109
    %3222 = vmatpush1.msra.mxu0 %v3108
    %3223 = vmatprep.subr.mxu0 %v3113
    %3224 = vmatpush1.msra.mxu0 %v3112
    %3225 = vmatprep.subr.mxu0 %v3117
    %3226 = vmatpush1.msra.mxu0 %v3116
    %3227 = vmatprep.subr.mxu0 %v3121
    %3228 = vmatpush1.msra.mxu0 %v3120
    %3229 = vmatprep.subr.mxu0 %v3125
    %3230 = vmatpush1.msra.mxu0 %v3124
    %3231 = vmatprep.subr.mxu0 %v3129
    %3232 = vmatpush1.msra.mxu0 %v3128
    %3233 = vmatprep.subr.mxu0 0.0
    %3234 = vmatpush1.msra.mxu0 0.0
    %3235 = vmatprep.subr.mxu0 0.0
    %3236 = vmatpush1.msra.mxu0 0.0
    %3237 = vmatprep.subr.mxu0 0.0
    %3238 = vmatpush1.msra.mxu0 0.0
    %3239 = vmatprep.subr.mxu0 0.0
    %3240 = vmatpush1.msra.mxu0 0.0
    %3241 = vmatprep.subr.mxu0 0.0
    %3242 = vmatpush1.msra.mxu0 0.0
    %3243 = vmatprep.subr.mxu0 0.0
    %3244 = vmatpush1.msra.mxu0 0.0
    %3245 = vmatprep.subr.mxu0 0.0
    %3246 = vmatpush1.msra.mxu0 0.0
    %3247 = vmatprep.subr.mxu0 0.0
    %3248 = vmatpush1.msra.mxu0 0.0
    %3249 = vmatprep.subr.mxu0 0.0
    %3250 = vmatpush1.msra.mxu0 0.0
    %3251 = vmatprep.subr.mxu0 0.0
    %3252 = vmatpush1.msra.mxu0 0.0
    %3253 = vmatprep.subr.mxu0 0.0
    %3254 = vmatpush1.msra.mxu0 0.0
    %3255 = vmatprep.subr.mxu0 0.0
    %3256 = vmatpush1.msra.mxu0 0.0
    %3257 = vmatprep.subr.mxu0 0.0
    %3258 = vmatpush1.msra.mxu0 0.0
    %3259 = vmatprep.subr.mxu0 0.0
    %3260 = vmatpush1.msra.mxu0 0.0
    %3261 = vmatprep.subr.mxu0 0.0
    %3262 = vmatpush1.msra.mxu0 0.0
    %3263 = vmatprep.subr.mxu0 0.0
    %3264 = vmatpush1.msra.mxu0 0.0
    %3265 = vmatprep.mubr.f32.mxu0 0.0
    %3266 = vmatmul.mubr.f32.gmra.mrb[0].mxu0 %v2356
    %v3267 = vpop.f32.mrb[0].mxu0
    %v3268 = vadd.f32 0.0, %v3267
    %v3269 = vpop.f32.mrb[0].mxu0
    %v3270 = vadd.f32 0.0, %v3269
    %3271 = vdwg.mxu0
    %v3272 = vadd.f32 %v3062, %v3197
    %v3273 = vadd.f32 %v3063, %v3199
    %v3274 = vadd.f32 %v3064, %v3268
    %v3275 = vadd.f32 %v3065, %v3270
    %v3276 = vxor.u32 %v3272, 2147483648
    %v3277 = vmul.f32 %v3276, 1.442695
    %v3278 = vpow.pop %v3277
    %v3279 = vadd.f32 %v3278, 1.0
    %v3280 = vrcp.pop %v3279
    %v3281 = vmul.f32 1.0, %v3280
    %v3282 = vxor.u32 %v3273, 2147483648
    %v3283 = vmul.f32 %v3282, 1.442695
    %v3284 = vpow.pop %v3283
    %v3285 = vadd.f32 %v3284, 1.0
    %v3286 = vrcp.pop %v3285
    %v3287 = vmul.f32 1.0, %v3286
    %v3288 = vtanh.pop %v3274
    %v3289 = vxor.u32 %v3275, 2147483648
    %v3290 = vmul.f32 %v3289, 1.442695
    %v3291 = vpow.pop %v3290
    %v3292 = vadd.f32 %v3291, 1.0
    %v3293 = vrcp.pop %v3292
    %v3294 = vmul.f32 1.0, %v3293
    %v3295 = vmul.f32 %v3287, %v2354
    %v3296 = vmul.f32 %v3281, %v3288
    %v3297 = vadd.f32 %v3295, %v3296
    %v3298 = vtanh.pop %v3297
    %v3299 = vmul.f32 %v3294, %v3298
    %v3300 = vld [vmem:[%s1] sm:$0xff]
    %v3301 = vmul.f32 %v3299, %v3300
    %3302 = vadd.xlane.f32.xlu0 %v3301
    %v3303 = vpop.xlane.xlu0 %3302
    %v3304 = vmul.f32 %v3303, %v3300
    %v3305 = vadd.f32 %v3304, 0.0
    %v3306 = vld [vmem:[%s471] sm:$0xff]
    %v3307 = vmul.f32 %v3299, %v3306
    %3308 = vadd.xlane.f32.xlu0 %v3307
    %v3309 = vpop.xlane.xlu0 %3308
    %v3310 = vmul.f32 %v3309, %v3306
    %v3311 = vadd.f32 %v3305, %v3310
    %v3312 = vld [vmem:[%s478] sm:$0xff]
    %v3313 = vmul.f32 %v3299, %v3312
    %3314 = vadd.xlane.f32.xlu0 %v3313
    %v3315 = vpop.xlane.xlu0 %3314
    %v3316 = vmul.f32 %v3315, %v3312
    %v3317 = vadd.f32 %v3311, %v3316
    %v3318 = vld [vmem:[%s485] sm:$0xff]
    %v3319 = vmul.f32 %v3299, %v3318
    %3320 = vadd.xlane.f32.xlu0 %v3319
    %v3321 = vpop.xlane.xlu0 %3320
    %v3322 = vmul.f32 %v3321, %v3318
    %v3323 = vadd.f32 %v3317, %v3322
    %v3324 = vld [vmem:[%s492] sm:$0xff]
    %v3325 = vmul.f32 %v3299, %v3324
    %3326 = vadd.xlane.f32.xlu0 %v3325
    %v3327 = vpop.xlane.xlu0 %3326
    %v3328 = vmul.f32 %v3327, %v3324
    %v3329 = vadd.f32 %v3323, %v3328
    %v3330 = vld [vmem:[%s499] sm:$0xff]
    %v3331 = vmul.f32 %v3299, %v3330
    %3332 = vadd.xlane.f32.xlu0 %v3331
    %v3333 = vpop.xlane.xlu0 %3332
    %v3334 = vmul.f32 %v3333, %v3330
    %v3335 = vadd.f32 %v3329, %v3334
    %v3336 = vld [vmem:[%s506] sm:$0xff]
    %v3337 = vmul.f32 %v3299, %v3336
    %3338 = vadd.xlane.f32.xlu0 %v3337
    %v3339 = vpop.xlane.xlu0 %3338
    %v3340 = vmul.f32 %v3339, %v3336
    %v3341 = vadd.f32 %v3335, %v3340
    %v3342 = vld [vmem:[%s513] sm:$0xff]
    %v3343 = vmul.f32 %v3299, %v3342
    %3344 = vadd.xlane.f32.xlu0 %v3343
    %v3345 = vpop.xlane.xlu0 %3344
    %v3346 = vmul.f32 %v3345, %v3342
    %v3347 = vadd.f32 %v3341, %v3346
    %v3348 = vld [vmem:[%s3] sm:$0xff]
    %v3349 = vld [vmem:[%s3 + $0x8] sm:$0xff]
    %v3350 = vld [vmem:[%s3 + $0x10] sm:$0xff]
    %v3351 = vld [vmem:[%s3 + $0x18] sm:$0xff]
    %v3352 = vld [vmem:[%s3 + $0x20] sm:$0xff]
    %v3353 = vld [vmem:[%s3 + $0x28] sm:$0xff]
    %v3354 = vld [vmem:[%s3 + $0x30] sm:$0xff]
    %v3355 = vld [vmem:[%s3 + $0x38] sm:$0xff]
    %v3356 = vld [vmem:[%s3 + $0x40] sm:$0xff]
    %v3357 = vld [vmem:[%s3 + $0x48] sm:$0xff]
    %v3358 = vld [vmem:[%s3 + $0x50] sm:$0xff]
    %v3359 = vld [vmem:[%s3 + $0x58] sm:$0xff]
    %v3360 = vld [vmem:[%s3 + $0x60] sm:$0xff]
    %v3361 = vld [vmem:[%s3 + $0x68] sm:$0xff]
    %v3362 = vld [vmem:[%s3 + $0x70] sm:$0xff]
    %v3363 = vld [vmem:[%s3 + $0x78] sm:$0xff]
    %v3364 = vld [vmem:[%s3 + $0x80] sm:$0xff]
    %v3365 = vld [vmem:[%s3 + $0x88] sm:$0xff]
    %v3366 = vld [vmem:[%s3 + $0x90] sm:$0xff]
    %v3367 = vld [vmem:[%s3 + $0x98] sm:$0xff]
    %v3368 = vld [vmem:[%s3 + $0xa0] sm:$0xff]
    %v3369 = vld [vmem:[%s3 + $0xa8] sm:$0xff]
    %v3370 = vld [vmem:[%s3 + $0xb0] sm:$0xff]
    %v3371 = vld [vmem:[%s3 + $0xb8] sm:$0xff]
    %v3372 = vld [vmem:[%s3 + $0xc0] sm:$0xff]
    %v3373 = vld [vmem:[%s3 + $0xc8] sm:$0xff]
    %v3374 = vld [vmem:[%s3 + $0xd0] sm:$0xff]
    %v3375 = vld [vmem:[%s3 + $0xd8] sm:$0xff]
    %v3376 = vld [vmem:[%s3 + $0xe0] sm:$0xff]
    %v3377 = vld [vmem:[%s3 + $0xe8] sm:$0xff]
    %v3378 = vld [vmem:[%s3 + $0xf0] sm:$0xff]
    %v3379 = vld [vmem:[%s3 + $0xf8] sm:$0xff]
    %v3380 = vld [vmem:[%s3 + $0x100] sm:$0xff]
    %v3381 = vld [vmem:[%s3 + $0x108] sm:$0xff]
    %v3382 = vld [vmem:[%s3 + $0x110] sm:$0xff]
    %v3383 = vld [vmem:[%s3 + $0x118] sm:$0xff]
    %v3384 = vld [vmem:[%s3 + $0x120] sm:$0xff]
    %v3385 = vld [vmem:[%s3 + $0x128] sm:$0xff]
    %v3386 = vld [vmem:[%s3 + $0x130] sm:$0xff]
    %v3387 = vld [vmem:[%s3 + $0x138] sm:$0xff]
    %v3388 = vld [vmem:[%s3 + $0x140] sm:$0xff]
    %v3389 = vld [vmem:[%s3 + $0x148] sm:$0xff]
    %v3390 = vld [vmem:[%s3 + $0x150] sm:$0xff]
    %v3391 = vld [vmem:[%s3 + $0x158] sm:$0xff]
    %v3392 = vld [vmem:[%s3 + $0x160] sm:$0xff]
    %v3393 = vld [vmem:[%s3 + $0x168] sm:$0xff]
    %v3394 = vld [vmem:[%s3 + $0x170] sm:$0xff]
    %v3395 = vld [vmem:[%s3 + $0x178] sm:$0xff]
    %v3396 = vld [vmem:[%s3 + $0x180] sm:$0xff]
    %v3397 = vld [vmem:[%s3 + $0x188] sm:$0xff]
    %v3398 = vld [vmem:[%s3 + $0x190] sm:$0xff]
    %v3399 = vld [vmem:[%s3 + $0x198] sm:$0xff]
    %v3400 = vld [vmem:[%s3 + $0x1a0] sm:$0xff]
    %v3401 = vld [vmem:[%s3 + $0x1a8] sm:$0xff]
    %v3402 = vld [vmem:[%s3 + $0x1b0] sm:$0xff]
    %v3403 = vld [vmem:[%s3 + $0x1b8] sm:$0xff]
    %v3404 = vld [vmem:[%s3 + $0x1c0] sm:$0xff]
    %v3405 = vld [vmem:[%s3 + $0x1c8] sm:$0xff]
    %v3406 = vld [vmem:[%s3 + $0x1d0] sm:$0xff]
    %v3407 = vld [vmem:[%s3 + $0x1d8] sm:$0xff]
    %v3408 = vld [vmem:[%s3 + $0x1e0] sm:$0xff]
    %v3409 = vld [vmem:[%s3 + $0x1e8] sm:$0xff]
    %v3410 = vld [vmem:[%s3 + $0x1f0] sm:$0xff]
    %v3411 = vld [vmem:[%s3 + $0x1f8] sm:$0xff]
    %v3412 = vld [vmem:[%s3 + $0x200] sm:$0xff]
    %v3413 = vld [vmem:[%s3 + $0x208] sm:$0xff]
    %v3414 = vld [vmem:[%s3 + $0x210] sm:$0xff]
    %v3415 = vld [vmem:[%s3 + $0x218] sm:$0xff]
    %v3416 = vld [vmem:[%s3 + $0x220] sm:$0xff]
    %v3417 = vld [vmem:[%s3 + $0x228] sm:$0xff]
    %v3418 = vld [vmem:[%s3 + $0x230] sm:$0xff]
    %v3419 = vld [vmem:[%s3 + $0x238] sm:$0xff]
    %v3420 = vld [vmem:[%s3 + $0x240] sm:$0xff]
    %v3421 = vld [vmem:[%s3 + $0x248] sm:$0xff]
    %v3422 = vld [vmem:[%s3 + $0x250] sm:$0xff]
    %v3423 = vld [vmem:[%s3 + $0x258] sm:$0xff]
    %v3424 = vld [vmem:[%s3 + $0x260] sm:$0xff]
    %v3425 = vld [vmem:[%s3 + $0x268] sm:$0xff]
    %v3426 = vld [vmem:[%s3 + $0x270] sm:$0xff]
    %v3427 = vld [vmem:[%s3 + $0x278] sm:$0xff]
    %v3428 = vld [vmem:[%s3 + $0x280] sm:$0xff]
    %v3429 = vld [vmem:[%s3 + $0x288] sm:$0xff]
    %v3430 = vld [vmem:[%s3 + $0x290] sm:$0xff]
    %v3431 = vld [vmem:[%s3 + $0x298] sm:$0xff]
    %v3432 = vld [vmem:[%s3 + $0x2a0] sm:$0xff]
    %v3433 = vld [vmem:[%s3 + $0x2a8] sm:$0xff]
    %v3434 = vld [vmem:[%s3 + $0x2b0] sm:$0xff]
    %v3435 = vld [vmem:[%s3 + $0x2b8] sm:$0xff]
    %v3436 = vld [vmem:[%s3 + $0x2c0] sm:$0xff]
    %v3437 = vld [vmem:[%s3 + $0x2c8] sm:$0xff]
    %v3438 = vld [vmem:[%s3 + $0x2d0] sm:$0xff]
    %v3439 = vld [vmem:[%s3 + $0x2d8] sm:$0xff]
    %v3440 = vld [vmem:[%s3 + $0x2e0] sm:$0xff]
    %v3441 = vld [vmem:[%s3 + $0x2e8] sm:$0xff]
    %v3442 = vld [vmem:[%s3 + $0x2f0] sm:$0xff]
    %v3443 = vld [vmem:[%s3 + $0x2f8] sm:$0xff]
    %v3444 = vld [vmem:[%s3 + $0x300] sm:$0xff]
    %v3445 = vld [vmem:[%s3 + $0x308] sm:$0xff]
    %v3446 = vld [vmem:[%s3 + $0x310] sm:$0xff]
    %v3447 = vld [vmem:[%s3 + $0x318] sm:$0xff]
    %v3448 = vld [vmem:[%s3 + $0x320] sm:$0xff]
    %v3449 = vld [vmem:[%s3 + $0x328] sm:$0xff]
    %v3450 = vld [vmem:[%s3 + $0x330] sm:$0xff]
    %v3451 = vld [vmem:[%s3 + $0x338] sm:$0xff]
    %v3452 = vld [vmem:[%s3 + $0x340] sm:$0xff]
    %v3453 = vld [vmem:[%s3 + $0x348] sm:$0xff]
    %v3454 = vld [vmem:[%s3 + $0x350] sm:$0xff]
    %v3455 = vld [vmem:[%s3 + $0x358] sm:$0xff]
    %v3456 = vld [vmem:[%s3 + $0x360] sm:$0xff]
    %v3457 = vld [vmem:[%s3 + $0x368] sm:$0xff]
    %v3458 = vld [vmem:[%s3 + $0x370] sm:$0xff]
    %v3459 = vld [vmem:[%s3 + $0x378] sm:$0xff]
    %v3460 = vld [vmem:[%s3 + $0x380] sm:$0xff]
    %v3461 = vld [vmem:[%s3 + $0x388] sm:$0xff]
    %v3462 = vld [vmem:[%s3 + $0x390] sm:$0xff]
    %v3463 = vld [vmem:[%s3 + $0x398] sm:$0xff]
    %v3464 = vld [vmem:[%s3 + $0x3a0] sm:$0xff]
    %v3465 = vld [vmem:[%s3 + $0x3a8] sm:$0xff]
    %v3466 = vld [vmem:[%s3 + $0x3b0] sm:$0xff]
    %v3467 = vld [vmem:[%s3 + $0x3b8] sm:$0xff]
    %v3468 = vld [vmem:[%s3 + $0x3c0] sm:$0xff]
    %v3469 = vld [vmem:[%s3 + $0x3c8] sm:$0xff]
    %v3470 = vld [vmem:[%s3 + $0x3d0] sm:$0xff]
    %v3471 = vld [vmem:[%s3 + $0x3d8] sm:$0xff]
    %v3472 = vld [vmem:[%s3 + $0x3e0] sm:$0xff]
    %v3473 = vld [vmem:[%s3 + $0x3e8] sm:$0xff]
    %v3474 = vld [vmem:[%s3 + $0x3f0] sm:$0xff]
    %v3475 = vld [vmem:[%s3 + $0x3f8] sm:$0xff]
    %3476 = vmatprep.subr.mxu0 %v3413
    %3477 = vmatpush1.msra.mxu0 %v3412
    %3478 = vmatprep.subr.mxu0 %v3417
    %3479 = vmatpush1.msra.mxu0 %v3416
    %3480 = vmatprep.subr.mxu0 %v3421
    %3481 = vmatpush1.msra.mxu0 %v3420
    %3482 = vmatprep.subr.mxu0 %v3425
    %3483 = vmatpush1.msra.mxu0 %v3424
    %3484 = vmatprep.subr.mxu0 %v3429
    %3485 = vmatpush1.msra.mxu0 %v3428
    %3486 = vmatprep.subr.mxu0 %v3433
    %3487 = vmatpush1.msra.mxu0 %v3432
    %3488 = vmatprep.subr.mxu0 %v3437
    %3489 = vmatpush1.msra.mxu0 %v3436
    %3490 = vmatprep.subr.mxu0 %v3441
    %3491 = vmatpush1.msra.mxu0 %v3440
    %3492 = vmatprep.subr.mxu0 %v3445
    %3493 = vmatpush1.msra.mxu0 %v3444
    %3494 = vmatprep.subr.mxu0 %v3449
    %3495 = vmatpush1.msra.mxu0 %v3448
    %3496 = vmatprep.subr.mxu0 %v3453
    %3497 = vmatpush1.msra.mxu0 %v3452
    %3498 = vmatprep.subr.mxu0 %v3457
    %3499 = vmatpush1.msra.mxu0 %v3456
    %3500 = vmatprep.subr.mxu0 %v3461
    %3501 = vmatpush1.msra.mxu0 %v3460
    %3502 = vmatprep.subr.mxu0 %v3465
    %3503 = vmatpush1.msra.mxu0 %v3464
    %3504 = vmatprep.subr.mxu0 %v3469
    %3505 = vmatpush1.msra.mxu0 %v3468
    %3506 = vmatprep.subr.mxu0 %v3473
    %3507 = vmatpush1.msra.mxu0 %v3472
    %3508 = vmatprep.subr.mxu0 0.0
    %3509 = vmatpush1.msra.mxu0 0.0
    %3510 = vmatprep.subr.mxu0 0.0
    %3511 = vmatpush1.msra.mxu0 0.0
    %3512 = vmatprep.subr.mxu0 0.0
    %3513 = vmatpush1.msra.mxu0 0.0
    %3514 = vmatprep.subr.mxu0 0.0
    %3515 = vmatpush1.msra.mxu0 0.0
    %3516 = vmatprep.subr.mxu0 0.0
    %3517 = vmatpush1.msra.mxu0 0.0
    %3518 = vmatprep.subr.mxu0 0.0
    %3519 = vmatpush1.msra.mxu0 0.0
    %3520 = vmatprep.subr.mxu0 0.0
    %3521 = vmatpush1.msra.mxu0 0.0
    %3522 = vmatprep.subr.mxu0 0.0
    %3523 = vmatpush1.msra.mxu0 0.0
    %3524 = vmatprep.subr.mxu0 0.0
    %3525 = vmatpush1.msra.mxu0 0.0
    %3526 = vmatprep.subr.mxu0 0.0
    %3527 = vmatpush1.msra.mxu0 0.0
    %3528 = vmatprep.subr.mxu0 0.0
    %3529 = vmatpush1.msra.mxu0 0.0
    %3530 = vmatprep.subr.mxu0 0.0
    %3531 = vmatpush1.msra.mxu0 0.0
    %3532 = vmatprep.subr.mxu0 0.0
    %3533 = vmatpush1.msra.mxu0 0.0
    %3534 = vmatprep.subr.mxu0 0.0
    %3535 = vmatpush1.msra.mxu0 0.0
    %3536 = vmatprep.subr.mxu0 0.0
    %3537 = vmatpush1.msra.mxu0 0.0
    %3538 = vmatprep.subr.mxu0 0.0
    %3539 = vmatpush1.msra.mxu0 0.0
    %3540 = vmatprep.mubr.f32.mxu0 0.0
    %3541 = vmatmul.mubr.f32.gmra.mrb[0].mxu0 %v3299
    %v3542 = vpop.f32.mrb[0].mxu0
    %v3543 = vadd.f32 0.0, %v3542
    %v3544 = vpop.f32.mrb[0].mxu0
    %v3545 = vadd.f32 0.0, %v3544
    %3546 = vdwg.mxu0
    %3547 = vmatprep.subr.mxu0 %v3415
    %3548 = vmatpush1.msra.mxu0 %v3414
    %3549 = vmatprep.subr.mxu0 %v3419
    %3550 = vmatpush1.msra.mxu0 %v3418
    %3551 = vmatprep.subr.mxu0 %v3423
    %3552 = vmatpush1.msra.mxu0 %v3422
    %3553 = vmatprep.subr.mxu0 %v3427
    %3554 = vmatpush1.msra.mxu0 %v3426
    %3555 = vmatprep.subr.mxu0 %v3431
    %3556 = vmatpush1.msra.mxu0 %v3430
    %3557 = vmatprep.subr.mxu0 %v3435
    %3558 = vmatpush1.msra.mxu0 %v3434
    %3559 = vmatprep.subr.mxu0 %v3439
    %3560 = vmatpush1.msra.mxu0 %v3438
    %3561 = vmatprep.subr.mxu0 %v3443
    %3562 = vmatpush1.msra.mxu0 %v3442
    %3563 = vmatprep.subr.mxu0 %v3447
    %3564 = vmatpush1.msra.mxu0 %v3446
    %3565 = vmatprep.subr.mxu0 %v3451
    %3566 = vmatpush1.msra.mxu0 %v3450
    %3567 = vmatprep.subr.mxu0 %v3455
    %3568 = vmatpush1.msra.mxu0 %v3454
    %3569 = vmatprep.subr.mxu0 %v3459
    %3570 = vmatpush1.msra.mxu0 %v3458
    %3571 = vmatprep.subr.mxu0 %v3463
    %3572 = vmatpush1.msra.mxu0 %v3462
    %3573 = vmatprep.subr.mxu0 %v3467
    %3574 = vmatpush1.msra.mxu0 %v3466
    %3575 = vmatprep.subr.mxu0 %v3471
    %3576 = vmatpush1.msra.mxu0 %v3470
    %3577 = vmatprep.subr.mxu0 %v3475
    %3578 = vmatpush1.msra.mxu0 %v3474
    %3579 = vmatprep.subr.mxu0 0.0
    %3580 = vmatpush1.msra.mxu0 0.0
    %3581 = vmatprep.subr.mxu0 0.0
    %3582 = vmatpush1.msra.mxu0 0.0
    %3583 = vmatprep.subr.mxu0 0.0
    %3584 = vmatpush1.msra.mxu0 0.0
    %3585 = vmatprep.subr.mxu0 0.0
    %3586 = vmatpush1.msra.mxu0 0.0
    %3587 = vmatprep.subr.mxu0 0.0
    %3588 = vmatpush1.msra.mxu0 0.0
    %3589 = vmatprep.subr.mxu0 0.0
    %3590 = vmatpush1.msra.mxu0 0.0
    %3591 = vmatprep.subr.mxu0 0.0
    %3592 = vmatpush1.msra.mxu0 0.0
    %3593 = vmatprep.subr.mxu0 0.0
    %3594 = vmatpush1.msra.mxu0 0.0
    %3595 = vmatprep.subr.mxu0 0.0
    %3596 = vmatpush1.msra.mxu0 0.0
    %3597 = vmatprep.subr.mxu0 0.0
    %3598 = vmatpush1.msra.mxu0 0.0
    %3599 = vmatprep.subr.mxu0 0.0
    %3600 = vmatpush1.msra.mxu0 0.0
    %3601 = vmatprep.subr.mxu0 0.0
    %3602 = vmatpush1.msra.mxu0 0.0
    %3603 = vmatprep.subr.mxu0 0.0
    %3604 = vmatpush1.msra.mxu0 0.0
    %3605 = vmatprep.subr.mxu0 0.0
    %3606 = vmatpush1.msra.mxu0 0.0
    %3607 = vmatprep.subr.mxu0 0.0
    %3608 = vmatpush1.msra.mxu0 0.0
    %3609 = vmatprep.subr.mxu0 0.0
    %3610 = vmatpush1.msra.mxu0 0.0
    %3611 = vmatprep.mubr.f32.mxu0 0.0
    %3612 = vmatmul.mubr.f32.gmra.mrb[0].mxu0 %v3299
    %v3613 = vpop.f32.mrb[0].mxu0
    %v3614 = vadd.f32 0.0, %v3613
    %v3615 = vpop.f32.mrb[0].mxu0
    %v3616 = vadd.f32 0.0, %v3615
    %3617 = vdwg.mxu0
    %3618 = vmatprep.subr.mxu0 %v3349
    %3619 = vmatpush1.msra.mxu0 %v3348
    %3620 = vmatprep.subr.mxu0 %v3353
    %3621 = vmatpush1.msra.mxu0 %v3352
    %3622 = vmatprep.subr.mxu0 %v3357
    %3623 = vmatpush1.msra.mxu0 %v3356
    %3624 = vmatprep.subr.mxu0 %v3361
    %3625 = vmatpush1.msra.mxu0 %v3360
    %3626 = vmatprep.subr.mxu0 %v3365
    %3627 = vmatpush1.msra.mxu0 %v3364
    %3628 = vmatprep.subr.mxu0 %v3369
    %3629 = vmatpush1.msra.mxu0 %v3368
    %3630 = vmatprep.subr.mxu0 %v3373
    %3631 = vmatpush1.msra.mxu0 %v3372
    %3632 = vmatprep.subr.mxu0 %v3377
    %3633 = vmatpush1.msra.mxu0 %v3376
    %3634 = vmatprep.subr.mxu0 %v3381
    %3635 = vmatpush1.msra.mxu0 %v3380
    %3636 = vmatprep.subr.mxu0 %v3385
    %3637 = vmatpush1.msra.mxu0 %v3384
    %3638 = vmatprep.subr.mxu0 %v3389
    %3639 = vmatpush1.msra.mxu0 %v3388
    %3640 = vmatprep.subr.mxu0 %v3393
    %3641 = vmatpush1.msra.mxu0 %v3392
    %3642 = vmatprep.subr.mxu0 %v3397
    %3643 = vmatpush1.msra.mxu0 %v3396
    %3644 = vmatprep.subr.mxu0 %v3401
    %3645 = vmatpush1.msra.mxu0 %v3400
    %3646 = vmatprep.subr.mxu0 %v3405
    %3647 = vmatpush1.msra.mxu0 %v3404
    %3648 = vmatprep.subr.mxu0 %v3409
    %3649 = vmatpush1.msra.mxu0 %v3408
    %3650 = vmatprep.subr.mxu0 0.0
    %3651 = vmatpush1.msra.mxu0 0.0
    %3652 = vmatprep.subr.mxu0 0.0
    %3653 = vmatpush1.msra.mxu0 0.0
    %3654 = vmatprep.subr.mxu0 0.0
    %3655 = vmatpush1.msra.mxu0 0.0
    %3656 = vmatprep.subr.mxu0 0.0
    %3657 = vmatpush1.msra.mxu0 0.0
    %3658 = vmatprep.subr.mxu0 0.0
    %3659 = vmatpush1.msra.mxu0 0.0
    %3660 = vmatprep.subr.mxu0 0.0
    %3661 = vmatpush1.msra.mxu0 0.0
    %3662 = vmatprep.subr.mxu0 0.0
    %3663 = vmatpush1.msra.mxu0 0.0
    %3664 = vmatprep.subr.mxu0 0.0
    %3665 = vmatpush1.msra.mxu0 0.0
    %3666 = vmatprep.subr.mxu0 0.0
    %3667 = vmatpush1.msra.mxu0 0.0
    %3668 = vmatprep.subr.mxu0 0.0
    %3669 = vmatpush1.msra.mxu0 0.0
    %3670 = vmatprep.subr.mxu0 0.0
    %3671 = vmatpush1.msra.mxu0 0.0
    %3672 = vmatprep.subr.mxu0 0.0
    %3673 = vmatpush1.msra.mxu0 0.0
    %3674 = vmatprep.subr.mxu0 0.0
    %3675 = vmatpush1.msra.mxu0 0.0
    %3676 = vmatprep.subr.mxu0 0.0
    %3677 = vmatpush1.msra.mxu0 0.0
    %3678 = vmatprep.subr.mxu0 0.0
    %3679 = vmatpush1.msra.mxu0 0.0
    %3680 = vmatprep.subr.mxu0 0.0
    %3681 = vmatpush1.msra.mxu0 0.0
    %3682 = vmatprep.mubr.f32.mxu0 0.0
    %3683 = vmatmul.mubr.f32.gmra.mrb[0].mxu0 %v3347
    %v3684 = vpop.f32.mrb[0].mxu0
    %v3685 = vadd.f32 %v3543, %v3684
    %v3686 = vpop.f32.mrb[0].mxu0
    %v3687 = vadd.f32 %v3545, %v3686
    %3688 = vdwg.mxu0
    %3689 = vmatprep.subr.mxu0 %v3351
    %3690 = vmatpush1.msra.mxu0 %v3350
    %3691 = vmatprep.subr.mxu0 %v3355
    %3692 = vmatpush1.msra.mxu0 %v3354
    %3693 = vmatprep.subr.mxu0 %v3359
    %3694 = vmatpush1.msra.mxu0 %v3358
    %3695 = vmatprep.subr.mxu0 %v3363
    %3696 = vmatpush1.msra.mxu0 %v3362
    %3697 = vmatprep.subr.mxu0 %v3367
    %3698 = vmatpush1.msra.mxu0 %v3366
    %3699 = vmatprep.subr.mxu0 %v3371
    %3700 = vmatpush1.msra.mxu0 %v3370
    %3701 = vmatprep.subr.mxu0 %v3375
    %3702 = vmatpush1.msra.mxu0 %v3374
    %3703 = vmatprep.subr.mxu0 %v3379
    %3704 = vmatpush1.msra.mxu0 %v3378
    %3705 = vmatprep.subr.mxu0 %v3383
    %3706 = vmatpush1.msra.mxu0 %v3382
    %3707 = vmatprep.subr.mxu0 %v3387
    %3708 = vmatpush1.msra.mxu0 %v3386
    %3709 = vmatprep.subr.mxu0 %v3391
    %3710 = vmatpush1.msra.mxu0 %v3390
    %3711 = vmatprep.subr.mxu0 %v3395
    %3712 = vmatpush1.msra.mxu0 %v3394
    %3713 = vmatprep.subr.mxu0 %v3399
    %3714 = vmatpush1.msra.mxu0 %v3398
    %3715 = vmatprep.subr.mxu0 %v3403
    %3716 = vmatpush1.msra.mxu0 %v3402
    %3717 = vmatprep.subr.mxu0 %v3407
    %3718 = vmatpush1.msra.mxu0 %v3406
    %3719 = vmatprep.subr.mxu0 %v3411
    %3720 = vmatpush1.msra.mxu0 %v3410
    %3721 = vmatprep.subr.mxu0 0.0
    %3722 = vmatpush1.msra.mxu0 0.0
    %3723 = vmatprep.subr.mxu0 0.0
    %3724 = vmatpush1.msra.mxu0 0.0
    %3725 = vmatprep.subr.mxu0 0.0
    %3726 = vmatpush1.msra.mxu0 0.0
    %3727 = vmatprep.subr.mxu0 0.0
    %3728 = vmatpush1.msra.mxu0 0.0
    %3729 = vmatprep.subr.mxu0 0.0
    %3730 = vmatpush1.msra.mxu0 0.0
    %3731 = vmatprep.subr.mxu0 0.0
    %3732 = vmatpush1.msra.mxu0 0.0
    %3733 = vmatprep.subr.mxu0 0.0
    %3734 = vmatpush1.msra.mxu0 0.0
    %3735 = vmatprep.subr.mxu0 0.0
    %3736 = vmatpush1.msra.mxu0 0.0
    %3737 = vmatprep.subr.mxu0 0.0
    %3738 = vmatpush1.msra.mxu0 0.0
    %3739 = vmatprep.subr.mxu0 0.0
    %3740 = vmatpush1.msra.mxu0 0.0
    %3741 = vmatprep.subr.mxu0 0.0
    %3742 = vmatpush1.msra.mxu0 0.0
    %3743 = vmatprep.subr.mxu0 0.0
    %3744 = vmatpush1.msra.mxu0 0.0
    %3745 = vmatprep.subr.mxu0 0.0
    %3746 = vmatpush1.msra.mxu0 0.0
    %3747 = vmatprep.subr.mxu0 0.0
    %3748 = vmatpush1.msra.mxu0 0.0
    %3749 = vmatprep.subr.mxu0 0.0
    %3750 = vmatpush1.msra.mxu0 0.0
    %3751 = vmatprep.subr.mxu0 0.0
    %3752 = vmatpush1.msra.mxu0 0.0
    %3753 = vmatprep.mubr.f32.mxu0 0.0
    %3754 = vmatmul.mubr.f32.gmra.mrb[0].mxu0 %v3347
    %v3755 = vpop.f32.mrb[0].mxu0
    %v3756 = vadd.f32 %v3614, %v3755
    %v3757 = vpop.f32.mrb[0].mxu0
    %v3758 = vadd.f32 %v3616, %v3757
    %3759 = vdwg.mxu0
    %v3760 = vadd.f32 %v3685, %v2986
    %v3761 = vadd.f32 %v3687, %v2988
    %v3762 = vadd.f32 %v3756, %v3057
    %v3763 = vadd.f32 %v3758, %v3059
    %v3764 = vld [vmem:[%s4] sm:$0xff]
    %v3765 = vld [vmem:[%s4 + $0x8] sm:$0xff]
    %v3766 = vld [vmem:[%s4 + $0x10] sm:$0xff]
    %v3767 = vld [vmem:[%s4 + $0x18] sm:$0xff]
    %v3768 = vadd.f32 %v3760, %v3764
    %v3769 = vadd.f32 %v3761, %v3765
    %v3770 = vadd.f32 %v3762, %v3766
    %v3771 = vadd.f32 %v3763, %v3767
    %v3772 = vxor.u32 %v3768, 2147483648
    %v3773 = vmul.f32 %v3772, 1.442695
    %v3774 = vpow.pop %v3773
    %v3775 = vadd.f32 %v3774, 1.0
    %v3776 = vrcp.pop %v3775
    %v3777 = vmul.f32 1.0, %v3776
    %v3778 = vxor.u32 %v3769, 2147483648
    %v3779 = vmul.f32 %v3778, 1.442695
    %v3780 = vpow.pop %v3779
    %v3781 = vadd.f32 %v3780, 1.0
    %v3782 = vrcp.pop %v3781
    %v3783 = vmul.f32 1.0, %v3782
    %v3784 = vtanh.pop %v3770
    %v3785 = vxor.u32 %v3771, 2147483648
    %v3786 = vmul.f32 %v3785, 1.442695
    %v3787 = vpow.pop %v3786
    %v3788 = vadd.f32 %v3787, 1.0
    %v3789 = vrcp.pop %v3788
    %v3790 = vmul.f32 1.0, %v3789
    %v3791 = vmul.f32 %v3783, %v2850
    %v3792 = vmul.f32 %v3777, %v3784
    %v3793 = vadd.f32 %v3791, %v3792
    %v3794 = vtanh.pop %v3793
    %v3795 = vmul.f32 %v3790, %v3794
    %s3796 = scalar_lea.vmem [#allocation2], 24
    %3797 = vst [vmem:[%s3796] sm:$0xff] %v3795
    %v3798 = vld [vmem:[%s3 + $0x400] sm:$0xff]
    %v3799 = vld [vmem:[%s3 + $0x408] sm:$0xff]
    %v3800 = vld [vmem:[%s3 + $0x410] sm:$0xff]
    %v3801 = vld [vmem:[%s3 + $0x418] sm:$0xff]
    %v3802 = vld [vmem:[%s3 + $0x420] sm:$0xff]
    %v3803 = vld [vmem:[%s3 + $0x428] sm:$0xff]
    %v3804 = vld [vmem:[%s3 + $0x430] sm:$0xff]
    %v3805 = vld [vmem:[%s3 + $0x438] sm:$0xff]
    %v3806 = vld [vmem:[%s3 + $0x440] sm:$0xff]
    %v3807 = vld [vmem:[%s3 + $0x448] sm:$0xff]
    %v3808 = vld [vmem:[%s3 + $0x450] sm:$0xff]
    %v3809 = vld [vmem:[%s3 + $0x458] sm:$0xff]
    %v3810 = vld [vmem:[%s3 + $0x460] sm:$0xff]
    %v3811 = vld [vmem:[%s3 + $0x468] sm:$0xff]
    %v3812 = vld [vmem:[%s3 + $0x470] sm:$0xff]
    %v3813 = vld [vmem:[%s3 + $0x478] sm:$0xff]
    %v3814 = vld [vmem:[%s3 + $0x480] sm:$0xff]
    %v3815 = vld [vmem:[%s3 + $0x488] sm:$0xff]
    %v3816 = vld [vmem:[%s3 + $0x490] sm:$0xff]
    %v3817 = vld [vmem:[%s3 + $0x498] sm:$0xff]
    %v3818 = vld [vmem:[%s3 + $0x4a0] sm:$0xff]
    %v3819 = vld [vmem:[%s3 + $0x4a8] sm:$0xff]
    %v3820 = vld [vmem:[%s3 + $0x4b0] sm:$0xff]
    %v3821 = vld [vmem:[%s3 + $0x4b8] sm:$0xff]
    %v3822 = vld [vmem:[%s3 + $0x4c0] sm:$0xff]
    %v3823 = vld [vmem:[%s3 + $0x4c8] sm:$0xff]
    %v3824 = vld [vmem:[%s3 + $0x4d0] sm:$0xff]
    %v3825 = vld [vmem:[%s3 + $0x4d8] sm:$0xff]
    %v3826 = vld [vmem:[%s3 + $0x4e0] sm:$0xff]
    %v3827 = vld [vmem:[%s3 + $0x4e8] sm:$0xff]
    %v3828 = vld [vmem:[%s3 + $0x4f0] sm:$0xff]
    %v3829 = vld [vmem:[%s3 + $0x4f8] sm:$0xff]
    %v3830 = vld [vmem:[%s3 + $0x500] sm:$0xff]
    %v3831 = vld [vmem:[%s3 + $0x508] sm:$0xff]
    %v3832 = vld [vmem:[%s3 + $0x510] sm:$0xff]
    %v3833 = vld [vmem:[%s3 + $0x518] sm:$0xff]
    %v3834 = vld [vmem:[%s3 + $0x520] sm:$0xff]
    %v3835 = vld [vmem:[%s3 + $0x528] sm:$0xff]
    %v3836 = vld [vmem:[%s3 + $0x530] sm:$0xff]
    %v3837 = vld [vmem:[%s3 + $0x538] sm:$0xff]
    %v3838 = vld [vmem:[%s3 + $0x540] sm:$0xff]
    %v3839 = vld [vmem:[%s3 + $0x548] sm:$0xff]
    %v3840 = vld [vmem:[%s3 + $0x550] sm:$0xff]
    %v3841 = vld [vmem:[%s3 + $0x558] sm:$0xff]
    %v3842 = vld [vmem:[%s3 + $0x560] sm:$0xff]
    %v3843 = vld [vmem:[%s3 + $0x568] sm:$0xff]
    %v3844 = vld [vmem:[%s3 + $0x570] sm:$0xff]
    %v3845 = vld [vmem:[%s3 + $0x578] sm:$0xff]
    %v3846 = vld [vmem:[%s3 + $0x580] sm:$0xff]
    %v3847 = vld [vmem:[%s3 + $0x588] sm:$0xff]
    %v3848 = vld [vmem:[%s3 + $0x590] sm:$0xff]
    %v3849 = vld [vmem:[%s3 + $0x598] sm:$0xff]
    %v3850 = vld [vmem:[%s3 + $0x5a0] sm:$0xff]
    %v3851 = vld [vmem:[%s3 + $0x5a8] sm:$0xff]
    %v3852 = vld [vmem:[%s3 + $0x5b0] sm:$0xff]
    %v3853 = vld [vmem:[%s3 + $0x5b8] sm:$0xff]
    %v3854 = vld [vmem:[%s3 + $0x5c0] sm:$0xff]
    %v3855 = vld [vmem:[%s3 + $0x5c8] sm:$0xff]
    %v3856 = vld [vmem:[%s3 + $0x5d0] sm:$0xff]
    %v3857 = vld [vmem:[%s3 + $0x5d8] sm:$0xff]
    %v3858 = vld [vmem:[%s3 + $0x5e0] sm:$0xff]
    %v3859 = vld [vmem:[%s3 + $0x5e8] sm:$0xff]
    %v3860 = vld [vmem:[%s3 + $0x5f0] sm:$0xff]
    %v3861 = vld [vmem:[%s3 + $0x5f8] sm:$0xff]
    %3862 = vmatprep.subr.mxu0 %v3799
    %3863 = vmatpush1.msra.mxu0 %v3798
    %3864 = vmatprep.subr.mxu0 %v3803
    %3865 = vmatpush1.msra.mxu0 %v3802
    %3866 = vmatprep.subr.mxu0 %v3807
    %3867 = vmatpush1.msra.mxu0 %v3806
    %3868 = vmatprep.subr.mxu0 %v3811
    %3869 = vmatpush1.msra.mxu0 %v3810
    %3870 = vmatprep.subr.mxu0 %v3815
    %3871 = vmatpush1.msra.mxu0 %v3814
    %3872 = vmatprep.subr.mxu0 %v3819
    %3873 = vmatpush1.msra.mxu0 %v3818
    %3874 = vmatprep.subr.mxu0 %v3823
    %3875 = vmatpush1.msra.mxu0 %v3822
    %3876 = vmatprep.subr.mxu0 %v3827
    %3877 = vmatpush1.msra.mxu0 %v3826
    %3878 = vmatprep.subr.mxu0 %v3831
    %3879 = vmatpush1.msra.mxu0 %v3830
    %3880 = vmatprep.subr.mxu0 %v3835
    %3881 = vmatpush1.msra.mxu0 %v3834
    %3882 = vmatprep.subr.mxu0 %v3839
    %3883 = vmatpush1.msra.mxu0 %v3838
    %3884 = vmatprep.subr.mxu0 %v3843
    %3885 = vmatpush1.msra.mxu0 %v3842
    %3886 = vmatprep.subr.mxu0 %v3847
    %3887 = vmatpush1.msra.mxu0 %v3846
    %3888 = vmatprep.subr.mxu0 %v3851
    %3889 = vmatpush1.msra.mxu0 %v3850
    %3890 = vmatprep.subr.mxu0 %v3855
    %3891 = vmatpush1.msra.mxu0 %v3854
    %3892 = vmatprep.subr.mxu0 %v3859
    %3893 = vmatpush1.msra.mxu0 %v3858
    %3894 = vmatprep.subr.mxu0 0.0
    %3895 = vmatpush1.msra.mxu0 0.0
    %3896 = vmatprep.subr.mxu0 0.0
    %3897 = vmatpush1.msra.mxu0 0.0
    %3898 = vmatprep.subr.mxu0 0.0
    %3899 = vmatpush1.msra.mxu0 0.0
    %3900 = vmatprep.subr.mxu0 0.0
    %3901 = vmatpush1.msra.mxu0 0.0
    %3902 = vmatprep.subr.mxu0 0.0
    %3903 = vmatpush1.msra.mxu0 0.0
    %3904 = vmatprep.subr.mxu0 0.0
    %3905 = vmatpush1.msra.mxu0 0.0
    %3906 = vmatprep.subr.mxu0 0.0
    %3907 = vmatpush1.msra.mxu0 0.0
    %3908 = vmatprep.subr.mxu0 0.0
    %3909 = vmatpush1.msra.mxu0 0.0
    %3910 = vmatprep.subr.mxu0 0.0
    %3911 = vmatpush1.msra.mxu0 0.0
    %3912 = vmatprep.subr.mxu0 0.0
    %3913 = vmatpush1.msra.mxu0 0.0
    %3914 = vmatprep.subr.mxu0 0.0
    %3915 = vmatpush1.msra.mxu0 0.0
    %3916 = vmatprep.subr.mxu0 0.0
    %3917 = vmatpush1.msra.mxu0 0.0
    %3918 = vmatprep.subr.mxu0 0.0
    %3919 = vmatpush1.msra.mxu0 0.0
    %3920 = vmatprep.subr.mxu0 0.0
    %3921 = vmatpush1.msra.mxu0 0.0
    %3922 = vmatprep.subr.mxu0 0.0
    %3923 = vmatpush1.msra.mxu0 0.0
    %3924 = vmatprep.subr.mxu0 0.0
    %3925 = vmatpush1.msra.mxu0 0.0
    %3926 = vmatprep.mubr.f32.mxu0 0.0
    %3927 = vmatmul.mubr.f32.gmra.mrb[0].mxu0 %v3795
    %v3928 = vpop.f32.mrb[0].mxu0
    %v3929 = vadd.f32 0.0, %v3928
    %v3930 = vpop.f32.mrb[0].mxu0
    %v3931 = vadd.f32 0.0, %v3930
    %3932 = vdwg.mxu0
    %3933 = vmatprep.subr.mxu0 %v3801
    %3934 = vmatpush1.msra.mxu0 %v3800
    %3935 = vmatprep.subr.mxu0 %v3805
    %3936 = vmatpush1.msra.mxu0 %v3804
    %3937 = vmatprep.subr.mxu0 %v3809
    %3938 = vmatpush1.msra.mxu0 %v3808
    %3939 = vmatprep.subr.mxu0 %v3813
    %3940 = vmatpush1.msra.mxu0 %v3812
    %3941 = vmatprep.subr.mxu0 %v3817
    %3942 = vmatpush1.msra.mxu0 %v3816
    %3943 = vmatprep.subr.mxu0 %v3821
    %3944 = vmatpush1.msra.mxu0 %v3820
    %3945 = vmatprep.subr.mxu0 %v3825
    %3946 = vmatpush1.msra.mxu0 %v3824
    %3947 = vmatprep.subr.mxu0 %v3829
    %3948 = vmatpush1.msra.mxu0 %v3828
    %3949 = vmatprep.subr.mxu0 %v3833
    %3950 = vmatpush1.msra.mxu0 %v3832
    %3951 = vmatprep.subr.mxu0 %v3837
    %3952 = vmatpush1.msra.mxu0 %v3836
    %3953 = vmatprep.subr.mxu0 %v3841
    %3954 = vmatpush1.msra.mxu0 %v3840
    %3955 = vmatprep.subr.mxu0 %v3845
    %3956 = vmatpush1.msra.mxu0 %v3844
    %3957 = vmatprep.subr.mxu0 %v3849
    %3958 = vmatpush1.msra.mxu0 %v3848
    %3959 = vmatprep.subr.mxu0 %v3853
    %3960 = vmatpush1.msra.mxu0 %v3852
    %3961 = vmatprep.subr.mxu0 %v3857
    %3962 = vmatpush1.msra.mxu0 %v3856
    %3963 = vmatprep.subr.mxu0 %v3861
    %3964 = vmatpush1.msra.mxu0 %v3860
    %3965 = vmatprep.subr.mxu0 0.0
    %3966 = vmatpush1.msra.mxu0 0.0
    %3967 = vmatprep.subr.mxu0 0.0
    %3968 = vmatpush1.msra.mxu0 0.0
    %3969 = vmatprep.subr.mxu0 0.0
    %3970 = vmatpush1.msra.mxu0 0.0
    %3971 = vmatprep.subr.mxu0 0.0
    %3972 = vmatpush1.msra.mxu0 0.0
    %3973 = vmatprep.subr.mxu0 0.0
    %3974 = vmatpush1.msra.mxu0 0.0
    %3975 = vmatprep.subr.mxu0 0.0
    %3976 = vmatpush1.msra.mxu0 0.0
    %3977 = vmatprep.subr.mxu0 0.0
    %3978 = vmatpush1.msra.mxu0 0.0
    %3979 = vmatprep.subr.mxu0 0.0
    %3980 = vmatpush1.msra.mxu0 0.0
    %3981 = vmatprep.subr.mxu0 0.0
    %3982 = vmatpush1.msra.mxu0 0.0
    %3983 = vmatprep.subr.mxu0 0.0
    %3984 = vmatpush1.msra.mxu0 0.0
    %3985 = vmatprep.subr.mxu0 0.0
    %3986 = vmatpush1.msra.mxu0 0.0
    %3987 = vmatprep.subr.mxu0 0.0
    %3988 = vmatpush1.msra.mxu0 0.0
    %3989 = vmatprep.subr.mxu0 0.0
    %3990 = vmatpush1.msra.mxu0 0.0
    %3991 = vmatprep.subr.mxu0 0.0
    %3992 = vmatpush1.msra.mxu0 0.0
    %3993 = vmatprep.subr.mxu0 0.0
    %3994 = vmatpush1.msra.mxu0 0.0
    %3995 = vmatprep.subr.mxu0 0.0
    %3996 = vmatpush1.msra.mxu0 0.0
    %3997 = vmatprep.mubr.f32.mxu0 0.0
    %3998 = vmatmul.mubr.f32.gmra.mrb[0].mxu0 %v3795
    %v3999 = vpop.f32.mrb[0].mxu0
    %v4000 = vadd.f32 0.0, %v3999
    %v4001 = vpop.f32.mrb[0].mxu0
    %v4002 = vadd.f32 0.0, %v4001
    %4003 = vdwg.mxu0
    %s4004 = scalar_lea.vmem %s0, 128
    %v4005 = vld [vmem:[%s4004] sm:$0xff]
    %v4006 = vld [vmem:[%s4004 + $0x8] sm:$0xff]
    %v4007 = vld [vmem:[%s4004 + $0x10] sm:$0xff]
    %v4008 = vld [vmem:[%s4004 + $0x18] sm:$0xff]
    %v4009 = vld [vmem:[%s2] sm:$0xff]
    %v4010 = vld [vmem:[%s2 + $0x8] sm:$0xff]
    %v4011 = vld [vmem:[%s2 + $0x10] sm:$0xff]
    %v4012 = vld [vmem:[%s2 + $0x18] sm:$0xff]
    %v4013 = vld [vmem:[%s2 + $0x20] sm:$0xff]
    %v4014 = vld [vmem:[%s2 + $0x28] sm:$0xff]
    %v4015 = vld [vmem:[%s2 + $0x30] sm:$0xff]
    %v4016 = vld [vmem:[%s2 + $0x38] sm:$0xff]
    %v4017 = vld [vmem:[%s2 + $0x40] sm:$0xff]
    %v4018 = vld [vmem:[%s2 + $0x48] sm:$0xff]
    %v4019 = vld [vmem:[%s2 + $0x50] sm:$0xff]
    %v4020 = vld [vmem:[%s2 + $0x58] sm:$0xff]
    %v4021 = vld [vmem:[%s2 + $0x60] sm:$0xff]
    %v4022 = vld [vmem:[%s2 + $0x68] sm:$0xff]
    %v4023 = vld [vmem:[%s2 + $0x70] sm:$0xff]
    %v4024 = vld [vmem:[%s2 + $0x78] sm:$0xff]
    %v4025 = vld [vmem:[%s2 + $0x80] sm:$0xff]
    %v4026 = vld [vmem:[%s2 + $0x88] sm:$0xff]
    %v4027 = vld [vmem:[%s2 + $0x90] sm:$0xff]
    %v4028 = vld [vmem:[%s2 + $0x98] sm:$0xff]
    %v4029 = vld [vmem:[%s2 + $0xa0] sm:$0xff]
    %v4030 = vld [vmem:[%s2 + $0xa8] sm:$0xff]
    %v4031 = vld [vmem:[%s2 + $0xb0] sm:$0xff]
    %v4032 = vld [vmem:[%s2 + $0xb8] sm:$0xff]
    %v4033 = vld [vmem:[%s2 + $0xc0] sm:$0xff]
    %v4034 = vld [vmem:[%s2 + $0xc8] sm:$0xff]
    %v4035 = vld [vmem:[%s2 + $0xd0] sm:$0xff]
    %v4036 = vld [vmem:[%s2 + $0xd8] sm:$0xff]
    %v4037 = vld [vmem:[%s2 + $0xe0] sm:$0xff]
    %v4038 = vld [vmem:[%s2 + $0xe8] sm:$0xff]
    %v4039 = vld [vmem:[%s2 + $0xf0] sm:$0xff]
    %v4040 = vld [vmem:[%s2 + $0xf8] sm:$0xff]
    %v4041 = vld [vmem:[%s2 + $0x100] sm:$0xff]
    %v4042 = vld [vmem:[%s2 + $0x108] sm:$0xff]
    %v4043 = vld [vmem:[%s2 + $0x110] sm:$0xff]
    %v4044 = vld [vmem:[%s2 + $0x118] sm:$0xff]
    %v4045 = vld [vmem:[%s2 + $0x120] sm:$0xff]
    %v4046 = vld [vmem:[%s2 + $0x128] sm:$0xff]
    %v4047 = vld [vmem:[%s2 + $0x130] sm:$0xff]
    %v4048 = vld [vmem:[%s2 + $0x138] sm:$0xff]
    %v4049 = vld [vmem:[%s2 + $0x140] sm:$0xff]
    %v4050 = vld [vmem:[%s2 + $0x148] sm:$0xff]
    %v4051 = vld [vmem:[%s2 + $0x150] sm:$0xff]
    %v4052 = vld [vmem:[%s2 + $0x158] sm:$0xff]
    %v4053 = vld [vmem:[%s2 + $0x160] sm:$0xff]
    %v4054 = vld [vmem:[%s2 + $0x168] sm:$0xff]
    %v4055 = vld [vmem:[%s2 + $0x170] sm:$0xff]
    %v4056 = vld [vmem:[%s2 + $0x178] sm:$0xff]
    %v4057 = vld [vmem:[%s2 + $0x180] sm:$0xff]
    %v4058 = vld [vmem:[%s2 + $0x188] sm:$0xff]
    %v4059 = vld [vmem:[%s2 + $0x190] sm:$0xff]
    %v4060 = vld [vmem:[%s2 + $0x198] sm:$0xff]
    %v4061 = vld [vmem:[%s2 + $0x1a0] sm:$0xff]
    %v4062 = vld [vmem:[%s2 + $0x1a8] sm:$0xff]
    %v4063 = vld [vmem:[%s2 + $0x1b0] sm:$0xff]
    %v4064 = vld [vmem:[%s2 + $0x1b8] sm:$0xff]
    %v4065 = vld [vmem:[%s2 + $0x1c0] sm:$0xff]
    %v4066 = vld [vmem:[%s2 + $0x1c8] sm:$0xff]
    %v4067 = vld [vmem:[%s2 + $0x1d0] sm:$0xff]
    %v4068 = vld [vmem:[%s2 + $0x1d8] sm:$0xff]
    %v4069 = vld [vmem:[%s2 + $0x1e0] sm:$0xff]
    %v4070 = vld [vmem:[%s2 + $0x1e8] sm:$0xff]
    %v4071 = vld [vmem:[%s2 + $0x1f0] sm:$0xff]
    %v4072 = vld [vmem:[%s2 + $0x1f8] sm:$0xff]
    %4073 = vmatprep.subr.mxu0 %v4010
    %4074 = vmatpush1.msra.mxu0 %v4009
    %4075 = vmatprep.subr.mxu0 %v4014
    %4076 = vmatpush1.msra.mxu0 %v4013
    %4077 = vmatprep.subr.mxu0 %v4018
    %4078 = vmatpush1.msra.mxu0 %v4017
    %4079 = vmatprep.subr.mxu0 %v4022
    %4080 = vmatpush1.msra.mxu0 %v4021
    %4081 = vmatprep.subr.mxu0 %v4026
    %4082 = vmatpush1.msra.mxu0 %v4025
    %4083 = vmatprep.subr.mxu0 %v4030
    %4084 = vmatpush1.msra.mxu0 %v4029
    %4085 = vmatprep.subr.mxu0 %v4034
    %4086 = vmatpush1.msra.mxu0 %v4033
    %4087 = vmatprep.subr.mxu0 %v4038
    %4088 = vmatpush1.msra.mxu0 %v4037
    %4089 = vmatprep.subr.mxu0 %v4042
    %4090 = vmatpush1.msra.mxu0 %v4041
    %4091 = vmatprep.subr.mxu0 %v4046
    %4092 = vmatpush1.msra.mxu0 %v4045
    %4093 = vmatprep.subr.mxu0 %v4050
    %4094 = vmatpush1.msra.mxu0 %v4049
    %4095 = vmatprep.subr.mxu0 %v4054
    %4096 = vmatpush1.msra.mxu0 %v4053
    %4097 = vmatprep.subr.mxu0 %v4058
    %4098 = vmatpush1.msra.mxu0 %v4057
    %4099 = vmatprep.subr.mxu0 %v4062
    %4100 = vmatpush1.msra.mxu0 %v4061
    %4101 = vmatprep.subr.mxu0 %v4066
    %4102 = vmatpush1.msra.mxu0 %v4065
    %4103 = vmatprep.subr.mxu0 %v4070
    %4104 = vmatpush1.msra.mxu0 %v4069
    %4105 = vmatprep.subr.mxu0 0.0
    %4106 = vmatpush1.msra.mxu0 0.0
    %4107 = vmatprep.subr.mxu0 0.0
    %4108 = vmatpush1.msra.mxu0 0.0
    %4109 = vmatprep.subr.mxu0 0.0
    %4110 = vmatpush1.msra.mxu0 0.0
    %4111 = vmatprep.subr.mxu0 0.0
    %4112 = vmatpush1.msra.mxu0 0.0
    %4113 = vmatprep.subr.mxu0 0.0
    %4114 = vmatpush1.msra.mxu0 0.0
    %4115 = vmatprep.subr.mxu0 0.0
    %4116 = vmatpush1.msra.mxu0 0.0
    %4117 = vmatprep.subr.mxu0 0.0
    %4118 = vmatpush1.msra.mxu0 0.0
    %4119 = vmatprep.subr.mxu0 0.0
    %4120 = vmatpush1.msra.mxu0 0.0
    %4121 = vmatprep.subr.mxu0 0.0
    %4122 = vmatpush1.msra.mxu0 0.0
    %4123 = vmatprep.subr.mxu0 0.0
    %4124 = vmatpush1.msra.mxu0 0.0
    %4125 = vmatprep.subr.mxu0 0.0
    %4126 = vmatpush1.msra.mxu0 0.0
    %4127 = vmatprep.subr.mxu0 0.0
    %4128 = vmatpush1.msra.mxu0 0.0
    %4129 = vmatprep.subr.mxu0 0.0
    %4130 = vmatpush1.msra.mxu0 0.0
    %4131 = vmatprep.subr.mxu0 0.0
    %4132 = vmatpush1.msra.mxu0 0.0
    %4133 = vmatprep.subr.mxu0 0.0
    %4134 = vmatpush1.msra.mxu0 0.0
    %4135 = vmatprep.subr.mxu0 0.0
    %4136 = vmatpush1.msra.mxu0 0.0
    %4137 = vmatprep.mubr.f32.mxu0 0.0
    %4138 = vmatmul.mubr.f32.gmra.mrb[0].mxu0 %v3299
    %v4139 = vpop.f32.mrb[0].mxu0
    %v4140 = vadd.f32 0.0, %v4139
    %v4141 = vpop.f32.mrb[0].mxu0
    %v4142 = vadd.f32 0.0, %v4141
    %4143 = vdwg.mxu0
    %4144 = vmatprep.subr.mxu0 %v4012
    %4145 = vmatpush1.msra.mxu0 %v4011
    %4146 = vmatprep.subr.mxu0 %v4016
    %4147 = vmatpush1.msra.mxu0 %v4015
    %4148 = vmatprep.subr.mxu0 %v4020
    %4149 = vmatpush1.msra.mxu0 %v4019
    %4150 = vmatprep.subr.mxu0 %v4024
    %4151 = vmatpush1.msra.mxu0 %v4023
    %4152 = vmatprep.subr.mxu0 %v4028
    %4153 = vmatpush1.msra.mxu0 %v4027
    %4154 = vmatprep.subr.mxu0 %v4032
    %4155 = vmatpush1.msra.mxu0 %v4031
    %4156 = vmatprep.subr.mxu0 %v4036
    %4157 = vmatpush1.msra.mxu0 %v4035
    %4158 = vmatprep.subr.mxu0 %v4040
    %4159 = vmatpush1.msra.mxu0 %v4039
    %4160 = vmatprep.subr.mxu0 %v4044
    %4161 = vmatpush1.msra.mxu0 %v4043
    %4162 = vmatprep.subr.mxu0 %v4048
    %4163 = vmatpush1.msra.mxu0 %v4047
    %4164 = vmatprep.subr.mxu0 %v4052
    %4165 = vmatpush1.msra.mxu0 %v4051
    %4166 = vmatprep.subr.mxu0 %v4056
    %4167 = vmatpush1.msra.mxu0 %v4055
    %4168 = vmatprep.subr.mxu0 %v4060
    %4169 = vmatpush1.msra.mxu0 %v4059
    %4170 = vmatprep.subr.mxu0 %v4064
    %4171 = vmatpush1.msra.mxu0 %v4063
    %4172 = vmatprep.subr.mxu0 %v4068
    %4173 = vmatpush1.msra.mxu0 %v4067
    %4174 = vmatprep.subr.mxu0 %v4072
    %4175 = vmatpush1.msra.mxu0 %v4071
    %4176 = vmatprep.subr.mxu0 0.0
    %4177 = vmatpush1.msra.mxu0 0.0
    %4178 = vmatprep.subr.mxu0 0.0
    %4179 = vmatpush1.msra.mxu0 0.0
    %4180 = vmatprep.subr.mxu0 0.0
    %4181 = vmatpush1.msra.mxu0 0.0
    %4182 = vmatprep.subr.mxu0 0.0
    %4183 = vmatpush1.msra.mxu0 0.0
    %4184 = vmatprep.subr.mxu0 0.0
    %4185 = vmatpush1.msra.mxu0 0.0
    %4186 = vmatprep.subr.mxu0 0.0
    %4187 = vmatpush1.msra.mxu0 0.0
    %4188 = vmatprep.subr.mxu0 0.0
    %4189 = vmatpush1.msra.mxu0 0.0
    %4190 = vmatprep.subr.mxu0 0.0
    %4191 = vmatpush1.msra.mxu0 0.0
    %4192 = vmatprep.subr.mxu0 0.0
    %4193 = vmatpush1.msra.mxu0 0.0
    %4194 = vmatprep.subr.mxu0 0.0
    %4195 = vmatpush1.msra.mxu0 0.0
    %4196 = vmatprep.subr.mxu0 0.0
    %4197 = vmatpush1.msra.mxu0 0.0
    %4198 = vmatprep.subr.mxu0 0.0
    %4199 = vmatpush1.msra.mxu0 0.0
    %4200 = vmatprep.subr.mxu0 0.0
    %4201 = vmatpush1.msra.mxu0 0.0
    %4202 = vmatprep.subr.mxu0 0.0
    %4203 = vmatpush1.msra.mxu0 0.0
    %4204 = vmatprep.subr.mxu0 0.0
    %4205 = vmatpush1.msra.mxu0 0.0
    %4206 = vmatprep.subr.mxu0 0.0
    %4207 = vmatpush1.msra.mxu0 0.0
    %4208 = vmatprep.mubr.f32.mxu0 0.0
    %4209 = vmatmul.mubr.f32.gmra.mrb[0].mxu0 %v3299
    %v4210 = vpop.f32.mrb[0].mxu0
    %v4211 = vadd.f32 0.0, %v4210
    %v4212 = vpop.f32.mrb[0].mxu0
    %v4213 = vadd.f32 0.0, %v4212
    %4214 = vdwg.mxu0
    %v4215 = vadd.f32 %v4005, %v4140
    %v4216 = vadd.f32 %v4006, %v4142
    %v4217 = vadd.f32 %v4007, %v4211
    %v4218 = vadd.f32 %v4008, %v4213
    %v4219 = vxor.u32 %v4215, 2147483648
    %v4220 = vmul.f32 %v4219, 1.442695
    %v4221 = vpow.pop %v4220
    %v4222 = vadd.f32 %v4221, 1.0
    %v4223 = vrcp.pop %v4222
    %v4224 = vmul.f32 1.0, %v4223
    %v4225 = vxor.u32 %v4216, 2147483648
    %v4226 = vmul.f32 %v4225, 1.442695
    %v4227 = vpow.pop %v4226
    %v4228 = vadd.f32 %v4227, 1.0
    %v4229 = vrcp.pop %v4228
    %v4230 = vmul.f32 1.0, %v4229
    %v4231 = vtanh.pop %v4217
    %v4232 = vxor.u32 %v4218, 2147483648
    %v4233 = vmul.f32 %v4232, 1.442695
    %v4234 = vpow.pop %v4233
    %v4235 = vadd.f32 %v4234, 1.0
    %v4236 = vrcp.pop %v4235
    %v4237 = vmul.f32 1.0, %v4236
    %v4238 = vmul.f32 %v4230, %v3297
    %v4239 = vmul.f32 %v4224, %v4231
    %v4240 = vadd.f32 %v4238, %v4239
    %v4241 = vtanh.pop %v4240
    %v4242 = vmul.f32 %v4237, %v4241
    %v4243 = vld [vmem:[%s1] sm:$0xff]
    %v4244 = vmul.f32 %v4242, %v4243
    %4245 = vadd.xlane.f32.xlu0 %v4244
    %v4246 = vpop.xlane.xlu0 %4245
    %v4247 = vmul.f32 %v4246, %v4243
    %v4248 = vadd.f32 %v4247, 0.0
    %v4249 = vld [vmem:[%s471] sm:$0xff]
    %v4250 = vmul.f32 %v4242, %v4249
    %4251 = vadd.xlane.f32.xlu0 %v4250
    %v4252 = vpop.xlane.xlu0 %4251
    %v4253 = vmul.f32 %v4252, %v4249
    %v4254 = vadd.f32 %v4248, %v4253
    %v4255 = vld [vmem:[%s478] sm:$0xff]
    %v4256 = vmul.f32 %v4242, %v4255
    %4257 = vadd.xlane.f32.xlu0 %v4256
    %v4258 = vpop.xlane.xlu0 %4257
    %v4259 = vmul.f32 %v4258, %v4255
    %v4260 = vadd.f32 %v4254, %v4259
    %v4261 = vld [vmem:[%s485] sm:$0xff]
    %v4262 = vmul.f32 %v4242, %v4261
    %4263 = vadd.xlane.f32.xlu0 %v4262
    %v4264 = vpop.xlane.xlu0 %4263
    %v4265 = vmul.f32 %v4264, %v4261
    %v4266 = vadd.f32 %v4260, %v4265
    %v4267 = vld [vmem:[%s492] sm:$0xff]
    %v4268 = vmul.f32 %v4242, %v4267
    %4269 = vadd.xlane.f32.xlu0 %v4268
    %v4270 = vpop.xlane.xlu0 %4269
    %v4271 = vmul.f32 %v4270, %v4267
    %v4272 = vadd.f32 %v4266, %v4271
    %v4273 = vld [vmem:[%s499] sm:$0xff]
    %v4274 = vmul.f32 %v4242, %v4273
    %4275 = vadd.xlane.f32.xlu0 %v4274
    %v4276 = vpop.xlane.xlu0 %4275
    %v4277 = vmul.f32 %v4276, %v4273
    %v4278 = vadd.f32 %v4272, %v4277
    %v4279 = vld [vmem:[%s506] sm:$0xff]
    %v4280 = vmul.f32 %v4242, %v4279
    %4281 = vadd.xlane.f32.xlu0 %v4280
    %v4282 = vpop.xlane.xlu0 %4281
    %v4283 = vmul.f32 %v4282, %v4279
    %v4284 = vadd.f32 %v4278, %v4283
    %v4285 = vld [vmem:[%s513] sm:$0xff]
    %v4286 = vmul.f32 %v4242, %v4285
    %4287 = vadd.xlane.f32.xlu0 %v4286
    %v4288 = vpop.xlane.xlu0 %4287
    %v4289 = vmul.f32 %v4288, %v4285
    %v4290 = vadd.f32 %v4284, %v4289
    %v4291 = vld [vmem:[%s3] sm:$0xff]
    %v4292 = vld [vmem:[%s3 + $0x8] sm:$0xff]
    %v4293 = vld [vmem:[%s3 + $0x10] sm:$0xff]
    %v4294 = vld [vmem:[%s3 + $0x18] sm:$0xff]
    %v4295 = vld [vmem:[%s3 + $0x20] sm:$0xff]
    %v4296 = vld [vmem:[%s3 + $0x28] sm:$0xff]
    %v4297 = vld [vmem:[%s3 + $0x30] sm:$0xff]
    %v4298 = vld [vmem:[%s3 + $0x38] sm:$0xff]
    %v4299 = vld [vmem:[%s3 + $0x40] sm:$0xff]
    %v4300 = vld [vmem:[%s3 + $0x48] sm:$0xff]
    %v4301 = vld [vmem:[%s3 + $0x50] sm:$0xff]
    %v4302 = vld [vmem:[%s3 + $0x58] sm:$0xff]
    %v4303 = vld [vmem:[%s3 + $0x60] sm:$0xff]
    %v4304 = vld [vmem:[%s3 + $0x68] sm:$0xff]
    %v4305 = vld [vmem:[%s3 + $0x70] sm:$0xff]
    %v4306 = vld [vmem:[%s3 + $0x78] sm:$0xff]
    %v4307 = vld [vmem:[%s3 + $0x80] sm:$0xff]
    %v4308 = vld [vmem:[%s3 + $0x88] sm:$0xff]
    %v4309 = vld [vmem:[%s3 + $0x90] sm:$0xff]
    %v4310 = vld [vmem:[%s3 + $0x98] sm:$0xff]
    %v4311 = vld [vmem:[%s3 + $0xa0] sm:$0xff]
    %v4312 = vld [vmem:[%s3 + $0xa8] sm:$0xff]
    %v4313 = vld [vmem:[%s3 + $0xb0] sm:$0xff]
    %v4314 = vld [vmem:[%s3 + $0xb8] sm:$0xff]
    %v4315 = vld [vmem:[%s3 + $0xc0] sm:$0xff]
    %v4316 = vld [vmem:[%s3 + $0xc8] sm:$0xff]
    %v4317 = vld [vmem:[%s3 + $0xd0] sm:$0xff]
    %v4318 = vld [vmem:[%s3 + $0xd8] sm:$0xff]
    %v4319 = vld [vmem:[%s3 + $0xe0] sm:$0xff]
    %v4320 = vld [vmem:[%s3 + $0xe8] sm:$0xff]
    %v4321 = vld [vmem:[%s3 + $0xf0] sm:$0xff]
    %v4322 = vld [vmem:[%s3 + $0xf8] sm:$0xff]
    %v4323 = vld [vmem:[%s3 + $0x100] sm:$0xff]
    %v4324 = vld [vmem:[%s3 + $0x108] sm:$0xff]
    %v4325 = vld [vmem:[%s3 + $0x110] sm:$0xff]
    %v4326 = vld [vmem:[%s3 + $0x118] sm:$0xff]
    %v4327 = vld [vmem:[%s3 + $0x120] sm:$0xff]
    %v4328 = vld [vmem:[%s3 + $0x128] sm:$0xff]
    %v4329 = vld [vmem:[%s3 + $0x130] sm:$0xff]
    %v4330 = vld [vmem:[%s3 + $0x138] sm:$0xff]
    %v4331 = vld [vmem:[%s3 + $0x140] sm:$0xff]
    %v4332 = vld [vmem:[%s3 + $0x148] sm:$0xff]
    %v4333 = vld [vmem:[%s3 + $0x150] sm:$0xff]
    %v4334 = vld [vmem:[%s3 + $0x158] sm:$0xff]
    %v4335 = vld [vmem:[%s3 + $0x160] sm:$0xff]
    %v4336 = vld [vmem:[%s3 + $0x168] sm:$0xff]
    %v4337 = vld [vmem:[%s3 + $0x170] sm:$0xff]
    %v4338 = vld [vmem:[%s3 + $0x178] sm:$0xff]
    %v4339 = vld [vmem:[%s3 + $0x180] sm:$0xff]
    %v4340 = vld [vmem:[%s3 + $0x188] sm:$0xff]
    %v4341 = vld [vmem:[%s3 + $0x190] sm:$0xff]
    %v4342 = vld [vmem:[%s3 + $0x198] sm:$0xff]
    %v4343 = vld [vmem:[%s3 + $0x1a0] sm:$0xff]
    %v4344 = vld [vmem:[%s3 + $0x1a8] sm:$0xff]
    %v4345 = vld [vmem:[%s3 + $0x1b0] sm:$0xff]
    %v4346 = vld [vmem:[%s3 + $0x1b8] sm:$0xff]
    %v4347 = vld [vmem:[%s3 + $0x1c0] sm:$0xff]
    %v4348 = vld [vmem:[%s3 + $0x1c8] sm:$0xff]
    %v4349 = vld [vmem:[%s3 + $0x1d0] sm:$0xff]
    %v4350 = vld [vmem:[%s3 + $0x1d8] sm:$0xff]
    %v4351 = vld [vmem:[%s3 + $0x1e0] sm:$0xff]
    %v4352 = vld [vmem:[%s3 + $0x1e8] sm:$0xff]
    %v4353 = vld [vmem:[%s3 + $0x1f0] sm:$0xff]
    %v4354 = vld [vmem:[%s3 + $0x1f8] sm:$0xff]
    %v4355 = vld [vmem:[%s3 + $0x200] sm:$0xff]
    %v4356 = vld [vmem:[%s3 + $0x208] sm:$0xff]
    %v4357 = vld [vmem:[%s3 + $0x210] sm:$0xff]
    %v4358 = vld [vmem:[%s3 + $0x218] sm:$0xff]
    %v4359 = vld [vmem:[%s3 + $0x220] sm:$0xff]
    %v4360 = vld [vmem:[%s3 + $0x228] sm:$0xff]
    %v4361 = vld [vmem:[%s3 + $0x230] sm:$0xff]
    %v4362 = vld [vmem:[%s3 + $0x238] sm:$0xff]
    %v4363 = vld [vmem:[%s3 + $0x240] sm:$0xff]
    %v4364 = vld [vmem:[%s3 + $0x248] sm:$0xff]
    %v4365 = vld [vmem:[%s3 + $0x250] sm:$0xff]
    %v4366 = vld [vmem:[%s3 + $0x258] sm:$0xff]
    %v4367 = vld [vmem:[%s3 + $0x260] sm:$0xff]
    %v4368 = vld [vmem:[%s3 + $0x268] sm:$0xff]
    %v4369 = vld [vmem:[%s3 + $0x270] sm:$0xff]
    %v4370 = vld [vmem:[%s3 + $0x278] sm:$0xff]
    %v4371 = vld [vmem:[%s3 + $0x280] sm:$0xff]
    %v4372 = vld [vmem:[%s3 + $0x288] sm:$0xff]
    %v4373 = vld [vmem:[%s3 + $0x290] sm:$0xff]
    %v4374 = vld [vmem:[%s3 + $0x298] sm:$0xff]
    %v4375 = vld [vmem:[%s3 + $0x2a0] sm:$0xff]
    %v4376 = vld [vmem:[%s3 + $0x2a8] sm:$0xff]
    %v4377 = vld [vmem:[%s3 + $0x2b0] sm:$0xff]
    %v4378 = vld [vmem:[%s3 + $0x2b8] sm:$0xff]
    %v4379 = vld [vmem:[%s3 + $0x2c0] sm:$0xff]
    %v4380 = vld [vmem:[%s3 + $0x2c8] sm:$0xff]
    %v4381 = vld [vmem:[%s3 + $0x2d0] sm:$0xff]
    %v4382 = vld [vmem:[%s3 + $0x2d8] sm:$0xff]
    %v4383 = vld [vmem:[%s3 + $0x2e0] sm:$0xff]
    %v4384 = vld [vmem:[%s3 + $0x2e8] sm:$0xff]
    %v4385 = vld [vmem:[%s3 + $0x2f0] sm:$0xff]
    %v4386 = vld [vmem:[%s3 + $0x2f8] sm:$0xff]
    %v4387 = vld [vmem:[%s3 + $0x300] sm:$0xff]
    %v4388 = vld [vmem:[%s3 + $0x308] sm:$0xff]
    %v4389 = vld [vmem:[%s3 + $0x310] sm:$0xff]
    %v4390 = vld [vmem:[%s3 + $0x318] sm:$0xff]
    %v4391 = vld [vmem:[%s3 + $0x320] sm:$0xff]
    %v4392 = vld [vmem:[%s3 + $0x328] sm:$0xff]
    %v4393 = vld [vmem:[%s3 + $0x330] sm:$0xff]
    %v4394 = vld [vmem:[%s3 + $0x338] sm:$0xff]
    %v4395 = vld [vmem:[%s3 + $0x340] sm:$0xff]
    %v4396 = vld [vmem:[%s3 + $0x348] sm:$0xff]
    %v4397 = vld [vmem:[%s3 + $0x350] sm:$0xff]
    %v4398 = vld [vmem:[%s3 + $0x358] sm:$0xff]
    %v4399 = vld [vmem:[%s3 + $0x360] sm:$0xff]
    %v4400 = vld [vmem:[%s3 + $0x368] sm:$0xff]
    %v4401 = vld [vmem:[%s3 + $0x370] sm:$0xff]
    %v4402 = vld [vmem:[%s3 + $0x378] sm:$0xff]
    %v4403 = vld [vmem:[%s3 + $0x380] sm:$0xff]
    %v4404 = vld [vmem:[%s3 + $0x388] sm:$0xff]
    %v4405 = vld [vmem:[%s3 + $0x390] sm:$0xff]
    %v4406 = vld [vmem:[%s3 + $0x398] sm:$0xff]
    %v4407 = vld [vmem:[%s3 + $0x3a0] sm:$0xff]
    %v4408 = vld [vmem:[%s3 + $0x3a8] sm:$0xff]
    %v4409 = vld [vmem:[%s3 + $0x3b0] sm:$0xff]
    %v4410 = vld [vmem:[%s3 + $0x3b8] sm:$0xff]
    %v4411 = vld [vmem:[%s3 + $0x3c0] sm:$0xff]
    %v4412 = vld [vmem:[%s3 + $0x3c8] sm:$0xff]
    %v4413 = vld [vmem:[%s3 + $0x3d0] sm:$0xff]
    %v4414 = vld [vmem:[%s3 + $0x3d8] sm:$0xff]
    %v4415 = vld [vmem:[%s3 + $0x3e0] sm:$0xff]
    %v4416 = vld [vmem:[%s3 + $0x3e8] sm:$0xff]
    %v4417 = vld [vmem:[%s3 + $0x3f0] sm:$0xff]
    %v4418 = vld [vmem:[%s3 + $0x3f8] sm:$0xff]
    %4419 = vmatprep.subr.mxu0 %v4356
    %4420 = vmatpush1.msra.mxu0 %v4355
    %4421 = vmatprep.subr.mxu0 %v4360
    %4422 = vmatpush1.msra.mxu0 %v4359
    %4423 = vmatprep.subr.mxu0 %v4364
    %4424 = vmatpush1.msra.mxu0 %v4363
    %4425 = vmatprep.subr.mxu0 %v4368
    %4426 = vmatpush1.msra.mxu0 %v4367
    %4427 = vmatprep.subr.mxu0 %v4372
    %4428 = vmatpush1.msra.mxu0 %v4371
    %4429 = vmatprep.subr.mxu0 %v4376
    %4430 = vmatpush1.msra.mxu0 %v4375
    %4431 = vmatprep.subr.mxu0 %v4380
    %4432 = vmatpush1.msra.mxu0 %v4379
    %4433 = vmatprep.subr.mxu0 %v4384
    %4434 = vmatpush1.msra.mxu0 %v4383
    %4435 = vmatprep.subr.mxu0 %v4388
    %4436 = vmatpush1.msra.mxu0 %v4387
    %4437 = vmatprep.subr.mxu0 %v4392
    %4438 = vmatpush1.msra.mxu0 %v4391
    %4439 = vmatprep.subr.mxu0 %v4396
    %4440 = vmatpush1.msra.mxu0 %v4395
    %4441 = vmatprep.subr.mxu0 %v4400
    %4442 = vmatpush1.msra.mxu0 %v4399
    %4443 = vmatprep.subr.mxu0 %v4404
    %4444 = vmatpush1.msra.mxu0 %v4403
    %4445 = vmatprep.subr.mxu0 %v4408
    %4446 = vmatpush1.msra.mxu0 %v4407
    %4447 = vmatprep.subr.mxu0 %v4412
    %4448 = vmatpush1.msra.mxu0 %v4411
    %4449 = vmatprep.subr.mxu0 %v4416
    %4450 = vmatpush1.msra.mxu0 %v4415
    %4451 = vmatprep.subr.mxu0 0.0
    %4452 = vmatpush1.msra.mxu0 0.0
    %4453 = vmatprep.subr.mxu0 0.0
    %4454 = vmatpush1.msra.mxu0 0.0
    %4455 = vmatprep.subr.mxu0 0.0
    %4456 = vmatpush1.msra.mxu0 0.0
    %4457 = vmatprep.subr.mxu0 0.0
    %4458 = vmatpush1.msra.mxu0 0.0
    %4459 = vmatprep.subr.mxu0 0.0
    %4460 = vmatpush1.msra.mxu0 0.0
    %4461 = vmatprep.subr.mxu0 0.0
    %4462 = vmatpush1.msra.mxu0 0.0
    %4463 = vmatprep.subr.mxu0 0.0
    %4464 = vmatpush1.msra.mxu0 0.0
    %4465 = vmatprep.subr.mxu0 0.0
    %4466 = vmatpush1.msra.mxu0 0.0
    %4467 = vmatprep.subr.mxu0 0.0
    %4468 = vmatpush1.msra.mxu0 0.0
    %4469 = vmatprep.subr.mxu0 0.0
    %4470 = vmatpush1.msra.mxu0 0.0
    %4471 = vmatprep.subr.mxu0 0.0
    %4472 = vmatpush1.msra.mxu0 0.0
    %4473 = vmatprep.subr.mxu0 0.0
    %4474 = vmatpush1.msra.mxu0 0.0
    %4475 = vmatprep.subr.mxu0 0.0
    %4476 = vmatpush1.msra.mxu0 0.0
    %4477 = vmatprep.subr.mxu0 0.0
    %4478 = vmatpush1.msra.mxu0 0.0
    %4479 = vmatprep.subr.mxu0 0.0
    %4480 = vmatpush1.msra.mxu0 0.0
    %4481 = vmatprep.subr.mxu0 0.0
    %4482 = vmatpush1.msra.mxu0 0.0
    %4483 = vmatprep.mubr.f32.mxu0 0.0
    %4484 = vmatmul.mubr.f32.gmra.mrb[0].mxu0 %v4242
    %v4485 = vpop.f32.mrb[0].mxu0
    %v4486 = vadd.f32 0.0, %v4485
    %v4487 = vpop.f32.mrb[0].mxu0
    %v4488 = vadd.f32 0.0, %v4487
    %4489 = vdwg.mxu0
    %4490 = vmatprep.subr.mxu0 %v4358
    %4491 = vmatpush1.msra.mxu0 %v4357
    %4492 = vmatprep.subr.mxu0 %v4362
    %4493 = vmatpush1.msra.mxu0 %v4361
    %4494 = vmatprep.subr.mxu0 %v4366
    %4495 = vmatpush1.msra.mxu0 %v4365
    %4496 = vmatprep.subr.mxu0 %v4370
    %4497 = vmatpush1.msra.mxu0 %v4369
    %4498 = vmatprep.subr.mxu0 %v4374
    %4499 = vmatpush1.msra.mxu0 %v4373
    %4500 = vmatprep.subr.mxu0 %v4378
    %4501 = vmatpush1.msra.mxu0 %v4377
    %4502 = vmatprep.subr.mxu0 %v4382
    %4503 = vmatpush1.msra.mxu0 %v4381
    %4504 = vmatprep.subr.mxu0 %v4386
    %4505 = vmatpush1.msra.mxu0 %v4385
    %4506 = vmatprep.subr.mxu0 %v4390
    %4507 = vmatpush1.msra.mxu0 %v4389
    %4508 = vmatprep.subr.mxu0 %v4394
    %4509 = vmatpush1.msra.mxu0 %v4393
    %4510 = vmatprep.subr.mxu0 %v4398
    %4511 = vmatpush1.msra.mxu0 %v4397
    %4512 = vmatprep.subr.mxu0 %v4402
    %4513 = vmatpush1.msra.mxu0 %v4401
    %4514 = vmatprep.subr.mxu0 %v4406
    %4515 = vmatpush1.msra.mxu0 %v4405
    %4516 = vmatprep.subr.mxu0 %v4410
    %4517 = vmatpush1.msra.mxu0 %v4409
    %4518 = vmatprep.subr.mxu0 %v4414
    %4519 = vmatpush1.msra.mxu0 %v4413
    %4520 = vmatprep.subr.mxu0 %v4418
    %4521 = vmatpush1.msra.mxu0 %v4417
    %4522 = vmatprep.subr.mxu0 0.0
    %4523 = vmatpush1.msra.mxu0 0.0
    %4524 = vmatprep.subr.mxu0 0.0
    %4525 = vmatpush1.msra.mxu0 0.0
    %4526 = vmatprep.subr.mxu0 0.0
    %4527 = vmatpush1.msra.mxu0 0.0
    %4528 = vmatprep.subr.mxu0 0.0
    %4529 = vmatpush1.msra.mxu0 0.0
    %4530 = vmatprep.subr.mxu0 0.0
    %4531 = vmatpush1.msra.mxu0 0.0
    %4532 = vmatprep.subr.mxu0 0.0
    %4533 = vmatpush1.msra.mxu0 0.0
    %4534 = vmatprep.subr.mxu0 0.0
    %4535 = vmatpush1.msra.mxu0 0.0
    %4536 = vmatprep.subr.mxu0 0.0
    %4537 = vmatpush1.msra.mxu0 0.0
    %4538 = vmatprep.subr.mxu0 0.0
    %4539 = vmatpush1.msra.mxu0 0.0
    %4540 = vmatprep.subr.mxu0 0.0
    %4541 = vmatpush1.msra.mxu0 0.0
    %4542 = vmatprep.subr.mxu0 0.0
    %4543 = vmatpush1.msra.mxu0 0.0
    %4544 = vmatprep.subr.mxu0 0.0
    %4545 = vmatpush1.msra.mxu0 0.0
    %4546 = vmatprep.subr.mxu0 0.0
    %4547 = vmatpush1.msra.mxu0 0.0
    %4548 = vmatprep.subr.mxu0 0.0
    %4549 = vmatpush1.msra.mxu0 0.0
    %4550 = vmatprep.subr.mxu0 0.0
    %4551 = vmatpush1.msra.mxu0 0.0
    %4552 = vmatprep.subr.mxu0 0.0
    %4553 = vmatpush1.msra.mxu0 0.0
    %4554 = vmatprep.mubr.f32.mxu0 0.0
    %4555 = vmatmul.mubr.f32.gmra.mrb[0].mxu0 %v4242
    %v4556 = vpop.f32.mrb[0].mxu0
    %v4557 = vadd.f32 0.0, %v4556
    %v4558 = vpop.f32.mrb[0].mxu0
    %v4559 = vadd.f32 0.0, %v4558
    %4560 = vdwg.mxu0
    %4561 = vmatprep.subr.mxu0 %v4292
    %4562 = vmatpush1.msra.mxu0 %v4291
    %4563 = vmatprep.subr.mxu0 %v4296
    %4564 = vmatpush1.msra.mxu0 %v4295
    %4565 = vmatprep.subr.mxu0 %v4300
    %4566 = vmatpush1.msra.mxu0 %v4299
    %4567 = vmatprep.subr.mxu0 %v4304
    %4568 = vmatpush1.msra.mxu0 %v4303
    %4569 = vmatprep.subr.mxu0 %v4308
    %4570 = vmatpush1.msra.mxu0 %v4307
    %4571 = vmatprep.subr.mxu0 %v4312
    %4572 = vmatpush1.msra.mxu0 %v4311
    %4573 = vmatprep.subr.mxu0 %v4316
    %4574 = vmatpush1.msra.mxu0 %v4315
    %4575 = vmatprep.subr.mxu0 %v4320
    %4576 = vmatpush1.msra.mxu0 %v4319
    %4577 = vmatprep.subr.mxu0 %v4324
    %4578 = vmatpush1.msra.mxu0 %v4323
    %4579 = vmatprep.subr.mxu0 %v4328
    %4580 = vmatpush1.msra.mxu0 %v4327
    %4581 = vmatprep.subr.mxu0 %v4332
    %4582 = vmatpush1.msra.mxu0 %v4331
    %4583 = vmatprep.subr.mxu0 %v4336
    %4584 = vmatpush1.msra.mxu0 %v4335
    %4585 = vmatprep.subr.mxu0 %v4340
    %4586 = vmatpush1.msra.mxu0 %v4339
    %4587 = vmatprep.subr.mxu0 %v4344
    %4588 = vmatpush1.msra.mxu0 %v4343
    %4589 = vmatprep.subr.mxu0 %v4348
    %4590 = vmatpush1.msra.mxu0 %v4347
    %4591 = vmatprep.subr.mxu0 %v4352
    %4592 = vmatpush1.msra.mxu0 %v4351
    %4593 = vmatprep.subr.mxu0 0.0
    %4594 = vmatpush1.msra.mxu0 0.0
    %4595 = vmatprep.subr.mxu0 0.0
    %4596 = vmatpush1.msra.mxu0 0.0
    %4597 = vmatprep.subr.mxu0 0.0
    %4598 = vmatpush1.msra.mxu0 0.0
    %4599 = vmatprep.subr.mxu0 0.0
    %4600 = vmatpush1.msra.mxu0 0.0
    %4601 = vmatprep.subr.mxu0 0.0
    %4602 = vmatpush1.msra.mxu0 0.0
    %4603 = vmatprep.subr.mxu0 0.0
    %4604 = vmatpush1.msra.mxu0 0.0
    %4605 = vmatprep.subr.mxu0 0.0
    %4606 = vmatpush1.msra.mxu0 0.0
    %4607 = vmatprep.subr.mxu0 0.0
    %4608 = vmatpush1.msra.mxu0 0.0
    %4609 = vmatprep.subr.mxu0 0.0
    %4610 = vmatpush1.msra.mxu0 0.0
    %4611 = vmatprep.subr.mxu0 0.0
    %4612 = vmatpush1.msra.mxu0 0.0
    %4613 = vmatprep.subr.mxu0 0.0
    %4614 = vmatpush1.msra.mxu0 0.0
    %4615 = vmatprep.subr.mxu0 0.0
    %4616 = vmatpush1.msra.mxu0 0.0
    %4617 = vmatprep.subr.mxu0 0.0
    %4618 = vmatpush1.msra.mxu0 0.0
    %4619 = vmatprep.subr.mxu0 0.0
    %4620 = vmatpush1.msra.mxu0 0.0
    %4621 = vmatprep.subr.mxu0 0.0
    %4622 = vmatpush1.msra.mxu0 0.0
    %4623 = vmatprep.subr.mxu0 0.0
    %4624 = vmatpush1.msra.mxu0 0.0
    %4625 = vmatprep.mubr.f32.mxu0 0.0
    %4626 = vmatmul.mubr.f32.gmra.mrb[0].mxu0 %v4290
    %v4627 = vpop.f32.mrb[0].mxu0
    %v4628 = vadd.f32 %v4486, %v4627
    %v4629 = vpop.f32.mrb[0].mxu0
    %v4630 = vadd.f32 %v4488, %v4629
    %4631 = vdwg.mxu0
    %4632 = vmatprep.subr.mxu0 %v4294
    %4633 = vmatpush1.msra.mxu0 %v4293
    %4634 = vmatprep.subr.mxu0 %v4298
    %4635 = vmatpush1.msra.mxu0 %v4297
    %4636 = vmatprep.subr.mxu0 %v4302
    %4637 = vmatpush1.msra.mxu0 %v4301
    %4638 = vmatprep.subr.mxu0 %v4306
    %4639 = vmatpush1.msra.mxu0 %v4305
    %4640 = vmatprep.subr.mxu0 %v4310
    %4641 = vmatpush1.msra.mxu0 %v4309
    %4642 = vmatprep.subr.mxu0 %v4314
    %4643 = vmatpush1.msra.mxu0 %v4313
    %4644 = vmatprep.subr.mxu0 %v4318
    %4645 = vmatpush1.msra.mxu0 %v4317
    %4646 = vmatprep.subr.mxu0 %v4322
    %4647 = vmatpush1.msra.mxu0 %v4321
    %4648 = vmatprep.subr.mxu0 %v4326
    %4649 = vmatpush1.msra.mxu0 %v4325
    %4650 = vmatprep.subr.mxu0 %v4330
    %4651 = vmatpush1.msra.mxu0 %v4329
    %4652 = vmatprep.subr.mxu0 %v4334
    %4653 = vmatpush1.msra.mxu0 %v4333
    %4654 = vmatprep.subr.mxu0 %v4338
    %4655 = vmatpush1.msra.mxu0 %v4337
    %4656 = vmatprep.subr.mxu0 %v4342
    %4657 = vmatpush1.msra.mxu0 %v4341
    %4658 = vmatprep.subr.mxu0 %v4346
    %4659 = vmatpush1.msra.mxu0 %v4345
    %4660 = vmatprep.subr.mxu0 %v4350
    %4661 = vmatpush1.msra.mxu0 %v4349
    %4662 = vmatprep.subr.mxu0 %v4354
    %4663 = vmatpush1.msra.mxu0 %v4353
    %4664 = vmatprep.subr.mxu0 0.0
    %4665 = vmatpush1.msra.mxu0 0.0
    %4666 = vmatprep.subr.mxu0 0.0
    %4667 = vmatpush1.msra.mxu0 0.0
    %4668 = vmatprep.subr.mxu0 0.0
    %4669 = vmatpush1.msra.mxu0 0.0
    %4670 = vmatprep.subr.mxu0 0.0
    %4671 = vmatpush1.msra.mxu0 0.0
    %4672 = vmatprep.subr.mxu0 0.0
    %4673 = vmatpush1.msra.mxu0 0.0
    %4674 = vmatprep.subr.mxu0 0.0
    %4675 = vmatpush1.msra.mxu0 0.0
    %4676 = vmatprep.subr.mxu0 0.0
    %4677 = vmatpush1.msra.mxu0 0.0
    %4678 = vmatprep.subr.mxu0 0.0
    %4679 = vmatpush1.msra.mxu0 0.0
    %4680 = vmatprep.subr.mxu0 0.0
    %4681 = vmatpush1.msra.mxu0 0.0
    %4682 = vmatprep.subr.mxu0 0.0
    %4683 = vmatpush1.msra.mxu0 0.0
    %4684 = vmatprep.subr.mxu0 0.0
    %4685 = vmatpush1.msra.mxu0 0.0
    %4686 = vmatprep.subr.mxu0 0.0
    %4687 = vmatpush1.msra.mxu0 0.0
    %4688 = vmatprep.subr.mxu0 0.0
    %4689 = vmatpush1.msra.mxu0 0.0
    %4690 = vmatprep.subr.mxu0 0.0
    %4691 = vmatpush1.msra.mxu0 0.0
    %4692 = vmatprep.subr.mxu0 0.0
    %4693 = vmatpush1.msra.mxu0 0.0
    %4694 = vmatprep.subr.mxu0 0.0
    %4695 = vmatpush1.msra.mxu0 0.0
    %4696 = vmatprep.mubr.f32.mxu0 0.0
    %4697 = vmatmul.mubr.f32.gmra.mrb[0].mxu0 %v4290
    %v4698 = vpop.f32.mrb[0].mxu0
    %v4699 = vadd.f32 %v4557, %v4698
    %v4700 = vpop.f32.mrb[0].mxu0
    %v4701 = vadd.f32 %v4559, %v4700
    %4702 = vdwg.mxu0
    %v4703 = vadd.f32 %v4628, %v3929
    %v4704 = vadd.f32 %v4630, %v3931
    %v4705 = vadd.f32 %v4699, %v4000
    %v4706 = vadd.f32 %v4701, %v4002
    %v4707 = vld [vmem:[%s4] sm:$0xff]
    %v4708 = vld [vmem:[%s4 + $0x8] sm:$0xff]
    %v4709 = vld [vmem:[%s4 + $0x10] sm:$0xff]
    %v4710 = vld [vmem:[%s4 + $0x18] sm:$0xff]
    %v4711 = vadd.f32 %v4703, %v4707
    %v4712 = vadd.f32 %v4704, %v4708
    %v4713 = vadd.f32 %v4705, %v4709
    %v4714 = vadd.f32 %v4706, %v4710
    %v4715 = vxor.u32 %v4711, 2147483648
    %v4716 = vmul.f32 %v4715, 1.442695
    %v4717 = vpow.pop %v4716
    %v4718 = vadd.f32 %v4717, 1.0
    %v4719 = vrcp.pop %v4718
    %v4720 = vmul.f32 1.0, %v4719
    %v4721 = vxor.u32 %v4712, 2147483648
    %v4722 = vmul.f32 %v4721, 1.442695
    %v4723 = vpow.pop %v4722
    %v4724 = vadd.f32 %v4723, 1.0
    %v4725 = vrcp.pop %v4724
    %v4726 = vmul.f32 1.0, %v4725
    %v4727 = vtanh.pop %v4713
    %v4728 = vxor.u32 %v4714, 2147483648
    %v4729 = vmul.f32 %v4728, 1.442695
    %v4730 = vpow.pop %v4729
    %v4731 = vadd.f32 %v4730, 1.0
    %v4732 = vrcp.pop %v4731
    %v4733 = vmul.f32 1.0, %v4732
    %v4734 = vmul.f32 %v4726, %v3793
    %v4735 = vmul.f32 %v4720, %v4727
    %v4736 = vadd.f32 %v4734, %v4735
    %v4737 = vtanh.pop %v4736
    %v4738 = vmul.f32 %v4733, %v4737
    %s4739 = scalar_lea.vmem [#allocation2], 32
    %4740 = vst [vmem:[%s4739] sm:$0xff] %v4738
    %v4741 = vld [vmem:[%s3 + $0x400] sm:$0xff]
    %v4742 = vld [vmem:[%s3 + $0x408] sm:$0xff]
    %v4743 = vld [vmem:[%s3 + $0x410] sm:$0xff]
    %v4744 = vld [vmem:[%s3 + $0x418] sm:$0xff]
    %v4745 = vld [vmem:[%s3 + $0x420] sm:$0xff]
    %v4746 = vld [vmem:[%s3 + $0x428] sm:$0xff]
    %v4747 = vld [vmem:[%s3 + $0x430] sm:$0xff]
    %v4748 = vld [vmem:[%s3 + $0x438] sm:$0xff]
    %v4749 = vld [vmem:[%s3 + $0x440] sm:$0xff]
    %v4750 = vld [vmem:[%s3 + $0x448] sm:$0xff]
    %v4751 = vld [vmem:[%s3 + $0x450] sm:$0xff]
    %v4752 = vld [vmem:[%s3 + $0x458] sm:$0xff]
    %v4753 = vld [vmem:[%s3 + $0x460] sm:$0xff]
    %v4754 = vld [vmem:[%s3 + $0x468] sm:$0xff]
    %v4755 = vld [vmem:[%s3 + $0x470] sm:$0xff]
    %v4756 = vld [vmem:[%s3 + $0x478] sm:$0xff]
    %v4757 = vld [vmem:[%s3 + $0x480] sm:$0xff]
    %v4758 = vld [vmem:[%s3 + $0x488] sm:$0xff]
    %v4759 = vld [vmem:[%s3 + $0x490] sm:$0xff]
    %v4760 = vld [vmem:[%s3 + $0x498] sm:$0xff]
    %v4761 = vld [vmem:[%s3 + $0x4a0] sm:$0xff]
    %v4762 = vld [vmem:[%s3 + $0x4a8] sm:$0xff]
    %v4763 = vld [vmem:[%s3 + $0x4b0] sm:$0xff]
    %v4764 = vld [vmem:[%s3 + $0x4b8] sm:$0xff]
    %v4765 = vld [vmem:[%s3 + $0x4c0] sm:$0xff]
    %v4766 = vld [vmem:[%s3 + $0x4c8] sm:$0xff]
    %v4767 = vld [vmem:[%s3 + $0x4d0] sm:$0xff]
    %v4768 = vld [vmem:[%s3 + $0x4d8] sm:$0xff]
    %v4769 = vld [vmem:[%s3 + $0x4e0] sm:$0xff]
    %v4770 = vld [vmem:[%s3 + $0x4e8] sm:$0xff]
    %v4771 = vld [vmem:[%s3 + $0x4f0] sm:$0xff]
    %v4772 = vld [vmem:[%s3 + $0x4f8] sm:$0xff]
    %v4773 = vld [vmem:[%s3 + $0x500] sm:$0xff]
    %v4774 = vld [vmem:[%s3 + $0x508] sm:$0xff]
    %v4775 = vld [vmem:[%s3 + $0x510] sm:$0xff]
    %v4776 = vld [vmem:[%s3 + $0x518] sm:$0xff]
    %v4777 = vld [vmem:[%s3 + $0x520] sm:$0xff]
    %v4778 = vld [vmem:[%s3 + $0x528] sm:$0xff]
    %v4779 = vld [vmem:[%s3 + $0x530] sm:$0xff]
    %v4780 = vld [vmem:[%s3 + $0x538] sm:$0xff]
    %v4781 = vld [vmem:[%s3 + $0x540] sm:$0xff]
    %v4782 = vld [vmem:[%s3 + $0x548] sm:$0xff]
    %v4783 = vld [vmem:[%s3 + $0x550] sm:$0xff]
    %v4784 = vld [vmem:[%s3 + $0x558] sm:$0xff]
    %v4785 = vld [vmem:[%s3 + $0x560] sm:$0xff]
    %v4786 = vld [vmem:[%s3 + $0x568] sm:$0xff]
    %v4787 = vld [vmem:[%s3 + $0x570] sm:$0xff]
    %v4788 = vld [vmem:[%s3 + $0x578] sm:$0xff]
    %v4789 = vld [vmem:[%s3 + $0x580] sm:$0xff]
    %v4790 = vld [vmem:[%s3 + $0x588] sm:$0xff]
    %v4791 = vld [vmem:[%s3 + $0x590] sm:$0xff]
    %v4792 = vld [vmem:[%s3 + $0x598] sm:$0xff]
    %v4793 = vld [vmem:[%s3 + $0x5a0] sm:$0xff]
    %v4794 = vld [vmem:[%s3 + $0x5a8] sm:$0xff]
    %v4795 = vld [vmem:[%s3 + $0x5b0] sm:$0xff]
    %v4796 = vld [vmem:[%s3 + $0x5b8] sm:$0xff]
    %v4797 = vld [vmem:[%s3 + $0x5c0] sm:$0xff]
    %v4798 = vld [vmem:[%s3 + $0x5c8] sm:$0xff]
    %v4799 = vld [vmem:[%s3 + $0x5d0] sm:$0xff]
    %v4800 = vld [vmem:[%s3 + $0x5d8] sm:$0xff]
    %v4801 = vld [vmem:[%s3 + $0x5e0] sm:$0xff]
    %v4802 = vld [vmem:[%s3 + $0x5e8] sm:$0xff]
    %v4803 = vld [vmem:[%s3 + $0x5f0] sm:$0xff]
    %v4804 = vld [vmem:[%s3 + $0x5f8] sm:$0xff]
    %4805 = vmatprep.subr.mxu0 %v4742
    %4806 = vmatpush1.msra.mxu0 %v4741
    %4807 = vmatprep.subr.mxu0 %v4746
    %4808 = vmatpush1.msra.mxu0 %v4745
    %4809 = vmatprep.subr.mxu0 %v4750
    %4810 = vmatpush1.msra.mxu0 %v4749
    %4811 = vmatprep.subr.mxu0 %v4754
    %4812 = vmatpush1.msra.mxu0 %v4753
    %4813 = vmatprep.subr.mxu0 %v4758
    %4814 = vmatpush1.msra.mxu0 %v4757
    %4815 = vmatprep.subr.mxu0 %v4762
    %4816 = vmatpush1.msra.mxu0 %v4761
    %4817 = vmatprep.subr.mxu0 %v4766
    %4818 = vmatpush1.msra.mxu0 %v4765
    %4819 = vmatprep.subr.mxu0 %v4770
    %4820 = vmatpush1.msra.mxu0 %v4769
    %4821 = vmatprep.subr.mxu0 %v4774
    %4822 = vmatpush1.msra.mxu0 %v4773
    %4823 = vmatprep.subr.mxu0 %v4778
    %4824 = vmatpush1.msra.mxu0 %v4777
    %4825 = vmatprep.subr.mxu0 %v4782
    %4826 = vmatpush1.msra.mxu0 %v4781
    %4827 = vmatprep.subr.mxu0 %v4786
    %4828 = vmatpush1.msra.mxu0 %v4785
    %4829 = vmatprep.subr.mxu0 %v4790
    %4830 = vmatpush1.msra.mxu0 %v4789
    %4831 = vmatprep.subr.mxu0 %v4794
    %4832 = vmatpush1.msra.mxu0 %v4793
    %4833 = vmatprep.subr.mxu0 %v4798
    %4834 = vmatpush1.msra.mxu0 %v4797
    %4835 = vmatprep.subr.mxu0 %v4802
    %4836 = vmatpush1.msra.mxu0 %v4801
    %4837 = vmatprep.subr.mxu0 0.0
    %4838 = vmatpush1.msra.mxu0 0.0
    %4839 = vmatprep.subr.mxu0 0.0
    %4840 = vmatpush1.msra.mxu0 0.0
    %4841 = vmatprep.subr.mxu0 0.0
    %4842 = vmatpush1.msra.mxu0 0.0
    %4843 = vmatprep.subr.mxu0 0.0
    %4844 = vmatpush1.msra.mxu0 0.0
    %4845 = vmatprep.subr.mxu0 0.0
    %4846 = vmatpush1.msra.mxu0 0.0
    %4847 = vmatprep.subr.mxu0 0.0
    %4848 = vmatpush1.msra.mxu0 0.0
    %4849 = vmatprep.subr.mxu0 0.0
    %4850 = vmatpush1.msra.mxu0 0.0
    %4851 = vmatprep.subr.mxu0 0.0
    %4852 = vmatpush1.msra.mxu0 0.0
    %4853 = vmatprep.subr.mxu0 0.0
    %4854 = vmatpush1.msra.mxu0 0.0
    %4855 = vmatprep.subr.mxu0 0.0
    %4856 = vmatpush1.msra.mxu0 0.0
    %4857 = vmatprep.subr.mxu0 0.0
    %4858 = vmatpush1.msra.mxu0 0.0
    %4859 = vmatprep.subr.mxu0 0.0
    %4860 = vmatpush1.msra.mxu0 0.0
    %4861 = vmatprep.subr.mxu0 0.0
    %4862 = vmatpush1.msra.mxu0 0.0
    %4863 = vmatprep.subr.mxu0 0.0
    %4864 = vmatpush1.msra.mxu0 0.0
    %4865 = vmatprep.subr.mxu0 0.0
    %4866 = vmatpush1.msra.mxu0 0.0
    %4867 = vmatprep.subr.mxu0 0.0
    %4868 = vmatpush1.msra.mxu0 0.0
    %4869 = vmatprep.mubr.f32.mxu0 0.0
    %4870 = vmatmul.mubr.f32.gmra.mrb[0].mxu0 %v4738
    %v4871 = vpop.f32.mrb[0].mxu0
    %v4872 = vadd.f32 0.0, %v4871
    %v4873 = vpop.f32.mrb[0].mxu0
    %v4874 = vadd.f32 0.0, %v4873
    %4875 = vdwg.mxu0
    %4876 = vmatprep.subr.mxu0 %v4744
    %4877 = vmatpush1.msra.mxu0 %v4743
    %4878 = vmatprep.subr.mxu0 %v4748
    %4879 = vmatpush1.msra.mxu0 %v4747
    %4880 = vmatprep.subr.mxu0 %v4752
    %4881 = vmatpush1.msra.mxu0 %v4751
    %4882 = vmatprep.subr.mxu0 %v4756
    %4883 = vmatpush1.msra.mxu0 %v4755
    %4884 = vmatprep.subr.mxu0 %v4760
    %4885 = vmatpush1.msra.mxu0 %v4759
    %4886 = vmatprep.subr.mxu0 %v4764
    %4887 = vmatpush1.msra.mxu0 %v4763
    %4888 = vmatprep.subr.mxu0 %v4768
    %4889 = vmatpush1.msra.mxu0 %v4767
    %4890 = vmatprep.subr.mxu0 %v4772
    %4891 = vmatpush1.msra.mxu0 %v4771
    %4892 = vmatprep.subr.mxu0 %v4776
    %4893 = vmatpush1.msra.mxu0 %v4775
    %4894 = vmatprep.subr.mxu0 %v4780
    %4895 = vmatpush1.msra.mxu0 %v4779
    %4896 = vmatprep.subr.mxu0 %v4784
    %4897 = vmatpush1.msra.mxu0 %v4783
    %4898 = vmatprep.subr.mxu0 %v4788
    %4899 = vmatpush1.msra.mxu0 %v4787
    %4900 = vmatprep.subr.mxu0 %v4792
    %4901 = vmatpush1.msra.mxu0 %v4791
    %4902 = vmatprep.subr.mxu0 %v4796
    %4903 = vmatpush1.msra.mxu0 %v4795
    %4904 = vmatprep.subr.mxu0 %v4800
    %4905 = vmatpush1.msra.mxu0 %v4799
    %4906 = vmatprep.subr.mxu0 %v4804
    %4907 = vmatpush1.msra.mxu0 %v4803
    %4908 = vmatprep.subr.mxu0 0.0
    %4909 = vmatpush1.msra.mxu0 0.0
    %4910 = vmatprep.subr.mxu0 0.0
    %4911 = vmatpush1.msra.mxu0 0.0
    %4912 = vmatprep.subr.mxu0 0.0
    %4913 = vmatpush1.msra.mxu0 0.0
    %4914 = vmatprep.subr.mxu0 0.0
    %4915 = vmatpush1.msra.mxu0 0.0
    %4916 = vmatprep.subr.mxu0 0.0
    %4917 = vmatpush1.msra.mxu0 0.0
    %4918 = vmatprep.subr.mxu0 0.0
    %4919 = vmatpush1.msra.mxu0 0.0
    %4920 = vmatprep.subr.mxu0 0.0
    %4921 = vmatpush1.msra.mxu0 0.0
    %4922 = vmatprep.subr.mxu0 0.0
    %4923 = vmatpush1.msra.mxu0 0.0
    %4924 = vmatprep.subr.mxu0 0.0
    %4925 = vmatpush1.msra.mxu0 0.0
    %4926 = vmatprep.subr.mxu0 0.0
    %4927 = vmatpush1.msra.mxu0 0.0
    %4928 = vmatprep.subr.mxu0 0.0
    %4929 = vmatpush1.msra.mxu0 0.0
    %4930 = vmatprep.subr.mxu0 0.0
    %4931 = vmatpush1.msra.mxu0 0.0
    %4932 = vmatprep.subr.mxu0 0.0
    %4933 = vmatpush1.msra.mxu0 0.0
    %4934 = vmatprep.subr.mxu0 0.0
    %4935 = vmatpush1.msra.mxu0 0.0
    %4936 = vmatprep.subr.mxu0 0.0
    %4937 = vmatpush1.msra.mxu0 0.0
    %4938 = vmatprep.subr.mxu0 0.0
    %4939 = vmatpush1.msra.mxu0 0.0
    %4940 = vmatprep.mubr.f32.mxu0 0.0
    %4941 = vmatmul.mubr.f32.gmra.mrb[0].mxu0 %v4738
    %v4942 = vpop.f32.mrb[0].mxu0
    %v4943 = vadd.f32 0.0, %v4942
    %v4944 = vpop.f32.mrb[0].mxu0
    %v4945 = vadd.f32 0.0, %v4944
    %4946 = vdwg.mxu0
    %s4947 = scalar_lea.vmem %s0, 160
    %v4948 = vld [vmem:[%s4947] sm:$0xff]
    %v4949 = vld [vmem:[%s4947 + $0x8] sm:$0xff]
    %v4950 = vld [vmem:[%s4947 + $0x10] sm:$0xff]
    %v4951 = vld [vmem:[%s4947 + $0x18] sm:$0xff]
    %v4952 = vld [vmem:[%s2] sm:$0xff]
    %v4953 = vld [vmem:[%s2 + $0x8] sm:$0xff]
    %v4954 = vld [vmem:[%s2 + $0x10] sm:$0xff]
    %v4955 = vld [vmem:[%s2 + $0x18] sm:$0xff]
    %v4956 = vld [vmem:[%s2 + $0x20] sm:$0xff]
    %v4957 = vld [vmem:[%s2 + $0x28] sm:$0xff]
    %v4958 = vld [vmem:[%s2 + $0x30] sm:$0xff]
    %v4959 = vld [vmem:[%s2 + $0x38] sm:$0xff]
    %v4960 = vld [vmem:[%s2 + $0x40] sm:$0xff]
    %v4961 = vld [vmem:[%s2 + $0x48] sm:$0xff]
    %v4962 = vld [vmem:[%s2 + $0x50] sm:$0xff]
    %v4963 = vld [vmem:[%s2 + $0x58] sm:$0xff]
    %v4964 = vld [vmem:[%s2 + $0x60] sm:$0xff]
    %v4965 = vld [vmem:[%s2 + $0x68] sm:$0xff]
    %v4966 = vld [vmem:[%s2 + $0x70] sm:$0xff]
    %v4967 = vld [vmem:[%s2 + $0x78] sm:$0xff]
    %v4968 = vld [vmem:[%s2 + $0x80] sm:$0xff]
    %v4969 = vld [vmem:[%s2 + $0x88] sm:$0xff]
    %v4970 = vld [vmem:[%s2 + $0x90] sm:$0xff]
    %v4971 = vld [vmem:[%s2 + $0x98] sm:$0xff]
    %v4972 = vld [vmem:[%s2 + $0xa0] sm:$0xff]
    %v4973 = vld [vmem:[%s2 + $0xa8] sm:$0xff]
    %v4974 = vld [vmem:[%s2 + $0xb0] sm:$0xff]
    %v4975 = vld [vmem:[%s2 + $0xb8] sm:$0xff]
    %v4976 = vld [vmem:[%s2 + $0xc0] sm:$0xff]
    %v4977 = vld [vmem:[%s2 + $0xc8] sm:$0xff]
    %v4978 = vld [vmem:[%s2 + $0xd0] sm:$0xff]
    %v4979 = vld [vmem:[%s2 + $0xd8] sm:$0xff]
    %v4980 = vld [vmem:[%s2 + $0xe0] sm:$0xff]
    %v4981 = vld [vmem:[%s2 + $0xe8] sm:$0xff]
    %v4982 = vld [vmem:[%s2 + $0xf0] sm:$0xff]
    %v4983 = vld [vmem:[%s2 + $0xf8] sm:$0xff]
    %v4984 = vld [vmem:[%s2 + $0x100] sm:$0xff]
    %v4985 = vld [vmem:[%s2 + $0x108] sm:$0xff]
    %v4986 = vld [vmem:[%s2 + $0x110] sm:$0xff]
    %v4987 = vld [vmem:[%s2 + $0x118] sm:$0xff]
    %v4988 = vld [vmem:[%s2 + $0x120] sm:$0xff]
    %v4989 = vld [vmem:[%s2 + $0x128] sm:$0xff]
    %v4990 = vld [vmem:[%s2 + $0x130] sm:$0xff]
    %v4991 = vld [vmem:[%s2 + $0x138] sm:$0xff]
    %v4992 = vld [vmem:[%s2 + $0x140] sm:$0xff]
    %v4993 = vld [vmem:[%s2 + $0x148] sm:$0xff]
    %v4994 = vld [vmem:[%s2 + $0x150] sm:$0xff]
    %v4995 = vld [vmem:[%s2 + $0x158] sm:$0xff]
    %v4996 = vld [vmem:[%s2 + $0x160] sm:$0xff]
    %v4997 = vld [vmem:[%s2 + $0x168] sm:$0xff]
    %v4998 = vld [vmem:[%s2 + $0x170] sm:$0xff]
    %v4999 = vld [vmem:[%s2 + $0x178] sm:$0xff]
    %v5000 = vld [vmem:[%s2 + $0x180] sm:$0xff]
    %v5001 = vld [vmem:[%s2 + $0x188] sm:$0xff]
    %v5002 = vld [vmem:[%s2 + $0x190] sm:$0xff]
    %v5003 = vld [vmem:[%s2 + $0x198] sm:$0xff]
    %v5004 = vld [vmem:[%s2 + $0x1a0] sm:$0xff]
    %v5005 = vld [vmem:[%s2 + $0x1a8] sm:$0xff]
    %v5006 = vld [vmem:[%s2 + $0x1b0] sm:$0xff]
    %v5007 = vld [vmem:[%s2 + $0x1b8] sm:$0xff]
    %v5008 = vld [vmem:[%s2 + $0x1c0] sm:$0xff]
    %v5009 = vld [vmem:[%s2 + $0x1c8] sm:$0xff]
    %v5010 = vld [vmem:[%s2 + $0x1d0] sm:$0xff]
    %v5011 = vld [vmem:[%s2 + $0x1d8] sm:$0xff]
    %v5012 = vld [vmem:[%s2 + $0x1e0] sm:$0xff]
    %v5013 = vld [vmem:[%s2 + $0x1e8] sm:$0xff]
    %v5014 = vld [vmem:[%s2 + $0x1f0] sm:$0xff]
    %v5015 = vld [vmem:[%s2 + $0x1f8] sm:$0xff]
    %5016 = vmatprep.subr.mxu0 %v4953
    %5017 = vmatpush1.msra.mxu0 %v4952
    %5018 = vmatprep.subr.mxu0 %v4957
    %5019 = vmatpush1.msra.mxu0 %v4956
    %5020 = vmatprep.subr.mxu0 %v4961
    %5021 = vmatpush1.msra.mxu0 %v4960
    %5022 = vmatprep.subr.mxu0 %v4965
    %5023 = vmatpush1.msra.mxu0 %v4964
    %5024 = vmatprep.subr.mxu0 %v4969
    %5025 = vmatpush1.msra.mxu0 %v4968
    %5026 = vmatprep.subr.mxu0 %v4973
    %5027 = vmatpush1.msra.mxu0 %v4972
    %5028 = vmatprep.subr.mxu0 %v4977
    %5029 = vmatpush1.msra.mxu0 %v4976
    %5030 = vmatprep.subr.mxu0 %v4981
    %5031 = vmatpush1.msra.mxu0 %v4980
    %5032 = vmatprep.subr.mxu0 %v4985
    %5033 = vmatpush1.msra.mxu0 %v4984
    %5034 = vmatprep.subr.mxu0 %v4989
    %5035 = vmatpush1.msra.mxu0 %v4988
    %5036 = vmatprep.subr.mxu0 %v4993
    %5037 = vmatpush1.msra.mxu0 %v4992
    %5038 = vmatprep.subr.mxu0 %v4997
    %5039 = vmatpush1.msra.mxu0 %v4996
    %5040 = vmatprep.subr.mxu0 %v5001
    %5041 = vmatpush1.msra.mxu0 %v5000
    %5042 = vmatprep.subr.mxu0 %v5005
    %5043 = vmatpush1.msra.mxu0 %v5004
    %5044 = vmatprep.subr.mxu0 %v5009
    %5045 = vmatpush1.msra.mxu0 %v5008
    %5046 = vmatprep.subr.mxu0 %v5013
    %5047 = vmatpush1.msra.mxu0 %v5012
    %5048 = vmatprep.subr.mxu0 0.0
    %5049 = vmatpush1.msra.mxu0 0.0
    %5050 = vmatprep.subr.mxu0 0.0
    %5051 = vmatpush1.msra.mxu0 0.0
    %5052 = vmatprep.subr.mxu0 0.0
    %5053 = vmatpush1.msra.mxu0 0.0
    %5054 = vmatprep.subr.mxu0 0.0
    %5055 = vmatpush1.msra.mxu0 0.0
    %5056 = vmatprep.subr.mxu0 0.0
    %5057 = vmatpush1.msra.mxu0 0.0
    %5058 = vmatprep.subr.mxu0 0.0
    %5059 = vmatpush1.msra.mxu0 0.0
    %5060 = vmatprep.subr.mxu0 0.0
    %5061 = vmatpush1.msra.mxu0 0.0
    %5062 = vmatprep.subr.mxu0 0.0
    %5063 = vmatpush1.msra.mxu0 0.0
    %5064 = vmatprep.subr.mxu0 0.0
    %5065 = vmatpush1.msra.mxu0 0.0
    %5066 = vmatprep.subr.mxu0 0.0
    %5067 = vmatpush1.msra.mxu0 0.0
    %5068 = vmatprep.subr.mxu0 0.0
    %5069 = vmatpush1.msra.mxu0 0.0
    %5070 = vmatprep.subr.mxu0 0.0
    %5071 = vmatpush1.msra.mxu0 0.0
    %5072 = vmatprep.subr.mxu0 0.0
    %5073 = vmatpush1.msra.mxu0 0.0
    %5074 = vmatprep.subr.mxu0 0.0
    %5075 = vmatpush1.msra.mxu0 0.0
    %5076 = vmatprep.subr.mxu0 0.0
    %5077 = vmatpush1.msra.mxu0 0.0
    %5078 = vmatprep.subr.mxu0 0.0
    %5079 = vmatpush1.msra.mxu0 0.0
    %5080 = vmatprep.mubr.f32.mxu0 0.0
    %5081 = vmatmul.mubr.f32.gmra.mrb[0].mxu0 %v4242
    %v5082 = vpop.f32.mrb[0].mxu0
    %v5083 = vadd.f32 0.0, %v5082
    %v5084 = vpop.f32.mrb[0].mxu0
    %v5085 = vadd.f32 0.0, %v5084
    %5086 = vdwg.mxu0
    %5087 = vmatprep.subr.mxu0 %v4955
    %5088 = vmatpush1.msra.mxu0 %v4954
    %5089 = vmatprep.subr.mxu0 %v4959
    %5090 = vmatpush1.msra.mxu0 %v4958
    %5091 = vmatprep.subr.mxu0 %v4963
    %5092 = vmatpush1.msra.mxu0 %v4962
    %5093 = vmatprep.subr.mxu0 %v4967
    %5094 = vmatpush1.msra.mxu0 %v4966
    %5095 = vmatprep.subr.mxu0 %v4971
    %5096 = vmatpush1.msra.mxu0 %v4970
    %5097 = vmatprep.subr.mxu0 %v4975
    %5098 = vmatpush1.msra.mxu0 %v4974
    %5099 = vmatprep.subr.mxu0 %v4979
    %5100 = vmatpush1.msra.mxu0 %v4978
    %5101 = vmatprep.subr.mxu0 %v4983
    %5102 = vmatpush1.msra.mxu0 %v4982
    %5103 = vmatprep.subr.mxu0 %v4987
    %5104 = vmatpush1.msra.mxu0 %v4986
    %5105 = vmatprep.subr.mxu0 %v4991
    %5106 = vmatpush1.msra.mxu0 %v4990
    %5107 = vmatprep.subr.mxu0 %v4995
    %5108 = vmatpush1.msra.mxu0 %v4994
    %5109 = vmatprep.subr.mxu0 %v4999
    %5110 = vmatpush1.msra.mxu0 %v4998
    %5111 = vmatprep.subr.mxu0 %v5003
    %5112 = vmatpush1.msra.mxu0 %v5002
    %5113 = vmatprep.subr.mxu0 %v5007
    %5114 = vmatpush1.msra.mxu0 %v5006
    %5115 = vmatprep.subr.mxu0 %v5011
    %5116 = vmatpush1.msra.mxu0 %v5010
    %5117 = vmatprep.subr.mxu0 %v5015
    %5118 = vmatpush1.msra.mxu0 %v5014
    %5119 = vmatprep.subr.mxu0 0.0
    %5120 = vmatpush1.msra.mxu0 0.0
    %5121 = vmatprep.subr.mxu0 0.0
    %5122 = vmatpush1.msra.mxu0 0.0
    %5123 = vmatprep.subr.mxu0 0.0
    %5124 = vmatpush1.msra.mxu0 0.0
    %5125 = vmatprep.subr.mxu0 0.0
    %5126 = vmatpush1.msra.mxu0 0.0
    %5127 = vmatprep.subr.mxu0 0.0
    %5128 = vmatpush1.msra.mxu0 0.0
    %5129 = vmatprep.subr.mxu0 0.0
    %5130 = vmatpush1.msra.mxu0 0.0
    %5131 = vmatprep.subr.mxu0 0.0
    %5132 = vmatpush1.msra.mxu0 0.0
    %5133 = vmatprep.subr.mxu0 0.0
    %5134 = vmatpush1.msra.mxu0 0.0
    %5135 = vmatprep.subr.mxu0 0.0
    %5136 = vmatpush1.msra.mxu0 0.0
    %5137 = vmatprep.subr.mxu0 0.0
    %5138 = vmatpush1.msra.mxu0 0.0
    %5139 = vmatprep.subr.mxu0 0.0
    %5140 = vmatpush1.msra.mxu0 0.0
    %5141 = vmatprep.subr.mxu0 0.0
    %5142 = vmatpush1.msra.mxu0 0.0
    %5143 = vmatprep.subr.mxu0 0.0
    %5144 = vmatpush1.msra.mxu0 0.0
    %5145 = vmatprep.subr.mxu0 0.0
    %5146 = vmatpush1.msra.mxu0 0.0
    %5147 = vmatprep.subr.mxu0 0.0
    %5148 = vmatpush1.msra.mxu0 0.0
    %5149 = vmatprep.subr.mxu0 0.0
    %5150 = vmatpush1.msra.mxu0 0.0
    %5151 = vmatprep.mubr.f32.mxu0 0.0
    %5152 = vmatmul.mubr.f32.gmra.mrb[0].mxu0 %v4242
    %v5153 = vpop.f32.mrb[0].mxu0
    %v5154 = vadd.f32 0.0, %v5153
    %v5155 = vpop.f32.mrb[0].mxu0
    %v5156 = vadd.f32 0.0, %v5155
    %5157 = vdwg.mxu0
    %v5158 = vadd.f32 %v4948, %v5083
    %v5159 = vadd.f32 %v4949, %v5085
    %v5160 = vadd.f32 %v4950, %v5154
    %v5161 = vadd.f32 %v4951, %v5156
    %v5162 = vxor.u32 %v5158, 2147483648
    %v5163 = vmul.f32 %v5162, 1.442695
    %v5164 = vpow.pop %v5163
    %v5165 = vadd.f32 %v5164, 1.0
    %v5166 = vrcp.pop %v5165
    %v5167 = vmul.f32 1.0, %v5166
    %v5168 = vxor.u32 %v5159, 2147483648
    %v5169 = vmul.f32 %v5168, 1.442695
    %v5170 = vpow.pop %v5169
    %v5171 = vadd.f32 %v5170, 1.0
    %v5172 = vrcp.pop %v5171
    %v5173 = vmul.f32 1.0, %v5172
    %v5174 = vtanh.pop %v5160
    %v5175 = vxor.u32 %v5161, 2147483648
    %v5176 = vmul.f32 %v5175, 1.442695
    %v5177 = vpow.pop %v5176
    %v5178 = vadd.f32 %v5177, 1.0
    %v5179 = vrcp.pop %v5178
    %v5180 = vmul.f32 1.0, %v5179
    %v5181 = vmul.f32 %v5173, %v4240
    %v5182 = vmul.f32 %v5167, %v5174
    %v5183 = vadd.f32 %v5181, %v5182
    %v5184 = vtanh.pop %v5183
    %v5185 = vmul.f32 %v5180, %v5184
    %v5186 = vld [vmem:[%s1] sm:$0xff]
    %v5187 = vmul.f32 %v5185, %v5186
    %5188 = vadd.xlane.f32.xlu0 %v5187
    %v5189 = vpop.xlane.xlu0 %5188
    %v5190 = vmul.f32 %v5189, %v5186
    %v5191 = vadd.f32 %v5190, 0.0
    %v5192 = vld [vmem:[%s471] sm:$0xff]
    %v5193 = vmul.f32 %v5185, %v5192
    %5194 = vadd.xlane.f32.xlu0 %v5193
    %v5195 = vpop.xlane.xlu0 %5194
    %v5196 = vmul.f32 %v5195, %v5192
    %v5197 = vadd.f32 %v5191, %v5196
    %v5198 = vld [vmem:[%s478] sm:$0xff]
    %v5199 = vmul.f32 %v5185, %v5198
    %5200 = vadd.xlane.f32.xlu0 %v5199
    %v5201 = vpop.xlane.xlu0 %5200
    %v5202 = vmul.f32 %v5201, %v5198
    %v5203 = vadd.f32 %v5197, %v5202
    %v5204 = vld [vmem:[%s485] sm:$0xff]
    %v5205 = vmul.f32 %v5185, %v5204
    %5206 = vadd.xlane.f32.xlu0 %v5205
    %v5207 = vpop.xlane.xlu0 %5206
    %v5208 = vmul.f32 %v5207, %v5204
    %v5209 = vadd.f32 %v5203, %v5208
    %v5210 = vld [vmem:[%s492] sm:$0xff]
    %v5211 = vmul.f32 %v5185, %v5210
    %5212 = vadd.xlane.f32.xlu0 %v5211
    %v5213 = vpop.xlane.xlu0 %5212
    %v5214 = vmul.f32 %v5213, %v5210
    %v5215 = vadd.f32 %v5209, %v5214
    %v5216 = vld [vmem:[%s499] sm:$0xff]
    %v5217 = vmul.f32 %v5185, %v5216
    %5218 = vadd.xlane.f32.xlu0 %v5217
    %v5219 = vpop.xlane.xlu0 %5218
    %v5220 = vmul.f32 %v5219, %v5216
    %v5221 = vadd.f32 %v5215, %v5220
    %v5222 = vld [vmem:[%s506] sm:$0xff]
    %v5223 = vmul.f32 %v5185, %v5222
    %5224 = vadd.xlane.f32.xlu0 %v5223
    %v5225 = vpop.xlane.xlu0 %5224
    %v5226 = vmul.f32 %v5225, %v5222
    %v5227 = vadd.f32 %v5221, %v5226
    %v5228 = vld [vmem:[%s513] sm:$0xff]
    %v5229 = vmul.f32 %v5185, %v5228
    %5230 = vadd.xlane.f32.xlu0 %v5229
    %v5231 = vpop.xlane.xlu0 %5230
    %v5232 = vmul.f32 %v5231, %v5228
    %v5233 = vadd.f32 %v5227, %v5232
    %v5234 = vld [vmem:[%s3] sm:$0xff]
    %v5235 = vld [vmem:[%s3 + $0x8] sm:$0xff]
    %v5236 = vld [vmem:[%s3 + $0x10] sm:$0xff]
    %v5237 = vld [vmem:[%s3 + $0x18] sm:$0xff]
    %v5238 = vld [vmem:[%s3 + $0x20] sm:$0xff]
    %v5239 = vld [vmem:[%s3 + $0x28] sm:$0xff]
    %v5240 = vld [vmem:[%s3 + $0x30] sm:$0xff]
    %v5241 = vld [vmem:[%s3 + $0x38] sm:$0xff]
    %v5242 = vld [vmem:[%s3 + $0x40] sm:$0xff]
    %v5243 = vld [vmem:[%s3 + $0x48] sm:$0xff]
    %v5244 = vld [vmem:[%s3 + $0x50] sm:$0xff]
    %v5245 = vld [vmem:[%s3 + $0x58] sm:$0xff]
    %v5246 = vld [vmem:[%s3 + $0x60] sm:$0xff]
    %v5247 = vld [vmem:[%s3 + $0x68] sm:$0xff]
    %v5248 = vld [vmem:[%s3 + $0x70] sm:$0xff]
    %v5249 = vld [vmem:[%s3 + $0x78] sm:$0xff]
    %v5250 = vld [vmem:[%s3 + $0x80] sm:$0xff]
    %v5251 = vld [vmem:[%s3 + $0x88] sm:$0xff]
    %v5252 = vld [vmem:[%s3 + $0x90] sm:$0xff]
    %v5253 = vld [vmem:[%s3 + $0x98] sm:$0xff]
    %v5254 = vld [vmem:[%s3 + $0xa0] sm:$0xff]
    %v5255 = vld [vmem:[%s3 + $0xa8] sm:$0xff]
    %v5256 = vld [vmem:[%s3 + $0xb0] sm:$0xff]
    %v5257 = vld [vmem:[%s3 + $0xb8] sm:$0xff]
    %v5258 = vld [vmem:[%s3 + $0xc0] sm:$0xff]
    %v5259 = vld [vmem:[%s3 + $0xc8] sm:$0xff]
    %v5260 = vld [vmem:[%s3 + $0xd0] sm:$0xff]
    %v5261 = vld [vmem:[%s3 + $0xd8] sm:$0xff]
    %v5262 = vld [vmem:[%s3 + $0xe0] sm:$0xff]
    %v5263 = vld [vmem:[%s3 + $0xe8] sm:$0xff]
    %v5264 = vld [vmem:[%s3 + $0xf0] sm:$0xff]
    %v5265 = vld [vmem:[%s3 + $0xf8] sm:$0xff]
    %v5266 = vld [vmem:[%s3 + $0x100] sm:$0xff]
    %v5267 = vld [vmem:[%s3 + $0x108] sm:$0xff]
    %v5268 = vld [vmem:[%s3 + $0x110] sm:$0xff]
    %v5269 = vld [vmem:[%s3 + $0x118] sm:$0xff]
    %v5270 = vld [vmem:[%s3 + $0x120] sm:$0xff]
    %v5271 = vld [vmem:[%s3 + $0x128] sm:$0xff]
    %v5272 = vld [vmem:[%s3 + $0x130] sm:$0xff]
    %v5273 = vld [vmem:[%s3 + $0x138] sm:$0xff]
    %v5274 = vld [vmem:[%s3 + $0x140] sm:$0xff]
    %v5275 = vld [vmem:[%s3 + $0x148] sm:$0xff]
    %v5276 = vld [vmem:[%s3 + $0x150] sm:$0xff]
    %v5277 = vld [vmem:[%s3 + $0x158] sm:$0xff]
    %v5278 = vld [vmem:[%s3 + $0x160] sm:$0xff]
    %v5279 = vld [vmem:[%s3 + $0x168] sm:$0xff]
    %v5280 = vld [vmem:[%s3 + $0x170] sm:$0xff]
    %v5281 = vld [vmem:[%s3 + $0x178] sm:$0xff]
    %v5282 = vld [vmem:[%s3 + $0x180] sm:$0xff]
    %v5283 = vld [vmem:[%s3 + $0x188] sm:$0xff]
    %v5284 = vld [vmem:[%s3 + $0x190] sm:$0xff]
    %v5285 = vld [vmem:[%s3 + $0x198] sm:$0xff]
    %v5286 = vld [vmem:[%s3 + $0x1a0] sm:$0xff]
    %v5287 = vld [vmem:[%s3 + $0x1a8] sm:$0xff]
    %v5288 = vld [vmem:[%s3 + $0x1b0] sm:$0xff]
    %v5289 = vld [vmem:[%s3 + $0x1b8] sm:$0xff]
    %v5290 = vld [vmem:[%s3 + $0x1c0] sm:$0xff]
    %v5291 = vld [vmem:[%s3 + $0x1c8] sm:$0xff]
    %v5292 = vld [vmem:[%s3 + $0x1d0] sm:$0xff]
    %v5293 = vld [vmem:[%s3 + $0x1d8] sm:$0xff]
    %v5294 = vld [vmem:[%s3 + $0x1e0] sm:$0xff]
    %v5295 = vld [vmem:[%s3 + $0x1e8] sm:$0xff]
    %v5296 = vld [vmem:[%s3 + $0x1f0] sm:$0xff]
    %v5297 = vld [vmem:[%s3 + $0x1f8] sm:$0xff]
    %v5298 = vld [vmem:[%s3 + $0x200] sm:$0xff]
    %v5299 = vld [vmem:[%s3 + $0x208] sm:$0xff]
    %v5300 = vld [vmem:[%s3 + $0x210] sm:$0xff]
    %v5301 = vld [vmem:[%s3 + $0x218] sm:$0xff]
    %v5302 = vld [vmem:[%s3 + $0x220] sm:$0xff]
    %v5303 = vld [vmem:[%s3 + $0x228] sm:$0xff]
    %v5304 = vld [vmem:[%s3 + $0x230] sm:$0xff]
    %v5305 = vld [vmem:[%s3 + $0x238] sm:$0xff]
    %v5306 = vld [vmem:[%s3 + $0x240] sm:$0xff]
    %v5307 = vld [vmem:[%s3 + $0x248] sm:$0xff]
    %v5308 = vld [vmem:[%s3 + $0x250] sm:$0xff]
    %v5309 = vld [vmem:[%s3 + $0x258] sm:$0xff]
    %v5310 = vld [vmem:[%s3 + $0x260] sm:$0xff]
    %v5311 = vld [vmem:[%s3 + $0x268] sm:$0xff]
    %v5312 = vld [vmem:[%s3 + $0x270] sm:$0xff]
    %v5313 = vld [vmem:[%s3 + $0x278] sm:$0xff]
    %v5314 = vld [vmem:[%s3 + $0x280] sm:$0xff]
    %v5315 = vld [vmem:[%s3 + $0x288] sm:$0xff]
    %v5316 = vld [vmem:[%s3 + $0x290] sm:$0xff]
    %v5317 = vld [vmem:[%s3 + $0x298] sm:$0xff]
    %v5318 = vld [vmem:[%s3 + $0x2a0] sm:$0xff]
    %v5319 = vld [vmem:[%s3 + $0x2a8] sm:$0xff]
    %v5320 = vld [vmem:[%s3 + $0x2b0] sm:$0xff]
    %v5321 = vld [vmem:[%s3 + $0x2b8] sm:$0xff]
    %v5322 = vld [vmem:[%s3 + $0x2c0] sm:$0xff]
    %v5323 = vld [vmem:[%s3 + $0x2c8] sm:$0xff]
    %v5324 = vld [vmem:[%s3 + $0x2d0] sm:$0xff]
    %v5325 = vld [vmem:[%s3 + $0x2d8] sm:$0xff]
    %v5326 = vld [vmem:[%s3 + $0x2e0] sm:$0xff]
    %v5327 = vld [vmem:[%s3 + $0x2e8] sm:$0xff]
    %v5328 = vld [vmem:[%s3 + $0x2f0] sm:$0xff]
    %v5329 = vld [vmem:[%s3 + $0x2f8] sm:$0xff]
    %v5330 = vld [vmem:[%s3 + $0x300] sm:$0xff]
    %v5331 = vld [vmem:[%s3 + $0x308] sm:$0xff]
    %v5332 = vld [vmem:[%s3 + $0x310] sm:$0xff]
    %v5333 = vld [vmem:[%s3 + $0x318] sm:$0xff]
    %v5334 = vld [vmem:[%s3 + $0x320] sm:$0xff]
    %v5335 = vld [vmem:[%s3 + $0x328] sm:$0xff]
    %v5336 = vld [vmem:[%s3 + $0x330] sm:$0xff]
    %v5337 = vld [vmem:[%s3 + $0x338] sm:$0xff]
    %v5338 = vld [vmem:[%s3 + $0x340] sm:$0xff]
    %v5339 = vld [vmem:[%s3 + $0x348] sm:$0xff]
    %v5340 = vld [vmem:[%s3 + $0x350] sm:$0xff]
    %v5341 = vld [vmem:[%s3 + $0x358] sm:$0xff]
    %v5342 = vld [vmem:[%s3 + $0x360] sm:$0xff]
    %v5343 = vld [vmem:[%s3 + $0x368] sm:$0xff]
    %v5344 = vld [vmem:[%s3 + $0x370] sm:$0xff]
    %v5345 = vld [vmem:[%s3 + $0x378] sm:$0xff]
    %v5346 = vld [vmem:[%s3 + $0x380] sm:$0xff]
    %v5347 = vld [vmem:[%s3 + $0x388] sm:$0xff]
    %v5348 = vld [vmem:[%s3 + $0x390] sm:$0xff]
    %v5349 = vld [vmem:[%s3 + $0x398] sm:$0xff]
    %v5350 = vld [vmem:[%s3 + $0x3a0] sm:$0xff]
    %v5351 = vld [vmem:[%s3 + $0x3a8] sm:$0xff]
    %v5352 = vld [vmem:[%s3 + $0x3b0] sm:$0xff]
    %v5353 = vld [vmem:[%s3 + $0x3b8] sm:$0xff]
    %v5354 = vld [vmem:[%s3 + $0x3c0] sm:$0xff]
    %v5355 = vld [vmem:[%s3 + $0x3c8] sm:$0xff]
    %v5356 = vld [vmem:[%s3 + $0x3d0] sm:$0xff]
    %v5357 = vld [vmem:[%s3 + $0x3d8] sm:$0xff]
    %v5358 = vld [vmem:[%s3 + $0x3e0] sm:$0xff]
    %v5359 = vld [vmem:[%s3 + $0x3e8] sm:$0xff]
    %v5360 = vld [vmem:[%s3 + $0x3f0] sm:$0xff]
    %v5361 = vld [vmem:[%s3 + $0x3f8] sm:$0xff]
    %5362 = vmatprep.subr.mxu0 %v5299
    %5363 = vmatpush1.msra.mxu0 %v5298
    %5364 = vmatprep.subr.mxu0 %v5303
    %5365 = vmatpush1.msra.mxu0 %v5302
    %5366 = vmatprep.subr.mxu0 %v5307
    %5367 = vmatpush1.msra.mxu0 %v5306
    %5368 = vmatprep.subr.mxu0 %v5311
    %5369 = vmatpush1.msra.mxu0 %v5310
    %5370 = vmatprep.subr.mxu0 %v5315
    %5371 = vmatpush1.msra.mxu0 %v5314
    %5372 = vmatprep.subr.mxu0 %v5319
    %5373 = vmatpush1.msra.mxu0 %v5318
    %5374 = vmatprep.subr.mxu0 %v5323
    %5375 = vmatpush1.msra.mxu0 %v5322
    %5376 = vmatprep.subr.mxu0 %v5327
    %5377 = vmatpush1.msra.mxu0 %v5326
    %5378 = vmatprep.subr.mxu0 %v5331
    %5379 = vmatpush1.msra.mxu0 %v5330
    %5380 = vmatprep.subr.mxu0 %v5335
    %5381 = vmatpush1.msra.mxu0 %v5334
    %5382 = vmatprep.subr.mxu0 %v5339
    %5383 = vmatpush1.msra.mxu0 %v5338
    %5384 = vmatprep.subr.mxu0 %v5343
    %5385 = vmatpush1.msra.mxu0 %v5342
    %5386 = vmatprep.subr.mxu0 %v5347
    %5387 = vmatpush1.msra.mxu0 %v5346
    %5388 = vmatprep.subr.mxu0 %v5351
    %5389 = vmatpush1.msra.mxu0 %v5350
    %5390 = vmatprep.subr.mxu0 %v5355
    %5391 = vmatpush1.msra.mxu0 %v5354
    %5392 = vmatprep.subr.mxu0 %v5359
    %5393 = vmatpush1.msra.mxu0 %v5358
    %5394 = vmatprep.subr.mxu0 0.0
    %5395 = vmatpush1.msra.mxu0 0.0
    %5396 = vmatprep.subr.mxu0 0.0
    %5397 = vmatpush1.msra.mxu0 0.0
    %5398 = vmatprep.subr.mxu0 0.0
    %5399 = vmatpush1.msra.mxu0 0.0
    %5400 = vmatprep.subr.mxu0 0.0
    %5401 = vmatpush1.msra.mxu0 0.0
    %5402 = vmatprep.subr.mxu0 0.0
    %5403 = vmatpush1.msra.mxu0 0.0
    %5404 = vmatprep.subr.mxu0 0.0
    %5405 = vmatpush1.msra.mxu0 0.0
    %5406 = vmatprep.subr.mxu0 0.0
    %5407 = vmatpush1.msra.mxu0 0.0
    %5408 = vmatprep.subr.mxu0 0.0
    %5409 = vmatpush1.msra.mxu0 0.0
    %5410 = vmatprep.subr.mxu0 0.0
    %5411 = vmatpush1.msra.mxu0 0.0
    %5412 = vmatprep.subr.mxu0 0.0
    %5413 = vmatpush1.msra.mxu0 0.0
    %5414 = vmatprep.subr.mxu0 0.0
    %5415 = vmatpush1.msra.mxu0 0.0
    %5416 = vmatprep.subr.mxu0 0.0
    %5417 = vmatpush1.msra.mxu0 0.0
    %5418 = vmatprep.subr.mxu0 0.0
    %5419 = vmatpush1.msra.mxu0 0.0
    %5420 = vmatprep.subr.mxu0 0.0
    %5421 = vmatpush1.msra.mxu0 0.0
    %5422 = vmatprep.subr.mxu0 0.0
    %5423 = vmatpush1.msra.mxu0 0.0
    %5424 = vmatprep.subr.mxu0 0.0
    %5425 = vmatpush1.msra.mxu0 0.0
    %5426 = vmatprep.mubr.f32.mxu0 0.0
    %5427 = vmatmul.mubr.f32.gmra.mrb[0].mxu0 %v5185
    %v5428 = vpop.f32.mrb[0].mxu0
    %v5429 = vadd.f32 0.0, %v5428
    %v5430 = vpop.f32.mrb[0].mxu0
    %v5431 = vadd.f32 0.0, %v5430
    %5432 = vdwg.mxu0
    %5433 = vmatprep.subr.mxu0 %v5301
    %5434 = vmatpush1.msra.mxu0 %v5300
    %5435 = vmatprep.subr.mxu0 %v5305
    %5436 = vmatpush1.msra.mxu0 %v5304
    %5437 = vmatprep.subr.mxu0 %v5309
    %5438 = vmatpush1.msra.mxu0 %v5308
    %5439 = vmatprep.subr.mxu0 %v5313
    %5440 = vmatpush1.msra.mxu0 %v5312
    %5441 = vmatprep.subr.mxu0 %v5317
    %5442 = vmatpush1.msra.mxu0 %v5316
    %5443 = vmatprep.subr.mxu0 %v5321
    %5444 = vmatpush1.msra.mxu0 %v5320
    %5445 = vmatprep.subr.mxu0 %v5325
    %5446 = vmatpush1.msra.mxu0 %v5324
    %5447 = vmatprep.subr.mxu0 %v5329
    %5448 = vmatpush1.msra.mxu0 %v5328
    %5449 = vmatprep.subr.mxu0 %v5333
    %5450 = vmatpush1.msra.mxu0 %v5332
    %5451 = vmatprep.subr.mxu0 %v5337
    %5452 = vmatpush1.msra.mxu0 %v5336
    %5453 = vmatprep.subr.mxu0 %v5341
    %5454 = vmatpush1.msra.mxu0 %v5340
    %5455 = vmatprep.subr.mxu0 %v5345
    %5456 = vmatpush1.msra.mxu0 %v5344
    %5457 = vmatprep.subr.mxu0 %v5349
    %5458 = vmatpush1.msra.mxu0 %v5348
    %5459 = vmatprep.subr.mxu0 %v5353
    %5460 = vmatpush1.msra.mxu0 %v5352
    %5461 = vmatprep.subr.mxu0 %v5357
    %5462 = vmatpush1.msra.mxu0 %v5356
    %5463 = vmatprep.subr.mxu0 %v5361
    %5464 = vmatpush1.msra.mxu0 %v5360
    %5465 = vmatprep.subr.mxu0 0.0
    %5466 = vmatpush1.msra.mxu0 0.0
    %5467 = vmatprep.subr.mxu0 0.0
    %5468 = vmatpush1.msra.mxu0 0.0
    %5469 = vmatprep.subr.mxu0 0.0
    %5470 = vmatpush1.msra.mxu0 0.0
    %5471 = vmatprep.subr.mxu0 0.0
    %5472 = vmatpush1.msra.mxu0 0.0
    %5473 = vmatprep.subr.mxu0 0.0
    %5474 = vmatpush1.msra.mxu0 0.0
    %5475 = vmatprep.subr.mxu0 0.0
    %5476 = vmatpush1.msra.mxu0 0.0
    %5477 = vmatprep.subr.mxu0 0.0
    %5478 = vmatpush1.msra.mxu0 0.0
    %5479 = vmatprep.subr.mxu0 0.0
    %5480 = vmatpush1.msra.mxu0 0.0
    %5481 = vmatprep.subr.mxu0 0.0
    %5482 = vmatpush1.msra.mxu0 0.0
    %5483 = vmatprep.subr.mxu0 0.0
    %5484 = vmatpush1.msra.mxu0 0.0
    %5485 = vmatprep.subr.mxu0 0.0
    %5486 = vmatpush1.msra.mxu0 0.0
    %5487 = vmatprep.subr.mxu0 0.0
    %5488 = vmatpush1.msra.mxu0 0.0
    %5489 = vmatprep.subr.mxu0 0.0
    %5490 = vmatpush1.msra.mxu0 0.0
    %5491 = vmatprep.subr.mxu0 0.0
    %5492 = vmatpush1.msra.mxu0 0.0
    %5493 = vmatprep.subr.mxu0 0.0
    %5494 = vmatpush1.msra.mxu0 0.0
    %5495 = vmatprep.subr.mxu0 0.0
    %5496 = vmatpush1.msra.mxu0 0.0
    %5497 = vmatprep.mubr.f32.mxu0 0.0
    %5498 = vmatmul.mubr.f32.gmra.mrb[0].mxu0 %v5185
    %v5499 = vpop.f32.mrb[0].mxu0
    %v5500 = vadd.f32 0.0, %v5499
    %v5501 = vpop.f32.mrb[0].mxu0
    %v5502 = vadd.f32 0.0, %v5501
    %5503 = vdwg.mxu0
    %5504 = vmatprep.subr.mxu0 %v5235
    %5505 = vmatpush1.msra.mxu0 %v5234
    %5506 = vmatprep.subr.mxu0 %v5239
    %5507 = vmatpush1.msra.mxu0 %v5238
    %5508 = vmatprep.subr.mxu0 %v5243
    %5509 = vmatpush1.msra.mxu0 %v5242
    %5510 = vmatprep.subr.mxu0 %v5247
    %5511 = vmatpush1.msra.mxu0 %v5246
    %5512 = vmatprep.subr.mxu0 %v5251
    %5513 = vmatpush1.msra.mxu0 %v5250
    %5514 = vmatprep.subr.mxu0 %v5255
    %5515 = vmatpush1.msra.mxu0 %v5254
    %5516 = vmatprep.subr.mxu0 %v5259
    %5517 = vmatpush1.msra.mxu0 %v5258
    %5518 = vmatprep.subr.mxu0 %v5263
    %5519 = vmatpush1.msra.mxu0 %v5262
    %5520 = vmatprep.subr.mxu0 %v5267
    %5521 = vmatpush1.msra.mxu0 %v5266
    %5522 = vmatprep.subr.mxu0 %v5271
    %5523 = vmatpush1.msra.mxu0 %v5270
    %5524 = vmatprep.subr.mxu0 %v5275
    %5525 = vmatpush1.msra.mxu0 %v5274
    %5526 = vmatprep.subr.mxu0 %v5279
    %5527 = vmatpush1.msra.mxu0 %v5278
    %5528 = vmatprep.subr.mxu0 %v5283
    %5529 = vmatpush1.msra.mxu0 %v5282
    %5530 = vmatprep.subr.mxu0 %v5287
    %5531 = vmatpush1.msra.mxu0 %v5286
    %5532 = vmatprep.subr.mxu0 %v5291
    %5533 = vmatpush1.msra.mxu0 %v5290
    %5534 = vmatprep.subr.mxu0 %v5295
    %5535 = vmatpush1.msra.mxu0 %v5294
    %5536 = vmatprep.subr.mxu0 0.0
    %5537 = vmatpush1.msra.mxu0 0.0
    %5538 = vmatprep.subr.mxu0 0.0
    %5539 = vmatpush1.msra.mxu0 0.0
    %5540 = vmatprep.subr.mxu0 0.0
    %5541 = vmatpush1.msra.mxu0 0.0
    %5542 = vmatprep.subr.mxu0 0.0
    %5543 = vmatpush1.msra.mxu0 0.0
    %5544 = vmatprep.subr.mxu0 0.0
    %5545 = vmatpush1.msra.mxu0 0.0
    %5546 = vmatprep.subr.mxu0 0.0
    %5547 = vmatpush1.msra.mxu0 0.0
    %5548 = vmatprep.subr.mxu0 0.0
    %5549 = vmatpush1.msra.mxu0 0.0
    %5550 = vmatprep.subr.mxu0 0.0
    %5551 = vmatpush1.msra.mxu0 0.0
    %5552 = vmatprep.subr.mxu0 0.0
    %5553 = vmatpush1.msra.mxu0 0.0
    %5554 = vmatprep.subr.mxu0 0.0
    %5555 = vmatpush1.msra.mxu0 0.0
    %5556 = vmatprep.subr.mxu0 0.0
    %5557 = vmatpush1.msra.mxu0 0.0
    %5558 = vmatprep.subr.mxu0 0.0
    %5559 = vmatpush1.msra.mxu0 0.0
    %5560 = vmatprep.subr.mxu0 0.0
    %5561 = vmatpush1.msra.mxu0 0.0
    %5562 = vmatprep.subr.mxu0 0.0
    %5563 = vmatpush1.msra.mxu0 0.0
    %5564 = vmatprep.subr.mxu0 0.0
    %5565 = vmatpush1.msra.mxu0 0.0
    %5566 = vmatprep.subr.mxu0 0.0
    %5567 = vmatpush1.msra.mxu0 0.0
    %5568 = vmatprep.mubr.f32.mxu0 0.0
    %5569 = vmatmul.mubr.f32.gmra.mrb[0].mxu0 %v5233
    %v5570 = vpop.f32.mrb[0].mxu0
    %v5571 = vadd.f32 %v5429, %v5570
    %v5572 = vpop.f32.mrb[0].mxu0
    %v5573 = vadd.f32 %v5431, %v5572
    %5574 = vdwg.mxu0
    %5575 = vmatprep.subr.mxu0 %v5237
    %5576 = vmatpush1.msra.mxu0 %v5236
    %5577 = vmatprep.subr.mxu0 %v5241
    %5578 = vmatpush1.msra.mxu0 %v5240
    %5579 = vmatprep.subr.mxu0 %v5245
    %5580 = vmatpush1.msra.mxu0 %v5244
    %5581 = vmatprep.subr.mxu0 %v5249
    %5582 = vmatpush1.msra.mxu0 %v5248
    %5583 = vmatprep.subr.mxu0 %v5253
    %5584 = vmatpush1.msra.mxu0 %v5252
    %5585 = vmatprep.subr.mxu0 %v5257
    %5586 = vmatpush1.msra.mxu0 %v5256
    %5587 = vmatprep.subr.mxu0 %v5261
    %5588 = vmatpush1.msra.mxu0 %v5260
    %5589 = vmatprep.subr.mxu0 %v5265
    %5590 = vmatpush1.msra.mxu0 %v5264
    %5591 = vmatprep.subr.mxu0 %v5269
    %5592 = vmatpush1.msra.mxu0 %v5268
    %5593 = vmatprep.subr.mxu0 %v5273
    %5594 = vmatpush1.msra.mxu0 %v5272
    %5595 = vmatprep.subr.mxu0 %v5277
    %5596 = vmatpush1.msra.mxu0 %v5276
    %5597 = vmatprep.subr.mxu0 %v5281
    %5598 = vmatpush1.msra.mxu0 %v5280
    %5599 = vmatprep.subr.mxu0 %v5285
    %5600 = vmatpush1.msra.mxu0 %v5284
    %5601 = vmatprep.subr.mxu0 %v5289
    %5602 = vmatpush1.msra.mxu0 %v5288
    %5603 = vmatprep.subr.mxu0 %v5293
    %5604 = vmatpush1.msra.mxu0 %v5292
    %5605 = vmatprep.subr.mxu0 %v5297
    %5606 = vmatpush1.msra.mxu0 %v5296
    %5607 = vmatprep.subr.mxu0 0.0
    %5608 = vmatpush1.msra.mxu0 0.0
    %5609 = vmatprep.subr.mxu0 0.0
    %5610 = vmatpush1.msra.mxu0 0.0
    %5611 = vmatprep.subr.mxu0 0.0
    %5612 = vmatpush1.msra.mxu0 0.0
    %5613 = vmatprep.subr.mxu0 0.0
    %5614 = vmatpush1.msra.mxu0 0.0
    %5615 = vmatprep.subr.mxu0 0.0
    %5616 = vmatpush1.msra.mxu0 0.0
    %5617 = vmatprep.subr.mxu0 0.0
    %5618 = vmatpush1.msra.mxu0 0.0
    %5619 = vmatprep.subr.mxu0 0.0
    %5620 = vmatpush1.msra.mxu0 0.0
    %5621 = vmatprep.subr.mxu0 0.0
    %5622 = vmatpush1.msra.mxu0 0.0
    %5623 = vmatprep.subr.mxu0 0.0
    %5624 = vmatpush1.msra.mxu0 0.0
    %5625 = vmatprep.subr.mxu0 0.0
    %5626 = vmatpush1.msra.mxu0 0.0
    %5627 = vmatprep.subr.mxu0 0.0
    %5628 = vmatpush1.msra.mxu0 0.0
    %5629 = vmatprep.subr.mxu0 0.0
    %5630 = vmatpush1.msra.mxu0 0.0
    %5631 = vmatprep.subr.mxu0 0.0
    %5632 = vmatpush1.msra.mxu0 0.0
    %5633 = vmatprep.subr.mxu0 0.0
    %5634 = vmatpush1.msra.mxu0 0.0
    %5635 = vmatprep.subr.mxu0 0.0
    %5636 = vmatpush1.msra.mxu0 0.0
    %5637 = vmatprep.subr.mxu0 0.0
    %5638 = vmatpush1.msra.mxu0 0.0
    %5639 = vmatprep.mubr.f32.mxu0 0.0
    %5640 = vmatmul.mubr.f32.gmra.mrb[0].mxu0 %v5233
    %v5641 = vpop.f32.mrb[0].mxu0
    %v5642 = vadd.f32 %v5500, %v5641
    %v5643 = vpop.f32.mrb[0].mxu0
    %v5644 = vadd.f32 %v5502, %v5643
    %5645 = vdwg.mxu0
    %v5646 = vadd.f32 %v5571, %v4872
    %v5647 = vadd.f32 %v5573, %v4874
    %v5648 = vadd.f32 %v5642, %v4943
    %v5649 = vadd.f32 %v5644, %v4945
    %v5650 = vld [vmem:[%s4] sm:$0xff]
    %v5651 = vld [vmem:[%s4 + $0x8] sm:$0xff]
    %v5652 = vld [vmem:[%s4 + $0x10] sm:$0xff]
    %v5653 = vld [vmem:[%s4 + $0x18] sm:$0xff]
    %v5654 = vadd.f32 %v5646, %v5650
    %v5655 = vadd.f32 %v5647, %v5651
    %v5656 = vadd.f32 %v5648, %v5652
    %v5657 = vadd.f32 %v5649, %v5653
    %v5658 = vxor.u32 %v5654, 2147483648
    %v5659 = vmul.f32 %v5658, 1.442695
    %v5660 = vpow.pop %v5659
    %v5661 = vadd.f32 %v5660, 1.0
    %v5662 = vrcp.pop %v5661
    %v5663 = vmul.f32 1.0, %v5662
    %v5664 = vxor.u32 %v5655, 2147483648
    %v5665 = vmul.f32 %v5664, 1.442695
    %v5666 = vpow.pop %v5665
    %v5667 = vadd.f32 %v5666, 1.0
    %v5668 = vrcp.pop %v5667
    %v5669 = vmul.f32 1.0, %v5668
    %v5670 = vtanh.pop %v5656
    %v5671 = vxor.u32 %v5657, 2147483648
    %v5672 = vmul.f32 %v5671, 1.442695
    %v5673 = vpow.pop %v5672
    %v5674 = vadd.f32 %v5673, 1.0
    %v5675 = vrcp.pop %v5674
    %v5676 = vmul.f32 1.0, %v5675
    %v5677 = vmul.f32 %v5669, %v4736
    %v5678 = vmul.f32 %v5663, %v5670
    %v5679 = vadd.f32 %v5677, %v5678
    %v5680 = vtanh.pop %v5679
    %v5681 = vmul.f32 %v5676, %v5680
    %s5682 = scalar_lea.vmem [#allocation2], 40
    %5683 = vst [vmem:[%s5682] sm:$0xff] %v5681
    %v5684 = vld [vmem:[%s3 + $0x400] sm:$0xff]
    %v5685 = vld [vmem:[%s3 + $0x408] sm:$0xff]
    %v5686 = vld [vmem:[%s3 + $0x410] sm:$0xff]
    %v5687 = vld [vmem:[%s3 + $0x418] sm:$0xff]
    %v5688 = vld [vmem:[%s3 + $0x420] sm:$0xff]
    %v5689 = vld [vmem:[%s3 + $0x428] sm:$0xff]
    %v5690 = vld [vmem:[%s3 + $0x430] sm:$0xff]
    %v5691 = vld [vmem:[%s3 + $0x438] sm:$0xff]
    %v5692 = vld [vmem:[%s3 + $0x440] sm:$0xff]
    %v5693 = vld [vmem:[%s3 + $0x448] sm:$0xff]
    %v5694 = vld [vmem:[%s3 + $0x450] sm:$0xff]
    %v5695 = vld [vmem:[%s3 + $0x458] sm:$0xff]
    %v5696 = vld [vmem:[%s3 + $0x460] sm:$0xff]
    %v5697 = vld [vmem:[%s3 + $0x468] sm:$0xff]
    %v5698 = vld [vmem:[%s3 + $0x470] sm:$0xff]
    %v5699 = vld [vmem:[%s3 + $0x478] sm:$0xff]
    %v5700 = vld [vmem:[%s3 + $0x480] sm:$0xff]
    %v5701 = vld [vmem:[%s3 + $0x488] sm:$0xff]
    %v5702 = vld [vmem:[%s3 + $0x490] sm:$0xff]
    %v5703 = vld [vmem:[%s3 + $0x498] sm:$0xff]
    %v5704 = vld [vmem:[%s3 + $0x4a0] sm:$0xff]
    %v5705 = vld [vmem:[%s3 + $0x4a8] sm:$0xff]
    %v5706 = vld [vmem:[%s3 + $0x4b0] sm:$0xff]
    %v5707 = vld [vmem:[%s3 + $0x4b8] sm:$0xff]
    %v5708 = vld [vmem:[%s3 + $0x4c0] sm:$0xff]
    %v5709 = vld [vmem:[%s3 + $0x4c8] sm:$0xff]
    %v5710 = vld [vmem:[%s3 + $0x4d0] sm:$0xff]
    %v5711 = vld [vmem:[%s3 + $0x4d8] sm:$0xff]
    %v5712 = vld [vmem:[%s3 + $0x4e0] sm:$0xff]
    %v5713 = vld [vmem:[%s3 + $0x4e8] sm:$0xff]
    %v5714 = vld [vmem:[%s3 + $0x4f0] sm:$0xff]
    %v5715 = vld [vmem:[%s3 + $0x4f8] sm:$0xff]
    %v5716 = vld [vmem:[%s3 + $0x500] sm:$0xff]
    %v5717 = vld [vmem:[%s3 + $0x508] sm:$0xff]
    %v5718 = vld [vmem:[%s3 + $0x510] sm:$0xff]
    %v5719 = vld [vmem:[%s3 + $0x518] sm:$0xff]
    %v5720 = vld [vmem:[%s3 + $0x520] sm:$0xff]
    %v5721 = vld [vmem:[%s3 + $0x528] sm:$0xff]
    %v5722 = vld [vmem:[%s3 + $0x530] sm:$0xff]
    %v5723 = vld [vmem:[%s3 + $0x538] sm:$0xff]
    %v5724 = vld [vmem:[%s3 + $0x540] sm:$0xff]
    %v5725 = vld [vmem:[%s3 + $0x548] sm:$0xff]
    %v5726 = vld [vmem:[%s3 + $0x550] sm:$0xff]
    %v5727 = vld [vmem:[%s3 + $0x558] sm:$0xff]
    %v5728 = vld [vmem:[%s3 + $0x560] sm:$0xff]
    %v5729 = vld [vmem:[%s3 + $0x568] sm:$0xff]
    %v5730 = vld [vmem:[%s3 + $0x570] sm:$0xff]
    %v5731 = vld [vmem:[%s3 + $0x578] sm:$0xff]
    %v5732 = vld [vmem:[%s3 + $0x580] sm:$0xff]
    %v5733 = vld [vmem:[%s3 + $0x588] sm:$0xff]
    %v5734 = vld [vmem:[%s3 + $0x590] sm:$0xff]
    %v5735 = vld [vmem:[%s3 + $0x598] sm:$0xff]
    %v5736 = vld [vmem:[%s3 + $0x5a0] sm:$0xff]
    %v5737 = vld [vmem:[%s3 + $0x5a8] sm:$0xff]
    %v5738 = vld [vmem:[%s3 + $0x5b0] sm:$0xff]
    %v5739 = vld [vmem:[%s3 + $0x5b8] sm:$0xff]
    %v5740 = vld [vmem:[%s3 + $0x5c0] sm:$0xff]
    %v5741 = vld [vmem:[%s3 + $0x5c8] sm:$0xff]
    %v5742 = vld [vmem:[%s3 + $0x5d0] sm:$0xff]
    %v5743 = vld [vmem:[%s3 + $0x5d8] sm:$0xff]
    %v5744 = vld [vmem:[%s3 + $0x5e0] sm:$0xff]
    %v5745 = vld [vmem:[%s3 + $0x5e8] sm:$0xff]
    %v5746 = vld [vmem:[%s3 + $0x5f0] sm:$0xff]
    %v5747 = vld [vmem:[%s3 + $0x5f8] sm:$0xff]
    %5748 = vmatprep.subr.mxu0 %v5685
    %5749 = vmatpush1.msra.mxu0 %v5684
    %5750 = vmatprep.subr.mxu0 %v5689
    %5751 = vmatpush1.msra.mxu0 %v5688
    %5752 = vmatprep.subr.mxu0 %v5693
    %5753 = vmatpush1.msra.mxu0 %v5692
    %5754 = vmatprep.subr.mxu0 %v5697
    %5755 = vmatpush1.msra.mxu0 %v5696
    %5756 = vmatprep.subr.mxu0 %v5701
    %5757 = vmatpush1.msra.mxu0 %v5700
    %5758 = vmatprep.subr.mxu0 %v5705
    %5759 = vmatpush1.msra.mxu0 %v5704
    %5760 = vmatprep.subr.mxu0 %v5709
    %5761 = vmatpush1.msra.mxu0 %v5708
    %5762 = vmatprep.subr.mxu0 %v5713
    %5763 = vmatpush1.msra.mxu0 %v5712
    %5764 = vmatprep.subr.mxu0 %v5717
    %5765 = vmatpush1.msra.mxu0 %v5716
    %5766 = vmatprep.subr.mxu0 %v5721
    %5767 = vmatpush1.msra.mxu0 %v5720
    %5768 = vmatprep.subr.mxu0 %v5725
    %5769 = vmatpush1.msra.mxu0 %v5724
    %5770 = vmatprep.subr.mxu0 %v5729
    %5771 = vmatpush1.msra.mxu0 %v5728
    %5772 = vmatprep.subr.mxu0 %v5733
    %5773 = vmatpush1.msra.mxu0 %v5732
    %5774 = vmatprep.subr.mxu0 %v5737
    %5775 = vmatpush1.msra.mxu0 %v5736
    %5776 = vmatprep.subr.mxu0 %v5741
    %5777 = vmatpush1.msra.mxu0 %v5740
    %5778 = vmatprep.subr.mxu0 %v5745
    %5779 = vmatpush1.msra.mxu0 %v5744
    %5780 = vmatprep.subr.mxu0 0.0
    %5781 = vmatpush1.msra.mxu0 0.0
    %5782 = vmatprep.subr.mxu0 0.0
    %5783 = vmatpush1.msra.mxu0 0.0
    %5784 = vmatprep.subr.mxu0 0.0
    %5785 = vmatpush1.msra.mxu0 0.0
    %5786 = vmatprep.subr.mxu0 0.0
    %5787 = vmatpush1.msra.mxu0 0.0
    %5788 = vmatprep.subr.mxu0 0.0
    %5789 = vmatpush1.msra.mxu0 0.0
    %5790 = vmatprep.subr.mxu0 0.0
    %5791 = vmatpush1.msra.mxu0 0.0
    %5792 = vmatprep.subr.mxu0 0.0
    %5793 = vmatpush1.msra.mxu0 0.0
    %5794 = vmatprep.subr.mxu0 0.0
    %5795 = vmatpush1.msra.mxu0 0.0
    %5796 = vmatprep.subr.mxu0 0.0
    %5797 = vmatpush1.msra.mxu0 0.0
    %5798 = vmatprep.subr.mxu0 0.0
    %5799 = vmatpush1.msra.mxu0 0.0
    %5800 = vmatprep.subr.mxu0 0.0
    %5801 = vmatpush1.msra.mxu0 0.0
    %5802 = vmatprep.subr.mxu0 0.0
    %5803 = vmatpush1.msra.mxu0 0.0
    %5804 = vmatprep.subr.mxu0 0.0
    %5805 = vmatpush1.msra.mxu0 0.0
    %5806 = vmatprep.subr.mxu0 0.0
    %5807 = vmatpush1.msra.mxu0 0.0
    %5808 = vmatprep.subr.mxu0 0.0
    %5809 = vmatpush1.msra.mxu0 0.0
    %5810 = vmatprep.subr.mxu0 0.0
    %5811 = vmatpush1.msra.mxu0 0.0
    %5812 = vmatprep.mubr.f32.mxu0 0.0
    %5813 = vmatmul.mubr.f32.gmra.mrb[0].mxu0 %v5681
    %v5814 = vpop.f32.mrb[0].mxu0
    %v5815 = vadd.f32 0.0, %v5814
    %v5816 = vpop.f32.mrb[0].mxu0
    %v5817 = vadd.f32 0.0, %v5816
    %5818 = vdwg.mxu0
    %5819 = vmatprep.subr.mxu0 %v5687
    %5820 = vmatpush1.msra.mxu0 %v5686
    %5821 = vmatprep.subr.mxu0 %v5691
    %5822 = vmatpush1.msra.mxu0 %v5690
    %5823 = vmatprep.subr.mxu0 %v5695
    %5824 = vmatpush1.msra.mxu0 %v5694
    %5825 = vmatprep.subr.mxu0 %v5699
    %5826 = vmatpush1.msra.mxu0 %v5698
    %5827 = vmatprep.subr.mxu0 %v5703
    %5828 = vmatpush1.msra.mxu0 %v5702
    %5829 = vmatprep.subr.mxu0 %v5707
    %5830 = vmatpush1.msra.mxu0 %v5706
    %5831 = vmatprep.subr.mxu0 %v5711
    %5832 = vmatpush1.msra.mxu0 %v5710
    %5833 = vmatprep.subr.mxu0 %v5715
    %5834 = vmatpush1.msra.mxu0 %v5714
    %5835 = vmatprep.subr.mxu0 %v5719
    %5836 = vmatpush1.msra.mxu0 %v5718
    %5837 = vmatprep.subr.mxu0 %v5723
    %5838 = vmatpush1.msra.mxu0 %v5722
    %5839 = vmatprep.subr.mxu0 %v5727
    %5840 = vmatpush1.msra.mxu0 %v5726
    %5841 = vmatprep.subr.mxu0 %v5731
    %5842 = vmatpush1.msra.mxu0 %v5730
    %5843 = vmatprep.subr.mxu0 %v5735
    %5844 = vmatpush1.msra.mxu0 %v5734
    %5845 = vmatprep.subr.mxu0 %v5739
    %5846 = vmatpush1.msra.mxu0 %v5738
    %5847 = vmatprep.subr.mxu0 %v5743
    %5848 = vmatpush1.msra.mxu0 %v5742
    %5849 = vmatprep.subr.mxu0 %v5747
    %5850 = vmatpush1.msra.mxu0 %v5746
    %5851 = vmatprep.subr.mxu0 0.0
    %5852 = vmatpush1.msra.mxu0 0.0
    %5853 = vmatprep.subr.mxu0 0.0
    %5854 = vmatpush1.msra.mxu0 0.0
    %5855 = vmatprep.subr.mxu0 0.0
    %5856 = vmatpush1.msra.mxu0 0.0
    %5857 = vmatprep.subr.mxu0 0.0
    %5858 = vmatpush1.msra.mxu0 0.0
    %5859 = vmatprep.subr.mxu0 0.0
    %5860 = vmatpush1.msra.mxu0 0.0
    %5861 = vmatprep.subr.mxu0 0.0
    %5862 = vmatpush1.msra.mxu0 0.0
    %5863 = vmatprep.subr.mxu0 0.0
    %5864 = vmatpush1.msra.mxu0 0.0
    %5865 = vmatprep.subr.mxu0 0.0
    %5866 = vmatpush1.msra.mxu0 0.0
    %5867 = vmatprep.subr.mxu0 0.0
    %5868 = vmatpush1.msra.mxu0 0.0
    %5869 = vmatprep.subr.mxu0 0.0
    %5870 = vmatpush1.msra.mxu0 0.0
    %5871 = vmatprep.subr.mxu0 0.0
    %5872 = vmatpush1.msra.mxu0 0.0
    %5873 = vmatprep.subr.mxu0 0.0
    %5874 = vmatpush1.msra.mxu0 0.0
    %5875 = vmatprep.subr.mxu0 0.0
    %5876 = vmatpush1.msra.mxu0 0.0
    %5877 = vmatprep.subr.mxu0 0.0
    %5878 = vmatpush1.msra.mxu0 0.0
    %5879 = vmatprep.subr.mxu0 0.0
    %5880 = vmatpush1.msra.mxu0 0.0
    %5881 = vmatprep.subr.mxu0 0.0
    %5882 = vmatpush1.msra.mxu0 0.0
    %5883 = vmatprep.mubr.f32.mxu0 0.0
    %5884 = vmatmul.mubr.f32.gmra.mrb[0].mxu0 %v5681
    %v5885 = vpop.f32.mrb[0].mxu0
    %v5886 = vadd.f32 0.0, %v5885
    %v5887 = vpop.f32.mrb[0].mxu0
    %v5888 = vadd.f32 0.0, %v5887
    %5889 = vdwg.mxu0
    %s5890 = scalar_lea.vmem %s0, 192
    %v5891 = vld [vmem:[%s5890] sm:$0xff]
    %v5892 = vld [vmem:[%s5890 + $0x8] sm:$0xff]
    %v5893 = vld [vmem:[%s5890 + $0x10] sm:$0xff]
    %v5894 = vld [vmem:[%s5890 + $0x18] sm:$0xff]
    %v5895 = vld [vmem:[%s2] sm:$0xff]
    %v5896 = vld [vmem:[%s2 + $0x8] sm:$0xff]
    %v5897 = vld [vmem:[%s2 + $0x10] sm:$0xff]
    %v5898 = vld [vmem:[%s2 + $0x18] sm:$0xff]
    %v5899 = vld [vmem:[%s2 + $0x20] sm:$0xff]
    %v5900 = vld [vmem:[%s2 + $0x28] sm:$0xff]
    %v5901 = vld [vmem:[%s2 + $0x30] sm:$0xff]
    %v5902 = vld [vmem:[%s2 + $0x38] sm:$0xff]
    %v5903 = vld [vmem:[%s2 + $0x40] sm:$0xff]
    %v5904 = vld [vmem:[%s2 + $0x48] sm:$0xff]
    %v5905 = vld [vmem:[%s2 + $0x50] sm:$0xff]
    %v5906 = vld [vmem:[%s2 + $0x58] sm:$0xff]
    %v5907 = vld [vmem:[%s2 + $0x60] sm:$0xff]
    %v5908 = vld [vmem:[%s2 + $0x68] sm:$0xff]
    %v5909 = vld [vmem:[%s2 + $0x70] sm:$0xff]
    %v5910 = vld [vmem:[%s2 + $0x78] sm:$0xff]
    %v5911 = vld [vmem:[%s2 + $0x80] sm:$0xff]
    %v5912 = vld [vmem:[%s2 + $0x88] sm:$0xff]
    %v5913 = vld [vmem:[%s2 + $0x90] sm:$0xff]
    %v5914 = vld [vmem:[%s2 + $0x98] sm:$0xff]
    %v5915 = vld [vmem:[%s2 + $0xa0] sm:$0xff]
    %v5916 = vld [vmem:[%s2 + $0xa8] sm:$0xff]
    %v5917 = vld [vmem:[%s2 + $0xb0] sm:$0xff]
    %v5918 = vld [vmem:[%s2 + $0xb8] sm:$0xff]
    %v5919 = vld [vmem:[%s2 + $0xc0] sm:$0xff]
    %v5920 = vld [vmem:[%s2 + $0xc8] sm:$0xff]
    %v5921 = vld [vmem:[%s2 + $0xd0] sm:$0xff]
    %v5922 = vld [vmem:[%s2 + $0xd8] sm:$0xff]
    %v5923 = vld [vmem:[%s2 + $0xe0] sm:$0xff]
    %v5924 = vld [vmem:[%s2 + $0xe8] sm:$0xff]
    %v5925 = vld [vmem:[%s2 + $0xf0] sm:$0xff]
    %v5926 = vld [vmem:[%s2 + $0xf8] sm:$0xff]
    %v5927 = vld [vmem:[%s2 + $0x100] sm:$0xff]
    %v5928 = vld [vmem:[%s2 + $0x108] sm:$0xff]
    %v5929 = vld [vmem:[%s2 + $0x110] sm:$0xff]
    %v5930 = vld [vmem:[%s2 + $0x118] sm:$0xff]
    %v5931 = vld [vmem:[%s2 + $0x120] sm:$0xff]
    %v5932 = vld [vmem:[%s2 + $0x128] sm:$0xff]
    %v5933 = vld [vmem:[%s2 + $0x130] sm:$0xff]
    %v5934 = vld [vmem:[%s2 + $0x138] sm:$0xff]
    %v5935 = vld [vmem:[%s2 + $0x140] sm:$0xff]
    %v5936 = vld [vmem:[%s2 + $0x148] sm:$0xff]
    %v5937 = vld [vmem:[%s2 + $0x150] sm:$0xff]
    %v5938 = vld [vmem:[%s2 + $0x158] sm:$0xff]
    %v5939 = vld [vmem:[%s2 + $0x160] sm:$0xff]
    %v5940 = vld [vmem:[%s2 + $0x168] sm:$0xff]
    %v5941 = vld [vmem:[%s2 + $0x170] sm:$0xff]
    %v5942 = vld [vmem:[%s2 + $0x178] sm:$0xff]
    %v5943 = vld [vmem:[%s2 + $0x180] sm:$0xff]
    %v5944 = vld [vmem:[%s2 + $0x188] sm:$0xff]
    %v5945 = vld [vmem:[%s2 + $0x190] sm:$0xff]
    %v5946 = vld [vmem:[%s2 + $0x198] sm:$0xff]
    %v5947 = vld [vmem:[%s2 + $0x1a0] sm:$0xff]
    %v5948 = vld [vmem:[%s2 + $0x1a8] sm:$0xff]
    %v5949 = vld [vmem:[%s2 + $0x1b0] sm:$0xff]
    %v5950 = vld [vmem:[%s2 + $0x1b8] sm:$0xff]
    %v5951 = vld [vmem:[%s2 + $0x1c0] sm:$0xff]
    %v5952 = vld [vmem:[%s2 + $0x1c8] sm:$0xff]
    %v5953 = vld [vmem:[%s2 + $0x1d0] sm:$0xff]
    %v5954 = vld [vmem:[%s2 + $0x1d8] sm:$0xff]
    %v5955 = vld [vmem:[%s2 + $0x1e0] sm:$0xff]
    %v5956 = vld [vmem:[%s2 + $0x1e8] sm:$0xff]
    %v5957 = vld [vmem:[%s2 + $0x1f0] sm:$0xff]
    %v5958 = vld [vmem:[%s2 + $0x1f8] sm:$0xff]
    %5959 = vmatprep.subr.mxu0 %v5896
    %5960 = vmatpush1.msra.mxu0 %v5895
    %5961 = vmatprep.subr.mxu0 %v5900
    %5962 = vmatpush1.msra.mxu0 %v5899
    %5963 = vmatprep.subr.mxu0 %v5904
    %5964 = vmatpush1.msra.mxu0 %v5903
    %5965 = vmatprep.subr.mxu0 %v5908
    %5966 = vmatpush1.msra.mxu0 %v5907
    %5967 = vmatprep.subr.mxu0 %v5912
    %5968 = vmatpush1.msra.mxu0 %v5911
    %5969 = vmatprep.subr.mxu0 %v5916
    %5970 = vmatpush1.msra.mxu0 %v5915
    %5971 = vmatprep.subr.mxu0 %v5920
    %5972 = vmatpush1.msra.mxu0 %v5919
    %5973 = vmatprep.subr.mxu0 %v5924
    %5974 = vmatpush1.msra.mxu0 %v5923
    %5975 = vmatprep.subr.mxu0 %v5928
    %5976 = vmatpush1.msra.mxu0 %v5927
    %5977 = vmatprep.subr.mxu0 %v5932
    %5978 = vmatpush1.msra.mxu0 %v5931
    %5979 = vmatprep.subr.mxu0 %v5936
    %5980 = vmatpush1.msra.mxu0 %v5935
    %5981 = vmatprep.subr.mxu0 %v5940
    %5982 = vmatpush1.msra.mxu0 %v5939
    %5983 = vmatprep.subr.mxu0 %v5944
    %5984 = vmatpush1.msra.mxu0 %v5943
    %5985 = vmatprep.subr.mxu0 %v5948
    %5986 = vmatpush1.msra.mxu0 %v5947
    %5987 = vmatprep.subr.mxu0 %v5952
    %5988 = vmatpush1.msra.mxu0 %v5951
    %5989 = vmatprep.subr.mxu0 %v5956
    %5990 = vmatpush1.msra.mxu0 %v5955
    %5991 = vmatprep.subr.mxu0 0.0
    %5992 = vmatpush1.msra.mxu0 0.0
    %5993 = vmatprep.subr.mxu0 0.0
    %5994 = vmatpush1.msra.mxu0 0.0
    %5995 = vmatprep.subr.mxu0 0.0
    %5996 = vmatpush1.msra.mxu0 0.0
    %5997 = vmatprep.subr.mxu0 0.0
    %5998 = vmatpush1.msra.mxu0 0.0
    %5999 = vmatprep.subr.mxu0 0.0
    %6000 = vmatpush1.msra.mxu0 0.0
    %6001 = vmatprep.subr.mxu0 0.0
    %6002 = vmatpush1.msra.mxu0 0.0
    %6003 = vmatprep.subr.mxu0 0.0
    %6004 = vmatpush1.msra.mxu0 0.0
    %6005 = vmatprep.subr.mxu0 0.0
    %6006 = vmatpush1.msra.mxu0 0.0
    %6007 = vmatprep.subr.mxu0 0.0
    %6008 = vmatpush1.msra.mxu0 0.0
    %6009 = vmatprep.subr.mxu0 0.0
    %6010 = vmatpush1.msra.mxu0 0.0
    %6011 = vmatprep.subr.mxu0 0.0
    %6012 = vmatpush1.msra.mxu0 0.0
    %6013 = vmatprep.subr.mxu0 0.0
    %6014 = vmatpush1.msra.mxu0 0.0
    %6015 = vmatprep.subr.mxu0 0.0
    %6016 = vmatpush1.msra.mxu0 0.0
    %6017 = vmatprep.subr.mxu0 0.0
    %6018 = vmatpush1.msra.mxu0 0.0
    %6019 = vmatprep.subr.mxu0 0.0
    %6020 = vmatpush1.msra.mxu0 0.0
    %6021 = vmatprep.subr.mxu0 0.0
    %6022 = vmatpush1.msra.mxu0 0.0
    %6023 = vmatprep.mubr.f32.mxu0 0.0
    %6024 = vmatmul.mubr.f32.gmra.mrb[0].mxu0 %v5185
    %v6025 = vpop.f32.mrb[0].mxu0
    %v6026 = vadd.f32 0.0, %v6025
    %v6027 = vpop.f32.mrb[0].mxu0
    %v6028 = vadd.f32 0.0, %v6027
    %6029 = vdwg.mxu0
    %6030 = vmatprep.subr.mxu0 %v5898
    %6031 = vmatpush1.msra.mxu0 %v5897
    %6032 = vmatprep.subr.mxu0 %v5902
    %6033 = vmatpush1.msra.mxu0 %v5901
    %6034 = vmatprep.subr.mxu0 %v5906
    %6035 = vmatpush1.msra.mxu0 %v5905
    %6036 = vmatprep.subr.mxu0 %v5910
    %6037 = vmatpush1.msra.mxu0 %v5909
    %6038 = vmatprep.subr.mxu0 %v5914
    %6039 = vmatpush1.msra.mxu0 %v5913
    %6040 = vmatprep.subr.mxu0 %v5918
    %6041 = vmatpush1.msra.mxu0 %v5917
    %6042 = vmatprep.subr.mxu0 %v5922
    %6043 = vmatpush1.msra.mxu0 %v5921
    %6044 = vmatprep.subr.mxu0 %v5926
    %6045 = vmatpush1.msra.mxu0 %v5925
    %6046 = vmatprep.subr.mxu0 %v5930
    %6047 = vmatpush1.msra.mxu0 %v5929
    %6048 = vmatprep.subr.mxu0 %v5934
    %6049 = vmatpush1.msra.mxu0 %v5933
    %6050 = vmatprep.subr.mxu0 %v5938
    %6051 = vmatpush1.msra.mxu0 %v5937
    %6052 = vmatprep.subr.mxu0 %v5942
    %6053 = vmatpush1.msra.mxu0 %v5941
    %6054 = vmatprep.subr.mxu0 %v5946
    %6055 = vmatpush1.msra.mxu0 %v5945
    %6056 = vmatprep.subr.mxu0 %v5950
    %6057 = vmatpush1.msra.mxu0 %v5949
    %6058 = vmatprep.subr.mxu0 %v5954
    %6059 = vmatpush1.msra.mxu0 %v5953
    %6060 = vmatprep.subr.mxu0 %v5958
    %6061 = vmatpush1.msra.mxu0 %v5957
    %6062 = vmatprep.subr.mxu0 0.0
    %6063 = vmatpush1.msra.mxu0 0.0
    %6064 = vmatprep.subr.mxu0 0.0
    %6065 = vmatpush1.msra.mxu0 0.0
    %6066 = vmatprep.subr.mxu0 0.0
    %6067 = vmatpush1.msra.mxu0 0.0
    %6068 = vmatprep.subr.mxu0 0.0
    %6069 = vmatpush1.msra.mxu0 0.0
    %6070 = vmatprep.subr.mxu0 0.0
    %6071 = vmatpush1.msra.mxu0 0.0
    %6072 = vmatprep.subr.mxu0 0.0
    %6073 = vmatpush1.msra.mxu0 0.0
    %6074 = vmatprep.subr.mxu0 0.0
    %6075 = vmatpush1.msra.mxu0 0.0
    %6076 = vmatprep.subr.mxu0 0.0
    %6077 = vmatpush1.msra.mxu0 0.0
    %6078 = vmatprep.subr.mxu0 0.0
    %6079 = vmatpush1.msra.mxu0 0.0
    %6080 = vmatprep.subr.mxu0 0.0
    %6081 = vmatpush1.msra.mxu0 0.0
    %6082 = vmatprep.subr.mxu0 0.0
    %6083 = vmatpush1.msra.mxu0 0.0
    %6084 = vmatprep.subr.mxu0 0.0
    %6085 = vmatpush1.msra.mxu0 0.0
    %6086 = vmatprep.subr.mxu0 0.0
    %6087 = vmatpush1.msra.mxu0 0.0
    %6088 = vmatprep.subr.mxu0 0.0
    %6089 = vmatpush1.msra.mxu0 0.0
    %6090 = vmatprep.subr.mxu0 0.0
    %6091 = vmatpush1.msra.mxu0 0.0
    %6092 = vmatprep.subr.mxu0 0.0
    %6093 = vmatpush1.msra.mxu0 0.0
    %6094 = vmatprep.mubr.f32.mxu0 0.0
    %6095 = vmatmul.mubr.f32.gmra.mrb[0].mxu0 %v5185
    %v6096 = vpop.f32.mrb[0].mxu0
    %v6097 = vadd.f32 0.0, %v6096
    %v6098 = vpop.f32.mrb[0].mxu0
    %v6099 = vadd.f32 0.0, %v6098
    %6100 = vdwg.mxu0
    %v6101 = vadd.f32 %v5891, %v6026
    %v6102 = vadd.f32 %v5892, %v6028
    %v6103 = vadd.f32 %v5893, %v6097
    %v6104 = vadd.f32 %v5894, %v6099
    %v6105 = vxor.u32 %v6101, 2147483648
    %v6106 = vmul.f32 %v6105, 1.442695
    %v6107 = vpow.pop %v6106
    %v6108 = vadd.f32 %v6107, 1.0
    %v6109 = vrcp.pop %v6108
    %v6110 = vmul.f32 1.0, %v6109
    %v6111 = vxor.u32 %v6102, 2147483648
    %v6112 = vmul.f32 %v6111, 1.442695
    %v6113 = vpow.pop %v6112
    %v6114 = vadd.f32 %v6113, 1.0
    %v6115 = vrcp.pop %v6114
    %v6116 = vmul.f32 1.0, %v6115
    %v6117 = vtanh.pop %v6103
    %v6118 = vxor.u32 %v6104, 2147483648
    %v6119 = vmul.f32 %v6118, 1.442695
    %v6120 = vpow.pop %v6119
    %v6121 = vadd.f32 %v6120, 1.0
    %v6122 = vrcp.pop %v6121
    %v6123 = vmul.f32 1.0, %v6122
    %v6124 = vmul.f32 %v6116, %v5183
    %v6125 = vmul.f32 %v6110, %v6117
    %v6126 = vadd.f32 %v6124, %v6125
    %v6127 = vtanh.pop %v6126
    %v6128 = vmul.f32 %v6123, %v6127
    %v6129 = vld [vmem:[%s1] sm:$0xff]
    %v6130 = vmul.f32 %v6128, %v6129
    %6131 = vadd.xlane.f32.xlu0 %v6130
    %v6132 = vpop.xlane.xlu0 %6131
    %v6133 = vmul.f32 %v6132, %v6129
    %v6134 = vadd.f32 %v6133, 0.0
    %v6135 = vld [vmem:[%s471] sm:$0xff]
    %v6136 = vmul.f32 %v6128, %v6135
    %6137 = vadd.xlane.f32.xlu0 %v6136
    %v6138 = vpop.xlane.xlu0 %6137
    %v6139 = vmul.f32 %v6138, %v6135
    %v6140 = vadd.f32 %v6134, %v6139
    %v6141 = vld [vmem:[%s478] sm:$0xff]
    %v6142 = vmul.f32 %v6128, %v6141
    %6143 = vadd.xlane.f32.xlu0 %v6142
    %v6144 = vpop.xlane.xlu0 %6143
    %v6145 = vmul.f32 %v6144, %v6141
    %v6146 = vadd.f32 %v6140, %v6145
    %v6147 = vld [vmem:[%s485] sm:$0xff]
    %v6148 = vmul.f32 %v6128, %v6147
    %6149 = vadd.xlane.f32.xlu0 %v6148
    %v6150 = vpop.xlane.xlu0 %6149
    %v6151 = vmul.f32 %v6150, %v6147
    %v6152 = vadd.f32 %v6146, %v6151
    %v6153 = vld [vmem:[%s492] sm:$0xff]
    %v6154 = vmul.f32 %v6128, %v6153
    %6155 = vadd.xlane.f32.xlu0 %v6154
    %v6156 = vpop.xlane.xlu0 %6155
    %v6157 = vmul.f32 %v6156, %v6153
    %v6158 = vadd.f32 %v6152, %v6157
    %v6159 = vld [vmem:[%s499] sm:$0xff]
    %v6160 = vmul.f32 %v6128, %v6159
    %6161 = vadd.xlane.f32.xlu0 %v6160
    %v6162 = vpop.xlane.xlu0 %6161
    %v6163 = vmul.f32 %v6162, %v6159
    %v6164 = vadd.f32 %v6158, %v6163
    %v6165 = vld [vmem:[%s506] sm:$0xff]
    %v6166 = vmul.f32 %v6128, %v6165
    %6167 = vadd.xlane.f32.xlu0 %v6166
    %v6168 = vpop.xlane.xlu0 %6167
    %v6169 = vmul.f32 %v6168, %v6165
    %v6170 = vadd.f32 %v6164, %v6169
    %v6171 = vld [vmem:[%s513] sm:$0xff]
    %v6172 = vmul.f32 %v6128, %v6171
    %6173 = vadd.xlane.f32.xlu0 %v6172
    %v6174 = vpop.xlane.xlu0 %6173
    %v6175 = vmul.f32 %v6174, %v6171
    %v6176 = vadd.f32 %v6170, %v6175
    %v6177 = vld [vmem:[%s3] sm:$0xff]
    %v6178 = vld [vmem:[%s3 + $0x8] sm:$0xff]
    %v6179 = vld [vmem:[%s3 + $0x10] sm:$0xff]
    %v6180 = vld [vmem:[%s3 + $0x18] sm:$0xff]
    %v6181 = vld [vmem:[%s3 + $0x20] sm:$0xff]
    %v6182 = vld [vmem:[%s3 + $0x28] sm:$0xff]
    %v6183 = vld [vmem:[%s3 + $0x30] sm:$0xff]
    %v6184 = vld [vmem:[%s3 + $0x38] sm:$0xff]
    %v6185 = vld [vmem:[%s3 + $0x40] sm:$0xff]
    %v6186 = vld [vmem:[%s3 + $0x48] sm:$0xff]
    %v6187 = vld [vmem:[%s3 + $0x50] sm:$0xff]
    %v6188 = vld [vmem:[%s3 + $0x58] sm:$0xff]
    %v6189 = vld [vmem:[%s3 + $0x60] sm:$0xff]
    %v6190 = vld [vmem:[%s3 + $0x68] sm:$0xff]
    %v6191 = vld [vmem:[%s3 + $0x70] sm:$0xff]
    %v6192 = vld [vmem:[%s3 + $0x78] sm:$0xff]
    %v6193 = vld [vmem:[%s3 + $0x80] sm:$0xff]
    %v6194 = vld [vmem:[%s3 + $0x88] sm:$0xff]
    %v6195 = vld [vmem:[%s3 + $0x90] sm:$0xff]
    %v6196 = vld [vmem:[%s3 + $0x98] sm:$0xff]
    %v6197 = vld [vmem:[%s3 + $0xa0] sm:$0xff]
    %v6198 = vld [vmem:[%s3 + $0xa8] sm:$0xff]
    %v6199 = vld [vmem:[%s3 + $0xb0] sm:$0xff]
    %v6200 = vld [vmem:[%s3 + $0xb8] sm:$0xff]
    %v6201 = vld [vmem:[%s3 + $0xc0] sm:$0xff]
    %v6202 = vld [vmem:[%s3 + $0xc8] sm:$0xff]
    %v6203 = vld [vmem:[%s3 + $0xd0] sm:$0xff]
    %v6204 = vld [vmem:[%s3 + $0xd8] sm:$0xff]
    %v6205 = vld [vmem:[%s3 + $0xe0] sm:$0xff]
    %v6206 = vld [vmem:[%s3 + $0xe8] sm:$0xff]
    %v6207 = vld [vmem:[%s3 + $0xf0] sm:$0xff]
    %v6208 = vld [vmem:[%s3 + $0xf8] sm:$0xff]
    %v6209 = vld [vmem:[%s3 + $0x100] sm:$0xff]
    %v6210 = vld [vmem:[%s3 + $0x108] sm:$0xff]
    %v6211 = vld [vmem:[%s3 + $0x110] sm:$0xff]
    %v6212 = vld [vmem:[%s3 + $0x118] sm:$0xff]
    %v6213 = vld [vmem:[%s3 + $0x120] sm:$0xff]
    %v6214 = vld [vmem:[%s3 + $0x128] sm:$0xff]
    %v6215 = vld [vmem:[%s3 + $0x130] sm:$0xff]
    %v6216 = vld [vmem:[%s3 + $0x138] sm:$0xff]
    %v6217 = vld [vmem:[%s3 + $0x140] sm:$0xff]
    %v6218 = vld [vmem:[%s3 + $0x148] sm:$0xff]
    %v6219 = vld [vmem:[%s3 + $0x150] sm:$0xff]
    %v6220 = vld [vmem:[%s3 + $0x158] sm:$0xff]
    %v6221 = vld [vmem:[%s3 + $0x160] sm:$0xff]
    %v6222 = vld [vmem:[%s3 + $0x168] sm:$0xff]
    %v6223 = vld [vmem:[%s3 + $0x170] sm:$0xff]
    %v6224 = vld [vmem:[%s3 + $0x178] sm:$0xff]
    %v6225 = vld [vmem:[%s3 + $0x180] sm:$0xff]
    %v6226 = vld [vmem:[%s3 + $0x188] sm:$0xff]
    %v6227 = vld [vmem:[%s3 + $0x190] sm:$0xff]
    %v6228 = vld [vmem:[%s3 + $0x198] sm:$0xff]
    %v6229 = vld [vmem:[%s3 + $0x1a0] sm:$0xff]
    %v6230 = vld [vmem:[%s3 + $0x1a8] sm:$0xff]
    %v6231 = vld [vmem:[%s3 + $0x1b0] sm:$0xff]
    %v6232 = vld [vmem:[%s3 + $0x1b8] sm:$0xff]
    %v6233 = vld [vmem:[%s3 + $0x1c0] sm:$0xff]
    %v6234 = vld [vmem:[%s3 + $0x1c8] sm:$0xff]
    %v6235 = vld [vmem:[%s3 + $0x1d0] sm:$0xff]
    %v6236 = vld [vmem:[%s3 + $0x1d8] sm:$0xff]
    %v6237 = vld [vmem:[%s3 + $0x1e0] sm:$0xff]
    %v6238 = vld [vmem:[%s3 + $0x1e8] sm:$0xff]
    %v6239 = vld [vmem:[%s3 + $0x1f0] sm:$0xff]
    %v6240 = vld [vmem:[%s3 + $0x1f8] sm:$0xff]
    %v6241 = vld [vmem:[%s3 + $0x200] sm:$0xff]
    %v6242 = vld [vmem:[%s3 + $0x208] sm:$0xff]
    %v6243 = vld [vmem:[%s3 + $0x210] sm:$0xff]
    %v6244 = vld [vmem:[%s3 + $0x218] sm:$0xff]
    %v6245 = vld [vmem:[%s3 + $0x220] sm:$0xff]
    %v6246 = vld [vmem:[%s3 + $0x228] sm:$0xff]
    %v6247 = vld [vmem:[%s3 + $0x230] sm:$0xff]
    %v6248 = vld [vmem:[%s3 + $0x238] sm:$0xff]
    %v6249 = vld [vmem:[%s3 + $0x240] sm:$0xff]
    %v6250 = vld [vmem:[%s3 + $0x248] sm:$0xff]
    %v6251 = vld [vmem:[%s3 + $0x250] sm:$0xff]
    %v6252 = vld [vmem:[%s3 + $0x258] sm:$0xff]
    %v6253 = vld [vmem:[%s3 + $0x260] sm:$0xff]
    %v6254 = vld [vmem:[%s3 + $0x268] sm:$0xff]
    %v6255 = vld [vmem:[%s3 + $0x270] sm:$0xff]
    %v6256 = vld [vmem:[%s3 + $0x278] sm:$0xff]
    %v6257 = vld [vmem:[%s3 + $0x280] sm:$0xff]
    %v6258 = vld [vmem:[%s3 + $0x288] sm:$0xff]
    %v6259 = vld [vmem:[%s3 + $0x290] sm:$0xff]
    %v6260 = vld [vmem:[%s3 + $0x298] sm:$0xff]
    %v6261 = vld [vmem:[%s3 + $0x2a0] sm:$0xff]
    %v6262 = vld [vmem:[%s3 + $0x2a8] sm:$0xff]
    %v6263 = vld [vmem:[%s3 + $0x2b0] sm:$0xff]
    %v6264 = vld [vmem:[%s3 + $0x2b8] sm:$0xff]
    %v6265 = vld [vmem:[%s3 + $0x2c0] sm:$0xff]
    %v6266 = vld [vmem:[%s3 + $0x2c8] sm:$0xff]
    %v6267 = vld [vmem:[%s3 + $0x2d0] sm:$0xff]
    %v6268 = vld [vmem:[%s3 + $0x2d8] sm:$0xff]
    %v6269 = vld [vmem:[%s3 + $0x2e0] sm:$0xff]
    %v6270 = vld [vmem:[%s3 + $0x2e8] sm:$0xff]
    %v6271 = vld [vmem:[%s3 + $0x2f0] sm:$0xff]
    %v6272 = vld [vmem:[%s3 + $0x2f8] sm:$0xff]
    %v6273 = vld [vmem:[%s3 + $0x300] sm:$0xff]
    %v6274 = vld [vmem:[%s3 + $0x308] sm:$0xff]
    %v6275 = vld [vmem:[%s3 + $0x310] sm:$0xff]
    %v6276 = vld [vmem:[%s3 + $0x318] sm:$0xff]
    %v6277 = vld [vmem:[%s3 + $0x320] sm:$0xff]
    %v6278 = vld [vmem:[%s3 + $0x328] sm:$0xff]
    %v6279 = vld [vmem:[%s3 + $0x330] sm:$0xff]
    %v6280 = vld [vmem:[%s3 + $0x338] sm:$0xff]
    %v6281 = vld [vmem:[%s3 + $0x340] sm:$0xff]
    %v6282 = vld [vmem:[%s3 + $0x348] sm:$0xff]
    %v6283 = vld [vmem:[%s3 + $0x350] sm:$0xff]
    %v6284 = vld [vmem:[%s3 + $0x358] sm:$0xff]
    %v6285 = vld [vmem:[%s3 + $0x360] sm:$0xff]
    %v6286 = vld [vmem:[%s3 + $0x368] sm:$0xff]
    %v6287 = vld [vmem:[%s3 + $0x370] sm:$0xff]
    %v6288 = vld [vmem:[%s3 + $0x378] sm:$0xff]
    %v6289 = vld [vmem:[%s3 + $0x380] sm:$0xff]
    %v6290 = vld [vmem:[%s3 + $0x388] sm:$0xff]
    %v6291 = vld [vmem:[%s3 + $0x390] sm:$0xff]
    %v6292 = vld [vmem:[%s3 + $0x398] sm:$0xff]
    %v6293 = vld [vmem:[%s3 + $0x3a0] sm:$0xff]
    %v6294 = vld [vmem:[%s3 + $0x3a8] sm:$0xff]
    %v6295 = vld [vmem:[%s3 + $0x3b0] sm:$0xff]
    %v6296 = vld [vmem:[%s3 + $0x3b8] sm:$0xff]
    %v6297 = vld [vmem:[%s3 + $0x3c0] sm:$0xff]
    %v6298 = vld [vmem:[%s3 + $0x3c8] sm:$0xff]
    %v6299 = vld [vmem:[%s3 + $0x3d0] sm:$0xff]
    %v6300 = vld [vmem:[%s3 + $0x3d8] sm:$0xff]
    %v6301 = vld [vmem:[%s3 + $0x3e0] sm:$0xff]
    %v6302 = vld [vmem:[%s3 + $0x3e8] sm:$0xff]
    %v6303 = vld [vmem:[%s3 + $0x3f0] sm:$0xff]
    %v6304 = vld [vmem:[%s3 + $0x3f8] sm:$0xff]
    %6305 = vmatprep.subr.mxu0 %v6242
    %6306 = vmatpush1.msra.mxu0 %v6241
    %6307 = vmatprep.subr.mxu0 %v6246
    %6308 = vmatpush1.msra.mxu0 %v6245
    %6309 = vmatprep.subr.mxu0 %v6250
    %6310 = vmatpush1.msra.mxu0 %v6249
    %6311 = vmatprep.subr.mxu0 %v6254
    %6312 = vmatpush1.msra.mxu0 %v6253
    %6313 = vmatprep.subr.mxu0 %v6258
    %6314 = vmatpush1.msra.mxu0 %v6257
    %6315 = vmatprep.subr.mxu0 %v6262
    %6316 = vmatpush1.msra.mxu0 %v6261
    %6317 = vmatprep.subr.mxu0 %v6266
    %6318 = vmatpush1.msra.mxu0 %v6265
    %6319 = vmatprep.subr.mxu0 %v6270
    %6320 = vmatpush1.msra.mxu0 %v6269
    %6321 = vmatprep.subr.mxu0 %v6274
    %6322 = vmatpush1.msra.mxu0 %v6273
    %6323 = vmatprep.subr.mxu0 %v6278
    %6324 = vmatpush1.msra.mxu0 %v6277
    %6325 = vmatprep.subr.mxu0 %v6282
    %6326 = vmatpush1.msra.mxu0 %v6281
    %6327 = vmatprep.subr.mxu0 %v6286
    %6328 = vmatpush1.msra.mxu0 %v6285
    %6329 = vmatprep.subr.mxu0 %v6290
    %6330 = vmatpush1.msra.mxu0 %v6289
    %6331 = vmatprep.subr.mxu0 %v6294
    %6332 = vmatpush1.msra.mxu0 %v6293
    %6333 = vmatprep.subr.mxu0 %v6298
    %6334 = vmatpush1.msra.mxu0 %v6297
    %6335 = vmatprep.subr.mxu0 %v6302
    %6336 = vmatpush1.msra.mxu0 %v6301
    %6337 = vmatprep.subr.mxu0 0.0
    %6338 = vmatpush1.msra.mxu0 0.0
    %6339 = vmatprep.subr.mxu0 0.0
    %6340 = vmatpush1.msra.mxu0 0.0
    %6341 = vmatprep.subr.mxu0 0.0
    %6342 = vmatpush1.msra.mxu0 0.0
    %6343 = vmatprep.subr.mxu0 0.0
    %6344 = vmatpush1.msra.mxu0 0.0
    %6345 = vmatprep.subr.mxu0 0.0
    %6346 = vmatpush1.msra.mxu0 0.0
    %6347 = vmatprep.subr.mxu0 0.0
    %6348 = vmatpush1.msra.mxu0 0.0
    %6349 = vmatprep.subr.mxu0 0.0
    %6350 = vmatpush1.msra.mxu0 0.0
    %6351 = vmatprep.subr.mxu0 0.0
    %6352 = vmatpush1.msra.mxu0 0.0
    %6353 = vmatprep.subr.mxu0 0.0
    %6354 = vmatpush1.msra.mxu0 0.0
    %6355 = vmatprep.subr.mxu0 0.0
    %6356 = vmatpush1.msra.mxu0 0.0
    %6357 = vmatprep.subr.mxu0 0.0
    %6358 = vmatpush1.msra.mxu0 0.0
    %6359 = vmatprep.subr.mxu0 0.0
    %6360 = vmatpush1.msra.mxu0 0.0
    %6361 = vmatprep.subr.mxu0 0.0
    %6362 = vmatpush1.msra.mxu0 0.0
    %6363 = vmatprep.subr.mxu0 0.0
    %6364 = vmatpush1.msra.mxu0 0.0
    %6365 = vmatprep.subr.mxu0 0.0
    %6366 = vmatpush1.msra.mxu0 0.0
    %6367 = vmatprep.subr.mxu0 0.0
    %6368 = vmatpush1.msra.mxu0 0.0
    %6369 = vmatprep.mubr.f32.mxu0 0.0
    %6370 = vmatmul.mubr.f32.gmra.mrb[0].mxu0 %v6128
    %v6371 = vpop.f32.mrb[0].mxu0
    %v6372 = vadd.f32 0.0, %v6371
    %v6373 = vpop.f32.mrb[0].mxu0
    %v6374 = vadd.f32 0.0, %v6373
    %6375 = vdwg.mxu0
    %6376 = vmatprep.subr.mxu0 %v6244
    %6377 = vmatpush1.msra.mxu0 %v6243
    %6378 = vmatprep.subr.mxu0 %v6248
    %6379 = vmatpush1.msra.mxu0 %v6247
    %6380 = vmatprep.subr.mxu0 %v6252
    %6381 = vmatpush1.msra.mxu0 %v6251
    %6382 = vmatprep.subr.mxu0 %v6256
    %6383 = vmatpush1.msra.mxu0 %v6255
    %6384 = vmatprep.subr.mxu0 %v6260
    %6385 = vmatpush1.msra.mxu0 %v6259
    %6386 = vmatprep.subr.mxu0 %v6264
    %6387 = vmatpush1.msra.mxu0 %v6263
    %6388 = vmatprep.subr.mxu0 %v6268
    %6389 = vmatpush1.msra.mxu0 %v6267
    %6390 = vmatprep.subr.mxu0 %v6272
    %6391 = vmatpush1.msra.mxu0 %v6271
    %6392 = vmatprep.subr.mxu0 %v6276
    %6393 = vmatpush1.msra.mxu0 %v6275
    %6394 = vmatprep.subr.mxu0 %v6280
    %6395 = vmatpush1.msra.mxu0 %v6279
    %6396 = vmatprep.subr.mxu0 %v6284
    %6397 = vmatpush1.msra.mxu0 %v6283
    %6398 = vmatprep.subr.mxu0 %v6288
    %6399 = vmatpush1.msra.mxu0 %v6287
    %6400 = vmatprep.subr.mxu0 %v6292
    %6401 = vmatpush1.msra.mxu0 %v6291
    %6402 = vmatprep.subr.mxu0 %v6296
    %6403 = vmatpush1.msra.mxu0 %v6295
    %6404 = vmatprep.subr.mxu0 %v6300
    %6405 = vmatpush1.msra.mxu0 %v6299
    %6406 = vmatprep.subr.mxu0 %v6304
    %6407 = vmatpush1.msra.mxu0 %v6303
    %6408 = vmatprep.subr.mxu0 0.0
    %6409 = vmatpush1.msra.mxu0 0.0
    %6410 = vmatprep.subr.mxu0 0.0
    %6411 = vmatpush1.msra.mxu0 0.0
    %6412 = vmatprep.subr.mxu0 0.0
    %6413 = vmatpush1.msra.mxu0 0.0
    %6414 = vmatprep.subr.mxu0 0.0
    %6415 = vmatpush1.msra.mxu0 0.0
    %6416 = vmatprep.subr.mxu0 0.0
    %6417 = vmatpush1.msra.mxu0 0.0
    %6418 = vmatprep.subr.mxu0 0.0
    %6419 = vmatpush1.msra.mxu0 0.0
    %6420 = vmatprep.subr.mxu0 0.0
    %6421 = vmatpush1.msra.mxu0 0.0
    %6422 = vmatprep.subr.mxu0 0.0
    %6423 = vmatpush1.msra.mxu0 0.0
    %6424 = vmatprep.subr.mxu0 0.0
    %6425 = vmatpush1.msra.mxu0 0.0
    %6426 = vmatprep.subr.mxu0 0.0
    %6427 = vmatpush1.msra.mxu0 0.0
    %6428 = vmatprep.subr.mxu0 0.0
    %6429 = vmatpush1.msra.mxu0 0.0
    %6430 = vmatprep.subr.mxu0 0.0
    %6431 = vmatpush1.msra.mxu0 0.0
    %6432 = vmatprep.subr.mxu0 0.0
    %6433 = vmatpush1.msra.mxu0 0.0
    %6434 = vmatprep.subr.mxu0 0.0
    %6435 = vmatpush1.msra.mxu0 0.0
    %6436 = vmatprep.subr.mxu0 0.0
    %6437 = vmatpush1.msra.mxu0 0.0
    %6438 = vmatprep.subr.mxu0 0.0
    %6439 = vmatpush1.msra.mxu0 0.0
    %6440 = vmatprep.mubr.f32.mxu0 0.0
    %6441 = vmatmul.mubr.f32.gmra.mrb[0].mxu0 %v6128
    %v6442 = vpop.f32.mrb[0].mxu0
    %v6443 = vadd.f32 0.0, %v6442
    %v6444 = vpop.f32.mrb[0].mxu0
    %v6445 = vadd.f32 0.0, %v6444
    %6446 = vdwg.mxu0
    %6447 = vmatprep.subr.mxu0 %v6178
    %6448 = vmatpush1.msra.mxu0 %v6177
    %6449 = vmatprep.subr.mxu0 %v6182
    %6450 = vmatpush1.msra.mxu0 %v6181
    %6451 = vmatprep.subr.mxu0 %v6186
    %6452 = vmatpush1.msra.mxu0 %v6185
    %6453 = vmatprep.subr.mxu0 %v6190
    %6454 = vmatpush1.msra.mxu0 %v6189
    %6455 = vmatprep.subr.mxu0 %v6194
    %6456 = vmatpush1.msra.mxu0 %v6193
    %6457 = vmatprep.subr.mxu0 %v6198
    %6458 = vmatpush1.msra.mxu0 %v6197
    %6459 = vmatprep.subr.mxu0 %v6202
    %6460 = vmatpush1.msra.mxu0 %v6201
    %6461 = vmatprep.subr.mxu0 %v6206
    %6462 = vmatpush1.msra.mxu0 %v6205
    %6463 = vmatprep.subr.mxu0 %v6210
    %6464 = vmatpush1.msra.mxu0 %v6209
    %6465 = vmatprep.subr.mxu0 %v6214
    %6466 = vmatpush1.msra.mxu0 %v6213
    %6467 = vmatprep.subr.mxu0 %v6218
    %6468 = vmatpush1.msra.mxu0 %v6217
    %6469 = vmatprep.subr.mxu0 %v6222
    %6470 = vmatpush1.msra.mxu0 %v6221
    %6471 = vmatprep.subr.mxu0 %v6226
    %6472 = vmatpush1.msra.mxu0 %v6225
    %6473 = vmatprep.subr.mxu0 %v6230
    %6474 = vmatpush1.msra.mxu0 %v6229
    %6475 = vmatprep.subr.mxu0 %v6234
    %6476 = vmatpush1.msra.mxu0 %v6233
    %6477 = vmatprep.subr.mxu0 %v6238
    %6478 = vmatpush1.msra.mxu0 %v6237
    %6479 = vmatprep.subr.mxu0 0.0
    %6480 = vmatpush1.msra.mxu0 0.0
    %6481 = vmatprep.subr.mxu0 0.0
    %6482 = vmatpush1.msra.mxu0 0.0
    %6483 = vmatprep.subr.mxu0 0.0
    %6484 = vmatpush1.msra.mxu0 0.0
    %6485 = vmatprep.subr.mxu0 0.0
    %6486 = vmatpush1.msra.mxu0 0.0
    %6487 = vmatprep.subr.mxu0 0.0
    %6488 = vmatpush1.msra.mxu0 0.0
    %6489 = vmatprep.subr.mxu0 0.0
    %6490 = vmatpush1.msra.mxu0 0.0
    %6491 = vmatprep.subr.mxu0 0.0
    %6492 = vmatpush1.msra.mxu0 0.0
    %6493 = vmatprep.subr.mxu0 0.0
    %6494 = vmatpush1.msra.mxu0 0.0
    %6495 = vmatprep.subr.mxu0 0.0
    %6496 = vmatpush1.msra.mxu0 0.0
    %6497 = vmatprep.subr.mxu0 0.0
    %6498 = vmatpush1.msra.mxu0 0.0
    %6499 = vmatprep.subr.mxu0 0.0
    %6500 = vmatpush1.msra.mxu0 0.0
    %6501 = vmatprep.subr.mxu0 0.0
    %6502 = vmatpush1.msra.mxu0 0.0
    %6503 = vmatprep.subr.mxu0 0.0
    %6504 = vmatpush1.msra.mxu0 0.0
    %6505 = vmatprep.subr.mxu0 0.0
    %6506 = vmatpush1.msra.mxu0 0.0
    %6507 = vmatprep.subr.mxu0 0.0
    %6508 = vmatpush1.msra.mxu0 0.0
    %6509 = vmatprep.subr.mxu0 0.0
    %6510 = vmatpush1.msra.mxu0 0.0
    %6511 = vmatprep.mubr.f32.mxu0 0.0
    %6512 = vmatmul.mubr.f32.gmra.mrb[0].mxu0 %v6176
    %v6513 = vpop.f32.mrb[0].mxu0
    %v6514 = vadd.f32 %v6372, %v6513
    %v6515 = vpop.f32.mrb[0].mxu0
    %v6516 = vadd.f32 %v6374, %v6515
    %6517 = vdwg.mxu0
    %6518 = vmatprep.subr.mxu0 %v6180
    %6519 = vmatpush1.msra.mxu0 %v6179
    %6520 = vmatprep.subr.mxu0 %v6184
    %6521 = vmatpush1.msra.mxu0 %v6183
    %6522 = vmatprep.subr.mxu0 %v6188
    %6523 = vmatpush1.msra.mxu0 %v6187
    %6524 = vmatprep.subr.mxu0 %v6192
    %6525 = vmatpush1.msra.mxu0 %v6191
    %6526 = vmatprep.subr.mxu0 %v6196
    %6527 = vmatpush1.msra.mxu0 %v6195
    %6528 = vmatprep.subr.mxu0 %v6200
    %6529 = vmatpush1.msra.mxu0 %v6199
    %6530 = vmatprep.subr.mxu0 %v6204
    %6531 = vmatpush1.msra.mxu0 %v6203
    %6532 = vmatprep.subr.mxu0 %v6208
    %6533 = vmatpush1.msra.mxu0 %v6207
    %6534 = vmatprep.subr.mxu0 %v6212
    %6535 = vmatpush1.msra.mxu0 %v6211
    %6536 = vmatprep.subr.mxu0 %v6216
    %6537 = vmatpush1.msra.mxu0 %v6215
    %6538 = vmatprep.subr.mxu0 %v6220
    %6539 = vmatpush1.msra.mxu0 %v6219
    %6540 = vmatprep.subr.mxu0 %v6224
    %6541 = vmatpush1.msra.mxu0 %v6223
    %6542 = vmatprep.subr.mxu0 %v6228
    %6543 = vmatpush1.msra.mxu0 %v6227
    %6544 = vmatprep.subr.mxu0 %v6232
    %6545 = vmatpush1.msra.mxu0 %v6231
    %6546 = vmatprep.subr.mxu0 %v6236
    %6547 = vmatpush1.msra.mxu0 %v6235
    %6548 = vmatprep.subr.mxu0 %v6240
    %6549 = vmatpush1.msra.mxu0 %v6239
    %6550 = vmatprep.subr.mxu0 0.0
    %6551 = vmatpush1.msra.mxu0 0.0
    %6552 = vmatprep.subr.mxu0 0.0
    %6553 = vmatpush1.msra.mxu0 0.0
    %6554 = vmatprep.subr.mxu0 0.0
    %6555 = vmatpush1.msra.mxu0 0.0
    %6556 = vmatprep.subr.mxu0 0.0
    %6557 = vmatpush1.msra.mxu0 0.0
    %6558 = vmatprep.subr.mxu0 0.0
    %6559 = vmatpush1.msra.mxu0 0.0
    %6560 = vmatprep.subr.mxu0 0.0
    %6561 = vmatpush1.msra.mxu0 0.0
    %6562 = vmatprep.subr.mxu0 0.0
    %6563 = vmatpush1.msra.mxu0 0.0
    %6564 = vmatprep.subr.mxu0 0.0
    %6565 = vmatpush1.msra.mxu0 0.0
    %6566 = vmatprep.subr.mxu0 0.0
    %6567 = vmatpush1.msra.mxu0 0.0
    %6568 = vmatprep.subr.mxu0 0.0
    %6569 = vmatpush1.msra.mxu0 0.0
    %6570 = vmatprep.subr.mxu0 0.0
    %6571 = vmatpush1.msra.mxu0 0.0
    %6572 = vmatprep.subr.mxu0 0.0
    %6573 = vmatpush1.msra.mxu0 0.0
    %6574 = vmatprep.subr.mxu0 0.0
    %6575 = vmatpush1.msra.mxu0 0.0
    %6576 = vmatprep.subr.mxu0 0.0
    %6577 = vmatpush1.msra.mxu0 0.0
    %6578 = vmatprep.subr.mxu0 0.0
    %6579 = vmatpush1.msra.mxu0 0.0
    %6580 = vmatprep.subr.mxu0 0.0
    %6581 = vmatpush1.msra.mxu0 0.0
    %6582 = vmatprep.mubr.f32.mxu0 0.0
    %6583 = vmatmul.mubr.f32.gmra.mrb[0].mxu0 %v6176
    %v6584 = vpop.f32.mrb[0].mxu0
    %v6585 = vadd.f32 %v6443, %v6584
    %v6586 = vpop.f32.mrb[0].mxu0
    %v6587 = vadd.f32 %v6445, %v6586
    %6588 = vdwg.mxu0
    %v6589 = vadd.f32 %v6514, %v5815
    %v6590 = vadd.f32 %v6516, %v5817
    %v6591 = vadd.f32 %v6585, %v5886
    %v6592 = vadd.f32 %v6587, %v5888
    %v6593 = vld [vmem:[%s4] sm:$0xff]
    %v6594 = vld [vmem:[%s4 + $0x8] sm:$0xff]
    %v6595 = vld [vmem:[%s4 + $0x10] sm:$0xff]
    %v6596 = vld [vmem:[%s4 + $0x18] sm:$0xff]
    %v6597 = vadd.f32 %v6589, %v6593
    %v6598 = vadd.f32 %v6590, %v6594
    %v6599 = vadd.f32 %v6591, %v6595
    %v6600 = vadd.f32 %v6592, %v6596
    %v6601 = vxor.u32 %v6597, 2147483648
    %v6602 = vmul.f32 %v6601, 1.442695
    %v6603 = vpow.pop %v6602
    %v6604 = vadd.f32 %v6603, 1.0
    %v6605 = vrcp.pop %v6604
    %v6606 = vmul.f32 1.0, %v6605
    %v6607 = vxor.u32 %v6598, 2147483648
    %v6608 = vmul.f32 %v6607, 1.442695
    %v6609 = vpow.pop %v6608
    %v6610 = vadd.f32 %v6609, 1.0
    %v6611 = vrcp.pop %v6610
    %v6612 = vmul.f32 1.0, %v6611
    %v6613 = vtanh.pop %v6599
    %v6614 = vxor.u32 %v6600, 2147483648
    %v6615 = vmul.f32 %v6614, 1.442695
    %v6616 = vpow.pop %v6615
    %v6617 = vadd.f32 %v6616, 1.0
    %v6618 = vrcp.pop %v6617
    %v6619 = vmul.f32 1.0, %v6618
    %v6620 = vmul.f32 %v6612, %v5679
    %v6621 = vmul.f32 %v6606, %v6613
    %v6622 = vadd.f32 %v6620, %v6621
    %v6623 = vtanh.pop %v6622
    %v6624 = vmul.f32 %v6619, %v6623
    %s6625 = scalar_lea.vmem [#allocation2], 48
    %6626 = vst [vmem:[%s6625] sm:$0xff] %v6624
    %v6627 = vld [vmem:[%s3 + $0x400] sm:$0xff]
    %v6628 = vld [vmem:[%s3 + $0x408] sm:$0xff]
    %v6629 = vld [vmem:[%s3 + $0x410] sm:$0xff]
    %v6630 = vld [vmem:[%s3 + $0x418] sm:$0xff]
    %v6631 = vld [vmem:[%s3 + $0x420] sm:$0xff]
    %v6632 = vld [vmem:[%s3 + $0x428] sm:$0xff]
    %v6633 = vld [vmem:[%s3 + $0x430] sm:$0xff]
    %v6634 = vld [vmem:[%s3 + $0x438] sm:$0xff]
    %v6635 = vld [vmem:[%s3 + $0x440] sm:$0xff]
    %v6636 = vld [vmem:[%s3 + $0x448] sm:$0xff]
    %v6637 = vld [vmem:[%s3 + $0x450] sm:$0xff]
    %v6638 = vld [vmem:[%s3 + $0x458] sm:$0xff]
    %v6639 = vld [vmem:[%s3 + $0x460] sm:$0xff]
    %v6640 = vld [vmem:[%s3 + $0x468] sm:$0xff]
    %v6641 = vld [vmem:[%s3 + $0x470] sm:$0xff]
    %v6642 = vld [vmem:[%s3 + $0x478] sm:$0xff]
    %v6643 = vld [vmem:[%s3 + $0x480] sm:$0xff]
    %v6644 = vld [vmem:[%s3 + $0x488] sm:$0xff]
    %v6645 = vld [vmem:[%s3 + $0x490] sm:$0xff]
    %v6646 = vld [vmem:[%s3 + $0x498] sm:$0xff]
    %v6647 = vld [vmem:[%s3 + $0x4a0] sm:$0xff]
    %v6648 = vld [vmem:[%s3 + $0x4a8] sm:$0xff]
    %v6649 = vld [vmem:[%s3 + $0x4b0] sm:$0xff]
    %v6650 = vld [vmem:[%s3 + $0x4b8] sm:$0xff]
    %v6651 = vld [vmem:[%s3 + $0x4c0] sm:$0xff]
    %v6652 = vld [vmem:[%s3 + $0x4c8] sm:$0xff]
    %v6653 = vld [vmem:[%s3 + $0x4d0] sm:$0xff]
    %v6654 = vld [vmem:[%s3 + $0x4d8] sm:$0xff]
    %v6655 = vld [vmem:[%s3 + $0x4e0] sm:$0xff]
    %v6656 = vld [vmem:[%s3 + $0x4e8] sm:$0xff]
    %v6657 = vld [vmem:[%s3 + $0x4f0] sm:$0xff]
    %v6658 = vld [vmem:[%s3 + $0x4f8] sm:$0xff]
    %v6659 = vld [vmem:[%s3 + $0x500] sm:$0xff]
    %v6660 = vld [vmem:[%s3 + $0x508] sm:$0xff]
    %v6661 = vld [vmem:[%s3 + $0x510] sm:$0xff]
    %v6662 = vld [vmem:[%s3 + $0x518] sm:$0xff]
    %v6663 = vld [vmem:[%s3 + $0x520] sm:$0xff]
    %v6664 = vld [vmem:[%s3 + $0x528] sm:$0xff]
    %v6665 = vld [vmem:[%s3 + $0x530] sm:$0xff]
    %v6666 = vld [vmem:[%s3 + $0x538] sm:$0xff]
    %v6667 = vld [vmem:[%s3 + $0x540] sm:$0xff]
    %v6668 = vld [vmem:[%s3 + $0x548] sm:$0xff]
    %v6669 = vld [vmem:[%s3 + $0x550] sm:$0xff]
    %v6670 = vld [vmem:[%s3 + $0x558] sm:$0xff]
    %v6671 = vld [vmem:[%s3 + $0x560] sm:$0xff]
    %v6672 = vld [vmem:[%s3 + $0x568] sm:$0xff]
    %v6673 = vld [vmem:[%s3 + $0x570] sm:$0xff]
    %v6674 = vld [vmem:[%s3 + $0x578] sm:$0xff]
    %v6675 = vld [vmem:[%s3 + $0x580] sm:$0xff]
    %v6676 = vld [vmem:[%s3 + $0x588] sm:$0xff]
    %v6677 = vld [vmem:[%s3 + $0x590] sm:$0xff]
    %v6678 = vld [vmem:[%s3 + $0x598] sm:$0xff]
    %v6679 = vld [vmem:[%s3 + $0x5a0] sm:$0xff]
    %v6680 = vld [vmem:[%s3 + $0x5a8] sm:$0xff]
    %v6681 = vld [vmem:[%s3 + $0x5b0] sm:$0xff]
    %v6682 = vld [vmem:[%s3 + $0x5b8] sm:$0xff]
    %v6683 = vld [vmem:[%s3 + $0x5c0] sm:$0xff]
    %v6684 = vld [vmem:[%s3 + $0x5c8] sm:$0xff]
    %v6685 = vld [vmem:[%s3 + $0x5d0] sm:$0xff]
    %v6686 = vld [vmem:[%s3 + $0x5d8] sm:$0xff]
    %v6687 = vld [vmem:[%s3 + $0x5e0] sm:$0xff]
    %v6688 = vld [vmem:[%s3 + $0x5e8] sm:$0xff]
    %v6689 = vld [vmem:[%s3 + $0x5f0] sm:$0xff]
    %v6690 = vld [vmem:[%s3 + $0x5f8] sm:$0xff]
    %6691 = vmatprep.subr.mxu0 %v6628
    %6692 = vmatpush1.msra.mxu0 %v6627
    %6693 = vmatprep.subr.mxu0 %v6632
    %6694 = vmatpush1.msra.mxu0 %v6631
    %6695 = vmatprep.subr.mxu0 %v6636
    %6696 = vmatpush1.msra.mxu0 %v6635
    %6697 = vmatprep.subr.mxu0 %v6640
    %6698 = vmatpush1.msra.mxu0 %v6639
    %6699 = vmatprep.subr.mxu0 %v6644
    %6700 = vmatpush1.msra.mxu0 %v6643
    %6701 = vmatprep.subr.mxu0 %v6648
    %6702 = vmatpush1.msra.mxu0 %v6647
    %6703 = vmatprep.subr.mxu0 %v6652
    %6704 = vmatpush1.msra.mxu0 %v6651
    %6705 = vmatprep.subr.mxu0 %v6656
    %6706 = vmatpush1.msra.mxu0 %v6655
    %6707 = vmatprep.subr.mxu0 %v6660
    %6708 = vmatpush1.msra.mxu0 %v6659
    %6709 = vmatprep.subr.mxu0 %v6664
    %6710 = vmatpush1.msra.mxu0 %v6663
    %6711 = vmatprep.subr.mxu0 %v6668
    %6712 = vmatpush1.msra.mxu0 %v6667
    %6713 = vmatprep.subr.mxu0 %v6672
    %6714 = vmatpush1.msra.mxu0 %v6671
    %6715 = vmatprep.subr.mxu0 %v6676
    %6716 = vmatpush1.msra.mxu0 %v6675
    %6717 = vmatprep.subr.mxu0 %v6680
    %6718 = vmatpush1.msra.mxu0 %v6679
    %6719 = vmatprep.subr.mxu0 %v6684
    %6720 = vmatpush1.msra.mxu0 %v6683
    %6721 = vmatprep.subr.mxu0 %v6688
    %6722 = vmatpush1.msra.mxu0 %v6687
    %6723 = vmatprep.subr.mxu0 0.0
    %6724 = vmatpush1.msra.mxu0 0.0
    %6725 = vmatprep.subr.mxu0 0.0
    %6726 = vmatpush1.msra.mxu0 0.0
    %6727 = vmatprep.subr.mxu0 0.0
    %6728 = vmatpush1.msra.mxu0 0.0
    %6729 = vmatprep.subr.mxu0 0.0
    %6730 = vmatpush1.msra.mxu0 0.0
    %6731 = vmatprep.subr.mxu0 0.0
    %6732 = vmatpush1.msra.mxu0 0.0
    %6733 = vmatprep.subr.mxu0 0.0
    %6734 = vmatpush1.msra.mxu0 0.0
    %6735 = vmatprep.subr.mxu0 0.0
    %6736 = vmatpush1.msra.mxu0 0.0
    %6737 = vmatprep.subr.mxu0 0.0
    %6738 = vmatpush1.msra.mxu0 0.0
    %6739 = vmatprep.subr.mxu0 0.0
    %6740 = vmatpush1.msra.mxu0 0.0
    %6741 = vmatprep.subr.mxu0 0.0
    %6742 = vmatpush1.msra.mxu0 0.0
    %6743 = vmatprep.subr.mxu0 0.0
    %6744 = vmatpush1.msra.mxu0 0.0
    %6745 = vmatprep.subr.mxu0 0.0
    %6746 = vmatpush1.msra.mxu0 0.0
    %6747 = vmatprep.subr.mxu0 0.0
    %6748 = vmatpush1.msra.mxu0 0.0
    %6749 = vmatprep.subr.mxu0 0.0
    %6750 = vmatpush1.msra.mxu0 0.0
    %6751 = vmatprep.subr.mxu0 0.0
    %6752 = vmatpush1.msra.mxu0 0.0
    %6753 = vmatprep.subr.mxu0 0.0
    %6754 = vmatpush1.msra.mxu0 0.0
    %6755 = vmatprep.mubr.f32.mxu0 0.0
    %6756 = vmatmul.mubr.f32.gmra.mrb[0].mxu0 %v6624
    %v6757 = vpop.f32.mrb[0].mxu0
    %v6758 = vadd.f32 0.0, %v6757
    %v6759 = vpop.f32.mrb[0].mxu0
    %v6760 = vadd.f32 0.0, %v6759
    %6761 = vdwg.mxu0
    %6762 = vmatprep.subr.mxu0 %v6630
    %6763 = vmatpush1.msra.mxu0 %v6629
    %6764 = vmatprep.subr.mxu0 %v6634
    %6765 = vmatpush1.msra.mxu0 %v6633
    %6766 = vmatprep.subr.mxu0 %v6638
    %6767 = vmatpush1.msra.mxu0 %v6637
    %6768 = vmatprep.subr.mxu0 %v6642
    %6769 = vmatpush1.msra.mxu0 %v6641
    %6770 = vmatprep.subr.mxu0 %v6646
    %6771 = vmatpush1.msra.mxu0 %v6645
    %6772 = vmatprep.subr.mxu0 %v6650
    %6773 = vmatpush1.msra.mxu0 %v6649
    %6774 = vmatprep.subr.mxu0 %v6654
    %6775 = vmatpush1.msra.mxu0 %v6653
    %6776 = vmatprep.subr.mxu0 %v6658
    %6777 = vmatpush1.msra.mxu0 %v6657
    %6778 = vmatprep.subr.mxu0 %v6662
    %6779 = vmatpush1.msra.mxu0 %v6661
    %6780 = vmatprep.subr.mxu0 %v6666
    %6781 = vmatpush1.msra.mxu0 %v6665
    %6782 = vmatprep.subr.mxu0 %v6670
    %6783 = vmatpush1.msra.mxu0 %v6669
    %6784 = vmatprep.subr.mxu0 %v6674
    %6785 = vmatpush1.msra.mxu0 %v6673
    %6786 = vmatprep.subr.mxu0 %v6678
    %6787 = vmatpush1.msra.mxu0 %v6677
    %6788 = vmatprep.subr.mxu0 %v6682
    %6789 = vmatpush1.msra.mxu0 %v6681
    %6790 = vmatprep.subr.mxu0 %v6686
    %6791 = vmatpush1.msra.mxu0 %v6685
    %6792 = vmatprep.subr.mxu0 %v6690
    %6793 = vmatpush1.msra.mxu0 %v6689
    %6794 = vmatprep.subr.mxu0 0.0
    %6795 = vmatpush1.msra.mxu0 0.0
    %6796 = vmatprep.subr.mxu0 0.0
    %6797 = vmatpush1.msra.mxu0 0.0
    %6798 = vmatprep.subr.mxu0 0.0
    %6799 = vmatpush1.msra.mxu0 0.0
    %6800 = vmatprep.subr.mxu0 0.0
    %6801 = vmatpush1.msra.mxu0 0.0
    %6802 = vmatprep.subr.mxu0 0.0
    %6803 = vmatpush1.msra.mxu0 0.0
    %6804 = vmatprep.subr.mxu0 0.0
    %6805 = vmatpush1.msra.mxu0 0.0
    %6806 = vmatprep.subr.mxu0 0.0
    %6807 = vmatpush1.msra.mxu0 0.0
    %6808 = vmatprep.subr.mxu0 0.0
    %6809 = vmatpush1.msra.mxu0 0.0
    %6810 = vmatprep.subr.mxu0 0.0
    %6811 = vmatpush1.msra.mxu0 0.0
    %6812 = vmatprep.subr.mxu0 0.0
    %6813 = vmatpush1.msra.mxu0 0.0
    %6814 = vmatprep.subr.mxu0 0.0
    %6815 = vmatpush1.msra.mxu0 0.0
    %6816 = vmatprep.subr.mxu0 0.0
    %6817 = vmatpush1.msra.mxu0 0.0
    %6818 = vmatprep.subr.mxu0 0.0
    %6819 = vmatpush1.msra.mxu0 0.0
    %6820 = vmatprep.subr.mxu0 0.0
    %6821 = vmatpush1.msra.mxu0 0.0
    %6822 = vmatprep.subr.mxu0 0.0
    %6823 = vmatpush1.msra.mxu0 0.0
    %6824 = vmatprep.subr.mxu0 0.0
    %6825 = vmatpush1.msra.mxu0 0.0
    %6826 = vmatprep.mubr.f32.mxu0 0.0
    %6827 = vmatmul.mubr.f32.gmra.mrb[0].mxu0 %v6624
    %v6828 = vpop.f32.mrb[0].mxu0
    %v6829 = vadd.f32 0.0, %v6828
    %v6830 = vpop.f32.mrb[0].mxu0
    %v6831 = vadd.f32 0.0, %v6830
    %6832 = vdwg.mxu0
    %s6833 = scalar_lea.vmem %s0, 224
    %v6834 = vld [vmem:[%s6833] sm:$0xff]
    %v6835 = vld [vmem:[%s6833 + $0x8] sm:$0xff]
    %v6836 = vld [vmem:[%s6833 + $0x10] sm:$0xff]
    %v6837 = vld [vmem:[%s6833 + $0x18] sm:$0xff]
    %v6838 = vld [vmem:[%s2] sm:$0xff]
    %v6839 = vld [vmem:[%s2 + $0x8] sm:$0xff]
    %v6840 = vld [vmem:[%s2 + $0x10] sm:$0xff]
    %v6841 = vld [vmem:[%s2 + $0x18] sm:$0xff]
    %v6842 = vld [vmem:[%s2 + $0x20] sm:$0xff]
    %v6843 = vld [vmem:[%s2 + $0x28] sm:$0xff]
    %v6844 = vld [vmem:[%s2 + $0x30] sm:$0xff]
    %v6845 = vld [vmem:[%s2 + $0x38] sm:$0xff]
    %v6846 = vld [vmem:[%s2 + $0x40] sm:$0xff]
    %v6847 = vld [vmem:[%s2 + $0x48] sm:$0xff]
    %v6848 = vld [vmem:[%s2 + $0x50] sm:$0xff]
    %v6849 = vld [vmem:[%s2 + $0x58] sm:$0xff]
    %v6850 = vld [vmem:[%s2 + $0x60] sm:$0xff]
    %v6851 = vld [vmem:[%s2 + $0x68] sm:$0xff]
    %v6852 = vld [vmem:[%s2 + $0x70] sm:$0xff]
    %v6853 = vld [vmem:[%s2 + $0x78] sm:$0xff]
    %v6854 = vld [vmem:[%s2 + $0x80] sm:$0xff]
    %v6855 = vld [vmem:[%s2 + $0x88] sm:$0xff]
    %v6856 = vld [vmem:[%s2 + $0x90] sm:$0xff]
    %v6857 = vld [vmem:[%s2 + $0x98] sm:$0xff]
    %v6858 = vld [vmem:[%s2 + $0xa0] sm:$0xff]
    %v6859 = vld [vmem:[%s2 + $0xa8] sm:$0xff]
    %v6860 = vld [vmem:[%s2 + $0xb0] sm:$0xff]
    %v6861 = vld [vmem:[%s2 + $0xb8] sm:$0xff]
    %v6862 = vld [vmem:[%s2 + $0xc0] sm:$0xff]
    %v6863 = vld [vmem:[%s2 + $0xc8] sm:$0xff]
    %v6864 = vld [vmem:[%s2 + $0xd0] sm:$0xff]
    %v6865 = vld [vmem:[%s2 + $0xd8] sm:$0xff]
    %v6866 = vld [vmem:[%s2 + $0xe0] sm:$0xff]
    %v6867 = vld [vmem:[%s2 + $0xe8] sm:$0xff]
    %v6868 = vld [vmem:[%s2 + $0xf0] sm:$0xff]
    %v6869 = vld [vmem:[%s2 + $0xf8] sm:$0xff]
    %v6870 = vld [vmem:[%s2 + $0x100] sm:$0xff]
    %v6871 = vld [vmem:[%s2 + $0x108] sm:$0xff]
    %v6872 = vld [vmem:[%s2 + $0x110] sm:$0xff]
    %v6873 = vld [vmem:[%s2 + $0x118] sm:$0xff]
    %v6874 = vld [vmem:[%s2 + $0x120] sm:$0xff]
    %v6875 = vld [vmem:[%s2 + $0x128] sm:$0xff]
    %v6876 = vld [vmem:[%s2 + $0x130] sm:$0xff]
    %v6877 = vld [vmem:[%s2 + $0x138] sm:$0xff]
    %v6878 = vld [vmem:[%s2 + $0x140] sm:$0xff]
    %v6879 = vld [vmem:[%s2 + $0x148] sm:$0xff]
    %v6880 = vld [vmem:[%s2 + $0x150] sm:$0xff]
    %v6881 = vld [vmem:[%s2 + $0x158] sm:$0xff]
    %v6882 = vld [vmem:[%s2 + $0x160] sm:$0xff]
    %v6883 = vld [vmem:[%s2 + $0x168] sm:$0xff]
    %v6884 = vld [vmem:[%s2 + $0x170] sm:$0xff]
    %v6885 = vld [vmem:[%s2 + $0x178] sm:$0xff]
    %v6886 = vld [vmem:[%s2 + $0x180] sm:$0xff]
    %v6887 = vld [vmem:[%s2 + $0x188] sm:$0xff]
    %v6888 = vld [vmem:[%s2 + $0x190] sm:$0xff]
    %v6889 = vld [vmem:[%s2 + $0x198] sm:$0xff]
    %v6890 = vld [vmem:[%s2 + $0x1a0] sm:$0xff]
    %v6891 = vld [vmem:[%s2 + $0x1a8] sm:$0xff]
    %v6892 = vld [vmem:[%s2 + $0x1b0] sm:$0xff]
    %v6893 = vld [vmem:[%s2 + $0x1b8] sm:$0xff]
    %v6894 = vld [vmem:[%s2 + $0x1c0] sm:$0xff]
    %v6895 = vld [vmem:[%s2 + $0x1c8] sm:$0xff]
    %v6896 = vld [vmem:[%s2 + $0x1d0] sm:$0xff]
    %v6897 = vld [vmem:[%s2 + $0x1d8] sm:$0xff]
    %v6898 = vld [vmem:[%s2 + $0x1e0] sm:$0xff]
    %v6899 = vld [vmem:[%s2 + $0x1e8] sm:$0xff]
    %v6900 = vld [vmem:[%s2 + $0x1f0] sm:$0xff]
    %v6901 = vld [vmem:[%s2 + $0x1f8] sm:$0xff]
    %6902 = vmatprep.subr.mxu0 %v6839
    %6903 = vmatpush1.msra.mxu0 %v6838
    %6904 = vmatprep.subr.mxu0 %v6843
    %6905 = vmatpush1.msra.mxu0 %v6842
    %6906 = vmatprep.subr.mxu0 %v6847
    %6907 = vmatpush1.msra.mxu0 %v6846
    %6908 = vmatprep.subr.mxu0 %v6851
    %6909 = vmatpush1.msra.mxu0 %v6850
    %6910 = vmatprep.subr.mxu0 %v6855
    %6911 = vmatpush1.msra.mxu0 %v6854
    %6912 = vmatprep.subr.mxu0 %v6859
    %6913 = vmatpush1.msra.mxu0 %v6858
    %6914 = vmatprep.subr.mxu0 %v6863
    %6915 = vmatpush1.msra.mxu0 %v6862
    %6916 = vmatprep.subr.mxu0 %v6867
    %6917 = vmatpush1.msra.mxu0 %v6866
    %6918 = vmatprep.subr.mxu0 %v6871
    %6919 = vmatpush1.msra.mxu0 %v6870
    %6920 = vmatprep.subr.mxu0 %v6875
    %6921 = vmatpush1.msra.mxu0 %v6874
    %6922 = vmatprep.subr.mxu0 %v6879
    %6923 = vmatpush1.msra.mxu0 %v6878
    %6924 = vmatprep.subr.mxu0 %v6883
    %6925 = vmatpush1.msra.mxu0 %v6882
    %6926 = vmatprep.subr.mxu0 %v6887
    %6927 = vmatpush1.msra.mxu0 %v6886
    %6928 = vmatprep.subr.mxu0 %v6891
    %6929 = vmatpush1.msra.mxu0 %v6890
    %6930 = vmatprep.subr.mxu0 %v6895
    %6931 = vmatpush1.msra.mxu0 %v6894
    %6932 = vmatprep.subr.mxu0 %v6899
    %6933 = vmatpush1.msra.mxu0 %v6898
    %6934 = vmatprep.subr.mxu0 0.0
    %6935 = vmatpush1.msra.mxu0 0.0
    %6936 = vmatprep.subr.mxu0 0.0
    %6937 = vmatpush1.msra.mxu0 0.0
    %6938 = vmatprep.subr.mxu0 0.0
    %6939 = vmatpush1.msra.mxu0 0.0
    %6940 = vmatprep.subr.mxu0 0.0
    %6941 = vmatpush1.msra.mxu0 0.0
    %6942 = vmatprep.subr.mxu0 0.0
    %6943 = vmatpush1.msra.mxu0 0.0
    %6944 = vmatprep.subr.mxu0 0.0
    %6945 = vmatpush1.msra.mxu0 0.0
    %6946 = vmatprep.subr.mxu0 0.0
    %6947 = vmatpush1.msra.mxu0 0.0
    %6948 = vmatprep.subr.mxu0 0.0
    %6949 = vmatpush1.msra.mxu0 0.0
    %6950 = vmatprep.subr.mxu0 0.0
    %6951 = vmatpush1.msra.mxu0 0.0
    %6952 = vmatprep.subr.mxu0 0.0
    %6953 = vmatpush1.msra.mxu0 0.0
    %6954 = vmatprep.subr.mxu0 0.0
    %6955 = vmatpush1.msra.mxu0 0.0
    %6956 = vmatprep.subr.mxu0 0.0
    %6957 = vmatpush1.msra.mxu0 0.0
    %6958 = vmatprep.subr.mxu0 0.0
    %6959 = vmatpush1.msra.mxu0 0.0
    %6960 = vmatprep.subr.mxu0 0.0
    %6961 = vmatpush1.msra.mxu0 0.0
    %6962 = vmatprep.subr.mxu0 0.0
    %6963 = vmatpush1.msra.mxu0 0.0
    %6964 = vmatprep.subr.mxu0 0.0
    %6965 = vmatpush1.msra.mxu0 0.0
    %6966 = vmatprep.mubr.f32.mxu0 0.0
    %6967 = vmatmul.mubr.f32.gmra.mrb[0].mxu0 %v6128
    %v6968 = vpop.f32.mrb[0].mxu0
    %v6969 = vadd.f32 0.0, %v6968
    %v6970 = vpop.f32.mrb[0].mxu0
    %v6971 = vadd.f32 0.0, %v6970
    %6972 = vdwg.mxu0
    %6973 = vmatprep.subr.mxu0 %v6841
    %6974 = vmatpush1.msra.mxu0 %v6840
    %6975 = vmatprep.subr.mxu0 %v6845
    %6976 = vmatpush1.msra.mxu0 %v6844
    %6977 = vmatprep.subr.mxu0 %v6849
    %6978 = vmatpush1.msra.mxu0 %v6848
    %6979 = vmatprep.subr.mxu0 %v6853
    %6980 = vmatpush1.msra.mxu0 %v6852
    %6981 = vmatprep.subr.mxu0 %v6857
    %6982 = vmatpush1.msra.mxu0 %v6856
    %6983 = vmatprep.subr.mxu0 %v6861
    %6984 = vmatpush1.msra.mxu0 %v6860
    %6985 = vmatprep.subr.mxu0 %v6865
    %6986 = vmatpush1.msra.mxu0 %v6864
    %6987 = vmatprep.subr.mxu0 %v6869
    %6988 = vmatpush1.msra.mxu0 %v6868
    %6989 = vmatprep.subr.mxu0 %v6873
    %6990 = vmatpush1.msra.mxu0 %v6872
    %6991 = vmatprep.subr.mxu0 %v6877
    %6992 = vmatpush1.msra.mxu0 %v6876
    %6993 = vmatprep.subr.mxu0 %v6881
    %6994 = vmatpush1.msra.mxu0 %v6880
    %6995 = vmatprep.subr.mxu0 %v6885
    %6996 = vmatpush1.msra.mxu0 %v6884
    %6997 = vmatprep.subr.mxu0 %v6889
    %6998 = vmatpush1.msra.mxu0 %v6888
    %6999 = vmatprep.subr.mxu0 %v6893
    %7000 = vmatpush1.msra.mxu0 %v6892
    %7001 = vmatprep.subr.mxu0 %v6897
    %7002 = vmatpush1.msra.mxu0 %v6896
    %7003 = vmatprep.subr.mxu0 %v6901
    %7004 = vmatpush1.msra.mxu0 %v6900
    %7005 = vmatprep.subr.mxu0 0.0
    %7006 = vmatpush1.msra.mxu0 0.0
    %7007 = vmatprep.subr.mxu0 0.0
    %7008 = vmatpush1.msra.mxu0 0.0
    %7009 = vmatprep.subr.mxu0 0.0
    %7010 = vmatpush1.msra.mxu0 0.0
    %7011 = vmatprep.subr.mxu0 0.0
    %7012 = vmatpush1.msra.mxu0 0.0
    %7013 = vmatprep.subr.mxu0 0.0
    %7014 = vmatpush1.msra.mxu0 0.0
    %7015 = vmatprep.subr.mxu0 0.0
    %7016 = vmatpush1.msra.mxu0 0.0
    %7017 = vmatprep.subr.mxu0 0.0
    %7018 = vmatpush1.msra.mxu0 0.0
    %7019 = vmatprep.subr.mxu0 0.0
    %7020 = vmatpush1.msra.mxu0 0.0
    %7021 = vmatprep.subr.mxu0 0.0
    %7022 = vmatpush1.msra.mxu0 0.0
    %7023 = vmatprep.subr.mxu0 0.0
    %7024 = vmatpush1.msra.mxu0 0.0
    %7025 = vmatprep.subr.mxu0 0.0
    %7026 = vmatpush1.msra.mxu0 0.0
    %7027 = vmatprep.subr.mxu0 0.0
    %7028 = vmatpush1.msra.mxu0 0.0
    %7029 = vmatprep.subr.mxu0 0.0
    %7030 = vmatpush1.msra.mxu0 0.0
    %7031 = vmatprep.subr.mxu0 0.0
    %7032 = vmatpush1.msra.mxu0 0.0
    %7033 = vmatprep.subr.mxu0 0.0
    %7034 = vmatpush1.msra.mxu0 0.0
    %7035 = vmatprep.subr.mxu0 0.0
    %7036 = vmatpush1.msra.mxu0 0.0
    %7037 = vmatprep.mubr.f32.mxu0 0.0
    %7038 = vmatmul.mubr.f32.gmra.mrb[0].mxu0 %v6128
    %v7039 = vpop.f32.mrb[0].mxu0
    %v7040 = vadd.f32 0.0, %v7039
    %v7041 = vpop.f32.mrb[0].mxu0
    %v7042 = vadd.f32 0.0, %v7041
    %7043 = vdwg.mxu0
    %v7044 = vadd.f32 %v6834, %v6969
    %v7045 = vadd.f32 %v6835, %v6971
    %v7046 = vadd.f32 %v6836, %v7040
    %v7047 = vadd.f32 %v6837, %v7042
    %v7048 = vxor.u32 %v7044, 2147483648
    %v7049 = vmul.f32 %v7048, 1.442695
    %v7050 = vpow.pop %v7049
    %v7051 = vadd.f32 %v7050, 1.0
    %v7052 = vrcp.pop %v7051
    %v7053 = vmul.f32 1.0, %v7052
    %v7054 = vxor.u32 %v7045, 2147483648
    %v7055 = vmul.f32 %v7054, 1.442695
    %v7056 = vpow.pop %v7055
    %v7057 = vadd.f32 %v7056, 1.0
    %v7058 = vrcp.pop %v7057
    %v7059 = vmul.f32 1.0, %v7058
    %v7060 = vtanh.pop %v7046
    %v7061 = vxor.u32 %v7047, 2147483648
    %v7062 = vmul.f32 %v7061, 1.442695
    %v7063 = vpow.pop %v7062
    %v7064 = vadd.f32 %v7063, 1.0
    %v7065 = vrcp.pop %v7064
    %v7066 = vmul.f32 1.0, %v7065
    %v7067 = vmul.f32 %v7059, %v6126
    %v7068 = vmul.f32 %v7053, %v7060
    %v7069 = vadd.f32 %v7067, %v7068
    %v7070 = vtanh.pop %v7069
    %v7071 = vmul.f32 %v7066, %v7070
    %v7072 = vld [vmem:[%s1] sm:$0xff]
    %v7073 = vmul.f32 %v7071, %v7072
    %7074 = vadd.xlane.f32.xlu0 %v7073
    %v7075 = vpop.xlane.xlu0 %7074
    %v7076 = vmul.f32 %v7075, %v7072
    %v7077 = vadd.f32 %v7076, 0.0
    %v7078 = vld [vmem:[%s471] sm:$0xff]
    %v7079 = vmul.f32 %v7071, %v7078
    %7080 = vadd.xlane.f32.xlu0 %v7079
    %v7081 = vpop.xlane.xlu0 %7080
    %v7082 = vmul.f32 %v7081, %v7078
    %v7083 = vadd.f32 %v7077, %v7082
    %v7084 = vld [vmem:[%s478] sm:$0xff]
    %v7085 = vmul.f32 %v7071, %v7084
    %7086 = vadd.xlane.f32.xlu0 %v7085
    %v7087 = vpop.xlane.xlu0 %7086
    %v7088 = vmul.f32 %v7087, %v7084
    %v7089 = vadd.f32 %v7083, %v7088
    %v7090 = vld [vmem:[%s485] sm:$0xff]
    %v7091 = vmul.f32 %v7071, %v7090
    %7092 = vadd.xlane.f32.xlu0 %v7091
    %v7093 = vpop.xlane.xlu0 %7092
    %v7094 = vmul.f32 %v7093, %v7090
    %v7095 = vadd.f32 %v7089, %v7094
    %v7096 = vld [vmem:[%s492] sm:$0xff]
    %v7097 = vmul.f32 %v7071, %v7096
    %7098 = vadd.xlane.f32.xlu0 %v7097
    %v7099 = vpop.xlane.xlu0 %7098
    %v7100 = vmul.f32 %v7099, %v7096
    %v7101 = vadd.f32 %v7095, %v7100
    %v7102 = vld [vmem:[%s499] sm:$0xff]
    %v7103 = vmul.f32 %v7071, %v7102
    %7104 = vadd.xlane.f32.xlu0 %v7103
    %v7105 = vpop.xlane.xlu0 %7104
    %v7106 = vmul.f32 %v7105, %v7102
    %v7107 = vadd.f32 %v7101, %v7106
    %v7108 = vld [vmem:[%s506] sm:$0xff]
    %v7109 = vmul.f32 %v7071, %v7108
    %7110 = vadd.xlane.f32.xlu0 %v7109
    %v7111 = vpop.xlane.xlu0 %7110
    %v7112 = vmul.f32 %v7111, %v7108
    %v7113 = vadd.f32 %v7107, %v7112
    %v7114 = vld [vmem:[%s513] sm:$0xff]
    %v7115 = vmul.f32 %v7071, %v7114
    %7116 = vadd.xlane.f32.xlu0 %v7115
    %v7117 = vpop.xlane.xlu0 %7116
    %v7118 = vmul.f32 %v7117, %v7114
    %v7119 = vadd.f32 %v7113, %v7118
    %v7120 = vld [vmem:[%s3] sm:$0xff]
    %v7121 = vld [vmem:[%s3 + $0x8] sm:$0xff]
    %v7122 = vld [vmem:[%s3 + $0x10] sm:$0xff]
    %v7123 = vld [vmem:[%s3 + $0x18] sm:$0xff]
    %v7124 = vld [vmem:[%s3 + $0x20] sm:$0xff]
    %v7125 = vld [vmem:[%s3 + $0x28] sm:$0xff]
    %v7126 = vld [vmem:[%s3 + $0x30] sm:$0xff]
    %v7127 = vld [vmem:[%s3 + $0x38] sm:$0xff]
    %v7128 = vld [vmem:[%s3 + $0x40] sm:$0xff]
    %v7129 = vld [vmem:[%s3 + $0x48] sm:$0xff]
    %v7130 = vld [vmem:[%s3 + $0x50] sm:$0xff]
    %v7131 = vld [vmem:[%s3 + $0x58] sm:$0xff]
    %v7132 = vld [vmem:[%s3 + $0x60] sm:$0xff]
    %v7133 = vld [vmem:[%s3 + $0x68] sm:$0xff]
    %v7134 = vld [vmem:[%s3 + $0x70] sm:$0xff]
    %v7135 = vld [vmem:[%s3 + $0x78] sm:$0xff]
    %v7136 = vld [vmem:[%s3 + $0x80] sm:$0xff]
    %v7137 = vld [vmem:[%s3 + $0x88] sm:$0xff]
    %v7138 = vld [vmem:[%s3 + $0x90] sm:$0xff]
    %v7139 = vld [vmem:[%s3 + $0x98] sm:$0xff]
    %v7140 = vld [vmem:[%s3 + $0xa0] sm:$0xff]
    %v7141 = vld [vmem:[%s3 + $0xa8] sm:$0xff]
    %v7142 = vld [vmem:[%s3 + $0xb0] sm:$0xff]
    %v7143 = vld [vmem:[%s3 + $0xb8] sm:$0xff]
    %v7144 = vld [vmem:[%s3 + $0xc0] sm:$0xff]
    %v7145 = vld [vmem:[%s3 + $0xc8] sm:$0xff]
    %v7146 = vld [vmem:[%s3 + $0xd0] sm:$0xff]
    %v7147 = vld [vmem:[%s3 + $0xd8] sm:$0xff]
    %v7148 = vld [vmem:[%s3 + $0xe0] sm:$0xff]
    %v7149 = vld [vmem:[%s3 + $0xe8] sm:$0xff]
    %v7150 = vld [vmem:[%s3 + $0xf0] sm:$0xff]
    %v7151 = vld [vmem:[%s3 + $0xf8] sm:$0xff]
    %v7152 = vld [vmem:[%s3 + $0x100] sm:$0xff]
    %v7153 = vld [vmem:[%s3 + $0x108] sm:$0xff]
    %v7154 = vld [vmem:[%s3 + $0x110] sm:$0xff]
    %v7155 = vld [vmem:[%s3 + $0x118] sm:$0xff]
    %v7156 = vld [vmem:[%s3 + $0x120] sm:$0xff]
    %v7157 = vld [vmem:[%s3 + $0x128] sm:$0xff]
    %v7158 = vld [vmem:[%s3 + $0x130] sm:$0xff]
    %v7159 = vld [vmem:[%s3 + $0x138] sm:$0xff]
    %v7160 = vld [vmem:[%s3 + $0x140] sm:$0xff]
    %v7161 = vld [vmem:[%s3 + $0x148] sm:$0xff]
    %v7162 = vld [vmem:[%s3 + $0x150] sm:$0xff]
    %v7163 = vld [vmem:[%s3 + $0x158] sm:$0xff]
    %v7164 = vld [vmem:[%s3 + $0x160] sm:$0xff]
    %v7165 = vld [vmem:[%s3 + $0x168] sm:$0xff]
    %v7166 = vld [vmem:[%s3 + $0x170] sm:$0xff]
    %v7167 = vld [vmem:[%s3 + $0x178] sm:$0xff]
    %v7168 = vld [vmem:[%s3 + $0x180] sm:$0xff]
    %v7169 = vld [vmem:[%s3 + $0x188] sm:$0xff]
    %v7170 = vld [vmem:[%s3 + $0x190] sm:$0xff]
    %v7171 = vld [vmem:[%s3 + $0x198] sm:$0xff]
    %v7172 = vld [vmem:[%s3 + $0x1a0] sm:$0xff]
    %v7173 = vld [vmem:[%s3 + $0x1a8] sm:$0xff]
    %v7174 = vld [vmem:[%s3 + $0x1b0] sm:$0xff]
    %v7175 = vld [vmem:[%s3 + $0x1b8] sm:$0xff]
    %v7176 = vld [vmem:[%s3 + $0x1c0] sm:$0xff]
    %v7177 = vld [vmem:[%s3 + $0x1c8] sm:$0xff]
    %v7178 = vld [vmem:[%s3 + $0x1d0] sm:$0xff]
    %v7179 = vld [vmem:[%s3 + $0x1d8] sm:$0xff]
    %v7180 = vld [vmem:[%s3 + $0x1e0] sm:$0xff]
    %v7181 = vld [vmem:[%s3 + $0x1e8] sm:$0xff]
    %v7182 = vld [vmem:[%s3 + $0x1f0] sm:$0xff]
    %v7183 = vld [vmem:[%s3 + $0x1f8] sm:$0xff]
    %v7184 = vld [vmem:[%s3 + $0x200] sm:$0xff]
    %v7185 = vld [vmem:[%s3 + $0x208] sm:$0xff]
    %v7186 = vld [vmem:[%s3 + $0x210] sm:$0xff]
    %v7187 = vld [vmem:[%s3 + $0x218] sm:$0xff]
    %v7188 = vld [vmem:[%s3 + $0x220] sm:$0xff]
    %v7189 = vld [vmem:[%s3 + $0x228] sm:$0xff]
    %v7190 = vld [vmem:[%s3 + $0x230] sm:$0xff]
    %v7191 = vld [vmem:[%s3 + $0x238] sm:$0xff]
    %v7192 = vld [vmem:[%s3 + $0x240] sm:$0xff]
    %v7193 = vld [vmem:[%s3 + $0x248] sm:$0xff]
    %v7194 = vld [vmem:[%s3 + $0x250] sm:$0xff]
    %v7195 = vld [vmem:[%s3 + $0x258] sm:$0xff]
    %v7196 = vld [vmem:[%s3 + $0x260] sm:$0xff]
    %v7197 = vld [vmem:[%s3 + $0x268] sm:$0xff]
    %v7198 = vld [vmem:[%s3 + $0x270] sm:$0xff]
    %v7199 = vld [vmem:[%s3 + $0x278] sm:$0xff]
    %v7200 = vld [vmem:[%s3 + $0x280] sm:$0xff]
    %v7201 = vld [vmem:[%s3 + $0x288] sm:$0xff]
    %v7202 = vld [vmem:[%s3 + $0x290] sm:$0xff]
    %v7203 = vld [vmem:[%s3 + $0x298] sm:$0xff]
    %v7204 = vld [vmem:[%s3 + $0x2a0] sm:$0xff]
    %v7205 = vld [vmem:[%s3 + $0x2a8] sm:$0xff]
    %v7206 = vld [vmem:[%s3 + $0x2b0] sm:$0xff]
    %v7207 = vld [vmem:[%s3 + $0x2b8] sm:$0xff]
    %v7208 = vld [vmem:[%s3 + $0x2c0] sm:$0xff]
    %v7209 = vld [vmem:[%s3 + $0x2c8] sm:$0xff]
    %v7210 = vld [vmem:[%s3 + $0x2d0] sm:$0xff]
    %v7211 = vld [vmem:[%s3 + $0x2d8] sm:$0xff]
    %v7212 = vld [vmem:[%s3 + $0x2e0] sm:$0xff]
    %v7213 = vld [vmem:[%s3 + $0x2e8] sm:$0xff]
    %v7214 = vld [vmem:[%s3 + $0x2f0] sm:$0xff]
    %v7215 = vld [vmem:[%s3 + $0x2f8] sm:$0xff]
    %v7216 = vld [vmem:[%s3 + $0x300] sm:$0xff]
    %v7217 = vld [vmem:[%s3 + $0x308] sm:$0xff]
    %v7218 = vld [vmem:[%s3 + $0x310] sm:$0xff]
    %v7219 = vld [vmem:[%s3 + $0x318] sm:$0xff]
    %v7220 = vld [vmem:[%s3 + $0x320] sm:$0xff]
    %v7221 = vld [vmem:[%s3 + $0x328] sm:$0xff]
    %v7222 = vld [vmem:[%s3 + $0x330] sm:$0xff]
    %v7223 = vld [vmem:[%s3 + $0x338] sm:$0xff]
    %v7224 = vld [vmem:[%s3 + $0x340] sm:$0xff]
    %v7225 = vld [vmem:[%s3 + $0x348] sm:$0xff]
    %v7226 = vld [vmem:[%s3 + $0x350] sm:$0xff]
    %v7227 = vld [vmem:[%s3 + $0x358] sm:$0xff]
    %v7228 = vld [vmem:[%s3 + $0x360] sm:$0xff]
    %v7229 = vld [vmem:[%s3 + $0x368] sm:$0xff]
    %v7230 = vld [vmem:[%s3 + $0x370] sm:$0xff]
    %v7231 = vld [vmem:[%s3 + $0x378] sm:$0xff]
    %v7232 = vld [vmem:[%s3 + $0x380] sm:$0xff]
    %v7233 = vld [vmem:[%s3 + $0x388] sm:$0xff]
    %v7234 = vld [vmem:[%s3 + $0x390] sm:$0xff]
    %v7235 = vld [vmem:[%s3 + $0x398] sm:$0xff]
    %v7236 = vld [vmem:[%s3 + $0x3a0] sm:$0xff]
    %v7237 = vld [vmem:[%s3 + $0x3a8] sm:$0xff]
    %v7238 = vld [vmem:[%s3 + $0x3b0] sm:$0xff]
    %v7239 = vld [vmem:[%s3 + $0x3b8] sm:$0xff]
    %v7240 = vld [vmem:[%s3 + $0x3c0] sm:$0xff]
    %v7241 = vld [vmem:[%s3 + $0x3c8] sm:$0xff]
    %v7242 = vld [vmem:[%s3 + $0x3d0] sm:$0xff]
    %v7243 = vld [vmem:[%s3 + $0x3d8] sm:$0xff]
    %v7244 = vld [vmem:[%s3 + $0x3e0] sm:$0xff]
    %v7245 = vld [vmem:[%s3 + $0x3e8] sm:$0xff]
    %v7246 = vld [vmem:[%s3 + $0x3f0] sm:$0xff]
    %v7247 = vld [vmem:[%s3 + $0x3f8] sm:$0xff]
    %7248 = vmatprep.subr.mxu0 %v7185
    %7249 = vmatpush1.msra.mxu0 %v7184
    %7250 = vmatprep.subr.mxu0 %v7189
    %7251 = vmatpush1.msra.mxu0 %v7188
    %7252 = vmatprep.subr.mxu0 %v7193
    %7253 = vmatpush1.msra.mxu0 %v7192
    %7254 = vmatprep.subr.mxu0 %v7197
    %7255 = vmatpush1.msra.mxu0 %v7196
    %7256 = vmatprep.subr.mxu0 %v7201
    %7257 = vmatpush1.msra.mxu0 %v7200
    %7258 = vmatprep.subr.mxu0 %v7205
    %7259 = vmatpush1.msra.mxu0 %v7204
    %7260 = vmatprep.subr.mxu0 %v7209
    %7261 = vmatpush1.msra.mxu0 %v7208
    %7262 = vmatprep.subr.mxu0 %v7213
    %7263 = vmatpush1.msra.mxu0 %v7212
    %7264 = vmatprep.subr.mxu0 %v7217
    %7265 = vmatpush1.msra.mxu0 %v7216
    %7266 = vmatprep.subr.mxu0 %v7221
    %7267 = vmatpush1.msra.mxu0 %v7220
    %7268 = vmatprep.subr.mxu0 %v7225
    %7269 = vmatpush1.msra.mxu0 %v7224
    %7270 = vmatprep.subr.mxu0 %v7229
    %7271 = vmatpush1.msra.mxu0 %v7228
    %7272 = vmatprep.subr.mxu0 %v7233
    %7273 = vmatpush1.msra.mxu0 %v7232
    %7274 = vmatprep.subr.mxu0 %v7237
    %7275 = vmatpush1.msra.mxu0 %v7236
    %7276 = vmatprep.subr.mxu0 %v7241
    %7277 = vmatpush1.msra.mxu0 %v7240
    %7278 = vmatprep.subr.mxu0 %v7245
    %7279 = vmatpush1.msra.mxu0 %v7244
    %7280 = vmatprep.subr.mxu0 0.0
    %7281 = vmatpush1.msra.mxu0 0.0
    %7282 = vmatprep.subr.mxu0 0.0
    %7283 = vmatpush1.msra.mxu0 0.0
    %7284 = vmatprep.subr.mxu0 0.0
    %7285 = vmatpush1.msra.mxu0 0.0
    %7286 = vmatprep.subr.mxu0 0.0
    %7287 = vmatpush1.msra.mxu0 0.0
    %7288 = vmatprep.subr.mxu0 0.0
    %7289 = vmatpush1.msra.mxu0 0.0
    %7290 = vmatprep.subr.mxu0 0.0
    %7291 = vmatpush1.msra.mxu0 0.0
    %7292 = vmatprep.subr.mxu0 0.0
    %7293 = vmatpush1.msra.mxu0 0.0
    %7294 = vmatprep.subr.mxu0 0.0
    %7295 = vmatpush1.msra.mxu0 0.0
    %7296 = vmatprep.subr.mxu0 0.0
    %7297 = vmatpush1.msra.mxu0 0.0
    %7298 = vmatprep.subr.mxu0 0.0
    %7299 = vmatpush1.msra.mxu0 0.0
    %7300 = vmatprep.subr.mxu0 0.0
    %7301 = vmatpush1.msra.mxu0 0.0
    %7302 = vmatprep.subr.mxu0 0.0
    %7303 = vmatpush1.msra.mxu0 0.0
    %7304 = vmatprep.subr.mxu0 0.0
    %7305 = vmatpush1.msra.mxu0 0.0
    %7306 = vmatprep.subr.mxu0 0.0
    %7307 = vmatpush1.msra.mxu0 0.0
    %7308 = vmatprep.subr.mxu0 0.0
    %7309 = vmatpush1.msra.mxu0 0.0
    %7310 = vmatprep.subr.mxu0 0.0
    %7311 = vmatpush1.msra.mxu0 0.0
    %7312 = vmatprep.mubr.f32.mxu0 0.0
    %7313 = vmatmul.mubr.f32.gmra.mrb[0].mxu0 %v7071
    %v7314 = vpop.f32.mrb[0].mxu0
    %v7315 = vadd.f32 0.0, %v7314
    %v7316 = vpop.f32.mrb[0].mxu0
    %v7317 = vadd.f32 0.0, %v7316
    %7318 = vdwg.mxu0
    %7319 = vmatprep.subr.mxu0 %v7187
    %7320 = vmatpush1.msra.mxu0 %v7186
    %7321 = vmatprep.subr.mxu0 %v7191
    %7322 = vmatpush1.msra.mxu0 %v7190
    %7323 = vmatprep.subr.mxu0 %v7195
    %7324 = vmatpush1.msra.mxu0 %v7194
    %7325 = vmatprep.subr.mxu0 %v7199
    %7326 = vmatpush1.msra.mxu0 %v7198
    %7327 = vmatprep.subr.mxu0 %v7203
    %7328 = vmatpush1.msra.mxu0 %v7202
    %7329 = vmatprep.subr.mxu0 %v7207
    %7330 = vmatpush1.msra.mxu0 %v7206
    %7331 = vmatprep.subr.mxu0 %v7211
    %7332 = vmatpush1.msra.mxu0 %v7210
    %7333 = vmatprep.subr.mxu0 %v7215
    %7334 = vmatpush1.msra.mxu0 %v7214
    %7335 = vmatprep.subr.mxu0 %v7219
    %7336 = vmatpush1.msra.mxu0 %v7218
    %7337 = vmatprep.subr.mxu0 %v7223
    %7338 = vmatpush1.msra.mxu0 %v7222
    %7339 = vmatprep.subr.mxu0 %v7227
    %7340 = vmatpush1.msra.mxu0 %v7226
    %7341 = vmatprep.subr.mxu0 %v7231
    %7342 = vmatpush1.msra.mxu0 %v7230
    %7343 = vmatprep.subr.mxu0 %v7235
    %7344 = vmatpush1.msra.mxu0 %v7234
    %7345 = vmatprep.subr.mxu0 %v7239
    %7346 = vmatpush1.msra.mxu0 %v7238
    %7347 = vmatprep.subr.mxu0 %v7243
    %7348 = vmatpush1.msra.mxu0 %v7242
    %7349 = vmatprep.subr.mxu0 %v7247
    %7350 = vmatpush1.msra.mxu0 %v7246
    %7351 = vmatprep.subr.mxu0 0.0
    %7352 = vmatpush1.msra.mxu0 0.0
    %7353 = vmatprep.subr.mxu0 0.0
    %7354 = vmatpush1.msra.mxu0 0.0
    %7355 = vmatprep.subr.mxu0 0.0
    %7356 = vmatpush1.msra.mxu0 0.0
    %7357 = vmatprep.subr.mxu0 0.0
    %7358 = vmatpush1.msra.mxu0 0.0
    %7359 = vmatprep.subr.mxu0 0.0
    %7360 = vmatpush1.msra.mxu0 0.0
    %7361 = vmatprep.subr.mxu0 0.0
    %7362 = vmatpush1.msra.mxu0 0.0
    %7363 = vmatprep.subr.mxu0 0.0
    %7364 = vmatpush1.msra.mxu0 0.0
    %7365 = vmatprep.subr.mxu0 0.0
    %7366 = vmatpush1.msra.mxu0 0.0
    %7367 = vmatprep.subr.mxu0 0.0
    %7368 = vmatpush1.msra.mxu0 0.0
    %7369 = vmatprep.subr.mxu0 0.0
    %7370 = vmatpush1.msra.mxu0 0.0
    %7371 = vmatprep.subr.mxu0 0.0
    %7372 = vmatpush1.msra.mxu0 0.0
    %7373 = vmatprep.subr.mxu0 0.0
    %7374 = vmatpush1.msra.mxu0 0.0
    %7375 = vmatprep.subr.mxu0 0.0
    %7376 = vmatpush1.msra.mxu0 0.0
    %7377 = vmatprep.subr.mxu0 0.0
    %7378 = vmatpush1.msra.mxu0 0.0
    %7379 = vmatprep.subr.mxu0 0.0
    %7380 = vmatpush1.msra.mxu0 0.0
    %7381 = vmatprep.subr.mxu0 0.0
    %7382 = vmatpush1.msra.mxu0 0.0
    %7383 = vmatprep.mubr.f32.mxu0 0.0
    %7384 = vmatmul.mubr.f32.gmra.mrb[0].mxu0 %v7071
    %v7385 = vpop.f32.mrb[0].mxu0
    %v7386 = vadd.f32 0.0, %v7385
    %v7387 = vpop.f32.mrb[0].mxu0
    %v7388 = vadd.f32 0.0, %v7387
    %7389 = vdwg.mxu0
    %7390 = vmatprep.subr.mxu0 %v7121
    %7391 = vmatpush1.msra.mxu0 %v7120
    %7392 = vmatprep.subr.mxu0 %v7125
    %7393 = vmatpush1.msra.mxu0 %v7124
    %7394 = vmatprep.subr.mxu0 %v7129
    %7395 = vmatpush1.msra.mxu0 %v7128
    %7396 = vmatprep.subr.mxu0 %v7133
    %7397 = vmatpush1.msra.mxu0 %v7132
    %7398 = vmatprep.subr.mxu0 %v7137
    %7399 = vmatpush1.msra.mxu0 %v7136
    %7400 = vmatprep.subr.mxu0 %v7141
    %7401 = vmatpush1.msra.mxu0 %v7140
    %7402 = vmatprep.subr.mxu0 %v7145
    %7403 = vmatpush1.msra.mxu0 %v7144
    %7404 = vmatprep.subr.mxu0 %v7149
    %7405 = vmatpush1.msra.mxu0 %v7148
    %7406 = vmatprep.subr.mxu0 %v7153
    %7407 = vmatpush1.msra.mxu0 %v7152
    %7408 = vmatprep.subr.mxu0 %v7157
    %7409 = vmatpush1.msra.mxu0 %v7156
    %7410 = vmatprep.subr.mxu0 %v7161
    %7411 = vmatpush1.msra.mxu0 %v7160
    %7412 = vmatprep.subr.mxu0 %v7165
    %7413 = vmatpush1.msra.mxu0 %v7164
    %7414 = vmatprep.subr.mxu0 %v7169
    %7415 = vmatpush1.msra.mxu0 %v7168
    %7416 = vmatprep.subr.mxu0 %v7173
    %7417 = vmatpush1.msra.mxu0 %v7172
    %7418 = vmatprep.subr.mxu0 %v7177
    %7419 = vmatpush1.msra.mxu0 %v7176
    %7420 = vmatprep.subr.mxu0 %v7181
    %7421 = vmatpush1.msra.mxu0 %v7180
    %7422 = vmatprep.subr.mxu0 0.0
    %7423 = vmatpush1.msra.mxu0 0.0
    %7424 = vmatprep.subr.mxu0 0.0
    %7425 = vmatpush1.msra.mxu0 0.0
    %7426 = vmatprep.subr.mxu0 0.0
    %7427 = vmatpush1.msra.mxu0 0.0
    %7428 = vmatprep.subr.mxu0 0.0
    %7429 = vmatpush1.msra.mxu0 0.0
    %7430 = vmatprep.subr.mxu0 0.0
    %7431 = vmatpush1.msra.mxu0 0.0
    %7432 = vmatprep.subr.mxu0 0.0
    %7433 = vmatpush1.msra.mxu0 0.0
    %7434 = vmatprep.subr.mxu0 0.0
    %7435 = vmatpush1.msra.mxu0 0.0
    %7436 = vmatprep.subr.mxu0 0.0
    %7437 = vmatpush1.msra.mxu0 0.0
    %7438 = vmatprep.subr.mxu0 0.0
    %7439 = vmatpush1.msra.mxu0 0.0
    %7440 = vmatprep.subr.mxu0 0.0
    %7441 = vmatpush1.msra.mxu0 0.0
    %7442 = vmatprep.subr.mxu0 0.0
    %7443 = vmatpush1.msra.mxu0 0.0
    %7444 = vmatprep.subr.mxu0 0.0
    %7445 = vmatpush1.msra.mxu0 0.0
    %7446 = vmatprep.subr.mxu0 0.0
    %7447 = vmatpush1.msra.mxu0 0.0
    %7448 = vmatprep.subr.mxu0 0.0
    %7449 = vmatpush1.msra.mxu0 0.0
    %7450 = vmatprep.subr.mxu0 0.0
    %7451 = vmatpush1.msra.mxu0 0.0
    %7452 = vmatprep.subr.mxu0 0.0
    %7453 = vmatpush1.msra.mxu0 0.0
    %7454 = vmatprep.mubr.f32.mxu0 0.0
    %7455 = vmatmul.mubr.f32.gmra.mrb[0].mxu0 %v7119
    %v7456 = vpop.f32.mrb[0].mxu0
    %v7457 = vadd.f32 %v7315, %v7456
    %v7458 = vpop.f32.mrb[0].mxu0
    %v7459 = vadd.f32 %v7317, %v7458
    %7460 = vdwg.mxu0
    %7461 = vmatprep.subr.mxu0 %v7123
    %7462 = vmatpush1.msra.mxu0 %v7122
    %7463 = vmatprep.subr.mxu0 %v7127
    %7464 = vmatpush1.msra.mxu0 %v7126
    %7465 = vmatprep.subr.mxu0 %v7131
    %7466 = vmatpush1.msra.mxu0 %v7130
    %7467 = vmatprep.subr.mxu0 %v7135
    %7468 = vmatpush1.msra.mxu0 %v7134
    %7469 = vmatprep.subr.mxu0 %v7139
    %7470 = vmatpush1.msra.mxu0 %v7138
    %7471 = vmatprep.subr.mxu0 %v7143
    %7472 = vmatpush1.msra.mxu0 %v7142
    %7473 = vmatprep.subr.mxu0 %v7147
    %7474 = vmatpush1.msra.mxu0 %v7146
    %7475 = vmatprep.subr.mxu0 %v7151
    %7476 = vmatpush1.msra.mxu0 %v7150
    %7477 = vmatprep.subr.mxu0 %v7155
    %7478 = vmatpush1.msra.mxu0 %v7154
    %7479 = vmatprep.subr.mxu0 %v7159
    %7480 = vmatpush1.msra.mxu0 %v7158
    %7481 = vmatprep.subr.mxu0 %v7163
    %7482 = vmatpush1.msra.mxu0 %v7162
    %7483 = vmatprep.subr.mxu0 %v7167
    %7484 = vmatpush1.msra.mxu0 %v7166
    %7485 = vmatprep.subr.mxu0 %v7171
    %7486 = vmatpush1.msra.mxu0 %v7170
    %7487 = vmatprep.subr.mxu0 %v7175
    %7488 = vmatpush1.msra.mxu0 %v7174
    %7489 = vmatprep.subr.mxu0 %v7179
    %7490 = vmatpush1.msra.mxu0 %v7178
    %7491 = vmatprep.subr.mxu0 %v7183
    %7492 = vmatpush1.msra.mxu0 %v7182
    %7493 = vmatprep.subr.mxu0 0.0
    %7494 = vmatpush1.msra.mxu0 0.0
    %7495 = vmatprep.subr.mxu0 0.0
    %7496 = vmatpush1.msra.mxu0 0.0
    %7497 = vmatprep.subr.mxu0 0.0
    %7498 = vmatpush1.msra.mxu0 0.0
    %7499 = vmatprep.subr.mxu0 0.0
    %7500 = vmatpush1.msra.mxu0 0.0
    %7501 = vmatprep.subr.mxu0 0.0
    %7502 = vmatpush1.msra.mxu0 0.0
    %7503 = vmatprep.subr.mxu0 0.0
    %7504 = vmatpush1.msra.mxu0 0.0
    %7505 = vmatprep.subr.mxu0 0.0
    %7506 = vmatpush1.msra.mxu0 0.0
    %7507 = vmatprep.subr.mxu0 0.0
    %7508 = vmatpush1.msra.mxu0 0.0
    %7509 = vmatprep.subr.mxu0 0.0
    %7510 = vmatpush1.msra.mxu0 0.0
    %7511 = vmatprep.subr.mxu0 0.0
    %7512 = vmatpush1.msra.mxu0 0.0
    %7513 = vmatprep.subr.mxu0 0.0
    %7514 = vmatpush1.msra.mxu0 0.0
    %7515 = vmatprep.subr.mxu0 0.0
    %7516 = vmatpush1.msra.mxu0 0.0
    %7517 = vmatprep.subr.mxu0 0.0
    %7518 = vmatpush1.msra.mxu0 0.0
    %7519 = vmatprep.subr.mxu0 0.0
    %7520 = vmatpush1.msra.mxu0 0.0
    %7521 = vmatprep.subr.mxu0 0.0
    %7522 = vmatpush1.msra.mxu0 0.0
    %7523 = vmatprep.subr.mxu0 0.0
    %7524 = vmatpush1.msra.mxu0 0.0
    %7525 = vmatprep.mubr.f32.mxu0 0.0
    %7526 = vmatmul.mubr.f32.gmra.mrb[0].mxu0 %v7119
    %v7527 = vpop.f32.mrb[0].mxu0
    %v7528 = vadd.f32 %v7386, %v7527
    %v7529 = vpop.f32.mrb[0].mxu0
    %v7530 = vadd.f32 %v7388, %v7529
    %7531 = vdwg.mxu0
    %v7532 = vadd.f32 %v7457, %v6758
    %v7533 = vadd.f32 %v7459, %v6760
    %v7534 = vadd.f32 %v7528, %v6829
    %v7535 = vadd.f32 %v7530, %v6831
    %v7536 = vld [vmem:[%s4] sm:$0xff]
    %v7537 = vld [vmem:[%s4 + $0x8] sm:$0xff]
    %v7538 = vld [vmem:[%s4 + $0x10] sm:$0xff]
    %v7539 = vld [vmem:[%s4 + $0x18] sm:$0xff]
    %v7540 = vadd.f32 %v7532, %v7536
    %v7541 = vadd.f32 %v7533, %v7537
    %v7542 = vadd.f32 %v7534, %v7538
    %v7543 = vadd.f32 %v7535, %v7539
    %v7544 = vxor.u32 %v7540, 2147483648
    %v7545 = vmul.f32 %v7544, 1.442695
    %v7546 = vpow.pop %v7545
    %v7547 = vadd.f32 %v7546, 1.0
    %v7548 = vrcp.pop %v7547
    %v7549 = vmul.f32 1.0, %v7548
    %v7550 = vxor.u32 %v7541, 2147483648
    %v7551 = vmul.f32 %v7550, 1.442695
    %v7552 = vpow.pop %v7551
    %v7553 = vadd.f32 %v7552, 1.0
    %v7554 = vrcp.pop %v7553
    %v7555 = vmul.f32 1.0, %v7554
    %v7556 = vtanh.pop %v7542
    %v7557 = vxor.u32 %v7543, 2147483648
    %v7558 = vmul.f32 %v7557, 1.442695
    %v7559 = vpow.pop %v7558
    %v7560 = vadd.f32 %v7559, 1.0
    %v7561 = vrcp.pop %v7560
    %v7562 = vmul.f32 1.0, %v7561
    %v7563 = vmul.f32 %v7555, %v6622
    %v7564 = vmul.f32 %v7549, %v7556
    %v7565 = vadd.f32 %v7563, %v7564
    %v7566 = vtanh.pop %v7565
    %v7567 = vmul.f32 %v7562, %v7566
    %s7568 = scalar_lea.vmem [#allocation2], 56
    %7569 = vst [vmem:[%s7568] sm:$0xff] %v7567
    // Predicated region
    $region22: #{lstm_attention_forward.1} parent=1 // pred_check
      _
    $region23: #{lstm_attention_forward.1} parent=1 // pred_check_branch
      %7571 = sbr.rel (0) target = $region25
    $region24: #{lstm_attention_forward.1} parent=1 // pred_region
      %s7573 = ssub.s32 1024, 1024
      %7574 = vsyncadd [#allocation3], %s7573
      %s7575 = sshll.u32 [#allocation2], 4
      %s7576 = int_to_ptr.vmem [resolvable:$true] %s7575
      %7581 = dma.vmem_to_hbm [thread:$0]  %s7576, 1024, %s5, [#allocation3], 128, 128, 8
    $region25: #{lstm_attention_forward.1} parent=1 // pred_fallthru
      _
    // Predicated region
    $region26: #{lstm_attention_forward.1} parent=1 // pred_check
      _
    $region27: #{lstm_attention_forward.1} parent=1 // pred_check_branch
      %7583 = sbr.rel (0) target = $region29
    $region28: #{lstm_attention_forward.1} parent=1 // pred_region
      %7584 = dma.done [#allocation3], 1024
    $region29: #{lstm_attention_forward.1} parent=1 // pred_fallthru
      _
    %7585 = vsyncpa [#allocation3], 1

</llo_original>
